<compile_context>
chip_gen: v5e
topology: v5e:2x2
jax: 0.10.0
libtpu: 0.0.40
codegen_flags: <defaults>
</compile_context>

<pallas_src>
import functools

import jax
import jax.numpy as jnp
from jax.experimental import pallas as pl
from jax.experimental.pallas import tpu as pltpu


# ------------------------------ fused kernel ---------------------------------

def _fused_forward_kernel(
    # inputs
    x_ref, adj_ref,
    c0_wl, c0_bl, c0_wr, c0_br, c0_att, c0_bias,
    c1_wl, c1_bl, c1_wr, c1_br, c1_att, c1_bias,
    c2_wl, c2_bl, c2_wr, c2_br, c2_att, c2_bias,
    fc0_w, fc0_b, bn0_g, bn0_b,
    fc1_w, fc1_b, bn1_g, bn1_b,
    fc2_w, fc2_b,
    # outputs
    emb0_ref, emb1_ref, emb2_ref, out_ref,
    *, heads, out_c,
):
    adj = adj_ref[...]                                   # [N, N], adj[i,j]=1 iff j->i
    neg_mask = jnp.where(adj > 0, 0.0, -1e30)            # additive mask, built once

    def gatv2(x, wl, bl, wr, br, att_ref, bias, n_heads, concat, apply_elu):
        # x: [N, Fin] value; weights read from VMEM refs (resident for the whole call)
        xl = jnp.dot(x, wl[...], preferred_element_type=jnp.float32) + bl[...]
        xr = jnp.dot(x, wr[...], preferred_element_type=jnp.float32) + br[...]
        att = att_ref[...]                               # [n_heads, C]
        head_outs = []
        for h in range(n_heads):                         # unrolled at trace time
            lo = h * out_c
            xl_h = xl[:, lo:lo + out_c]                  # [N, C] (static lane slice)
            xr_h = xr[:, lo:lo + out_c]                  # [N, C]
            a_h = att[h:h + 1, :]                        # [1, C]
            z = xr_h[:, None, :] + xl_h[None, :, :]      # [N, N, C]
            z = jnp.where(z > 0, z, 0.2 * z)             # leaky_relu(0.2)
            # Lane reduce is negligible at C=8; switch to an MXU matmul
            # (z.reshape(N*N, C) @ a) before scaling C.
            s = jnp.sum(z * a_h[None, :, :], axis=-1)    # [N, N]
            s = s + neg_mask                             # mask non-edges (single pass)
            s = s - jnp.max(s, axis=1, keepdims=True)
            p = jnp.exp(s)                               # exactly 0 on non-edges
            inv = pl.reciprocal(jnp.sum(p, axis=1, keepdims=True), approx=True)
            alpha = p * inv
            head_outs.append(
                jnp.dot(alpha, xl_h, preferred_element_type=jnp.float32))
        if concat:
            out = jnp.concatenate(head_outs, axis=-1)    # lane-dense [N, H*C]
        else:
            out = head_outs[0]
            for o in head_outs[1:]:
                out = out + o
            out = out * (1.0 / n_heads)                  # mean over heads
        out = out + bias[...]
        if apply_elu:
            out = jnp.where(out > 0, out, jnp.exp(jnp.minimum(out, 0.0)) - 1.0)
        return out

    x = x_ref[...]
    h0 = gatv2(x, c0_wl, c0_bl, c0_wr, c0_br, c0_att, c0_bias, heads, True, True)
    emb0_ref[...] = h0
    h1 = gatv2(h0, c1_wl, c1_bl, c1_wr, c1_br, c1_att, c1_bias, heads, True, True)
    emb1_ref[...] = h1
    h2 = gatv2(h1, c2_wl, c2_bl, c2_wr, c2_br, c2_att, c2_bias, 1, False, False)
    emb2_ref[...] = h2

    def linear_bn_relu(h, w, b, g, beta):
        # Linear -> BatchNorm1d (training-mode batch stats, eps=1e-5) -> ReLU
        y = jnp.dot(h, w[...], preferred_element_type=jnp.float32) + b[...]
        mu = jnp.mean(y, axis=0, keepdims=True)
        var = jnp.mean((y - mu) ** 2, axis=0, keepdims=True)   # biased var
        yn = (y - mu) * jax.lax.rsqrt(var + 1e-5)
        return jnp.maximum(yn * g[...] + beta[...], 0.0)

    f1 = linear_bn_relu(h2, fc0_w, fc0_b, bn0_g, bn0_b)
    f2 = linear_bn_relu(f1, fc1_w, fc1_b, bn1_g, bn1_b)
    out_ref[...] = (jnp.dot(f2, fc2_w[...], preferred_element_type=jnp.float32)
                    + fc2_b[...])


# ------------------------------- model glue ----------------------------------

def build_adj(edge_index, n):
    src, dst = edge_index[0], edge_index[1]
    adj = jnp.zeros((n, n), jnp.float32)
    adj = adj.at[dst, src].set(1.0)                          # edge j -> i => adj[i,j]=1
    adj = jnp.maximum(adj, jnp.eye(n, dtype=jnp.float32))    # add self loops
    return adj


def gat_onehot_mlp_forward(params, x, edge_index, hidden_channels, heads):
    n = x.shape[0]
    x = x.reshape(n, -1).astype(jnp.float32)                 # flatten(start_dim=1)
    adj = build_adj(edge_index, n)

    c0, c1, c2 = params["convs"]
    fc, bn = params["fc"], params["bn"]

    def row(v):                                              # 1-D param -> [1, d]
        return v.reshape(1, -1)

    inputs = [
        x, adj,
        c0["w_l"], row(c0["b_l"]), c0["w_r"], row(c0["b_r"]), c0["att"], row(c0["bias"]),
        c1["w_l"], row(c1["b_l"]), c1["w_r"], row(c1["b_r"]), c1["att"], row(c1["bias"]),
        c2["w_l"], row(c2["b_l"]), c2["w_r"], row(c2["b_r"]), c2["att"], row(c2["bias"]),
        fc[0]["w"], row(fc[0]["b"]), row(bn[0]["gamma"]), row(bn[0]["beta"]),
        fc[1]["w"], row(fc[1]["b"]), row(bn[1]["gamma"]), row(bn[1]["beta"]),
        fc[2]["w"], row(fc[2]["b"]),
    ]

    hc = hidden_channels
    out_shapes = (
        jax.ShapeDtypeStruct((n, heads * hc), jnp.float32),  # emb0
        jax.ShapeDtypeStruct((n, heads * hc), jnp.float32),  # emb1
        jax.ShapeDtypeStruct((n, hc), jnp.float32),          # emb2
        jax.ShapeDtypeStruct((n, 1), jnp.float32),           # final linear output
    )

    def full_spec(shape):
        nd = len(shape)
        return pl.BlockSpec(shape, lambda i, nd=nd: (0,) * nd)

    in_specs = [full_spec(a.shape) for a in inputs]
    out_specs = tuple(full_spec(s.shape) for s in out_shapes)

    kernel = functools.partial(_fused_forward_kernel, heads=heads, out_c=hc)

    emb0, emb1, emb2, out = pl.pallas_call(
        kernel,
        out_shape=out_shapes,
        grid=(1,),
        in_specs=in_specs,
        out_specs=out_specs,
        compiler_params=pltpu.CompilerParams(dimension_semantics=("arbitrary",)),
    )(*inputs)

    return jnp.squeeze(out), [emb0, emb1, emb2]              # .squeeze() -> [N]


# ------------------------------ parameter init --------------------------------

def _glorot(key, shape):
    fan_in, fan_out = shape[0], shape[-1]
    lim = (6.0 / (fan_in + fan_out)) ** 0.5
    return jax.random.uniform(key, shape, jnp.float32, -lim, lim)


def init_params(key, in_channels, hidden_channels, heads, hidden1, hidden2):
    params = {"convs": [], "fc": [], "bn": []}
    conv_cfg = [
        (in_channels, hidden_channels, heads, True),
        (hidden_channels * heads, hidden_channels, heads, True),
        (hidden_channels * heads, hidden_channels, 1, False),
    ]
    for cin, cout, h, concat in conv_cfg:
        key, k1, k2, k3 = jax.random.split(key, 4)
        params["convs"].append(dict(
            w_l=_glorot(k1, (cin, h * cout)),
            b_l=jnp.zeros((h * cout,), jnp.float32),
            w_r=_glorot(k2, (cin, h * cout)),
            b_r=jnp.zeros((h * cout,), jnp.float32),
            att=_glorot(k3, (h, cout)),
            bias=jnp.zeros((h * cout if concat else cout,), jnp.float32),
        ))
    for cin, cout in [(hidden_channels, hidden1), (hidden1, hidden2), (hidden2, 1)]:
        key, k1 = jax.random.split(key)
        params["fc"].append(dict(w=_glorot(k1, (cin, cout)),     # xavier_uniform
                                 b=jnp.zeros((cout,), jnp.float32)))
    for d in (hidden1, hidden2):
        params["bn"].append(dict(gamma=jnp.ones((d,), jnp.float32),
                                 beta=jnp.zeros((d,), jnp.float32)))
    return params


# ----------------------------------- main -------------------------------------

if __name__ == "__main__":
    N, F1, F2 = 16, 4, 4                    # x: [N, 4, 4] -> flattened to [N, 16]
    hidden_channels, heads = 8, 4
    hidden1, hidden2 = 128, 64

    key = jax.random.PRNGKey(0)
    kx, kp = jax.random.split(key)
    x = jax.random.normal(kx, (N, F1, F2), jnp.float32)

    # deterministic small graph: bidirectional ring + a few chords
    ring = jnp.arange(N)
    src = jnp.concatenate([ring, (ring + 1) % N, jnp.array([0, 3, 5, 7])])
    dst = jnp.concatenate([(ring + 1) % N, ring, jnp.array([8, 12, 1, 14])])
    edge_index = jnp.stack([src, dst]).astype(jnp.int32)     # [2, 36]

    params = init_params(kp, F1 * F2, hidden_channels, heads, hidden1, hidden2)

    out, embeddings = gat_onehot_mlp_forward(params, x, edge_index,
                                             hidden_channels, heads)
    jax.block_until_ready(out)
    for e in embeddings:
        jax.block_until_ready(e)

    assert out.shape == (N,)
    assert embeddings[0].shape == (N, hidden_channels * heads)
    assert embeddings[1].shape == (N, hidden_channels * heads)
    assert embeddings[2].shape == (N, hidden_channels)
    assert bool(jnp.all(jnp.isfinite(out)))
    # TODO(synk): PyG's sparse edge-wise softmax is emulated with a dense masked
    # softmax (exact for unique edges + self loops); BatchNorm1d uses training-mode
    # batch statistics, matching the module's default train() behavior.
    print("KERNEL_OK")
</pallas_src>

<mosaic_0001>
module attributes {stable_mosaic.version = 11 : i64} {
  func.func @_fused_forward_kernel(%arg0: i32, %arg1: memref<16x16xf32, #tpu.memory_space<vmem>>, %arg2: memref<16x16xf32, #tpu.memory_space<vmem>>, %arg3: memref<16x32xf32, #tpu.memory_space<vmem>>, %arg4: memref<1x32xf32, #tpu.memory_space<vmem>>, %arg5: memref<16x32xf32, #tpu.memory_space<vmem>>, %arg6: memref<1x32xf32, #tpu.memory_space<vmem>>, %arg7: memref<4x8xf32, #tpu.memory_space<vmem>>, %arg8: memref<1x32xf32, #tpu.memory_space<vmem>>, %arg9: memref<32x32xf32, #tpu.memory_space<vmem>>, %arg10: memref<1x32xf32, #tpu.memory_space<vmem>>, %arg11: memref<32x32xf32, #tpu.memory_space<vmem>>, %arg12: memref<1x32xf32, #tpu.memory_space<vmem>>, %arg13: memref<4x8xf32, #tpu.memory_space<vmem>>, %arg14: memref<1x32xf32, #tpu.memory_space<vmem>>, %arg15: memref<32x8xf32, #tpu.memory_space<vmem>>, %arg16: memref<1x8xf32, #tpu.memory_space<vmem>>, %arg17: memref<32x8xf32, #tpu.memory_space<vmem>>, %arg18: memref<1x8xf32, #tpu.memory_space<vmem>>, %arg19: memref<1x8xf32, #tpu.memory_space<vmem>>, %arg20: memref<1x8xf32, #tpu.memory_space<vmem>>, %arg21: memref<8x128xf32, #tpu.memory_space<vmem>>, %arg22: memref<1x128xf32, #tpu.memory_space<vmem>>, %arg23: memref<1x128xf32, #tpu.memory_space<vmem>>, %arg24: memref<1x128xf32, #tpu.memory_space<vmem>>, %arg25: memref<128x64xf32, #tpu.memory_space<vmem>>, %arg26: memref<1x64xf32, #tpu.memory_space<vmem>>, %arg27: memref<1x64xf32, #tpu.memory_space<vmem>>, %arg28: memref<1x64xf32, #tpu.memory_space<vmem>>, %arg29: memref<64x1xf32, #tpu.memory_space<vmem>>, %arg30: memref<1x1xf32, #tpu.memory_space<vmem>>, %arg31: memref<16x32xf32, #tpu.memory_space<vmem>>, %arg32: memref<16x32xf32, #tpu.memory_space<vmem>>, %arg33: memref<16x8xf32, #tpu.memory_space<vmem>>, %arg34: memref<16x1xf32, #tpu.memory_space<vmem>>) attributes {dimension_semantics = [#tpu.dimension_semantics<arbitrary>], iteration_bounds = array<i64: 1>, scalar_prefetch = 0 : i64, scratch_operands = 0 : i64, tpu.core_type = #tpu.core_type<tc>, window_params = [{pipeline_mode = #tpu.pipeline_mode<synchronous>, transform_indices = @transform_0, window_bounds = array<i64: 16, 16>}, {pipeline_mode = #tpu.pipeline_mode<synchronous>, transform_indices = @transform_1, window_bounds = array<i64: 16, 16>}, {pipeline_mode = #tpu.pipeline_mode<synchronous>, transform_indices = @transform_2, window_bounds = array<i64: 16, 32>}, {pipeline_mode = #tpu.pipeline_mode<synchronous>, transform_indices = @transform_3, window_bounds = array<i64: 1, 32>}, {pipeline_mode = #tpu.pipeline_mode<synchronous>, transform_indices = @transform_4, window_bounds = array<i64: 16, 32>}, {pipeline_mode = #tpu.pipeline_mode<synchronous>, transform_indices = @transform_5, window_bounds = array<i64: 1, 32>}, {pipeline_mode = #tpu.pipeline_mode<synchronous>, transform_indices = @transform_6, window_bounds = array<i64: 4, 8>}, {pipeline_mode = #tpu.pipeline_mode<synchronous>, transform_indices = @transform_7, window_bounds = array<i64: 1, 32>}, {pipeline_mode = #tpu.pipeline_mode<synchronous>, transform_indices = @transform_8, window_bounds = array<i64: 32, 32>}, {pipeline_mode = #tpu.pipeline_mode<synchronous>, transform_indices = @transform_9, window_bounds = array<i64: 1, 32>}, {pipeline_mode = #tpu.pipeline_mode<synchronous>, transform_indices = @transform_10, window_bounds = array<i64: 32, 32>}, {pipeline_mode = #tpu.pipeline_mode<synchronous>, transform_indices = @transform_11, window_bounds = array<i64: 1, 32>}, {pipeline_mode = #tpu.pipeline_mode<synchronous>, transform_indices = @transform_12, window_bounds = array<i64: 4, 8>}, {pipeline_mode = #tpu.pipeline_mode<synchronous>, transform_indices = @transform_13, window_bounds = array<i64: 1, 32>}, {pipeline_mode = #tpu.pipeline_mode<synchronous>, transform_indices = @transform_14, window_bounds = array<i64: 32, 8>}, {pipeline_mode = #tpu.pipeline_mode<synchronous>, transform_indices = @transform_15, window_bounds = array<i64: 1, 8>}, {pipeline_mode = #tpu.pipeline_mode<synchronous>, transform_indices = @transform_16, window_bounds = array<i64: 32, 8>}, {pipeline_mode = #tpu.pipeline_mode<synchronous>, transform_indices = @transform_17, window_bounds = array<i64: 1, 8>}, {pipeline_mode = #tpu.pipeline_mode<synchronous>, transform_indices = @transform_18, window_bounds = array<i64: 1, 8>}, {pipeline_mode = #tpu.pipeline_mode<synchronous>, transform_indices = @transform_19, window_bounds = array<i64: 1, 8>}, {pipeline_mode = #tpu.pipeline_mode<synchronous>, transform_indices = @transform_20, window_bounds = array<i64: 8, 128>}, {pipeline_mode = #tpu.pipeline_mode<synchronous>, transform_indices = @transform_21, window_bounds = array<i64: 1, 128>}, {pipeline_mode = #tpu.pipeline_mode<synchronous>, transform_indices = @transform_22, window_bounds = array<i64: 1, 128>}, {pipeline_mode = #tpu.pipeline_mode<synchronous>, transform_indices = @transform_23, window_bounds = array<i64: 1, 128>}, {pipeline_mode = #tpu.pipeline_mode<synchronous>, transform_indices = @transform_24, window_bounds = array<i64: 128, 64>}, {pipeline_mode = #tpu.pipeline_mode<synchronous>, transform_indices = @transform_25, window_bounds = array<i64: 1, 64>}, {pipeline_mode = #tpu.pipeline_mode<synchronous>, transform_indices = @transform_26, window_bounds = array<i64: 1, 64>}, {pipeline_mode = #tpu.pipeline_mode<synchronous>, transform_indices = @transform_27, window_bounds = array<i64: 1, 64>}, {pipeline_mode = #tpu.pipeline_mode<synchronous>, transform_indices = @transform_28, window_bounds = array<i64: 64, 1>}, {pipeline_mode = #tpu.pipeline_mode<synchronous>, transform_indices = @transform_29, window_bounds = array<i64: 1, 1>}, {pipeline_mode = #tpu.pipeline_mode<synchronous>, transform_indices = @transform_30, window_bounds = array<i64: 16, 32>}, {pipeline_mode = #tpu.pipeline_mode<synchronous>, transform_indices = @transform_31, window_bounds = array<i64: 16, 32>}, {pipeline_mode = #tpu.pipeline_mode<synchronous>, transform_indices = @transform_32, window_bounds = array<i64: 16, 8>}, {pipeline_mode = #tpu.pipeline_mode<synchronous>, transform_indices = @transform_33, window_bounds = array<i64: 16, 1>}]} {
    %c0 = arith.constant 0 : index
    %c0_0 = arith.constant 0 : index
    %0 = vector.load %arg2[%c0, %c0_0] : memref<16x16xf32, #tpu.memory_space<vmem>>, vector<16x16xf32>
    %cst = arith.constant 0.000000e+00 : f32
    %1 = vector.broadcast %cst : f32 to vector<16x16xf32>
    %2 = arith.cmpf ogt, %0, %1 : vector<16x16xf32>
    %cst_1 = arith.constant 0.000000e+00 : f32
    %cst_2 = arith.constant -1.000000e+30 : f32
    %3 = vector.broadcast %cst_1 : f32 to vector<16x16xf32>
    %4 = vector.broadcast %cst_2 : f32 to vector<16x16xf32>
    %5 = arith.select %2, %3, %4 : vector<16x16xi1>, vector<16x16xf32>
    %c0_3 = arith.constant 0 : index
    %c0_4 = arith.constant 0 : index
    %6 = vector.load %arg1[%c0_3, %c0_4] : memref<16x16xf32, #tpu.memory_space<vmem>>, vector<16x16xf32>
    %c0_5 = arith.constant 0 : index
    %c0_6 = arith.constant 0 : index
    %7 = vector.load %arg3[%c0_5, %c0_6] : memref<16x32xf32, #tpu.memory_space<vmem>>, vector<16x32xf32>
    %cst_7 = arith.constant dense<0.000000e+00> : vector<16x32xf32>
    %8 = tpu.matmul %6, %7, %cst_7 {dimension_numbers = #tpu.dot_dimension_numbers<[1], [0], [0], [1], [0, 0, 1, 1], [], []>} : vector<16x16xf32>, vector<16x32xf32>, vector<16x32xf32> -> vector<16x32xf32>
    %c0_8 = arith.constant 0 : index
    %c0_9 = arith.constant 0 : index
    %9 = vector.load %arg4[%c0_8, %c0_9] : memref<1x32xf32, #tpu.memory_space<vmem>>, vector<1x32xf32>
    %10 = vector.broadcast %9 : vector<1x32xf32> to vector<16x32xf32>
    %11 = arith.addf %8, %10 : vector<16x32xf32>
    %c0_10 = arith.constant 0 : index
    %c0_11 = arith.constant 0 : index
    %12 = vector.load %arg5[%c0_10, %c0_11] : memref<16x32xf32, #tpu.memory_space<vmem>>, vector<16x32xf32>
    %cst_12 = arith.constant dense<0.000000e+00> : vector<16x32xf32>
    %13 = tpu.matmul %6, %12, %cst_12 {dimension_numbers = #tpu.dot_dimension_numbers<[1], [0], [0], [1], [0, 0, 1, 1], [], []>} : vector<16x16xf32>, vector<16x32xf32>, vector<16x32xf32> -> vector<16x32xf32>
    %c0_13 = arith.constant 0 : index
    %c0_14 = arith.constant 0 : index
    %14 = vector.load %arg6[%c0_13, %c0_14] : memref<1x32xf32, #tpu.memory_space<vmem>>, vector<1x32xf32>
    %15 = vector.broadcast %14 : vector<1x32xf32> to vector<16x32xf32>
    %16 = arith.addf %13, %15 : vector<16x32xf32>
    %c0_15 = arith.constant 0 : index
    %c0_16 = arith.constant 0 : index
    %17 = vector.load %arg7[%c0_15, %c0_16] : memref<4x8xf32, #tpu.memory_space<vmem>>, vector<4x8xf32>
    %18 = vector.extract_strided_slice %11 {offsets = [0, 0], sizes = [16, 8], strides = [1, 1]} : vector<16x32xf32> to vector<16x8xf32>
    %19 = vector.extract_strided_slice %16 {offsets = [0, 0], sizes = [16, 8], strides = [1, 1]} : vector<16x32xf32> to vector<16x8xf32>
    %20 = vector.extract_strided_slice %17 {offsets = [0, 0], sizes = [1, 8], strides = [1, 1]} : vector<4x8xf32> to vector<1x8xf32>
    %21 = vector.shape_cast %19 : vector<16x8xf32> to vector<16x1x8xf32>
    %22 = vector.shape_cast %18 : vector<16x8xf32> to vector<1x16x8xf32>
    %23 = vector.broadcast %21 : vector<16x1x8xf32> to vector<16x16x8xf32>
    %24 = vector.broadcast %22 : vector<1x16x8xf32> to vector<16x16x8xf32>
    %25 = arith.addf %23, %24 : vector<16x16x8xf32>
    %cst_17 = arith.constant 0.000000e+00 : f32
    %26 = vector.broadcast %cst_17 : f32 to vector<16x16x8xf32>
    %27 = arith.cmpf ogt, %25, %26 : vector<16x16x8xf32>
    %cst_18 = arith.constant 2.000000e-01 : f32
    %28 = vector.broadcast %cst_18 : f32 to vector<16x16x8xf32>
    %29 = arith.mulf %28, %25 : vector<16x16x8xf32>
    %30 = arith.select %27, %25, %29 : vector<16x16x8xi1>, vector<16x16x8xf32>
    %31 = vector.shape_cast %20 : vector<1x8xf32> to vector<1x1x8xf32>
    %32 = vector.broadcast %31 : vector<1x1x8xf32> to vector<16x16x8xf32>
    %33 = arith.mulf %30, %32 : vector<16x16x8xf32>
    %cst_19 = arith.constant dense<0.000000e+00> : vector<16x16xf32>
    %34 = vector.multi_reduction <add>, %33, %cst_19 [2] : vector<16x16x8xf32> to vector<16x16xf32>
    %35 = arith.addf %34, %5 : vector<16x16xf32>
    %cst_20 = arith.constant dense<0xFF800000> : vector<16xf32>
    %36 = vector.multi_reduction <maximumf>, %35, %cst_20 [1] : vector<16x16xf32> to vector<16xf32>
    %37 = vector.shape_cast %36 : vector<16xf32> to vector<16x1xf32>
    %38 = vector.broadcast %37 : vector<16x1xf32> to vector<16x16xf32>
    %39 = arith.subf %35, %38 : vector<16x16xf32>
    %40 = math.exp %39 : vector<16x16xf32>
    %cst_21 = arith.constant dense<0.000000e+00> : vector<16xf32>
    %41 = vector.multi_reduction <add>, %40, %cst_21 [1] : vector<16x16xf32> to vector<16xf32>
    %42 = vector.shape_cast %41 : vector<16xf32> to vector<16x1xf32>
    %43 = tpu.reciprocal %42 {approx = true} : vector<16x1xf32> -> vector<16x1xf32>
    %44 = vector.broadcast %43 : vector<16x1xf32> to vector<16x16xf32>
    %45 = arith.mulf %40, %44 : vector<16x16xf32>
    %cst_22 = arith.constant dense<0.000000e+00> : vector<16x8xf32>
    %46 = tpu.matmul %45, %18, %cst_22 {dimension_numbers = #tpu.dot_dimension_numbers<[1], [0], [0], [1], [0, 0, 1, 1], [], []>} : vector<16x16xf32>, vector<16x8xf32>, vector<16x8xf32> -> vector<16x8xf32>
    %47 = vector.extract_strided_slice %11 {offsets = [0, 8], sizes = [16, 8], strides = [1, 1]} : vector<16x32xf32> to vector<16x8xf32>
    %48 = vector.extract_strided_slice %16 {offsets = [0, 8], sizes = [16, 8], strides = [1, 1]} : vector<16x32xf32> to vector<16x8xf32>
    %49 = vector.extract_strided_slice %17 {offsets = [1, 0], sizes = [1, 8], strides = [1, 1]} : vector<4x8xf32> to vector<1x8xf32>
    %50 = vector.shape_cast %48 : vector<16x8xf32> to vector<16x1x8xf32>
    %51 = vector.shape_cast %47 : vector<16x8xf32> to vector<1x16x8xf32>
    %52 = vector.broadcast %50 : vector<16x1x8xf32> to vector<16x16x8xf32>
    %53 = vector.broadcast %51 : vector<1x16x8xf32> to vector<16x16x8xf32>
    %54 = arith.addf %52, %53 : vector<16x16x8xf32>
    %cst_23 = arith.constant 0.000000e+00 : f32
    %55 = vector.broadcast %cst_23 : f32 to vector<16x16x8xf32>
    %56 = arith.cmpf ogt, %54, %55 : vector<16x16x8xf32>
    %cst_24 = arith.constant 2.000000e-01 : f32
    %57 = vector.broadcast %cst_24 : f32 to vector<16x16x8xf32>
    %58 = arith.mulf %57, %54 : vector<16x16x8xf32>
    %59 = arith.select %56, %54, %58 : vector<16x16x8xi1>, vector<16x16x8xf32>
    %60 = vector.shape_cast %49 : vector<1x8xf32> to vector<1x1x8xf32>
    %61 = vector.broadcast %60 : vector<1x1x8xf32> to vector<16x16x8xf32>
    %62 = arith.mulf %59, %61 : vector<16x16x8xf32>
    %cst_25 = arith.constant dense<0.000000e+00> : vector<16x16xf32>
    %63 = vector.multi_reduction <add>, %62, %cst_25 [2] : vector<16x16x8xf32> to vector<16x16xf32>
    %64 = arith.addf %63, %5 : vector<16x16xf32>
    %cst_26 = arith.constant dense<0xFF800000> : vector<16xf32>
    %65 = vector.multi_reduction <maximumf>, %64, %cst_26 [1] : vector<16x16xf32> to vector<16xf32>
    %66 = vector.shape_cast %65 : vector<16xf32> to vector<16x1xf32>
    %67 = vector.broadcast %66 : vector<16x1xf32> to vector<16x16xf32>
    %68 = arith.subf %64, %67 : vector<16x16xf32>
    %69 = math.exp %68 : vector<16x16xf32>
    %cst_27 = arith.constant dense<0.000000e+00> : vector<16xf32>
    %70 = vector.multi_reduction <add>, %69, %cst_27 [1] : vector<16x16xf32> to vector<16xf32>
    %71 = vector.shape_cast %70 : vector<16xf32> to vector<16x1xf32>
    %72 = tpu.reciprocal %71 {approx = true} : vector<16x1xf32> -> vector<16x1xf32>
    %73 = vector.broadcast %72 : vector<16x1xf32> to vector<16x16xf32>
    %74 = arith.mulf %69, %73 : vector<16x16xf32>
    %cst_28 = arith.constant dense<0.000000e+00> : vector<16x8xf32>
    %75 = tpu.matmul %74, %47, %cst_28 {dimension_numbers = #tpu.dot_dimension_numbers<[1], [0], [0], [1], [0, 0, 1, 1], [], []>} : vector<16x16xf32>, vector<16x8xf32>, vector<16x8xf32> -> vector<16x8xf32>
    %76 = vector.extract_strided_slice %11 {offsets = [0, 16], sizes = [16, 8], strides = [1, 1]} : vector<16x32xf32> to vector<16x8xf32>
    %77 = vector.extract_strided_slice %16 {offsets = [0, 16], sizes = [16, 8], strides = [1, 1]} : vector<16x32xf32> to vector<16x8xf32>
    %78 = vector.extract_strided_slice %17 {offsets = [2, 0], sizes = [1, 8], strides = [1, 1]} : vector<4x8xf32> to vector<1x8xf32>
    %79 = vector.shape_cast %77 : vector<16x8xf32> to vector<16x1x8xf32>
    %80 = vector.shape_cast %76 : vector<16x8xf32> to vector<1x16x8xf32>
    %81 = vector.broadcast %79 : vector<16x1x8xf32> to vector<16x16x8xf32>
    %82 = vector.broadcast %80 : vector<1x16x8xf32> to vector<16x16x8xf32>
    %83 = arith.addf %81, %82 : vector<16x16x8xf32>
    %cst_29 = arith.constant 0.000000e+00 : f32
    %84 = vector.broadcast %cst_29 : f32 to vector<16x16x8xf32>
    %85 = arith.cmpf ogt, %83, %84 : vector<16x16x8xf32>
    %cst_30 = arith.constant 2.000000e-01 : f32
    %86 = vector.broadcast %cst_30 : f32 to vector<16x16x8xf32>
    %87 = arith.mulf %86, %83 : vector<16x16x8xf32>
    %88 = arith.select %85, %83, %87 : vector<16x16x8xi1>, vector<16x16x8xf32>
    %89 = vector.shape_cast %78 : vector<1x8xf32> to vector<1x1x8xf32>
    %90 = vector.broadcast %89 : vector<1x1x8xf32> to vector<16x16x8xf32>
    %91 = arith.mulf %88, %90 : vector<16x16x8xf32>
    %cst_31 = arith.constant dense<0.000000e+00> : vector<16x16xf32>
    %92 = vector.multi_reduction <add>, %91, %cst_31 [2] : vector<16x16x8xf32> to vector<16x16xf32>
    %93 = arith.addf %92, %5 : vector<16x16xf32>
    %cst_32 = arith.constant dense<0xFF800000> : vector<16xf32>
    %94 = vector.multi_reduction <maximumf>, %93, %cst_32 [1] : vector<16x16xf32> to vector<16xf32>
    %95 = vector.shape_cast %94 : vector<16xf32> to vector<16x1xf32>
    %96 = vector.broadcast %95 : vector<16x1xf32> to vector<16x16xf32>
    %97 = arith.subf %93, %96 : vector<16x16xf32>
    %98 = math.exp %97 : vector<16x16xf32>
    %cst_33 = arith.constant dense<0.000000e+00> : vector<16xf32>
    %99 = vector.multi_reduction <add>, %98, %cst_33 [1] : vector<16x16xf32> to vector<16xf32>
    %100 = vector.shape_cast %99 : vector<16xf32> to vector<16x1xf32>
    %101 = tpu.reciprocal %100 {approx = true} : vector<16x1xf32> -> vector<16x1xf32>
    %102 = vector.broadcast %101 : vector<16x1xf32> to vector<16x16xf32>
    %103 = arith.mulf %98, %102 : vector<16x16xf32>
    %cst_34 = arith.constant dense<0.000000e+00> : vector<16x8xf32>
    %104 = tpu.matmul %103, %76, %cst_34 {dimension_numbers = #tpu.dot_dimension_numbers<[1], [0], [0], [1], [0, 0, 1, 1], [], []>} : vector<16x16xf32>, vector<16x8xf32>, vector<16x8xf32> -> vector<16x8xf32>
    %105 = vector.extract_strided_slice %11 {offsets = [0, 24], sizes = [16, 8], strides = [1, 1]} : vector<16x32xf32> to vector<16x8xf32>
    %106 = vector.extract_strided_slice %16 {offsets = [0, 24], sizes = [16, 8], strides = [1, 1]} : vector<16x32xf32> to vector<16x8xf32>
    %107 = vector.extract_strided_slice %17 {offsets = [3, 0], sizes = [1, 8], strides = [1, 1]} : vector<4x8xf32> to vector<1x8xf32>
    %108 = vector.shape_cast %106 : vector<16x8xf32> to vector<16x1x8xf32>
    %109 = vector.shape_cast %105 : vector<16x8xf32> to vector<1x16x8xf32>
    %110 = vector.broadcast %108 : vector<16x1x8xf32> to vector<16x16x8xf32>
    %111 = vector.broadcast %109 : vector<1x16x8xf32> to vector<16x16x8xf32>
    %112 = arith.addf %110, %111 : vector<16x16x8xf32>
    %cst_35 = arith.constant 0.000000e+00 : f32
    %113 = vector.broadcast %cst_35 : f32 to vector<16x16x8xf32>
    %114 = arith.cmpf ogt, %112, %113 : vector<16x16x8xf32>
    %cst_36 = arith.constant 2.000000e-01 : f32
    %115 = vector.broadcast %cst_36 : f32 to vector<16x16x8xf32>
    %116 = arith.mulf %115, %112 : vector<16x16x8xf32>
    %117 = arith.select %114, %112, %116 : vector<16x16x8xi1>, vector<16x16x8xf32>
    %118 = vector.shape_cast %107 : vector<1x8xf32> to vector<1x1x8xf32>
    %119 = vector.broadcast %118 : vector<1x1x8xf32> to vector<16x16x8xf32>
    %120 = arith.mulf %117, %119 : vector<16x16x8xf32>
    %cst_37 = arith.constant dense<0.000000e+00> : vector<16x16xf32>
    %121 = vector.multi_reduction <add>, %120, %cst_37 [2] : vector<16x16x8xf32> to vector<16x16xf32>
    %122 = arith.addf %121, %5 : vector<16x16xf32>
    %cst_38 = arith.constant dense<0xFF800000> : vector<16xf32>
    %123 = vector.multi_reduction <maximumf>, %122, %cst_38 [1] : vector<16x16xf32> to vector<16xf32>
    %124 = vector.shape_cast %123 : vector<16xf32> to vector<16x1xf32>
    %125 = vector.broadcast %124 : vector<16x1xf32> to vector<16x16xf32>
    %126 = arith.subf %122, %125 : vector<16x16xf32>
    %127 = math.exp %126 : vector<16x16xf32>
    %cst_39 = arith.constant dense<0.000000e+00> : vector<16xf32>
    %128 = vector.multi_reduction <add>, %127, %cst_39 [1] : vector<16x16xf32> to vector<16xf32>
    %129 = vector.shape_cast %128 : vector<16xf32> to vector<16x1xf32>
    %130 = tpu.reciprocal %129 {approx = true} : vector<16x1xf32> -> vector<16x1xf32>
    %131 = vector.broadcast %130 : vector<16x1xf32> to vector<16x16xf32>
    %132 = arith.mulf %127, %131 : vector<16x16xf32>
    %cst_40 = arith.constant dense<0.000000e+00> : vector<16x8xf32>
    %133 = tpu.matmul %132, %105, %cst_40 {dimension_numbers = #tpu.dot_dimension_numbers<[1], [0], [0], [1], [0, 0, 1, 1], [], []>} : vector<16x16xf32>, vector<16x8xf32>, vector<16x8xf32> -> vector<16x8xf32>
    %134 = tpu.concatenate %46, %75, %104, %133 in 1 : vector<16x8xf32>, vector<16x8xf32>, vector<16x8xf32>, vector<16x8xf32> -> vector<16x32xf32>
    %c0_41 = arith.constant 0 : index
    %c0_42 = arith.constant 0 : index
    %135 = vector.load %arg8[%c0_41, %c0_42] : memref<1x32xf32, #tpu.memory_space<vmem>>, vector<1x32xf32>
    %136 = vector.broadcast %135 : vector<1x32xf32> to vector<16x32xf32>
    %137 = arith.addf %134, %136 : vector<16x32xf32>
    %cst_43 = arith.constant 0.000000e+00 : f32
    %138 = vector.broadcast %cst_43 : f32 to vector<16x32xf32>
    %139 = arith.cmpf ogt, %137, %138 : vector<16x32xf32>
    %cst_44 = arith.constant 0.000000e+00 : f32
    %140 = vector.broadcast %cst_44 : f32 to vector<16x32xf32>
    %141 = arith.minimumf %137, %140 : vector<16x32xf32>
    %142 = math.exp %141 : vector<16x32xf32>
    %cst_45 = arith.constant 1.000000e+00 : f32
    %143 = vector.broadcast %cst_45 : f32 to vector<16x32xf32>
    %144 = arith.subf %142, %143 : vector<16x32xf32>
    %145 = arith.select %139, %137, %144 : vector<16x32xi1>, vector<16x32xf32>
    %c0_46 = arith.constant 0 : index
    %c0_47 = arith.constant 0 : index
    %146 = vector.load %arg31[%c0_46, %c0_47] : memref<16x32xf32, #tpu.memory_space<vmem>>, vector<16x32xf32>
    tpu.vector_store %arg31[%c0_46, %c0_47], %145 {strides = array<i32>} : memref<16x32xf32, #tpu.memory_space<vmem>>, vector<16x32xf32>,
    %c0_48 = arith.constant 0 : index
    %c0_49 = arith.constant 0 : index
    %147 = vector.load %arg9[%c0_48, %c0_49] : memref<32x32xf32, #tpu.memory_space<vmem>>, vector<32x32xf32>
    %cst_50 = arith.constant dense<0.000000e+00> : vector<16x32xf32>
    %148 = tpu.matmul %145, %147, %cst_50 {dimension_numbers = #tpu.dot_dimension_numbers<[1], [0], [0], [1], [0, 0, 1, 1], [], []>} : vector<16x32xf32>, vector<32x32xf32>, vector<16x32xf32> -> vector<16x32xf32>
    %c0_51 = arith.constant 0 : index
    %c0_52 = arith.constant 0 : index
    %149 = vector.load %arg10[%c0_51, %c0_52] : memref<1x32xf32, #tpu.memory_space<vmem>>, vector<1x32xf32>
    %150 = vector.broadcast %149 : vector<1x32xf32> to vector<16x32xf32>
    %151 = arith.addf %148, %150 : vector<16x32xf32>
    %c0_53 = arith.constant 0 : index
    %c0_54 = arith.constant 0 : index
    %152 = vector.load %arg11[%c0_53, %c0_54] : memref<32x32xf32, #tpu.memory_space<vmem>>, vector<32x32xf32>
    %cst_55 = arith.constant dense<0.000000e+00> : vector<16x32xf32>
    %153 = tpu.matmul %145, %152, %cst_55 {dimension_numbers = #tpu.dot_dimension_numbers<[1], [0], [0], [1], [0, 0, 1, 1], [], []>} : vector<16x32xf32>, vector<32x32xf32>, vector<16x32xf32> -> vector<16x32xf32>
    %c0_56 = arith.constant 0 : index
    %c0_57 = arith.constant 0 : index
    %154 = vector.load %arg12[%c0_56, %c0_57] : memref<1x32xf32, #tpu.memory_space<vmem>>, vector<1x32xf32>
    %155 = vector.broadcast %154 : vector<1x32xf32> to vector<16x32xf32>
    %156 = arith.addf %153, %155 : vector<16x32xf32>
    %c0_58 = arith.constant 0 : index
    %c0_59 = arith.constant 0 : index
    %157 = vector.load %arg13[%c0_58, %c0_59] : memref<4x8xf32, #tpu.memory_space<vmem>>, vector<4x8xf32>
    %158 = vector.extract_strided_slice %151 {offsets = [0, 0], sizes = [16, 8], strides = [1, 1]} : vector<16x32xf32> to vector<16x8xf32>
    %159 = vector.extract_strided_slice %156 {offsets = [0, 0], sizes = [16, 8], strides = [1, 1]} : vector<16x32xf32> to vector<16x8xf32>
    %160 = vector.extract_strided_slice %157 {offsets = [0, 0], sizes = [1, 8], strides = [1, 1]} : vector<4x8xf32> to vector<1x8xf32>
    %161 = vector.shape_cast %159 : vector<16x8xf32> to vector<16x1x8xf32>
    %162 = vector.shape_cast %158 : vector<16x8xf32> to vector<1x16x8xf32>
    %163 = vector.broadcast %161 : vector<16x1x8xf32> to vector<16x16x8xf32>
    %164 = vector.broadcast %162 : vector<1x16x8xf32> to vector<16x16x8xf32>
    %165 = arith.addf %163, %164 : vector<16x16x8xf32>
    %cst_60 = arith.constant 0.000000e+00 : f32
    %166 = vector.broadcast %cst_60 : f32 to vector<16x16x8xf32>
    %167 = arith.cmpf ogt, %165, %166 : vector<16x16x8xf32>
    %cst_61 = arith.constant 2.000000e-01 : f32
    %168 = vector.broadcast %cst_61 : f32 to vector<16x16x8xf32>
    %169 = arith.mulf %168, %165 : vector<16x16x8xf32>
    %170 = arith.select %167, %165, %169 : vector<16x16x8xi1>, vector<16x16x8xf32>
    %171 = vector.shape_cast %160 : vector<1x8xf32> to vector<1x1x8xf32>
    %172 = vector.broadcast %171 : vector<1x1x8xf32> to vector<16x16x8xf32>
    %173 = arith.mulf %170, %172 : vector<16x16x8xf32>
    %cst_62 = arith.constant dense<0.000000e+00> : vector<16x16xf32>
    %174 = vector.multi_reduction <add>, %173, %cst_62 [2] : vector<16x16x8xf32> to vector<16x16xf32>
    %175 = arith.addf %174, %5 : vector<16x16xf32>
    %cst_63 = arith.constant dense<0xFF800000> : vector<16xf32>
    %176 = vector.multi_reduction <maximumf>, %175, %cst_63 [1] : vector<16x16xf32> to vector<16xf32>
    %177 = vector.shape_cast %176 : vector<16xf32> to vector<16x1xf32>
    %178 = vector.broadcast %177 : vector<16x1xf32> to vector<16x16xf32>
    %179 = arith.subf %175, %178 : vector<16x16xf32>
    %180 = math.exp %179 : vector<16x16xf32>
    %cst_64 = arith.constant dense<0.000000e+00> : vector<16xf32>
    %181 = vector.multi_reduction <add>, %180, %cst_64 [1] : vector<16x16xf32> to vector<16xf32>
    %182 = vector.shape_cast %181 : vector<16xf32> to vector<16x1xf32>
    %183 = tpu.reciprocal %182 {approx = true} : vector<16x1xf32> -> vector<16x1xf32>
    %184 = vector.broadcast %183 : vector<16x1xf32> to vector<16x16xf32>
    %185 = arith.mulf %180, %184 : vector<16x16xf32>
    %cst_65 = arith.constant dense<0.000000e+00> : vector<16x8xf32>
    %186 = tpu.matmul %185, %158, %cst_65 {dimension_numbers = #tpu.dot_dimension_numbers<[1], [0], [0], [1], [0, 0, 1, 1], [], []>} : vector<16x16xf32>, vector<16x8xf32>, vector<16x8xf32> -> vector<16x8xf32>
    %187 = vector.extract_strided_slice %151 {offsets = [0, 8], sizes = [16, 8], strides = [1, 1]} : vector<16x32xf32> to vector<16x8xf32>
    %188 = vector.extract_strided_slice %156 {offsets = [0, 8], sizes = [16, 8], strides = [1, 1]} : vector<16x32xf32> to vector<16x8xf32>
    %189 = vector.extract_strided_slice %157 {offsets = [1, 0], sizes = [1, 8], strides = [1, 1]} : vector<4x8xf32> to vector<1x8xf32>
    %190 = vector.shape_cast %188 : vector<16x8xf32> to vector<16x1x8xf32>
    %191 = vector.shape_cast %187 : vector<16x8xf32> to vector<1x16x8xf32>
    %192 = vector.broadcast %190 : vector<16x1x8xf32> to vector<16x16x8xf32>
    %193 = vector.broadcast %191 : vector<1x16x8xf32> to vector<16x16x8xf32>
    %194 = arith.addf %192, %193 : vector<16x16x8xf32>
    %cst_66 = arith.constant 0.000000e+00 : f32
    %195 = vector.broadcast %cst_66 : f32 to vector<16x16x8xf32>
    %196 = arith.cmpf ogt, %194, %195 : vector<16x16x8xf32>
    %cst_67 = arith.constant 2.000000e-01 : f32
    %197 = vector.broadcast %cst_67 : f32 to vector<16x16x8xf32>
    %198 = arith.mulf %197, %194 : vector<16x16x8xf32>
    %199 = arith.select %196, %194, %198 : vector<16x16x8xi1>, vector<16x16x8xf32>
    %200 = vector.shape_cast %189 : vector<1x8xf32> to vector<1x1x8xf32>
    %201 = vector.broadcast %200 : vector<1x1x8xf32> to vector<16x16x8xf32>
    %202 = arith.mulf %199, %201 : vector<16x16x8xf32>
    %cst_68 = arith.constant dense<0.000000e+00> : vector<16x16xf32>
    %203 = vector.multi_reduction <add>, %202, %cst_68 [2] : vector<16x16x8xf32> to vector<16x16xf32>
    %204 = arith.addf %203, %5 : vector<16x16xf32>
    %cst_69 = arith.constant dense<0xFF800000> : vector<16xf32>
    %205 = vector.multi_reduction <maximumf>, %204, %cst_69 [1] : vector<16x16xf32> to vector<16xf32>
    %206 = vector.shape_cast %205 : vector<16xf32> to vector<16x1xf32>
    %207 = vector.broadcast %206 : vector<16x1xf32> to vector<16x16xf32>
    %208 = arith.subf %204, %207 : vector<16x16xf32>
    %209 = math.exp %208 : vector<16x16xf32>
    %cst_70 = arith.constant dense<0.000000e+00> : vector<16xf32>
    %210 = vector.multi_reduction <add>, %209, %cst_70 [1] : vector<16x16xf32> to vector<16xf32>
    %211 = vector.shape_cast %210 : vector<16xf32> to vector<16x1xf32>
    %212 = tpu.reciprocal %211 {approx = true} : vector<16x1xf32> -> vector<16x1xf32>
    %213 = vector.broadcast %212 : vector<16x1xf32> to vector<16x16xf32>
    %214 = arith.mulf %209, %213 : vector<16x16xf32>
    %cst_71 = arith.constant dense<0.000000e+00> : vector<16x8xf32>
    %215 = tpu.matmul %214, %187, %cst_71 {dimension_numbers = #tpu.dot_dimension_numbers<[1], [0], [0], [1], [0, 0, 1, 1], [], []>} : vector<16x16xf32>, vector<16x8xf32>, vector<16x8xf32> -> vector<16x8xf32>
    %216 = vector.extract_strided_slice %151 {offsets = [0, 16], sizes = [16, 8], strides = [1, 1]} : vector<16x32xf32> to vector<16x8xf32>
    %217 = vector.extract_strided_slice %156 {offsets = [0, 16], sizes = [16, 8], strides = [1, 1]} : vector<16x32xf32> to vector<16x8xf32>
    %218 = vector.extract_strided_slice %157 {offsets = [2, 0], sizes = [1, 8], strides = [1, 1]} : vector<4x8xf32> to vector<1x8xf32>
    %219 = vector.shape_cast %217 : vector<16x8xf32> to vector<16x1x8xf32>
    %220 = vector.shape_cast %216 : vector<16x8xf32> to vector<1x16x8xf32>
    %221 = vector.broadcast %219 : vector<16x1x8xf32> to vector<16x16x8xf32>
    %222 = vector.broadcast %220 : vector<1x16x8xf32> to vector<16x16x8xf32>
    %223 = arith.addf %221, %222 : vector<16x16x8xf32>
    %cst_72 = arith.constant 0.000000e+00 : f32
    %224 = vector.broadcast %cst_72 : f32 to vector<16x16x8xf32>
    %225 = arith.cmpf ogt, %223, %224 : vector<16x16x8xf32>
    %cst_73 = arith.constant 2.000000e-01 : f32
    %226 = vector.broadcast %cst_73 : f32 to vector<16x16x8xf32>
    %227 = arith.mulf %226, %223 : vector<16x16x8xf32>
    %228 = arith.select %225, %223, %227 : vector<16x16x8xi1>, vector<16x16x8xf32>
    %229 = vector.shape_cast %218 : vector<1x8xf32> to vector<1x1x8xf32>
    %230 = vector.broadcast %229 : vector<1x1x8xf32> to vector<16x16x8xf32>
    %231 = arith.mulf %228, %230 : vector<16x16x8xf32>
    %cst_74 = arith.constant dense<0.000000e+00> : vector<16x16xf32>
    %232 = vector.multi_reduction <add>, %231, %cst_74 [2] : vector<16x16x8xf32> to vector<16x16xf32>
    %233 = arith.addf %232, %5 : vector<16x16xf32>
    %cst_75 = arith.constant dense<0xFF800000> : vector<16xf32>
    %234 = vector.multi_reduction <maximumf>, %233, %cst_75 [1] : vector<16x16xf32> to vector<16xf32>
    %235 = vector.shape_cast %234 : vector<16xf32> to vector<16x1xf32>
    %236 = vector.broadcast %235 : vector<16x1xf32> to vector<16x16xf32>
    %237 = arith.subf %233, %236 : vector<16x16xf32>
    %238 = math.exp %237 : vector<16x16xf32>
    %cst_76 = arith.constant dense<0.000000e+00> : vector<16xf32>
    %239 = vector.multi_reduction <add>, %238, %cst_76 [1] : vector<16x16xf32> to vector<16xf32>
    %240 = vector.shape_cast %239 : vector<16xf32> to vector<16x1xf32>
    %241 = tpu.reciprocal %240 {approx = true} : vector<16x1xf32> -> vector<16x1xf32>
    %242 = vector.broadcast %241 : vector<16x1xf32> to vector<16x16xf32>
    %243 = arith.mulf %238, %242 : vector<16x16xf32>
    %cst_77 = arith.constant dense<0.000000e+00> : vector<16x8xf32>
    %244 = tpu.matmul %243, %216, %cst_77 {dimension_numbers = #tpu.dot_dimension_numbers<[1], [0], [0], [1], [0, 0, 1, 1], [], []>} : vector<16x16xf32>, vector<16x8xf32>, vector<16x8xf32> -> vector<16x8xf32>
    %245 = vector.extract_strided_slice %151 {offsets = [0, 24], sizes = [16, 8], strides = [1, 1]} : vector<16x32xf32> to vector<16x8xf32>
    %246 = vector.extract_strided_slice %156 {offsets = [0, 24], sizes = [16, 8], strides = [1, 1]} : vector<16x32xf32> to vector<16x8xf32>
    %247 = vector.extract_strided_slice %157 {offsets = [3, 0], sizes = [1, 8], strides = [1, 1]} : vector<4x8xf32> to vector<1x8xf32>
    %248 = vector.shape_cast %246 : vector<16x8xf32> to vector<16x1x8xf32>
    %249 = vector.shape_cast %245 : vector<16x8xf32> to vector<1x16x8xf32>
    %250 = vector.broadcast %248 : vector<16x1x8xf32> to vector<16x16x8xf32>
    %251 = vector.broadcast %249 : vector<1x16x8xf32> to vector<16x16x8xf32>
    %252 = arith.addf %250, %251 : vector<16x16x8xf32>
    %cst_78 = arith.constant 0.000000e+00 : f32
    %253 = vector.broadcast %cst_78 : f32 to vector<16x16x8xf32>
    %254 = arith.cmpf ogt, %252, %253 : vector<16x16x8xf32>
    %cst_79 = arith.constant 2.000000e-01 : f32
    %255 = vector.broadcast %cst_79 : f32 to vector<16x16x8xf32>
    %256 = arith.mulf %255, %252 : vector<16x16x8xf32>
    %257 = arith.select %254, %252, %256 : vector<16x16x8xi1>, vector<16x16x8xf32>
    %258 = vector.shape_cast %247 : vector<1x8xf32> to vector<1x1x8xf32>
    %259 = vector.broadcast %258 : vector<1x1x8xf32> to vector<16x16x8xf32>
    %260 = arith.mulf %257, %259 : vector<16x16x8xf32>
    %cst_80 = arith.constant dense<0.000000e+00> : vector<16x16xf32>
    %261 = vector.multi_reduction <add>, %260, %cst_80 [2] : vector<16x16x8xf32> to vector<16x16xf32>
    %262 = arith.addf %261, %5 : vector<16x16xf32>
    %cst_81 = arith.constant dense<0xFF800000> : vector<16xf32>
    %263 = vector.multi_reduction <maximumf>, %262, %cst_81 [1] : vector<16x16xf32> to vector<16xf32>
    %264 = vector.shape_cast %263 : vector<16xf32> to vector<16x1xf32>
    %265 = vector.broadcast %264 : vector<16x1xf32> to vector<16x16xf32>
    %266 = arith.subf %262, %265 : vector<16x16xf32>
    %267 = math.exp %266 : vector<16x16xf32>
    %cst_82 = arith.constant dense<0.000000e+00> : vector<16xf32>
    %268 = vector.multi_reduction <add>, %267, %cst_82 [1] : vector<16x16xf32> to vector<16xf32>
    %269 = vector.shape_cast %268 : vector<16xf32> to vector<16x1xf32>
    %270 = tpu.reciprocal %269 {approx = true} : vector<16x1xf32> -> vector<16x1xf32>
    %271 = vector.broadcast %270 : vector<16x1xf32> to vector<16x16xf32>
    %272 = arith.mulf %267, %271 : vector<16x16xf32>
    %cst_83 = arith.constant dense<0.000000e+00> : vector<16x8xf32>
    %273 = tpu.matmul %272, %245, %cst_83 {dimension_numbers = #tpu.dot_dimension_numbers<[1], [0], [0], [1], [0, 0, 1, 1], [], []>} : vector<16x16xf32>, vector<16x8xf32>, vector<16x8xf32> -> vector<16x8xf32>
    %274 = tpu.concatenate %186, %215, %244, %273 in 1 : vector<16x8xf32>, vector<16x8xf32>, vector<16x8xf32>, vector<16x8xf32> -> vector<16x32xf32>
    %c0_84 = arith.constant 0 : index
    %c0_85 = arith.constant 0 : index
    %275 = vector.load %arg14[%c0_84, %c0_85] : memref<1x32xf32, #tpu.memory_space<vmem>>, vector<1x32xf32>
    %276 = vector.broadcast %275 : vector<1x32xf32> to vector<16x32xf32>
    %277 = arith.addf %274, %276 : vector<16x32xf32>
    %cst_86 = arith.constant 0.000000e+00 : f32
    %278 = vector.broadcast %cst_86 : f32 to vector<16x32xf32>
    %279 = arith.cmpf ogt, %277, %278 : vector<16x32xf32>
    %cst_87 = arith.constant 0.000000e+00 : f32
    %280 = vector.broadcast %cst_87 : f32 to vector<16x32xf32>
    %281 = arith.minimumf %277, %280 : vector<16x32xf32>
    %282 = math.exp %281 : vector<16x32xf32>
    %cst_88 = arith.constant 1.000000e+00 : f32
    %283 = vector.broadcast %cst_88 : f32 to vector<16x32xf32>
    %284 = arith.subf %282, %283 : vector<16x32xf32>
    %285 = arith.select %279, %277, %284 : vector<16x32xi1>, vector<16x32xf32>
    %c0_89 = arith.constant 0 : index
    %c0_90 = arith.constant 0 : index
    %286 = vector.load %arg32[%c0_89, %c0_90] : memref<16x32xf32, #tpu.memory_space<vmem>>, vector<16x32xf32>
    tpu.vector_store %arg32[%c0_89, %c0_90], %285 {strides = array<i32>} : memref<16x32xf32, #tpu.memory_space<vmem>>, vector<16x32xf32>,
    %c0_91 = arith.constant 0 : index
    %c0_92 = arith.constant 0 : index
    %287 = vector.load %arg15[%c0_91, %c0_92] : memref<32x8xf32, #tpu.memory_space<vmem>>, vector<32x8xf32>
    %cst_93 = arith.constant dense<0.000000e+00> : vector<16x8xf32>
    %288 = tpu.matmul %285, %287, %cst_93 {dimension_numbers = #tpu.dot_dimension_numbers<[1], [0], [0], [1], [0, 0, 1, 1], [], []>} : vector<16x32xf32>, vector<32x8xf32>, vector<16x8xf32> -> vector<16x8xf32>
    %c0_94 = arith.constant 0 : index
    %c0_95 = arith.constant 0 : index
    %289 = vector.load %arg16[%c0_94, %c0_95] : memref<1x8xf32, #tpu.memory_space<vmem>>, vector<1x8xf32>
    %290 = vector.broadcast %289 : vector<1x8xf32> to vector<16x8xf32>
    %291 = arith.addf %288, %290 : vector<16x8xf32>
    %c0_96 = arith.constant 0 : index
    %c0_97 = arith.constant 0 : index
    %292 = vector.load %arg17[%c0_96, %c0_97] : memref<32x8xf32, #tpu.memory_space<vmem>>, vector<32x8xf32>
    %cst_98 = arith.constant dense<0.000000e+00> : vector<16x8xf32>
    %293 = tpu.matmul %285, %292, %cst_98 {dimension_numbers = #tpu.dot_dimension_numbers<[1], [0], [0], [1], [0, 0, 1, 1], [], []>} : vector<16x32xf32>, vector<32x8xf32>, vector<16x8xf32> -> vector<16x8xf32>
    %c0_99 = arith.constant 0 : index
    %c0_100 = arith.constant 0 : index
    %294 = vector.load %arg18[%c0_99, %c0_100] : memref<1x8xf32, #tpu.memory_space<vmem>>, vector<1x8xf32>
    %295 = vector.broadcast %294 : vector<1x8xf32> to vector<16x8xf32>
    %296 = arith.addf %293, %295 : vector<16x8xf32>
    %c0_101 = arith.constant 0 : index
    %c0_102 = arith.constant 0 : index
    %297 = vector.load %arg19[%c0_101, %c0_102] : memref<1x8xf32, #tpu.memory_space<vmem>>, vector<1x8xf32>
    %298 = vector.shape_cast %296 : vector<16x8xf32> to vector<16x1x8xf32>
    %299 = vector.shape_cast %291 : vector<16x8xf32> to vector<1x16x8xf32>
    %300 = vector.broadcast %298 : vector<16x1x8xf32> to vector<16x16x8xf32>
    %301 = vector.broadcast %299 : vector<1x16x8xf32> to vector<16x16x8xf32>
    %302 = arith.addf %300, %301 : vector<16x16x8xf32>
    %cst_103 = arith.constant 0.000000e+00 : f32
    %303 = vector.broadcast %cst_103 : f32 to vector<16x16x8xf32>
    %304 = arith.cmpf ogt, %302, %303 : vector<16x16x8xf32>
    %cst_104 = arith.constant 2.000000e-01 : f32
    %305 = vector.broadcast %cst_104 : f32 to vector<16x16x8xf32>
    %306 = arith.mulf %305, %302 : vector<16x16x8xf32>
    %307 = arith.select %304, %302, %306 : vector<16x16x8xi1>, vector<16x16x8xf32>
    %308 = vector.shape_cast %297 : vector<1x8xf32> to vector<1x1x8xf32>
    %309 = vector.broadcast %308 : vector<1x1x8xf32> to vector<16x16x8xf32>
    %310 = arith.mulf %307, %309 : vector<16x16x8xf32>
    %cst_105 = arith.constant dense<0.000000e+00> : vector<16x16xf32>
    %311 = vector.multi_reduction <add>, %310, %cst_105 [2] : vector<16x16x8xf32> to vector<16x16xf32>
    %312 = arith.addf %311, %5 : vector<16x16xf32>
    %cst_106 = arith.constant dense<0xFF800000> : vector<16xf32>
    %313 = vector.multi_reduction <maximumf>, %312, %cst_106 [1] : vector<16x16xf32> to vector<16xf32>
    %314 = vector.shape_cast %313 : vector<16xf32> to vector<16x1xf32>
    %315 = vector.broadcast %314 : vector<16x1xf32> to vector<16x16xf32>
    %316 = arith.subf %312, %315 : vector<16x16xf32>
    %317 = math.exp %316 : vector<16x16xf32>
    %cst_107 = arith.constant dense<0.000000e+00> : vector<16xf32>
    %318 = vector.multi_reduction <add>, %317, %cst_107 [1] : vector<16x16xf32> to vector<16xf32>
    %319 = vector.shape_cast %318 : vector<16xf32> to vector<16x1xf32>
    %320 = tpu.reciprocal %319 {approx = true} : vector<16x1xf32> -> vector<16x1xf32>
    %321 = vector.broadcast %320 : vector<16x1xf32> to vector<16x16xf32>
    %322 = arith.mulf %317, %321 : vector<16x16xf32>
    %cst_108 = arith.constant dense<0.000000e+00> : vector<16x8xf32>
    %323 = tpu.matmul %322, %291, %cst_108 {dimension_numbers = #tpu.dot_dimension_numbers<[1], [0], [0], [1], [0, 0, 1, 1], [], []>} : vector<16x16xf32>, vector<16x8xf32>, vector<16x8xf32> -> vector<16x8xf32>
    %cst_109 = arith.constant 1.000000e+00 : f32
    %324 = vector.broadcast %cst_109 : f32 to vector<16x8xf32>
    %325 = arith.mulf %323, %324 : vector<16x8xf32>
    %c0_110 = arith.constant 0 : index
    %c0_111 = arith.constant 0 : index
    %326 = vector.load %arg20[%c0_110, %c0_111] : memref<1x8xf32, #tpu.memory_space<vmem>>, vector<1x8xf32>
    %327 = vector.broadcast %326 : vector<1x8xf32> to vector<16x8xf32>
    %328 = arith.addf %325, %327 : vector<16x8xf32>
    %c0_112 = arith.constant 0 : index
    %c0_113 = arith.constant 0 : index
    %329 = vector.load %arg33[%c0_112, %c0_113] : memref<16x8xf32, #tpu.memory_space<vmem>>, vector<16x8xf32>
    tpu.vector_store %arg33[%c0_112, %c0_113], %328 {strides = array<i32>} : memref<16x8xf32, #tpu.memory_space<vmem>>, vector<16x8xf32>,
    %c0_114 = arith.constant 0 : index
    %c0_115 = arith.constant 0 : index
    %330 = vector.load %arg21[%c0_114, %c0_115] : memref<8x128xf32, #tpu.memory_space<vmem>>, vector<8x128xf32>
    %cst_116 = arith.constant dense<0.000000e+00> : vector<16x128xf32>
    %331 = tpu.matmul %328, %330, %cst_116 {dimension_numbers = #tpu.dot_dimension_numbers<[1], [0], [0], [1], [0, 0, 1, 1], [], []>} : vector<16x8xf32>, vector<8x128xf32>, vector<16x128xf32> -> vector<16x128xf32>
    %c0_117 = arith.constant 0 : index
    %c0_118 = arith.constant 0 : index
    %332 = vector.load %arg22[%c0_117, %c0_118] : memref<1x128xf32, #tpu.memory_space<vmem>>, vector<1x128xf32>
    %333 = vector.broadcast %332 : vector<1x128xf32> to vector<16x128xf32>
    %334 = arith.addf %331, %333 : vector<16x128xf32>
    %cst_119 = arith.constant dense<0.000000e+00> : vector<128xf32>
    %335 = vector.multi_reduction <add>, %334, %cst_119 [0] : vector<16x128xf32> to vector<128xf32>
    %336 = vector.shape_cast %335 : vector<128xf32> to vector<1x128xf32>
    %cst_120 = arith.constant 1.600000e+01 : f32
    %337 = vector.broadcast %cst_120 : f32 to vector<1x128xf32>
    %338 = arith.divf %336, %337 : vector<1x128xf32>
    %339 = vector.broadcast %338 : vector<1x128xf32> to vector<16x128xf32>
    %340 = arith.subf %334, %339 : vector<16x128xf32>
    %341 = arith.mulf %340, %340 : vector<16x128xf32>
    %cst_121 = arith.constant dense<0.000000e+00> : vector<128xf32>
    %342 = vector.multi_reduction <add>, %341, %cst_121 [0] : vector<16x128xf32> to vector<128xf32>
    %343 = vector.shape_cast %342 : vector<128xf32> to vector<1x128xf32>
    %cst_122 = arith.constant 1.600000e+01 : f32
    %344 = vector.broadcast %cst_122 : f32 to vector<1x128xf32>
    %345 = arith.divf %343, %344 : vector<1x128xf32>
    %346 = vector.broadcast %338 : vector<1x128xf32> to vector<16x128xf32>
    %347 = arith.subf %334, %346 : vector<16x128xf32>
    %cst_123 = arith.constant 9.99999974E-6 : f32
    %348 = vector.broadcast %cst_123 : f32 to vector<1x128xf32>
    %349 = arith.addf %345, %348 : vector<1x128xf32>
    %350 = math.rsqrt %349 : vector<1x128xf32>
    %351 = vector.broadcast %350 : vector<1x128xf32> to vector<16x128xf32>
    %352 = arith.mulf %347, %351 : vector<16x128xf32>
    %c0_124 = arith.constant 0 : index
    %c0_125 = arith.constant 0 : index
    %353 = vector.load %arg23[%c0_124, %c0_125] : memref<1x128xf32, #tpu.memory_space<vmem>>, vector<1x128xf32>
    %354 = vector.broadcast %353 : vector<1x128xf32> to vector<16x128xf32>
    %355 = arith.mulf %352, %354 : vector<16x128xf32>
    %c0_126 = arith.constant 0 : index
    %c0_127 = arith.constant 0 : index
    %356 = vector.load %arg24[%c0_126, %c0_127] : memref<1x128xf32, #tpu.memory_space<vmem>>, vector<1x128xf32>
    %357 = vector.broadcast %356 : vector<1x128xf32> to vector<16x128xf32>
    %358 = arith.addf %355, %357 : vector<16x128xf32>
    %cst_128 = arith.constant 0.000000e+00 : f32
    %359 = vector.broadcast %cst_128 : f32 to vector<16x128xf32>
    %360 = arith.maximumf %358, %359 : vector<16x128xf32>
    %c0_129 = arith.constant 0 : index
    %c0_130 = arith.constant 0 : index
    %361 = vector.load %arg25[%c0_129, %c0_130] : memref<128x64xf32, #tpu.memory_space<vmem>>, vector<128x64xf32>
    %cst_131 = arith.constant dense<0.000000e+00> : vector<16x64xf32>
    %362 = tpu.matmul %360, %361, %cst_131 {dimension_numbers = #tpu.dot_dimension_numbers<[1], [0], [0], [1], [0, 0, 1, 1], [], []>} : vector<16x128xf32>, vector<128x64xf32>, vector<16x64xf32> -> vector<16x64xf32>
    %c0_132 = arith.constant 0 : index
    %c0_133 = arith.constant 0 : index
    %363 = vector.load %arg26[%c0_132, %c0_133] : memref<1x64xf32, #tpu.memory_space<vmem>>, vector<1x64xf32>
    %364 = vector.broadcast %363 : vector<1x64xf32> to vector<16x64xf32>
    %365 = arith.addf %362, %364 : vector<16x64xf32>
    %cst_134 = arith.constant dense<0.000000e+00> : vector<64xf32>
    %366 = vector.multi_reduction <add>, %365, %cst_134 [0] : vector<16x64xf32> to vector<64xf32>
    %367 = vector.shape_cast %366 : vector<64xf32> to vector<1x64xf32>
    %cst_135 = arith.constant 1.600000e+01 : f32
    %368 = vector.broadcast %cst_135 : f32 to vector<1x64xf32>
    %369 = arith.divf %367, %368 : vector<1x64xf32>
    %370 = vector.broadcast %369 : vector<1x64xf32> to vector<16x64xf32>
    %371 = arith.subf %365, %370 : vector<16x64xf32>
    %372 = arith.mulf %371, %371 : vector<16x64xf32>
    %cst_136 = arith.constant dense<0.000000e+00> : vector<64xf32>
    %373 = vector.multi_reduction <add>, %372, %cst_136 [0] : vector<16x64xf32> to vector<64xf32>
    %374 = vector.shape_cast %373 : vector<64xf32> to vector<1x64xf32>
    %cst_137 = arith.constant 1.600000e+01 : f32
    %375 = vector.broadcast %cst_137 : f32 to vector<1x64xf32>
    %376 = arith.divf %374, %375 : vector<1x64xf32>
    %377 = vector.broadcast %369 : vector<1x64xf32> to vector<16x64xf32>
    %378 = arith.subf %365, %377 : vector<16x64xf32>
    %cst_138 = arith.constant 9.99999974E-6 : f32
    %379 = vector.broadcast %cst_138 : f32 to vector<1x64xf32>
    %380 = arith.addf %376, %379 : vector<1x64xf32>
    %381 = math.rsqrt %380 : vector<1x64xf32>
    %382 = vector.broadcast %381 : vector<1x64xf32> to vector<16x64xf32>
    %383 = arith.mulf %378, %382 : vector<16x64xf32>
    %c0_139 = arith.constant 0 : index
    %c0_140 = arith.constant 0 : index
    %384 = vector.load %arg27[%c0_139, %c0_140] : memref<1x64xf32, #tpu.memory_space<vmem>>, vector<1x64xf32>
    %385 = vector.broadcast %384 : vector<1x64xf32> to vector<16x64xf32>
    %386 = arith.mulf %383, %385 : vector<16x64xf32>
    %c0_141 = arith.constant 0 : index
    %c0_142 = arith.constant 0 : index
    %387 = vector.load %arg28[%c0_141, %c0_142] : memref<1x64xf32, #tpu.memory_space<vmem>>, vector<1x64xf32>
    %388 = vector.broadcast %387 : vector<1x64xf32> to vector<16x64xf32>
    %389 = arith.addf %386, %388 : vector<16x64xf32>
    %cst_143 = arith.constant 0.000000e+00 : f32
    %390 = vector.broadcast %cst_143 : f32 to vector<16x64xf32>
    %391 = arith.maximumf %389, %390 : vector<16x64xf32>
    %c0_144 = arith.constant 0 : index
    %c0_145 = arith.constant 0 : index
    %392 = vector.load %arg29[%c0_144, %c0_145] : memref<64x1xf32, #tpu.memory_space<vmem>>, vector<64x1xf32>
    %cst_146 = arith.constant dense<0.000000e+00> : vector<16x1xf32>
    %393 = tpu.matmul %391, %392, %cst_146 {dimension_numbers = #tpu.dot_dimension_numbers<[1], [0], [0], [1], [0, 0, 1, 1], [], []>} : vector<16x64xf32>, vector<64x1xf32>, vector<16x1xf32> -> vector<16x1xf32>
    %c0_147 = arith.constant 0 : index
    %c0_148 = arith.constant 0 : index
    %394 = vector.load %arg30[%c0_147, %c0_148] : memref<1x1xf32, #tpu.memory_space<vmem>>, vector<1x1xf32>
    %395 = vector.broadcast %394 : vector<1x1xf32> to vector<16x1xf32>
    %396 = arith.addf %393, %395 : vector<16x1xf32>
    %c0_149 = arith.constant 0 : index
    %c0_150 = arith.constant 0 : index
    %397 = vector.load %arg34[%c0_149, %c0_150] : memref<16x1xf32, #tpu.memory_space<vmem>>, vector<16x1xf32>
    tpu.vector_store %arg34[%c0_149, %c0_150], %396 {strides = array<i32>} : memref<16x1xf32, #tpu.memory_space<vmem>>, vector<16x1xf32>,
    return
  }
  func.func @transform_0(%arg0: i32) -> (i32, i32) {
    %c0_i32 = arith.constant 0 : i32
    %c0_i32_0 = arith.constant 0 : i32
    %c0_i32_1 = arith.constant 0 : i32
    return %c0_i32, %c0_i32_0 : i32, i32
  }
  func.func @transform_1(%arg0: i32) -> (i32, i32) {
    %c0_i32 = arith.constant 0 : i32
    %c0_i32_0 = arith.constant 0 : i32
    %c0_i32_1 = arith.constant 0 : i32
    return %c0_i32, %c0_i32_0 : i32, i32
  }
  func.func @transform_2(%arg0: i32) -> (i32, i32) {
    %c0_i32 = arith.constant 0 : i32
    %c0_i32_0 = arith.constant 0 : i32
    %c0_i32_1 = arith.constant 0 : i32
    return %c0_i32, %c0_i32_0 : i32, i32
  }
  func.func @transform_3(%arg0: i32) -> (i32, i32) {
    %c0_i32 = arith.constant 0 : i32
    %c0_i32_0 = arith.constant 0 : i32
    %c0_i32_1 = arith.constant 0 : i32
    return %c0_i32, %c0_i32_0 : i32, i32
  }
  func.func @transform_4(%arg0: i32) -> (i32, i32) {
    %c0_i32 = arith.constant 0 : i32
    %c0_i32_0 = arith.constant 0 : i32
    %c0_i32_1 = arith.constant 0 : i32
    return %c0_i32, %c0_i32_0 : i32, i32
  }
  func.func @transform_5(%arg0: i32) -> (i32, i32) {
    %c0_i32 = arith.constant 0 : i32
    %c0_i32_0 = arith.constant 0 : i32
    %c0_i32_1 = arith.constant 0 : i32
    return %c0_i32, %c0_i32_0 : i32, i32
  }
  func.func @transform_6(%arg0: i32) -> (i32, i32) {
    %c0_i32 = arith.constant 0 : i32
    %c0_i32_0 = arith.constant 0 : i32
    %c0_i32_1 = arith.constant 0 : i32
    return %c0_i32, %c0_i32_0 : i32, i32
  }
  func.func @transform_7(%arg0: i32) -> (i32, i32) {
    %c0_i32 = arith.constant 0 : i32
    %c0_i32_0 = arith.constant 0 : i32
    %c0_i32_1 = arith.constant 0 : i32
    return %c0_i32, %c0_i32_0 : i32, i32
  }
  func.func @transform_8(%arg0: i32) -> (i32, i32) {
    %c0_i32 = arith.constant 0 : i32
    %c0_i32_0 = arith.constant 0 : i32
    %c0_i32_1 = arith.constant 0 : i32
    return %c0_i32, %c0_i32_0 : i32, i32
  }
  func.func @transform_9(%arg0: i32) -> (i32, i32) {
    %c0_i32 = arith.constant 0 : i32
    %c0_i32_0 = arith.constant 0 : i32
    %c0_i32_1 = arith.constant 0 : i32
    return %c0_i32, %c0_i32_0 : i32, i32
  }
  func.func @transform_10(%arg0: i32) -> (i32, i32) {
    %c0_i32 = arith.constant 0 : i32
    %c0_i32_0 = arith.constant 0 : i32
    %c0_i32_1 = arith.constant 0 : i32
    return %c0_i32, %c0_i32_0 : i32, i32
  }
  func.func @transform_11(%arg0: i32) -> (i32, i32) {
    %c0_i32 = arith.constant 0 : i32
    %c0_i32_0 = arith.constant 0 : i32
    %c0_i32_1 = arith.constant 0 : i32
    return %c0_i32, %c0_i32_0 : i32, i32
  }
  func.func @transform_12(%arg0: i32) -> (i32, i32) {
    %c0_i32 = arith.constant 0 : i32
    %c0_i32_0 = arith.constant 0 : i32
    %c0_i32_1 = arith.constant 0 : i32
    return %c0_i32, %c0_i32_0 : i32, i32
  }
  func.func @transform_13(%arg0: i32) -> (i32, i32) {
    %c0_i32 = arith.constant 0 : i32
    %c0_i32_0 = arith.constant 0 : i32
    %c0_i32_1 = arith.constant 0 : i32
    return %c0_i32, %c0_i32_0 : i32, i32
  }
  func.func @transform_14(%arg0: i32) -> (i32, i32) {
    %c0_i32 = arith.constant 0 : i32
    %c0_i32_0 = arith.constant 0 : i32
    %c0_i32_1 = arith.constant 0 : i32
    return %c0_i32, %c0_i32_0 : i32, i32
  }
  func.func @transform_15(%arg0: i32) -> (i32, i32) {
    %c0_i32 = arith.constant 0 : i32
    %c0_i32_0 = arith.constant 0 : i32
    %c0_i32_1 = arith.constant 0 : i32
    return %c0_i32, %c0_i32_0 : i32, i32
  }
  func.func @transform_16(%arg0: i32) -> (i32, i32) {
    %c0_i32 = arith.constant 0 : i32
    %c0_i32_0 = arith.constant 0 : i32
    %c0_i32_1 = arith.constant 0 : i32
    return %c0_i32, %c0_i32_0 : i32, i32
  }
  func.func @transform_17(%arg0: i32) -> (i32, i32) {
    %c0_i32 = arith.constant 0 : i32
    %c0_i32_0 = arith.constant 0 : i32
    %c0_i32_1 = arith.constant 0 : i32
    return %c0_i32, %c0_i32_0 : i32, i32
  }
  func.func @transform_18(%arg0: i32) -> (i32, i32) {
    %c0_i32 = arith.constant 0 : i32
    %c0_i32_0 = arith.constant 0 : i32
    %c0_i32_1 = arith.constant 0 : i32
    return %c0_i32, %c0_i32_0 : i32, i32
  }
  func.func @transform_19(%arg0: i32) -> (i32, i32) {
    %c0_i32 = arith.constant 0 : i32
    %c0_i32_0 = arith.constant 0 : i32
    %c0_i32_1 = arith.constant 0 : i32
    return %c0_i32, %c0_i32_0 : i32, i32
  }
  func.func @transform_20(%arg0: i32) -> (i32, i32) {
    %c0_i32 = arith.constant 0 : i32
    %c0_i32_0 = arith.constant 0 : i32
    %c0_i32_1 = arith.constant 0 : i32
    return %c0_i32, %c0_i32_0 : i32, i32
  }
  func.func @transform_21(%arg0: i32) -> (i32, i32) {
    %c0_i32 = arith.constant 0 : i32
    %c0_i32_0 = arith.constant 0 : i32
    %c0_i32_1 = arith.constant 0 : i32
    return %c0_i32, %c0_i32_0 : i32, i32
  }
  func.func @transform_22(%arg0: i32) -> (i32, i32) {
    %c0_i32 = arith.constant 0 : i32
    %c0_i32_0 = arith.constant 0 : i32
    %c0_i32_1 = arith.constant 0 : i32
    return %c0_i32, %c0_i32_0 : i32, i32
  }
  func.func @transform_23(%arg0: i32) -> (i32, i32) {
    %c0_i32 = arith.constant 0 : i32
    %c0_i32_0 = arith.constant 0 : i32
    %c0_i32_1 = arith.constant 0 : i32
    return %c0_i32, %c0_i32_0 : i32, i32
  }
  func.func @transform_24(%arg0: i32) -> (i32, i32) {
    %c0_i32 = arith.constant 0 : i32
    %c0_i32_0 = arith.constant 0 : i32
    %c0_i32_1 = arith.constant 0 : i32
    return %c0_i32, %c0_i32_0 : i32, i32
  }
  func.func @transform_25(%arg0: i32) -> (i32, i32) {
    %c0_i32 = arith.constant 0 : i32
    %c0_i32_0 = arith.constant 0 : i32
    %c0_i32_1 = arith.constant 0 : i32
    return %c0_i32, %c0_i32_0 : i32, i32
  }
  func.func @transform_26(%arg0: i32) -> (i32, i32) {
    %c0_i32 = arith.constant 0 : i32
    %c0_i32_0 = arith.constant 0 : i32
    %c0_i32_1 = arith.constant 0 : i32
    return %c0_i32, %c0_i32_0 : i32, i32
  }
  func.func @transform_27(%arg0: i32) -> (i32, i32) {
    %c0_i32 = arith.constant 0 : i32
    %c0_i32_0 = arith.constant 0 : i32
    %c0_i32_1 = arith.constant 0 : i32
    return %c0_i32, %c0_i32_0 : i32, i32
  }
  func.func @transform_28(%arg0: i32) -> (i32, i32) {
    %c0_i32 = arith.constant 0 : i32
    %c0_i32_0 = arith.constant 0 : i32
    %c0_i32_1 = arith.constant 0 : i32
    return %c0_i32, %c0_i32_0 : i32, i32
  }
  func.func @transform_29(%arg0: i32) -> (i32, i32) {
    %c0_i32 = arith.constant 0 : i32
    %c0_i32_0 = arith.constant 0 : i32
    %c0_i32_1 = arith.constant 0 : i32
    return %c0_i32, %c0_i32_0 : i32, i32
  }
  func.func @transform_30(%arg0: i32) -> (i32, i32) {
    %c0_i32 = arith.constant 0 : i32
    %c0_i32_0 = arith.constant 0 : i32
    %c0_i32_1 = arith.constant 0 : i32
    return %c0_i32, %c0_i32_0 : i32, i32
  }
  func.func @transform_31(%arg0: i32) -> (i32, i32) {
    %c0_i32 = arith.constant 0 : i32
    %c0_i32_0 = arith.constant 0 : i32
    %c0_i32_1 = arith.constant 0 : i32
    return %c0_i32, %c0_i32_0 : i32, i32
  }
  func.func @transform_32(%arg0: i32) -> (i32, i32) {
    %c0_i32 = arith.constant 0 : i32
    %c0_i32_0 = arith.constant 0 : i32
    %c0_i32_1 = arith.constant 0 : i32
    return %c0_i32, %c0_i32_0 : i32, i32
  }
  func.func @transform_33(%arg0: i32) -> (i32, i32) {
    %c0_i32 = arith.constant 0 : i32
    %c0_i32_0 = arith.constant 0 : i32
    %c0_i32_1 = arith.constant 0 : i32
    return %c0_i32, %c0_i32_0 : i32, i32
  }
}

</mosaic_0001>

<llo_original>
// kernel: tpu_custom_call.1
$region0: #{tpu_custom_call.1}
  #allocation0 [shape = 'u32[]', space=smem, size = 0x4, offset = 0x4, fixed_abs, tag = 'smem constant byte address 0x4 - core index']
  #allocation1 [shape = 'u32[72,128]{1,0:T(1,128)}', space=vmem, size = 0x9000, scoped, tag = 'internal scratch']
  #allocation2 [shape = 'f32[1,1]{1,0:T(1,128)S(1)}', space=vmem, size = 0x200, scoped, tag = 'scoped memory for tpu_custom_call.1']
  %s0 = inlined_call_operand.smem [shape: u32[34], index: -1, kind: input, shape index: {}]
  %s1 = sld [smem:[%s0]]
  %s2 = scalar_lea.smem %s0, 1
  %s3 = sld [smem:[%s2]]
  %s4 = scalar_lea.smem %s0, 2
  %s5 = sld [smem:[%s4]]
  %s6 = scalar_lea.smem %s0, 3
  %s7 = sld [smem:[%s6]]
  %s8 = scalar_lea.smem %s0, 4
  %s9 = sld [smem:[%s8]]
  %s10 = scalar_lea.smem %s0, 5
  %s11 = sld [smem:[%s10]]
  %s12 = scalar_lea.smem %s0, 6
  %s13 = sld [smem:[%s12]]
  %s14 = scalar_lea.smem %s0, 7
  %s15 = sld [smem:[%s14]]
  %s16 = scalar_lea.smem %s0, 8
  %s17 = sld [smem:[%s16]]
  %s18 = scalar_lea.smem %s0, 9
  %s19 = sld [smem:[%s18]]
  %s20 = scalar_lea.smem %s0, 10
  %s21 = sld [smem:[%s20]]
  %s22 = scalar_lea.smem %s0, 11
  %s23 = sld [smem:[%s22]]
  %s24 = scalar_lea.smem %s0, 12
  %s25 = sld [smem:[%s24]]
  %s26 = scalar_lea.smem %s0, 13
  %s27 = sld [smem:[%s26]]
  %s28 = scalar_lea.smem %s0, 14
  %s29 = sld [smem:[%s28]]
  %s30 = scalar_lea.smem %s0, 15
  %s31 = sld [smem:[%s30]]
  %s32 = scalar_lea.smem %s0, 16
  %s33 = sld [smem:[%s32]]
  %s34 = scalar_lea.smem %s0, 17
  %s35 = sld [smem:[%s34]]
  %s36 = scalar_lea.smem %s0, 18
  %s37 = sld [smem:[%s36]]
  %s38 = scalar_lea.smem %s0, 19
  %s39 = sld [smem:[%s38]]
  %s40 = scalar_lea.smem %s0, 20
  %s41 = sld [smem:[%s40]]
  %s42 = scalar_lea.smem %s0, 21
  %s43 = sld [smem:[%s42]]
  %s44 = scalar_lea.smem %s0, 22
  %s45 = sld [smem:[%s44]]
  %s46 = scalar_lea.smem %s0, 23
  %s47 = sld [smem:[%s46]]
  %s48 = scalar_lea.smem %s0, 24
  %s49 = sld [smem:[%s48]]
  %s50 = scalar_lea.smem %s0, 25
  %s51 = sld [smem:[%s50]]
  %s52 = scalar_lea.smem %s0, 26
  %s53 = sld [smem:[%s52]]
  %s54 = scalar_lea.smem %s0, 27
  %s55 = sld [smem:[%s54]]
  %s56 = scalar_lea.smem %s0, 28
  %s57 = sld [smem:[%s56]]
  %s58 = scalar_lea.smem %s0, 29
  %s59 = sld [smem:[%s58]]
  %s60 = scalar_lea.smem %s0, 30
  %s61 = sld [smem:[%s60]]
  %s62 = scalar_lea.smem %s0, 31
  %s63 = sld [smem:[%s62]]
  %s64 = scalar_lea.smem %s0, 32
  %s65 = sld [smem:[%s64]]
  %s66 = scalar_lea.smem %s0, 33
  %s67 = sld [smem:[%s66]]
  %68 = xla_tuple %s61, %s63, %s65, %s67
  %s69 = sld [smem:[#allocation0]]
  $region154: #{tpu_custom_call.1} parent=0
    _
  %s71 = ssub.s32 1, %s69
  %s72 = scalar_select 0, %s71, %s69
  %v73 = vstv %s59
  %74 = vst [vmem:[#allocation2] sm:$0x1] %v73
  $region1: #{tpu_custom_call.1} parent=0
    #allocation3 [shape = 'u8[8192]{0}', space=vmem, size = 0x2000, scoped, tag = 'output window, operand 0, single buffered']
    #allocation4 [shape = 's32[1]{0}', space=sflag, size = 0x4, scoped, tag = 'scoped memory for tpu_custom_call.1']
    #allocation5 [shape = 'u8[8192]{0}', space=vmem, size = 0x2000, scoped, tag = 'output window, operand 1, single buffered']
    #allocation6 [shape = 's32[1]{0}', space=sflag, size = 0x4, scoped, tag = 'scoped memory for tpu_custom_call.1']
    %75 = vsyncpa [#allocation4], 0
    %76 = vsyncpa [#allocation6], 0
    // Predicated region
    $region2: #{tpu_custom_call.1} parent=1 // pred_check
      _
    $region3: #{tpu_custom_call.1} parent=1 // pred_check_branch
      %78 = sbr.rel (0) target = $region5
    $region4: #{tpu_custom_call.1} parent=1 // pred_region
      _
    $region5: #{tpu_custom_call.1} parent=1 // pred_fallthru
      _
    // Predicated region
    $region6: #{tpu_custom_call.1} parent=1 // pred_check
      _
    $region7: #{tpu_custom_call.1} parent=1 // pred_check_branch
      %80 = sbr.rel (0) target = $region9
    $region8: #{tpu_custom_call.1} parent=1 // pred_region
      _
    $region9: #{tpu_custom_call.1} parent=1 // pred_fallthru
      _
    // Predicated region
    $region10: #{tpu_custom_call.1} parent=1 // pred_check
      _
    $region11: #{tpu_custom_call.1} parent=1 // pred_check_branch
      %82 = sbr.rel (0) target = $region13
    $region12: #{tpu_custom_call.1} parent=1 // pred_region
      _
    $region13: #{tpu_custom_call.1} parent=1 // pred_fallthru
      _
    // Predicated region
    $region14: #{tpu_custom_call.1} parent=1 // pred_check
      _
    $region15: #{tpu_custom_call.1} parent=1 // pred_check_branch
      %84 = sbr.rel (0) target = $region17
    $region16: #{tpu_custom_call.1} parent=1 // pred_region
      _
    $region17: #{tpu_custom_call.1} parent=1 // pred_fallthru
      _
    // Predicated region
    $region18: #{tpu_custom_call.1} parent=1 // pred_check
      _
    $region19: #{tpu_custom_call.1} parent=1 // pred_check_branch
      %86 = sbr.rel (0) target = $region21
    $region20: #{tpu_custom_call.1} parent=1 // pred_region
      _
    $region21: #{tpu_custom_call.1} parent=1 // pred_fallthru
      _
    // Predicated region
    $region22: #{tpu_custom_call.1} parent=1 // pred_check
      _
    $region23: #{tpu_custom_call.1} parent=1 // pred_check_branch
      %88 = sbr.rel (0) target = $region25
    $region24: #{tpu_custom_call.1} parent=1 // pred_region
      _
    $region25: #{tpu_custom_call.1} parent=1 // pred_fallthru
      _
    // Predicated region
    $region26: #{tpu_custom_call.1} parent=1 // pred_check
      _
    $region27: #{tpu_custom_call.1} parent=1 // pred_check_branch
      %90 = sbr.rel (0) target = $region29
    $region28: #{tpu_custom_call.1} parent=1 // pred_region
      _
    $region29: #{tpu_custom_call.1} parent=1 // pred_fallthru
      _
    // Predicated region
    $region30: #{tpu_custom_call.1} parent=1 // pred_check
      _
    $region31: #{tpu_custom_call.1} parent=1 // pred_check_branch
      %92 = sbr.rel (0) target = $region33
    $region32: #{tpu_custom_call.1} parent=1 // pred_region
      _
    $region33: #{tpu_custom_call.1} parent=1 // pred_fallthru
      _
    // Predicated region
    $region34: #{tpu_custom_call.1} parent=1 // pred_check
      _
    $region35: #{tpu_custom_call.1} parent=1 // pred_check_branch
      %94 = sbr.rel (0) target = $region37
    $region36: #{tpu_custom_call.1} parent=1 // pred_region
      _
    $region37: #{tpu_custom_call.1} parent=1 // pred_fallthru
      _
    // Predicated region
    $region38: #{tpu_custom_call.1} parent=1 // pred_check
      _
    $region39: #{tpu_custom_call.1} parent=1 // pred_check_branch
      %96 = sbr.rel (0) target = $region41
    $region40: #{tpu_custom_call.1} parent=1 // pred_region
      _
    $region41: #{tpu_custom_call.1} parent=1 // pred_fallthru
      _
    // Predicated region
    $region42: #{tpu_custom_call.1} parent=1 // pred_check
      _
    $region43: #{tpu_custom_call.1} parent=1 // pred_check_branch
      %98 = sbr.rel (0) target = $region45
    $region44: #{tpu_custom_call.1} parent=1 // pred_region
      _
    $region45: #{tpu_custom_call.1} parent=1 // pred_fallthru
      _
    // Predicated region
    $region46: #{tpu_custom_call.1} parent=1 // pred_check
      _
    $region47: #{tpu_custom_call.1} parent=1 // pred_check_branch
      %100 = sbr.rel (0) target = $region49
    $region48: #{tpu_custom_call.1} parent=1 // pred_region
      _
    $region49: #{tpu_custom_call.1} parent=1 // pred_fallthru
      _
    // Predicated region
    $region50: #{tpu_custom_call.1} parent=1 // pred_check
      _
    $region51: #{tpu_custom_call.1} parent=1 // pred_check_branch
      %102 = sbr.rel (0) target = $region53
    $region52: #{tpu_custom_call.1} parent=1 // pred_region
      _
    $region53: #{tpu_custom_call.1} parent=1 // pred_fallthru
      _
    // Predicated region
    $region54: #{tpu_custom_call.1} parent=1 // pred_check
      _
    $region55: #{tpu_custom_call.1} parent=1 // pred_check_branch
      %104 = sbr.rel (0) target = $region57
    $region56: #{tpu_custom_call.1} parent=1 // pred_region
      _
    $region57: #{tpu_custom_call.1} parent=1 // pred_fallthru
      _
    // Predicated region
    $region58: #{tpu_custom_call.1} parent=1 // pred_check
      _
    $region59: #{tpu_custom_call.1} parent=1 // pred_check_branch
      %106 = sbr.rel (0) target = $region61
    $region60: #{tpu_custom_call.1} parent=1 // pred_region
      _
    $region61: #{tpu_custom_call.1} parent=1 // pred_fallthru
      _
    // Predicated region
    $region62: #{tpu_custom_call.1} parent=1 // pred_check
      _
    $region63: #{tpu_custom_call.1} parent=1 // pred_check_branch
      %108 = sbr.rel (0) target = $region65
    $region64: #{tpu_custom_call.1} parent=1 // pred_region
      _
    $region65: #{tpu_custom_call.1} parent=1 // pred_fallthru
      _
    // Predicated region
    $region66: #{tpu_custom_call.1} parent=1 // pred_check
      _
    $region67: #{tpu_custom_call.1} parent=1 // pred_check_branch
      %110 = sbr.rel (0) target = $region69
    $region68: #{tpu_custom_call.1} parent=1 // pred_region
      _
    $region69: #{tpu_custom_call.1} parent=1 // pred_fallthru
      _
    // Predicated region
    $region70: #{tpu_custom_call.1} parent=1 // pred_check
      _
    $region71: #{tpu_custom_call.1} parent=1 // pred_check_branch
      %112 = sbr.rel (0) target = $region73
    $region72: #{tpu_custom_call.1} parent=1 // pred_region
      _
    $region73: #{tpu_custom_call.1} parent=1 // pred_fallthru
      _
    // Predicated region
    $region74: #{tpu_custom_call.1} parent=1 // pred_check
      _
    $region75: #{tpu_custom_call.1} parent=1 // pred_check_branch
      %114 = sbr.rel (0) target = $region77
    $region76: #{tpu_custom_call.1} parent=1 // pred_region
      _
    $region77: #{tpu_custom_call.1} parent=1 // pred_fallthru
      _
    // Predicated region
    $region78: #{tpu_custom_call.1} parent=1 // pred_check
      _
    $region79: #{tpu_custom_call.1} parent=1 // pred_check_branch
      %116 = sbr.rel (0) target = $region81
    $region80: #{tpu_custom_call.1} parent=1 // pred_region
      _
    $region81: #{tpu_custom_call.1} parent=1 // pred_fallthru
      _
    // Predicated region
    $region82: #{tpu_custom_call.1} parent=1 // pred_check
      _
    $region83: #{tpu_custom_call.1} parent=1 // pred_check_branch
      %118 = sbr.rel (0) target = $region85
    $region84: #{tpu_custom_call.1} parent=1 // pred_region
      _
    $region85: #{tpu_custom_call.1} parent=1 // pred_fallthru
      _
    // Predicated region
    $region86: #{tpu_custom_call.1} parent=1 // pred_check
      _
    $region87: #{tpu_custom_call.1} parent=1 // pred_check_branch
      %120 = sbr.rel (0) target = $region89
    $region88: #{tpu_custom_call.1} parent=1 // pred_region
      _
    $region89: #{tpu_custom_call.1} parent=1 // pred_fallthru
      _
    // Predicated region
    $region90: #{tpu_custom_call.1} parent=1 // pred_check
      _
    $region91: #{tpu_custom_call.1} parent=1 // pred_check_branch
      %122 = sbr.rel (0) target = $region93
    $region92: #{tpu_custom_call.1} parent=1 // pred_region
      _
    $region93: #{tpu_custom_call.1} parent=1 // pred_fallthru
      _
    // Predicated region
    $region94: #{tpu_custom_call.1} parent=1 // pred_check
      _
    $region95: #{tpu_custom_call.1} parent=1 // pred_check_branch
      %124 = sbr.rel (0) target = $region97
    $region96: #{tpu_custom_call.1} parent=1 // pred_region
      _
    $region97: #{tpu_custom_call.1} parent=1 // pred_fallthru
      _
    // Predicated region
    $region98: #{tpu_custom_call.1} parent=1 // pred_check
      _
    $region99: #{tpu_custom_call.1} parent=1 // pred_check_branch
      %126 = sbr.rel (0) target = $region101
    $region100: #{tpu_custom_call.1} parent=1 // pred_region
      _
    $region101: #{tpu_custom_call.1} parent=1 // pred_fallthru
      _
    // Predicated region
    $region102: #{tpu_custom_call.1} parent=1 // pred_check
      _
    $region103: #{tpu_custom_call.1} parent=1 // pred_check_branch
      %128 = sbr.rel (0) target = $region105
    $region104: #{tpu_custom_call.1} parent=1 // pred_region
      _
    $region105: #{tpu_custom_call.1} parent=1 // pred_fallthru
      _
    // Predicated region
    $region106: #{tpu_custom_call.1} parent=1 // pred_check
      _
    $region107: #{tpu_custom_call.1} parent=1 // pred_check_branch
      %130 = sbr.rel (0) target = $region109
    $region108: #{tpu_custom_call.1} parent=1 // pred_region
      _
    $region109: #{tpu_custom_call.1} parent=1 // pred_fallthru
      _
    // Predicated region
    $region110: #{tpu_custom_call.1} parent=1 // pred_check
      _
    $region111: #{tpu_custom_call.1} parent=1 // pred_check_branch
      %132 = sbr.rel (0) target = $region113
    $region112: #{tpu_custom_call.1} parent=1 // pred_region
      _
    $region113: #{tpu_custom_call.1} parent=1 // pred_fallthru
      _
    // Predicated region
    $region114: #{tpu_custom_call.1} parent=1 // pred_check
      _
    $region115: #{tpu_custom_call.1} parent=1 // pred_check_branch
      %134 = sbr.rel (0) target = $region117
    $region116: #{tpu_custom_call.1} parent=1 // pred_region
      _
    $region117: #{tpu_custom_call.1} parent=1 // pred_fallthru
      _
    // Predicated region
    $region118: #{tpu_custom_call.1} parent=1 // pred_check
      _
    $region119: #{tpu_custom_call.1} parent=1 // pred_check_branch
      %136 = sbr.rel (0) target = $region121
    $region120: #{tpu_custom_call.1} parent=1 // pred_region
      _
    $region121: #{tpu_custom_call.1} parent=1 // pred_fallthru
      _
    %v137 = vld [vmem:[%s3] sm:$0xff]
    %v138 = vld [vmem:[%s3 + $0x8] sm:$0xff]
    %vm139 = vcmp.gt.f32.partialorder %v137, 0.0
    %vm140 = vcmp.gt.f32.partialorder %v138, 0.0
    %v141 = vsel %vm139, 0.0, -1e+30
    %v142 = vsel %vm140, 0.0, -1e+30
    %v143 = vld [vmem:[%s1] sm:$0xff]
    %v144 = vld [vmem:[%s1 + $0x8] sm:$0xff]
    %v145 = vld [vmem:[%s5] sm:$0xff]
    %v146 = vld [vmem:[%s5 + $0x8] sm:$0xff]
    %v147 = vld [vmem:[%s7] sm:$0x1]
    %v149 = vperm.slane %v147, 0
    %vm151 = vcmask 130048
    %v153 = vsel %vm151, %v143, 0
    %v156 = vsel %vm151, %v144, 0
    %158 = vmatpush.msra.mxu0 0.0
    %159 = vmatpush.msra.mxu0 0.0
    %160 = vmatpush.msra.mxu0 0.0
    %161 = vmatpush.msra.mxu0 0.0
    %162 = vmatpush.msra.mxu0 0.0
    %163 = vmatpush.msra.mxu0 0.0
    %164 = vmatpush.msra.mxu0 0.0
    %165 = vmatpush.msra.mxu0 0.0
    %166 = vmatpush.msra.mxu0 0.0
    %167 = vmatpush.msra.mxu0 0.0
    %168 = vmatpush.msra.mxu0 0.0
    %169 = vmatpush.msra.mxu0 0.0
    %170 = vmatpush.msra.mxu0 0.0
    %171 = vmatpush.msra.mxu0 0.0
    %172 = vmatpush.msra.mxu0 %v146
    %173 = vmatpush.msra.mxu0 %v145
    %174 = vmatmul.f32.gmra.mxu0 %v153
    %v175 = vpop.f32.mrf.mxu0
    %v176 = vadd.f32 %v149, %v175
    %177 = vmatmul.f32.gmra.mxu0 %v156
    %v178 = vpop.f32.mrf.mxu0
    %v179 = vadd.f32 %v149, %v178
    %180 = vdwg.mxu0
    %v181 = vld [vmem:[%s9] sm:$0xff]
    %v182 = vld [vmem:[%s9 + $0x8] sm:$0xff]
    %v183 = vld [vmem:[%s11] sm:$0x1]
    %v185 = vperm.slane %v183, 0
    %187 = vmatpush.msra.mxu0 0.0
    %188 = vmatpush.msra.mxu0 0.0
    %189 = vmatpush.msra.mxu0 0.0
    %190 = vmatpush.msra.mxu0 0.0
    %191 = vmatpush.msra.mxu0 0.0
    %192 = vmatpush.msra.mxu0 0.0
    %193 = vmatpush.msra.mxu0 0.0
    %194 = vmatpush.msra.mxu0 0.0
    %195 = vmatpush.msra.mxu0 0.0
    %196 = vmatpush.msra.mxu0 0.0
    %197 = vmatpush.msra.mxu0 0.0
    %198 = vmatpush.msra.mxu0 0.0
    %199 = vmatpush.msra.mxu0 0.0
    %200 = vmatpush.msra.mxu0 0.0
    %201 = vmatpush.msra.mxu0 %v182
    %202 = vmatpush.msra.mxu0 %v181
    %203 = vmatmul.f32.gmra.mxu0 %v153
    %v204 = vpop.f32.mrf.mxu0
    %v205 = vadd.f32 %v185, %v204
    %206 = vmatmul.f32.gmra.mxu0 %v156
    %v207 = vpop.f32.mrf.mxu0
    %v208 = vadd.f32 %v185, %v207
    %209 = vdwg.mxu0
    %v210 = vld [vmem:[%s13] sm:$0xf]
    %v213 = vrot.slane %v205, 1
    %v214 = vrot.slane %v205, 2
    %v215 = vrot.slane %v205, 3
    %v216 = vrot.slane %v205, 4
    %v217 = vrot.slane %v205, 5
    %v218 = vrot.slane %v205, 6
    %v219 = vrot.slane %v205, 7
    %v220 = vrot.slane %v208, 1
    %v221 = vrot.slane %v208, 2
    %v222 = vrot.slane %v208, 3
    %v223 = vrot.slane %v208, 4
    %v224 = vrot.slane %v208, 5
    %v225 = vrot.slane %v208, 6
    %v226 = vrot.slane %v208, 7
    %v227 = vperm.slane %v205, 0
    %v228 = vperm.slane %v213, 0
    %v229 = vperm.slane %v214, 0
    %v230 = vperm.slane %v215, 0
    %v231 = vperm.slane %v216, 0
    %v232 = vperm.slane %v217, 0
    %v233 = vperm.slane %v218, 0
    %v234 = vperm.slane %v219, 0
    %v235 = vperm.slane %v208, 0
    %v236 = vperm.slane %v220, 0
    %v237 = vperm.slane %v221, 0
    %v238 = vperm.slane %v222, 0
    %v239 = vperm.slane %v223, 0
    %v240 = vperm.slane %v224, 0
    %v241 = vperm.slane %v225, 0
    %v242 = vperm.slane %v226, 0
    %v259 = vadd.f32 %v227, %v176
    %v260 = vadd.f32 %v227, %v179
    %v261 = vadd.f32 %v228, %v176
    %v262 = vadd.f32 %v228, %v179
    %v263 = vadd.f32 %v229, %v176
    %v264 = vadd.f32 %v229, %v179
    %v265 = vadd.f32 %v230, %v176
    %v266 = vadd.f32 %v230, %v179
    %v267 = vadd.f32 %v231, %v176
    %v268 = vadd.f32 %v231, %v179
    %v269 = vadd.f32 %v232, %v176
    %v270 = vadd.f32 %v232, %v179
    %v271 = vadd.f32 %v233, %v176
    %v272 = vadd.f32 %v233, %v179
    %v273 = vadd.f32 %v234, %v176
    %v274 = vadd.f32 %v234, %v179
    %v275 = vadd.f32 %v235, %v176
    %v276 = vadd.f32 %v235, %v179
    %v277 = vadd.f32 %v236, %v176
    %v278 = vadd.f32 %v236, %v179
    %v279 = vadd.f32 %v237, %v176
    %v280 = vadd.f32 %v237, %v179
    %v281 = vadd.f32 %v238, %v176
    %v282 = vadd.f32 %v238, %v179
    %v283 = vadd.f32 %v239, %v176
    %v284 = vadd.f32 %v239, %v179
    %v285 = vadd.f32 %v240, %v176
    %v286 = vadd.f32 %v240, %v179
    %v287 = vadd.f32 %v241, %v176
    %v288 = vadd.f32 %v241, %v179
    %v289 = vadd.f32 %v242, %v176
    %v290 = vadd.f32 %v242, %v179
    %vm291 = vcmp.gt.f32.partialorder %v259, 0.0
    %vm292 = vcmp.gt.f32.partialorder %v260, 0.0
    %vm293 = vcmp.gt.f32.partialorder %v261, 0.0
    %vm294 = vcmp.gt.f32.partialorder %v262, 0.0
    %vm295 = vcmp.gt.f32.partialorder %v263, 0.0
    %vm296 = vcmp.gt.f32.partialorder %v264, 0.0
    %vm297 = vcmp.gt.f32.partialorder %v265, 0.0
    %vm298 = vcmp.gt.f32.partialorder %v266, 0.0
    %vm299 = vcmp.gt.f32.partialorder %v267, 0.0
    %vm300 = vcmp.gt.f32.partialorder %v268, 0.0
    %vm301 = vcmp.gt.f32.partialorder %v269, 0.0
    %vm302 = vcmp.gt.f32.partialorder %v270, 0.0
    %vm303 = vcmp.gt.f32.partialorder %v271, 0.0
    %vm304 = vcmp.gt.f32.partialorder %v272, 0.0
    %vm305 = vcmp.gt.f32.partialorder %v273, 0.0
    %vm306 = vcmp.gt.f32.partialorder %v274, 0.0
    %vm307 = vcmp.gt.f32.partialorder %v275, 0.0
    %vm308 = vcmp.gt.f32.partialorder %v276, 0.0
    %vm309 = vcmp.gt.f32.partialorder %v277, 0.0
    %vm310 = vcmp.gt.f32.partialorder %v278, 0.0
    %vm311 = vcmp.gt.f32.partialorder %v279, 0.0
    %vm312 = vcmp.gt.f32.partialorder %v280, 0.0
    %vm313 = vcmp.gt.f32.partialorder %v281, 0.0
    %vm314 = vcmp.gt.f32.partialorder %v282, 0.0
    %vm315 = vcmp.gt.f32.partialorder %v283, 0.0
    %vm316 = vcmp.gt.f32.partialorder %v284, 0.0
    %vm317 = vcmp.gt.f32.partialorder %v285, 0.0
    %vm318 = vcmp.gt.f32.partialorder %v286, 0.0
    %vm319 = vcmp.gt.f32.partialorder %v287, 0.0
    %vm320 = vcmp.gt.f32.partialorder %v288, 0.0
    %vm321 = vcmp.gt.f32.partialorder %v289, 0.0
    %vm322 = vcmp.gt.f32.partialorder %v290, 0.0
    %v323 = vmul.f32 %v259, 0.2
    %v324 = vmul.f32 %v260, 0.2
    %v325 = vmul.f32 %v261, 0.2
    %v326 = vmul.f32 %v262, 0.2
    %v327 = vmul.f32 %v263, 0.2
    %v328 = vmul.f32 %v264, 0.2
    %v329 = vmul.f32 %v265, 0.2
    %v330 = vmul.f32 %v266, 0.2
    %v331 = vmul.f32 %v267, 0.2
    %v332 = vmul.f32 %v268, 0.2
    %v333 = vmul.f32 %v269, 0.2
    %v334 = vmul.f32 %v270, 0.2
    %v335 = vmul.f32 %v271, 0.2
    %v336 = vmul.f32 %v272, 0.2
    %v337 = vmul.f32 %v273, 0.2
    %v338 = vmul.f32 %v274, 0.2
    %v339 = vmul.f32 %v275, 0.2
    %v340 = vmul.f32 %v276, 0.2
    %v341 = vmul.f32 %v277, 0.2
    %v342 = vmul.f32 %v278, 0.2
    %v343 = vmul.f32 %v279, 0.2
    %v344 = vmul.f32 %v280, 0.2
    %v345 = vmul.f32 %v281, 0.2
    %v346 = vmul.f32 %v282, 0.2
    %v347 = vmul.f32 %v283, 0.2
    %v348 = vmul.f32 %v284, 0.2
    %v349 = vmul.f32 %v285, 0.2
    %v350 = vmul.f32 %v286, 0.2
    %v351 = vmul.f32 %v287, 0.2
    %v352 = vmul.f32 %v288, 0.2
    %v353 = vmul.f32 %v289, 0.2
    %v354 = vmul.f32 %v290, 0.2
    %v355 = vsel %vm291, %v259, %v323
    %v356 = vsel %vm292, %v260, %v324
    %v357 = vsel %vm293, %v261, %v325
    %v358 = vsel %vm294, %v262, %v326
    %v359 = vsel %vm295, %v263, %v327
    %v360 = vsel %vm296, %v264, %v328
    %v361 = vsel %vm297, %v265, %v329
    %v362 = vsel %vm298, %v266, %v330
    %v363 = vsel %vm299, %v267, %v331
    %v364 = vsel %vm300, %v268, %v332
    %v365 = vsel %vm301, %v269, %v333
    %v366 = vsel %vm302, %v270, %v334
    %v367 = vsel %vm303, %v271, %v335
    %v368 = vsel %vm304, %v272, %v336
    %v369 = vsel %vm305, %v273, %v337
    %v370 = vsel %vm306, %v274, %v338
    %v371 = vsel %vm307, %v275, %v339
    %v372 = vsel %vm308, %v276, %v340
    %v373 = vsel %vm309, %v277, %v341
    %v374 = vsel %vm310, %v278, %v342
    %v375 = vsel %vm311, %v279, %v343
    %v376 = vsel %vm312, %v280, %v344
    %v377 = vsel %vm313, %v281, %v345
    %v378 = vsel %vm314, %v282, %v346
    %v379 = vsel %vm315, %v283, %v347
    %v380 = vsel %vm316, %v284, %v348
    %v381 = vsel %vm317, %v285, %v349
    %v382 = vsel %vm318, %v286, %v350
    %v383 = vsel %vm319, %v287, %v351
    %v384 = vsel %vm320, %v288, %v352
    %v385 = vsel %vm321, %v289, %v353
    %v386 = vsel %vm322, %v290, %v354
    %v387 = vperm.slane %v210, 0
    %v388 = vmul.f32 %v355, %v387
    %v389 = vmul.f32 %v356, %v387
    %v390 = vmul.f32 %v357, %v387
    %v391 = vmul.f32 %v358, %v387
    %v392 = vmul.f32 %v359, %v387
    %v393 = vmul.f32 %v360, %v387
    %v394 = vmul.f32 %v361, %v387
    %v395 = vmul.f32 %v362, %v387
    %v396 = vmul.f32 %v363, %v387
    %v397 = vmul.f32 %v364, %v387
    %v398 = vmul.f32 %v365, %v387
    %v399 = vmul.f32 %v366, %v387
    %v400 = vmul.f32 %v367, %v387
    %v401 = vmul.f32 %v368, %v387
    %v402 = vmul.f32 %v369, %v387
    %v403 = vmul.f32 %v370, %v387
    %v404 = vmul.f32 %v371, %v387
    %v405 = vmul.f32 %v372, %v387
    %v406 = vmul.f32 %v373, %v387
    %v407 = vmul.f32 %v374, %v387
    %v408 = vmul.f32 %v375, %v387
    %v409 = vmul.f32 %v376, %v387
    %v410 = vmul.f32 %v377, %v387
    %v411 = vmul.f32 %v378, %v387
    %v412 = vmul.f32 %v379, %v387
    %v413 = vmul.f32 %v380, %v387
    %v414 = vmul.f32 %v381, %v387
    %v415 = vmul.f32 %v382, %v387
    %v416 = vmul.f32 %v383, %v387
    %v417 = vmul.f32 %v384, %v387
    %v418 = vmul.f32 %v385, %v387
    %v419 = vmul.f32 %v386, %v387
    %vm420 = vcmask 64512
    %v421 = vsel %vm420, %v388, 0.0
    %422 = vadd.xlane.f32.xlu0 %v421
    %v423 = vpop.xlane.xlu0 %422
    %v424 = vsel %vm420, %v389, 0.0
    %425 = vadd.xlane.f32.xlu0 %v424
    %v426 = vpop.xlane.xlu0 %425
    %v427 = vsel %vm420, %v390, 0.0
    %428 = vadd.xlane.f32.xlu0 %v427
    %v429 = vpop.xlane.xlu0 %428
    %v430 = vsel %vm420, %v391, 0.0
    %431 = vadd.xlane.f32.xlu0 %v430
    %v432 = vpop.xlane.xlu0 %431
    %v433 = vsel %vm420, %v392, 0.0
    %434 = vadd.xlane.f32.xlu0 %v433
    %v435 = vpop.xlane.xlu0 %434
    %v436 = vsel %vm420, %v393, 0.0
    %437 = vadd.xlane.f32.xlu0 %v436
    %v438 = vpop.xlane.xlu0 %437
    %v439 = vsel %vm420, %v394, 0.0
    %440 = vadd.xlane.f32.xlu0 %v439
    %v441 = vpop.xlane.xlu0 %440
    %v442 = vsel %vm420, %v395, 0.0
    %443 = vadd.xlane.f32.xlu0 %v442
    %v444 = vpop.xlane.xlu0 %443
    %v445 = vsel %vm420, %v396, 0.0
    %446 = vadd.xlane.f32.xlu0 %v445
    %v447 = vpop.xlane.xlu0 %446
    %v448 = vsel %vm420, %v397, 0.0
    %449 = vadd.xlane.f32.xlu0 %v448
    %v450 = vpop.xlane.xlu0 %449
    %v451 = vsel %vm420, %v398, 0.0
    %452 = vadd.xlane.f32.xlu0 %v451
    %v453 = vpop.xlane.xlu0 %452
    %v454 = vsel %vm420, %v399, 0.0
    %455 = vadd.xlane.f32.xlu0 %v454
    %v456 = vpop.xlane.xlu0 %455
    %v457 = vsel %vm420, %v400, 0.0
    %458 = vadd.xlane.f32.xlu0 %v457
    %v459 = vpop.xlane.xlu0 %458
    %v460 = vsel %vm420, %v401, 0.0
    %461 = vadd.xlane.f32.xlu0 %v460
    %v462 = vpop.xlane.xlu0 %461
    %v463 = vsel %vm420, %v402, 0.0
    %464 = vadd.xlane.f32.xlu0 %v463
    %v465 = vpop.xlane.xlu0 %464
    %v466 = vsel %vm420, %v403, 0.0
    %467 = vadd.xlane.f32.xlu0 %v466
    %v468 = vpop.xlane.xlu0 %467
    %v469 = vsel %vm420, %v404, 0.0
    %470 = vadd.xlane.f32.xlu0 %v469
    %v471 = vpop.xlane.xlu0 %470
    %v472 = vsel %vm420, %v405, 0.0
    %473 = vadd.xlane.f32.xlu0 %v472
    %v474 = vpop.xlane.xlu0 %473
    %v475 = vsel %vm420, %v406, 0.0
    %476 = vadd.xlane.f32.xlu0 %v475
    %v477 = vpop.xlane.xlu0 %476
    %v478 = vsel %vm420, %v407, 0.0
    %479 = vadd.xlane.f32.xlu0 %v478
    %v480 = vpop.xlane.xlu0 %479
    %v481 = vsel %vm420, %v408, 0.0
    %482 = vadd.xlane.f32.xlu0 %v481
    %v483 = vpop.xlane.xlu0 %482
    %v484 = vsel %vm420, %v409, 0.0
    %485 = vadd.xlane.f32.xlu0 %v484
    %v486 = vpop.xlane.xlu0 %485
    %v487 = vsel %vm420, %v410, 0.0
    %488 = vadd.xlane.f32.xlu0 %v487
    %v489 = vpop.xlane.xlu0 %488
    %v490 = vsel %vm420, %v411, 0.0
    %491 = vadd.xlane.f32.xlu0 %v490
    %v492 = vpop.xlane.xlu0 %491
    %v493 = vsel %vm420, %v412, 0.0
    %494 = vadd.xlane.f32.xlu0 %v493
    %v495 = vpop.xlane.xlu0 %494
    %v496 = vsel %vm420, %v413, 0.0
    %497 = vadd.xlane.f32.xlu0 %v496
    %v498 = vpop.xlane.xlu0 %497
    %v499 = vsel %vm420, %v414, 0.0
    %500 = vadd.xlane.f32.xlu0 %v499
    %v501 = vpop.xlane.xlu0 %500
    %v502 = vsel %vm420, %v415, 0.0
    %503 = vadd.xlane.f32.xlu0 %v502
    %v504 = vpop.xlane.xlu0 %503
    %v505 = vsel %vm420, %v416, 0.0
    %506 = vadd.xlane.f32.xlu0 %v505
    %v507 = vpop.xlane.xlu0 %506
    %v508 = vsel %vm420, %v417, 0.0
    %509 = vadd.xlane.f32.xlu0 %v508
    %v510 = vpop.xlane.xlu0 %509
    %v511 = vsel %vm420, %v418, 0.0
    %512 = vadd.xlane.f32.xlu0 %v511
    %v513 = vpop.xlane.xlu0 %512
    %v514 = vsel %vm420, %v419, 0.0
    %515 = vadd.xlane.f32.xlu0 %v514
    %v516 = vpop.xlane.xlu0 %515
    %v519 = vperm.slane %v141, 0
    %v520 = vlaneseq
    %v521 = vshrl.u32 %v520, 7
    %523 = vset.pattern.permute.xlu0 %v521
    %524 = vperm.xlu0 %523, %v519
    %v525 = vpop.permute.xlu0 %524
    %v526 = vlaneseq
    %v527 = vshrl.u32 %v526, 7
    %v528 = vadd.s32 %v527, 8
    %529 = vset.pattern.permute.xlu0 %v528
    %530 = vperm.xlu0 %529, %v519
    %v531 = vpop.permute.xlu0 %530
    %v532 = vperm.slane %v141, 1
    %v533 = vlaneseq
    %v534 = vshrl.u32 %v533, 7
    %536 = vset.pattern.permute.xlu0 %v534
    %537 = vperm.xlu0 %536, %v532
    %v538 = vpop.permute.xlu0 %537
    %v539 = vlaneseq
    %v540 = vshrl.u32 %v539, 7
    %v541 = vadd.s32 %v540, 8
    %542 = vset.pattern.permute.xlu0 %v541
    %543 = vperm.xlu0 %542, %v532
    %v544 = vpop.permute.xlu0 %543
    %v545 = vperm.slane %v141, 2
    %v546 = vlaneseq
    %v547 = vshrl.u32 %v546, 7
    %549 = vset.pattern.permute.xlu0 %v547
    %550 = vperm.xlu0 %549, %v545
    %v551 = vpop.permute.xlu0 %550
    %v552 = vlaneseq
    %v553 = vshrl.u32 %v552, 7
    %v554 = vadd.s32 %v553, 8
    %555 = vset.pattern.permute.xlu0 %v554
    %556 = vperm.xlu0 %555, %v545
    %v557 = vpop.permute.xlu0 %556
    %v558 = vperm.slane %v141, 3
    %v559 = vlaneseq
    %v560 = vshrl.u32 %v559, 7
    %562 = vset.pattern.permute.xlu0 %v560
    %563 = vperm.xlu0 %562, %v558
    %v564 = vpop.permute.xlu0 %563
    %v565 = vlaneseq
    %v566 = vshrl.u32 %v565, 7
    %v567 = vadd.s32 %v566, 8
    %568 = vset.pattern.permute.xlu0 %v567
    %569 = vperm.xlu0 %568, %v558
    %v570 = vpop.permute.xlu0 %569
    %v571 = vperm.slane %v141, 4
    %v572 = vlaneseq
    %v573 = vshrl.u32 %v572, 7
    %575 = vset.pattern.permute.xlu0 %v573
    %576 = vperm.xlu0 %575, %v571
    %v577 = vpop.permute.xlu0 %576
    %v578 = vlaneseq
    %v579 = vshrl.u32 %v578, 7
    %v580 = vadd.s32 %v579, 8
    %581 = vset.pattern.permute.xlu0 %v580
    %582 = vperm.xlu0 %581, %v571
    %v583 = vpop.permute.xlu0 %582
    %v584 = vperm.slane %v141, 5
    %v585 = vlaneseq
    %v586 = vshrl.u32 %v585, 7
    %588 = vset.pattern.permute.xlu0 %v586
    %589 = vperm.xlu0 %588, %v584
    %v590 = vpop.permute.xlu0 %589
    %v591 = vlaneseq
    %v592 = vshrl.u32 %v591, 7
    %v593 = vadd.s32 %v592, 8
    %594 = vset.pattern.permute.xlu0 %v593
    %595 = vperm.xlu0 %594, %v584
    %v596 = vpop.permute.xlu0 %595
    %v597 = vperm.slane %v141, 6
    %v598 = vlaneseq
    %v599 = vshrl.u32 %v598, 7
    %601 = vset.pattern.permute.xlu0 %v599
    %602 = vperm.xlu0 %601, %v597
    %v603 = vpop.permute.xlu0 %602
    %v604 = vlaneseq
    %v605 = vshrl.u32 %v604, 7
    %v606 = vadd.s32 %v605, 8
    %607 = vset.pattern.permute.xlu0 %v606
    %608 = vperm.xlu0 %607, %v597
    %v609 = vpop.permute.xlu0 %608
    %v610 = vperm.slane %v141, 7
    %v611 = vlaneseq
    %v612 = vshrl.u32 %v611, 7
    %614 = vset.pattern.permute.xlu0 %v612
    %615 = vperm.xlu0 %614, %v610
    %v616 = vpop.permute.xlu0 %615
    %v617 = vlaneseq
    %v618 = vshrl.u32 %v617, 7
    %v619 = vadd.s32 %v618, 8
    %620 = vset.pattern.permute.xlu0 %v619
    %621 = vperm.xlu0 %620, %v610
    %v622 = vpop.permute.xlu0 %621
    %v623 = vperm.slane %v142, 0
    %v624 = vlaneseq
    %v625 = vshrl.u32 %v624, 7
    %627 = vset.pattern.permute.xlu0 %v625
    %628 = vperm.xlu0 %627, %v623
    %v629 = vpop.permute.xlu0 %628
    %v630 = vlaneseq
    %v631 = vshrl.u32 %v630, 7
    %v632 = vadd.s32 %v631, 8
    %633 = vset.pattern.permute.xlu0 %v632
    %634 = vperm.xlu0 %633, %v623
    %v635 = vpop.permute.xlu0 %634
    %v636 = vperm.slane %v142, 1
    %v637 = vlaneseq
    %v638 = vshrl.u32 %v637, 7
    %640 = vset.pattern.permute.xlu0 %v638
    %641 = vperm.xlu0 %640, %v636
    %v642 = vpop.permute.xlu0 %641
    %v643 = vlaneseq
    %v644 = vshrl.u32 %v643, 7
    %v645 = vadd.s32 %v644, 8
    %646 = vset.pattern.permute.xlu0 %v645
    %647 = vperm.xlu0 %646, %v636
    %v648 = vpop.permute.xlu0 %647
    %v649 = vperm.slane %v142, 2
    %v650 = vlaneseq
    %v651 = vshrl.u32 %v650, 7
    %653 = vset.pattern.permute.xlu0 %v651
    %654 = vperm.xlu0 %653, %v649
    %v655 = vpop.permute.xlu0 %654
    %v656 = vlaneseq
    %v657 = vshrl.u32 %v656, 7
    %v658 = vadd.s32 %v657, 8
    %659 = vset.pattern.permute.xlu0 %v658
    %660 = vperm.xlu0 %659, %v649
    %v661 = vpop.permute.xlu0 %660
    %v662 = vperm.slane %v142, 3
    %v663 = vlaneseq
    %v664 = vshrl.u32 %v663, 7
    %666 = vset.pattern.permute.xlu0 %v664
    %667 = vperm.xlu0 %666, %v662
    %v668 = vpop.permute.xlu0 %667
    %v669 = vlaneseq
    %v670 = vshrl.u32 %v669, 7
    %v671 = vadd.s32 %v670, 8
    %672 = vset.pattern.permute.xlu0 %v671
    %673 = vperm.xlu0 %672, %v662
    %v674 = vpop.permute.xlu0 %673
    %v675 = vperm.slane %v142, 4
    %v676 = vlaneseq
    %v677 = vshrl.u32 %v676, 7
    %679 = vset.pattern.permute.xlu0 %v677
    %680 = vperm.xlu0 %679, %v675
    %v681 = vpop.permute.xlu0 %680
    %v682 = vlaneseq
    %v683 = vshrl.u32 %v682, 7
    %v684 = vadd.s32 %v683, 8
    %685 = vset.pattern.permute.xlu0 %v684
    %686 = vperm.xlu0 %685, %v675
    %v687 = vpop.permute.xlu0 %686
    %v688 = vperm.slane %v142, 5
    %v689 = vlaneseq
    %v690 = vshrl.u32 %v689, 7
    %692 = vset.pattern.permute.xlu0 %v690
    %693 = vperm.xlu0 %692, %v688
    %v694 = vpop.permute.xlu0 %693
    %v695 = vlaneseq
    %v696 = vshrl.u32 %v695, 7
    %v697 = vadd.s32 %v696, 8
    %698 = vset.pattern.permute.xlu0 %v697
    %699 = vperm.xlu0 %698, %v688
    %v700 = vpop.permute.xlu0 %699
    %v701 = vperm.slane %v142, 6
    %v702 = vlaneseq
    %v703 = vshrl.u32 %v702, 7
    %705 = vset.pattern.permute.xlu0 %v703
    %706 = vperm.xlu0 %705, %v701
    %v707 = vpop.permute.xlu0 %706
    %v708 = vlaneseq
    %v709 = vshrl.u32 %v708, 7
    %v710 = vadd.s32 %v709, 8
    %711 = vset.pattern.permute.xlu0 %v710
    %712 = vperm.xlu0 %711, %v701
    %v713 = vpop.permute.xlu0 %712
    %v714 = vperm.slane %v142, 7
    %v715 = vlaneseq
    %v716 = vshrl.u32 %v715, 7
    %718 = vset.pattern.permute.xlu0 %v716
    %719 = vperm.xlu0 %718, %v714
    %v720 = vpop.permute.xlu0 %719
    %v721 = vlaneseq
    %v722 = vshrl.u32 %v721, 7
    %v723 = vadd.s32 %v722, 8
    %724 = vset.pattern.permute.xlu0 %v723
    %725 = vperm.xlu0 %724, %v714
    %v726 = vpop.permute.xlu0 %725
    %v759 = vadd.f32 %v423, %v525
    %v760 = vadd.f32 %v426, %v531
    %v761 = vadd.f32 %v429, %v538
    %v762 = vadd.f32 %v432, %v544
    %v763 = vadd.f32 %v435, %v551
    %v764 = vadd.f32 %v438, %v557
    %v765 = vadd.f32 %v441, %v564
    %v766 = vadd.f32 %v444, %v570
    %v767 = vadd.f32 %v447, %v577
    %v768 = vadd.f32 %v450, %v583
    %v769 = vadd.f32 %v453, %v590
    %v770 = vadd.f32 %v456, %v596
    %v771 = vadd.f32 %v459, %v603
    %v772 = vadd.f32 %v462, %v609
    %v773 = vadd.f32 %v465, %v616
    %v774 = vadd.f32 %v468, %v622
    %v775 = vadd.f32 %v471, %v629
    %v776 = vadd.f32 %v474, %v635
    %v777 = vadd.f32 %v477, %v642
    %v778 = vadd.f32 %v480, %v648
    %v779 = vadd.f32 %v483, %v655
    %v780 = vadd.f32 %v486, %v661
    %v781 = vadd.f32 %v489, %v668
    %v782 = vadd.f32 %v492, %v674
    %v783 = vadd.f32 %v495, %v681
    %v784 = vadd.f32 %v498, %v687
    %v785 = vadd.f32 %v501, %v694
    %v786 = vadd.f32 %v504, %v700
    %v787 = vadd.f32 %v507, %v707
    %v788 = vadd.f32 %v510, %v713
    %v789 = vadd.f32 %v513, %v720
    %v790 = vadd.f32 %v516, %v726
    %823 = vset.pattern.permute.xlu0 0
    %824 = vperm.xlu0 %823, %v759
    %v825 = vpop.permute.xlu0 %824
    %826 = vset.pattern.permute.xlu0 0
    %827 = vperm.xlu0 %826, %v760
    %v828 = vpop.permute.xlu0 %827
    %829 = vset.pattern.permute.xlu0 0
    %830 = vperm.xlu0 %829, %v761
    %v831 = vpop.permute.xlu0 %830
    %832 = vset.pattern.permute.xlu0 0
    %833 = vperm.xlu0 %832, %v762
    %v834 = vpop.permute.xlu0 %833
    %835 = vset.pattern.permute.xlu0 0
    %836 = vperm.xlu0 %835, %v763
    %v837 = vpop.permute.xlu0 %836
    %838 = vset.pattern.permute.xlu0 0
    %839 = vperm.xlu0 %838, %v764
    %v840 = vpop.permute.xlu0 %839
    %841 = vset.pattern.permute.xlu0 0
    %842 = vperm.xlu0 %841, %v765
    %v843 = vpop.permute.xlu0 %842
    %844 = vset.pattern.permute.xlu0 0
    %845 = vperm.xlu0 %844, %v766
    %v846 = vpop.permute.xlu0 %845
    %847 = vset.pattern.permute.xlu0 0
    %848 = vperm.xlu0 %847, %v767
    %v849 = vpop.permute.xlu0 %848
    %850 = vset.pattern.permute.xlu0 0
    %851 = vperm.xlu0 %850, %v768
    %v852 = vpop.permute.xlu0 %851
    %853 = vset.pattern.permute.xlu0 0
    %854 = vperm.xlu0 %853, %v769
    %v855 = vpop.permute.xlu0 %854
    %856 = vset.pattern.permute.xlu0 0
    %857 = vperm.xlu0 %856, %v770
    %v858 = vpop.permute.xlu0 %857
    %859 = vset.pattern.permute.xlu0 0
    %860 = vperm.xlu0 %859, %v771
    %v861 = vpop.permute.xlu0 %860
    %862 = vset.pattern.permute.xlu0 0
    %863 = vperm.xlu0 %862, %v772
    %v864 = vpop.permute.xlu0 %863
    %865 = vset.pattern.permute.xlu0 0
    %866 = vperm.xlu0 %865, %v773
    %v867 = vpop.permute.xlu0 %866
    %868 = vset.pattern.permute.xlu0 0
    %869 = vperm.xlu0 %868, %v774
    %v870 = vpop.permute.xlu0 %869
    %871 = vset.pattern.permute.xlu0 0
    %872 = vperm.xlu0 %871, %v775
    %v873 = vpop.permute.xlu0 %872
    %874 = vset.pattern.permute.xlu0 0
    %875 = vperm.xlu0 %874, %v776
    %v876 = vpop.permute.xlu0 %875
    %877 = vset.pattern.permute.xlu0 0
    %878 = vperm.xlu0 %877, %v777
    %v879 = vpop.permute.xlu0 %878
    %880 = vset.pattern.permute.xlu0 0
    %881 = vperm.xlu0 %880, %v778
    %v882 = vpop.permute.xlu0 %881
    %883 = vset.pattern.permute.xlu0 0
    %884 = vperm.xlu0 %883, %v779
    %v885 = vpop.permute.xlu0 %884
    %886 = vset.pattern.permute.xlu0 0
    %887 = vperm.xlu0 %886, %v780
    %v888 = vpop.permute.xlu0 %887
    %889 = vset.pattern.permute.xlu0 0
    %890 = vperm.xlu0 %889, %v781
    %v891 = vpop.permute.xlu0 %890
    %892 = vset.pattern.permute.xlu0 0
    %893 = vperm.xlu0 %892, %v782
    %v894 = vpop.permute.xlu0 %893
    %895 = vset.pattern.permute.xlu0 0
    %896 = vperm.xlu0 %895, %v783
    %v897 = vpop.permute.xlu0 %896
    %898 = vset.pattern.permute.xlu0 0
    %899 = vperm.xlu0 %898, %v784
    %v900 = vpop.permute.xlu0 %899
    %901 = vset.pattern.permute.xlu0 0
    %902 = vperm.xlu0 %901, %v785
    %v903 = vpop.permute.xlu0 %902
    %904 = vset.pattern.permute.xlu0 0
    %905 = vperm.xlu0 %904, %v786
    %v906 = vpop.permute.xlu0 %905
    %907 = vset.pattern.permute.xlu0 0
    %908 = vperm.xlu0 %907, %v787
    %v909 = vpop.permute.xlu0 %908
    %910 = vset.pattern.permute.xlu0 0
    %911 = vperm.xlu0 %910, %v788
    %v912 = vpop.permute.xlu0 %911
    %913 = vset.pattern.permute.xlu0 0
    %914 = vperm.xlu0 %913, %v789
    %v915 = vpop.permute.xlu0 %914
    %916 = vset.pattern.permute.xlu0 0
    %917 = vperm.xlu0 %916, %v790
    %v918 = vpop.permute.xlu0 %917
    %v919 = vlaneseq
    %v920 = vand.u32 %v919, 127
    %v921 = vperm.slane %v825, %v920
    %v922 = vadd.s32 %v920, 4294967288
    %v923 = vperm.slane %v828, %v922
    %vm924 = vcmask 130112
    %v925 = vsel %vm924, %v923, %v921
    %v926 = vperm.slane %v831, %v920
    %v927 = vperm.slane %v834, %v922
    %v928 = vsel %vm924, %v927, %v926
    %v929 = vperm.slane %v837, %v920
    %v930 = vperm.slane %v840, %v922
    %v931 = vsel %vm924, %v930, %v929
    %v932 = vperm.slane %v843, %v920
    %v933 = vperm.slane %v846, %v922
    %v934 = vsel %vm924, %v933, %v932
    %v935 = vperm.slane %v849, %v920
    %v936 = vperm.slane %v852, %v922
    %v937 = vsel %vm924, %v936, %v935
    %v938 = vperm.slane %v855, %v920
    %v939 = vperm.slane %v858, %v922
    %v940 = vsel %vm924, %v939, %v938
    %v941 = vperm.slane %v861, %v920
    %v942 = vperm.slane %v864, %v922
    %v943 = vsel %vm924, %v942, %v941
    %v944 = vperm.slane %v867, %v920
    %v945 = vperm.slane %v870, %v922
    %v946 = vsel %vm924, %v945, %v944
    %v947 = vperm.slane %v873, %v920
    %v948 = vperm.slane %v876, %v922
    %v949 = vsel %vm924, %v948, %v947
    %v950 = vperm.slane %v879, %v920
    %v951 = vperm.slane %v882, %v922
    %v952 = vsel %vm924, %v951, %v950
    %v953 = vperm.slane %v885, %v920
    %v954 = vperm.slane %v888, %v922
    %v955 = vsel %vm924, %v954, %v953
    %v956 = vperm.slane %v891, %v920
    %v957 = vperm.slane %v894, %v922
    %v958 = vsel %vm924, %v957, %v956
    %v959 = vperm.slane %v897, %v920
    %v960 = vperm.slane %v900, %v922
    %v961 = vsel %vm924, %v960, %v959
    %v962 = vperm.slane %v903, %v920
    %v963 = vperm.slane %v906, %v922
    %v964 = vsel %vm924, %v963, %v962
    %v965 = vperm.slane %v909, %v920
    %v966 = vperm.slane %v912, %v922
    %v967 = vsel %vm924, %v966, %v965
    %v968 = vperm.slane %v915, %v920
    %v969 = vperm.slane %v918, %v922
    %v970 = vsel %vm924, %v969, %v968
    %vm971 = vcmask 1041409
    %v972 = vsel %vm971, %v928, %v925
    %vm973 = vcmask 1042434
    %v974 = vsel %vm973, %v931, %v972
    %vm975 = vcmask 1043459
    %v976 = vsel %vm975, %v934, %v974
    %vm977 = vcmask 1044484
    %v978 = vsel %vm977, %v937, %v976
    %vm979 = vcmask 1045509
    %v980 = vsel %vm979, %v940, %v978
    %vm981 = vcmask 1046534
    %v982 = vsel %vm981, %v943, %v980
    %vm983 = vcmask 1047559
    %v984 = vsel %vm983, %v946, %v982
    %v985 = vsel %vm971, %v952, %v949
    %v986 = vsel %vm973, %v955, %v985
    %v987 = vsel %vm975, %v958, %v986
    %v988 = vsel %vm977, %v961, %v987
    %v989 = vsel %vm979, %v964, %v988
    %v990 = vsel %vm981, %v967, %v989
    %v991 = vsel %vm983, %v970, %v990
    %v994 = vsel %vm151, %v984, -inf
    %995 = vmax.xlane.f32.xlu0 %v994
    %v996 = vpop.xlane.xlu0 %995
    %v997 = vsel %vm151, %v991, -inf
    %998 = vmax.xlane.f32.xlu0 %v997
    %v999 = vpop.xlane.xlu0 %998
    %v1002 = vperm.slane %v996, 0
    %v1003 = vperm.slane %v996, 1
    %v1004 = vperm.slane %v996, 2
    %v1005 = vperm.slane %v996, 3
    %v1006 = vperm.slane %v996, 4
    %v1007 = vperm.slane %v996, 5
    %v1008 = vperm.slane %v996, 6
    %v1009 = vperm.slane %v996, 7
    %v1010 = vperm.slane %v999, 0
    %v1011 = vperm.slane %v999, 1
    %v1012 = vperm.slane %v999, 2
    %v1013 = vperm.slane %v999, 3
    %v1014 = vperm.slane %v999, 4
    %v1015 = vperm.slane %v999, 5
    %v1016 = vperm.slane %v999, 6
    %v1017 = vperm.slane %v999, 7
    %v1034 = vsub.f32 %v759, %v1002
    %v1035 = vsub.f32 %v760, %v1002
    %v1036 = vsub.f32 %v761, %v1003
    %v1037 = vsub.f32 %v762, %v1003
    %v1038 = vsub.f32 %v763, %v1004
    %v1039 = vsub.f32 %v764, %v1004
    %v1040 = vsub.f32 %v765, %v1005
    %v1041 = vsub.f32 %v766, %v1005
    %v1042 = vsub.f32 %v767, %v1006
    %v1043 = vsub.f32 %v768, %v1006
    %v1044 = vsub.f32 %v769, %v1007
    %v1045 = vsub.f32 %v770, %v1007
    %v1046 = vsub.f32 %v771, %v1008
    %v1047 = vsub.f32 %v772, %v1008
    %v1048 = vsub.f32 %v773, %v1009
    %v1049 = vsub.f32 %v774, %v1009
    %v1050 = vsub.f32 %v775, %v1010
    %v1051 = vsub.f32 %v776, %v1010
    %v1052 = vsub.f32 %v777, %v1011
    %v1053 = vsub.f32 %v778, %v1011
    %v1054 = vsub.f32 %v779, %v1012
    %v1055 = vsub.f32 %v780, %v1012
    %v1056 = vsub.f32 %v781, %v1013
    %v1057 = vsub.f32 %v782, %v1013
    %v1058 = vsub.f32 %v783, %v1014
    %v1059 = vsub.f32 %v784, %v1014
    %v1060 = vsub.f32 %v785, %v1015
    %v1061 = vsub.f32 %v786, %v1015
    %v1062 = vsub.f32 %v787, %v1016
    %v1063 = vsub.f32 %v788, %v1016
    %v1064 = vsub.f32 %v789, %v1017
    %v1065 = vsub.f32 %v790, %v1017
    %v1066 = vmul.f32 %v1034, 1.442695
    %v1067 = vpow.pop %v1066
    %v1068 = vmul.f32 %v1035, 1.442695
    %v1069 = vpow.pop %v1068
    %v1070 = vmul.f32 %v1036, 1.442695
    %v1071 = vpow.pop %v1070
    %v1072 = vmul.f32 %v1037, 1.442695
    %v1073 = vpow.pop %v1072
    %v1074 = vmul.f32 %v1038, 1.442695
    %v1075 = vpow.pop %v1074
    %v1076 = vmul.f32 %v1039, 1.442695
    %v1077 = vpow.pop %v1076
    %v1078 = vmul.f32 %v1040, 1.442695
    %v1079 = vpow.pop %v1078
    %v1080 = vmul.f32 %v1041, 1.442695
    %v1081 = vpow.pop %v1080
    %v1082 = vmul.f32 %v1042, 1.442695
    %v1083 = vpow.pop %v1082
    %v1084 = vmul.f32 %v1043, 1.442695
    %v1085 = vpow.pop %v1084
    %v1086 = vmul.f32 %v1044, 1.442695
    %v1087 = vpow.pop %v1086
    %v1088 = vmul.f32 %v1045, 1.442695
    %v1089 = vpow.pop %v1088
    %v1090 = vmul.f32 %v1046, 1.442695
    %v1091 = vpow.pop %v1090
    %v1092 = vmul.f32 %v1047, 1.442695
    %v1093 = vpow.pop %v1092
    %v1094 = vmul.f32 %v1048, 1.442695
    %v1095 = vpow.pop %v1094
    %v1096 = vmul.f32 %v1049, 1.442695
    %v1097 = vpow.pop %v1096
    %v1098 = vmul.f32 %v1050, 1.442695
    %v1099 = vpow.pop %v1098
    %v1100 = vmul.f32 %v1051, 1.442695
    %v1101 = vpow.pop %v1100
    %v1102 = vmul.f32 %v1052, 1.442695
    %v1103 = vpow.pop %v1102
    %v1104 = vmul.f32 %v1053, 1.442695
    %v1105 = vpow.pop %v1104
    %v1106 = vmul.f32 %v1054, 1.442695
    %v1107 = vpow.pop %v1106
    %v1108 = vmul.f32 %v1055, 1.442695
    %v1109 = vpow.pop %v1108
    %v1110 = vmul.f32 %v1056, 1.442695
    %v1111 = vpow.pop %v1110
    %v1112 = vmul.f32 %v1057, 1.442695
    %v1113 = vpow.pop %v1112
    %v1114 = vmul.f32 %v1058, 1.442695
    %v1115 = vpow.pop %v1114
    %v1116 = vmul.f32 %v1059, 1.442695
    %v1117 = vpow.pop %v1116
    %v1118 = vmul.f32 %v1060, 1.442695
    %v1119 = vpow.pop %v1118
    %v1120 = vmul.f32 %v1061, 1.442695
    %v1121 = vpow.pop %v1120
    %v1122 = vmul.f32 %v1062, 1.442695
    %v1123 = vpow.pop %v1122
    %v1124 = vmul.f32 %v1063, 1.442695
    %v1125 = vpow.pop %v1124
    %v1126 = vmul.f32 %v1064, 1.442695
    %v1127 = vpow.pop %v1126
    %v1128 = vmul.f32 %v1065, 1.442695
    %v1129 = vpow.pop %v1128
    %1162 = vset.pattern.permute.xlu0 0
    %1163 = vperm.xlu0 %1162, %v1067
    %v1164 = vpop.permute.xlu0 %1163
    %1165 = vset.pattern.permute.xlu0 0
    %1166 = vperm.xlu0 %1165, %v1069
    %v1167 = vpop.permute.xlu0 %1166
    %1168 = vset.pattern.permute.xlu0 0
    %1169 = vperm.xlu0 %1168, %v1071
    %v1170 = vpop.permute.xlu0 %1169
    %1171 = vset.pattern.permute.xlu0 0
    %1172 = vperm.xlu0 %1171, %v1073
    %v1173 = vpop.permute.xlu0 %1172
    %1174 = vset.pattern.permute.xlu0 0
    %1175 = vperm.xlu0 %1174, %v1075
    %v1176 = vpop.permute.xlu0 %1175
    %1177 = vset.pattern.permute.xlu0 0
    %1178 = vperm.xlu0 %1177, %v1077
    %v1179 = vpop.permute.xlu0 %1178
    %1180 = vset.pattern.permute.xlu0 0
    %1181 = vperm.xlu0 %1180, %v1079
    %v1182 = vpop.permute.xlu0 %1181
    %1183 = vset.pattern.permute.xlu0 0
    %1184 = vperm.xlu0 %1183, %v1081
    %v1185 = vpop.permute.xlu0 %1184
    %1186 = vset.pattern.permute.xlu0 0
    %1187 = vperm.xlu0 %1186, %v1083
    %v1188 = vpop.permute.xlu0 %1187
    %1189 = vset.pattern.permute.xlu0 0
    %1190 = vperm.xlu0 %1189, %v1085
    %v1191 = vpop.permute.xlu0 %1190
    %1192 = vset.pattern.permute.xlu0 0
    %1193 = vperm.xlu0 %1192, %v1087
    %v1194 = vpop.permute.xlu0 %1193
    %1195 = vset.pattern.permute.xlu0 0
    %1196 = vperm.xlu0 %1195, %v1089
    %v1197 = vpop.permute.xlu0 %1196
    %1198 = vset.pattern.permute.xlu0 0
    %1199 = vperm.xlu0 %1198, %v1091
    %v1200 = vpop.permute.xlu0 %1199
    %1201 = vset.pattern.permute.xlu0 0
    %1202 = vperm.xlu0 %1201, %v1093
    %v1203 = vpop.permute.xlu0 %1202
    %1204 = vset.pattern.permute.xlu0 0
    %1205 = vperm.xlu0 %1204, %v1095
    %v1206 = vpop.permute.xlu0 %1205
    %1207 = vset.pattern.permute.xlu0 0
    %1208 = vperm.xlu0 %1207, %v1097
    %v1209 = vpop.permute.xlu0 %1208
    %1210 = vset.pattern.permute.xlu0 0
    %1211 = vperm.xlu0 %1210, %v1099
    %v1212 = vpop.permute.xlu0 %1211
    %1213 = vset.pattern.permute.xlu0 0
    %1214 = vperm.xlu0 %1213, %v1101
    %v1215 = vpop.permute.xlu0 %1214
    %1216 = vset.pattern.permute.xlu0 0
    %1217 = vperm.xlu0 %1216, %v1103
    %v1218 = vpop.permute.xlu0 %1217
    %1219 = vset.pattern.permute.xlu0 0
    %1220 = vperm.xlu0 %1219, %v1105
    %v1221 = vpop.permute.xlu0 %1220
    %1222 = vset.pattern.permute.xlu0 0
    %1223 = vperm.xlu0 %1222, %v1107
    %v1224 = vpop.permute.xlu0 %1223
    %1225 = vset.pattern.permute.xlu0 0
    %1226 = vperm.xlu0 %1225, %v1109
    %v1227 = vpop.permute.xlu0 %1226
    %1228 = vset.pattern.permute.xlu0 0
    %1229 = vperm.xlu0 %1228, %v1111
    %v1230 = vpop.permute.xlu0 %1229
    %1231 = vset.pattern.permute.xlu0 0
    %1232 = vperm.xlu0 %1231, %v1113
    %v1233 = vpop.permute.xlu0 %1232
    %1234 = vset.pattern.permute.xlu0 0
    %1235 = vperm.xlu0 %1234, %v1115
    %v1236 = vpop.permute.xlu0 %1235
    %1237 = vset.pattern.permute.xlu0 0
    %1238 = vperm.xlu0 %1237, %v1117
    %v1239 = vpop.permute.xlu0 %1238
    %1240 = vset.pattern.permute.xlu0 0
    %1241 = vperm.xlu0 %1240, %v1119
    %v1242 = vpop.permute.xlu0 %1241
    %1243 = vset.pattern.permute.xlu0 0
    %1244 = vperm.xlu0 %1243, %v1121
    %v1245 = vpop.permute.xlu0 %1244
    %1246 = vset.pattern.permute.xlu0 0
    %1247 = vperm.xlu0 %1246, %v1123
    %v1248 = vpop.permute.xlu0 %1247
    %1249 = vset.pattern.permute.xlu0 0
    %1250 = vperm.xlu0 %1249, %v1125
    %v1251 = vpop.permute.xlu0 %1250
    %1252 = vset.pattern.permute.xlu0 0
    %1253 = vperm.xlu0 %1252, %v1127
    %v1254 = vpop.permute.xlu0 %1253
    %1255 = vset.pattern.permute.xlu0 0
    %1256 = vperm.xlu0 %1255, %v1129
    %v1257 = vpop.permute.xlu0 %1256
    %v1258 = vperm.slane %v1164, %v920
    %v1259 = vperm.slane %v1167, %v922
    %v1260 = vsel %vm924, %v1259, %v1258
    %v1261 = vperm.slane %v1170, %v920
    %v1262 = vperm.slane %v1173, %v922
    %v1263 = vsel %vm924, %v1262, %v1261
    %v1264 = vperm.slane %v1176, %v920
    %v1265 = vperm.slane %v1179, %v922
    %v1266 = vsel %vm924, %v1265, %v1264
    %v1267 = vperm.slane %v1182, %v920
    %v1268 = vperm.slane %v1185, %v922
    %v1269 = vsel %vm924, %v1268, %v1267
    %v1270 = vperm.slane %v1188, %v920
    %v1271 = vperm.slane %v1191, %v922
    %v1272 = vsel %vm924, %v1271, %v1270
    %v1273 = vperm.slane %v1194, %v920
    %v1274 = vperm.slane %v1197, %v922
    %v1275 = vsel %vm924, %v1274, %v1273
    %v1276 = vperm.slane %v1200, %v920
    %v1277 = vperm.slane %v1203, %v922
    %v1278 = vsel %vm924, %v1277, %v1276
    %v1279 = vperm.slane %v1206, %v920
    %v1280 = vperm.slane %v1209, %v922
    %v1281 = vsel %vm924, %v1280, %v1279
    %v1282 = vperm.slane %v1212, %v920
    %v1283 = vperm.slane %v1215, %v922
    %v1284 = vsel %vm924, %v1283, %v1282
    %v1285 = vperm.slane %v1218, %v920
    %v1286 = vperm.slane %v1221, %v922
    %v1287 = vsel %vm924, %v1286, %v1285
    %v1288 = vperm.slane %v1224, %v920
    %v1289 = vperm.slane %v1227, %v922
    %v1290 = vsel %vm924, %v1289, %v1288
    %v1291 = vperm.slane %v1230, %v920
    %v1292 = vperm.slane %v1233, %v922
    %v1293 = vsel %vm924, %v1292, %v1291
    %v1294 = vperm.slane %v1236, %v920
    %v1295 = vperm.slane %v1239, %v922
    %v1296 = vsel %vm924, %v1295, %v1294
    %v1297 = vperm.slane %v1242, %v920
    %v1298 = vperm.slane %v1245, %v922
    %v1299 = vsel %vm924, %v1298, %v1297
    %v1300 = vperm.slane %v1248, %v920
    %v1301 = vperm.slane %v1251, %v922
    %v1302 = vsel %vm924, %v1301, %v1300
    %v1303 = vperm.slane %v1254, %v920
    %v1304 = vperm.slane %v1257, %v922
    %v1305 = vsel %vm924, %v1304, %v1303
    %v1306 = vsel %vm971, %v1263, %v1260
    %v1307 = vsel %vm973, %v1266, %v1306
    %v1308 = vsel %vm975, %v1269, %v1307
    %v1309 = vsel %vm977, %v1272, %v1308
    %v1310 = vsel %vm979, %v1275, %v1309
    %v1311 = vsel %vm981, %v1278, %v1310
    %v1312 = vsel %vm983, %v1281, %v1311
    %v1313 = vsel %vm971, %v1287, %v1284
    %v1314 = vsel %vm973, %v1290, %v1313
    %v1315 = vsel %vm975, %v1293, %v1314
    %v1316 = vsel %vm977, %v1296, %v1315
    %v1317 = vsel %vm979, %v1299, %v1316
    %v1318 = vsel %vm981, %v1302, %v1317
    %v1319 = vsel %vm983, %v1305, %v1318
    %v1322 = vsel %vm151, %v1312, 0.0
    %1323 = vadd.xlane.f32.xlu0 %v1322
    %v1324 = vpop.xlane.xlu0 %1323
    %v1325 = vsel %vm151, %v1319, 0.0
    %1326 = vadd.xlane.f32.xlu0 %v1325
    %v1327 = vpop.xlane.xlu0 %1326
    %v1328 = vrcp.pop %v1324
    %v1329 = vrcp.pop %v1327
    %v1332 = vperm.slane %v1328, 0
    %v1333 = vperm.slane %v1328, 1
    %v1334 = vperm.slane %v1328, 2
    %v1335 = vperm.slane %v1328, 3
    %v1336 = vperm.slane %v1328, 4
    %v1337 = vperm.slane %v1328, 5
    %v1338 = vperm.slane %v1328, 6
    %v1339 = vperm.slane %v1328, 7
    %v1340 = vperm.slane %v1329, 0
    %v1341 = vperm.slane %v1329, 1
    %v1342 = vperm.slane %v1329, 2
    %v1343 = vperm.slane %v1329, 3
    %v1344 = vperm.slane %v1329, 4
    %v1345 = vperm.slane %v1329, 5
    %v1346 = vperm.slane %v1329, 6
    %v1347 = vperm.slane %v1329, 7
    %v1364 = vmul.f32 %v1067, %v1332
    %v1365 = vmul.f32 %v1069, %v1332
    %v1366 = vmul.f32 %v1071, %v1333
    %v1367 = vmul.f32 %v1073, %v1333
    %v1368 = vmul.f32 %v1075, %v1334
    %v1369 = vmul.f32 %v1077, %v1334
    %v1370 = vmul.f32 %v1079, %v1335
    %v1371 = vmul.f32 %v1081, %v1335
    %v1372 = vmul.f32 %v1083, %v1336
    %v1373 = vmul.f32 %v1085, %v1336
    %v1374 = vmul.f32 %v1087, %v1337
    %v1375 = vmul.f32 %v1089, %v1337
    %v1376 = vmul.f32 %v1091, %v1338
    %v1377 = vmul.f32 %v1093, %v1338
    %v1378 = vmul.f32 %v1095, %v1339
    %v1379 = vmul.f32 %v1097, %v1339
    %v1380 = vmul.f32 %v1099, %v1340
    %v1381 = vmul.f32 %v1101, %v1340
    %v1382 = vmul.f32 %v1103, %v1341
    %v1383 = vmul.f32 %v1105, %v1341
    %v1384 = vmul.f32 %v1107, %v1342
    %v1385 = vmul.f32 %v1109, %v1342
    %v1386 = vmul.f32 %v1111, %v1343
    %v1387 = vmul.f32 %v1113, %v1343
    %v1388 = vmul.f32 %v1115, %v1344
    %v1389 = vmul.f32 %v1117, %v1344
    %v1390 = vmul.f32 %v1119, %v1345
    %v1391 = vmul.f32 %v1121, %v1345
    %v1392 = vmul.f32 %v1123, %v1346
    %v1393 = vmul.f32 %v1125, %v1346
    %v1394 = vmul.f32 %v1127, %v1347
    %v1395 = vmul.f32 %v1129, %v1347
    %1428 = vset.pattern.permute.xlu0 0
    %1429 = vperm.xlu0 %1428, %v1364
    %v1430 = vpop.permute.xlu0 %1429
    %1431 = vset.pattern.permute.xlu0 0
    %1432 = vperm.xlu0 %1431, %v1365
    %v1433 = vpop.permute.xlu0 %1432
    %1434 = vset.pattern.permute.xlu0 0
    %1435 = vperm.xlu0 %1434, %v1366
    %v1436 = vpop.permute.xlu0 %1435
    %1437 = vset.pattern.permute.xlu0 0
    %1438 = vperm.xlu0 %1437, %v1367
    %v1439 = vpop.permute.xlu0 %1438
    %1440 = vset.pattern.permute.xlu0 0
    %1441 = vperm.xlu0 %1440, %v1368
    %v1442 = vpop.permute.xlu0 %1441
    %1443 = vset.pattern.permute.xlu0 0
    %1444 = vperm.xlu0 %1443, %v1369
    %v1445 = vpop.permute.xlu0 %1444
    %1446 = vset.pattern.permute.xlu0 0
    %1447 = vperm.xlu0 %1446, %v1370
    %v1448 = vpop.permute.xlu0 %1447
    %1449 = vset.pattern.permute.xlu0 0
    %1450 = vperm.xlu0 %1449, %v1371
    %v1451 = vpop.permute.xlu0 %1450
    %1452 = vset.pattern.permute.xlu0 0
    %1453 = vperm.xlu0 %1452, %v1372
    %v1454 = vpop.permute.xlu0 %1453
    %1455 = vset.pattern.permute.xlu0 0
    %1456 = vperm.xlu0 %1455, %v1373
    %v1457 = vpop.permute.xlu0 %1456
    %1458 = vset.pattern.permute.xlu0 0
    %1459 = vperm.xlu0 %1458, %v1374
    %v1460 = vpop.permute.xlu0 %1459
    %1461 = vset.pattern.permute.xlu0 0
    %1462 = vperm.xlu0 %1461, %v1375
    %v1463 = vpop.permute.xlu0 %1462
    %1464 = vset.pattern.permute.xlu0 0
    %1465 = vperm.xlu0 %1464, %v1376
    %v1466 = vpop.permute.xlu0 %1465
    %1467 = vset.pattern.permute.xlu0 0
    %1468 = vperm.xlu0 %1467, %v1377
    %v1469 = vpop.permute.xlu0 %1468
    %1470 = vset.pattern.permute.xlu0 0
    %1471 = vperm.xlu0 %1470, %v1378
    %v1472 = vpop.permute.xlu0 %1471
    %1473 = vset.pattern.permute.xlu0 0
    %1474 = vperm.xlu0 %1473, %v1379
    %v1475 = vpop.permute.xlu0 %1474
    %1476 = vset.pattern.permute.xlu0 0
    %1477 = vperm.xlu0 %1476, %v1380
    %v1478 = vpop.permute.xlu0 %1477
    %1479 = vset.pattern.permute.xlu0 0
    %1480 = vperm.xlu0 %1479, %v1381
    %v1481 = vpop.permute.xlu0 %1480
    %1482 = vset.pattern.permute.xlu0 0
    %1483 = vperm.xlu0 %1482, %v1382
    %v1484 = vpop.permute.xlu0 %1483
    %1485 = vset.pattern.permute.xlu0 0
    %1486 = vperm.xlu0 %1485, %v1383
    %v1487 = vpop.permute.xlu0 %1486
    %1488 = vset.pattern.permute.xlu0 0
    %1489 = vperm.xlu0 %1488, %v1384
    %v1490 = vpop.permute.xlu0 %1489
    %1491 = vset.pattern.permute.xlu0 0
    %1492 = vperm.xlu0 %1491, %v1385
    %v1493 = vpop.permute.xlu0 %1492
    %1494 = vset.pattern.permute.xlu0 0
    %1495 = vperm.xlu0 %1494, %v1386
    %v1496 = vpop.permute.xlu0 %1495
    %1497 = vset.pattern.permute.xlu0 0
    %1498 = vperm.xlu0 %1497, %v1387
    %v1499 = vpop.permute.xlu0 %1498
    %1500 = vset.pattern.permute.xlu0 0
    %1501 = vperm.xlu0 %1500, %v1388
    %v1502 = vpop.permute.xlu0 %1501
    %1503 = vset.pattern.permute.xlu0 0
    %1504 = vperm.xlu0 %1503, %v1389
    %v1505 = vpop.permute.xlu0 %1504
    %1506 = vset.pattern.permute.xlu0 0
    %1507 = vperm.xlu0 %1506, %v1390
    %v1508 = vpop.permute.xlu0 %1507
    %1509 = vset.pattern.permute.xlu0 0
    %1510 = vperm.xlu0 %1509, %v1391
    %v1511 = vpop.permute.xlu0 %1510
    %1512 = vset.pattern.permute.xlu0 0
    %1513 = vperm.xlu0 %1512, %v1392
    %v1514 = vpop.permute.xlu0 %1513
    %1515 = vset.pattern.permute.xlu0 0
    %1516 = vperm.xlu0 %1515, %v1393
    %v1517 = vpop.permute.xlu0 %1516
    %1518 = vset.pattern.permute.xlu0 0
    %1519 = vperm.xlu0 %1518, %v1394
    %v1520 = vpop.permute.xlu0 %1519
    %1521 = vset.pattern.permute.xlu0 0
    %1522 = vperm.xlu0 %1521, %v1395
    %v1523 = vpop.permute.xlu0 %1522
    %v1524 = vperm.slane %v1430, %v920
    %v1525 = vperm.slane %v1433, %v922
    %v1526 = vsel %vm924, %v1525, %v1524
    %v1527 = vperm.slane %v1436, %v920
    %v1528 = vperm.slane %v1439, %v922
    %v1529 = vsel %vm924, %v1528, %v1527
    %v1530 = vperm.slane %v1442, %v920
    %v1531 = vperm.slane %v1445, %v922
    %v1532 = vsel %vm924, %v1531, %v1530
    %v1533 = vperm.slane %v1448, %v920
    %v1534 = vperm.slane %v1451, %v922
    %v1535 = vsel %vm924, %v1534, %v1533
    %v1536 = vperm.slane %v1454, %v920
    %v1537 = vperm.slane %v1457, %v922
    %v1538 = vsel %vm924, %v1537, %v1536
    %v1539 = vperm.slane %v1460, %v920
    %v1540 = vperm.slane %v1463, %v922
    %v1541 = vsel %vm924, %v1540, %v1539
    %v1542 = vperm.slane %v1466, %v920
    %v1543 = vperm.slane %v1469, %v922
    %v1544 = vsel %vm924, %v1543, %v1542
    %v1545 = vperm.slane %v1472, %v920
    %v1546 = vperm.slane %v1475, %v922
    %v1547 = vsel %vm924, %v1546, %v1545
    %v1548 = vperm.slane %v1478, %v920
    %v1549 = vperm.slane %v1481, %v922
    %v1550 = vsel %vm924, %v1549, %v1548
    %v1551 = vperm.slane %v1484, %v920
    %v1552 = vperm.slane %v1487, %v922
    %v1553 = vsel %vm924, %v1552, %v1551
    %v1554 = vperm.slane %v1490, %v920
    %v1555 = vperm.slane %v1493, %v922
    %v1556 = vsel %vm924, %v1555, %v1554
    %v1557 = vperm.slane %v1496, %v920
    %v1558 = vperm.slane %v1499, %v922
    %v1559 = vsel %vm924, %v1558, %v1557
    %v1560 = vperm.slane %v1502, %v920
    %v1561 = vperm.slane %v1505, %v922
    %v1562 = vsel %vm924, %v1561, %v1560
    %v1563 = vperm.slane %v1508, %v920
    %v1564 = vperm.slane %v1511, %v922
    %v1565 = vsel %vm924, %v1564, %v1563
    %v1566 = vperm.slane %v1514, %v920
    %v1567 = vperm.slane %v1517, %v922
    %v1568 = vsel %vm924, %v1567, %v1566
    %v1569 = vperm.slane %v1520, %v920
    %v1570 = vperm.slane %v1523, %v922
    %v1571 = vsel %vm924, %v1570, %v1569
    %v1572 = vsel %vm971, %v1529, %v1526
    %v1573 = vsel %vm973, %v1532, %v1572
    %v1574 = vsel %vm975, %v1535, %v1573
    %v1575 = vsel %vm977, %v1538, %v1574
    %v1576 = vsel %vm979, %v1541, %v1575
    %v1577 = vsel %vm981, %v1544, %v1576
    %v1578 = vsel %vm983, %v1547, %v1577
    %v1579 = vsel %vm971, %v1553, %v1550
    %v1580 = vsel %vm973, %v1556, %v1579
    %v1581 = vsel %vm975, %v1559, %v1580
    %v1582 = vsel %vm977, %v1562, %v1581
    %v1583 = vsel %vm979, %v1565, %v1582
    %v1584 = vsel %vm981, %v1568, %v1583
    %v1585 = vsel %vm983, %v1571, %v1584
    %v1586 = vsel %vm151, %v1578, 0
    %v1588 = vsel %vm151, %v1585, 0
    %1590 = vmatpush.msra.mxu0 0.0
    %1591 = vmatpush.msra.mxu0 0.0
    %1592 = vmatpush.msra.mxu0 0.0
    %1593 = vmatpush.msra.mxu0 0.0
    %1594 = vmatpush.msra.mxu0 0.0
    %1595 = vmatpush.msra.mxu0 0.0
    %1596 = vmatpush.msra.mxu0 0.0
    %1597 = vmatpush.msra.mxu0 0.0
    %1598 = vmatpush.msra.mxu0 0.0
    %1599 = vmatpush.msra.mxu0 0.0
    %1600 = vmatpush.msra.mxu0 0.0
    %1601 = vmatpush.msra.mxu0 0.0
    %1602 = vmatpush.msra.mxu0 0.0
    %1603 = vmatpush.msra.mxu0 0.0
    %1604 = vmatpush.msra.mxu0 %v179
    %1605 = vmatpush.msra.mxu0 %v176
    %1606 = vmatmul.f32.gmra.mxu0 %v1586
    %v1607 = vpop.f32.mrf.mxu0
    %v1608 = vadd.f32 0.0, %v1607
    %1609 = vmatmul.f32.gmra.mxu0 %v1588
    %v1610 = vpop.f32.mrf.mxu0
    %v1611 = vadd.f32 0.0, %v1610
    %1612 = vdwg.mxu0
    %v1613 = vperm.slane %v210, 1
    %1615 = vrot.lane.b32.xlu0 %v1613, 8
    %v1616 = vpop.permute.xlu0 %1615
    %v1618 = vmul.f32 %v355, %v1616
    %v1619 = vmul.f32 %v356, %v1616
    %v1620 = vmul.f32 %v357, %v1616
    %v1621 = vmul.f32 %v358, %v1616
    %v1622 = vmul.f32 %v359, %v1616
    %v1623 = vmul.f32 %v360, %v1616
    %v1624 = vmul.f32 %v361, %v1616
    %v1625 = vmul.f32 %v362, %v1616
    %v1626 = vmul.f32 %v363, %v1616
    %v1627 = vmul.f32 %v364, %v1616
    %v1628 = vmul.f32 %v365, %v1616
    %v1629 = vmul.f32 %v366, %v1616
    %v1630 = vmul.f32 %v367, %v1616
    %v1631 = vmul.f32 %v368, %v1616
    %v1632 = vmul.f32 %v369, %v1616
    %v1633 = vmul.f32 %v370, %v1616
    %v1634 = vmul.f32 %v371, %v1616
    %v1635 = vmul.f32 %v372, %v1616
    %v1636 = vmul.f32 %v373, %v1616
    %v1637 = vmul.f32 %v374, %v1616
    %v1638 = vmul.f32 %v375, %v1616
    %v1639 = vmul.f32 %v376, %v1616
    %v1640 = vmul.f32 %v377, %v1616
    %v1641 = vmul.f32 %v378, %v1616
    %v1642 = vmul.f32 %v379, %v1616
    %v1643 = vmul.f32 %v380, %v1616
    %v1644 = vmul.f32 %v381, %v1616
    %v1645 = vmul.f32 %v382, %v1616
    %v1646 = vmul.f32 %v383, %v1616
    %v1647 = vmul.f32 %v384, %v1616
    %v1648 = vmul.f32 %v385, %v1616
    %v1649 = vmul.f32 %v386, %v1616
    %1682 = vrot.lane.b32.xlu0 %v1618, 120
    %v1683 = vpop.permute.xlu0 %1682
    %1684 = vrot.lane.b32.xlu0 %v1619, 120
    %v1685 = vpop.permute.xlu0 %1684
    %1686 = vrot.lane.b32.xlu0 %v1620, 120
    %v1687 = vpop.permute.xlu0 %1686
    %1688 = vrot.lane.b32.xlu0 %v1621, 120
    %v1689 = vpop.permute.xlu0 %1688
    %1690 = vrot.lane.b32.xlu0 %v1622, 120
    %v1691 = vpop.permute.xlu0 %1690
    %1692 = vrot.lane.b32.xlu0 %v1623, 120
    %v1693 = vpop.permute.xlu0 %1692
    %1694 = vrot.lane.b32.xlu0 %v1624, 120
    %v1695 = vpop.permute.xlu0 %1694
    %1696 = vrot.lane.b32.xlu0 %v1625, 120
    %v1697 = vpop.permute.xlu0 %1696
    %1698 = vrot.lane.b32.xlu0 %v1626, 120
    %v1699 = vpop.permute.xlu0 %1698
    %1700 = vrot.lane.b32.xlu0 %v1627, 120
    %v1701 = vpop.permute.xlu0 %1700
    %1702 = vrot.lane.b32.xlu0 %v1628, 120
    %v1703 = vpop.permute.xlu0 %1702
    %1704 = vrot.lane.b32.xlu0 %v1629, 120
    %v1705 = vpop.permute.xlu0 %1704
    %1706 = vrot.lane.b32.xlu0 %v1630, 120
    %v1707 = vpop.permute.xlu0 %1706
    %1708 = vrot.lane.b32.xlu0 %v1631, 120
    %v1709 = vpop.permute.xlu0 %1708
    %1710 = vrot.lane.b32.xlu0 %v1632, 120
    %v1711 = vpop.permute.xlu0 %1710
    %1712 = vrot.lane.b32.xlu0 %v1633, 120
    %v1713 = vpop.permute.xlu0 %1712
    %1714 = vrot.lane.b32.xlu0 %v1634, 120
    %v1715 = vpop.permute.xlu0 %1714
    %1716 = vrot.lane.b32.xlu0 %v1635, 120
    %v1717 = vpop.permute.xlu0 %1716
    %1718 = vrot.lane.b32.xlu0 %v1636, 120
    %v1719 = vpop.permute.xlu0 %1718
    %1720 = vrot.lane.b32.xlu0 %v1637, 120
    %v1721 = vpop.permute.xlu0 %1720
    %1722 = vrot.lane.b32.xlu0 %v1638, 120
    %v1723 = vpop.permute.xlu0 %1722
    %1724 = vrot.lane.b32.xlu0 %v1639, 120
    %v1725 = vpop.permute.xlu0 %1724
    %1726 = vrot.lane.b32.xlu0 %v1640, 120
    %v1727 = vpop.permute.xlu0 %1726
    %1728 = vrot.lane.b32.xlu0 %v1641, 120
    %v1729 = vpop.permute.xlu0 %1728
    %1730 = vrot.lane.b32.xlu0 %v1642, 120
    %v1731 = vpop.permute.xlu0 %1730
    %1732 = vrot.lane.b32.xlu0 %v1643, 120
    %v1733 = vpop.permute.xlu0 %1732
    %1734 = vrot.lane.b32.xlu0 %v1644, 120
    %v1735 = vpop.permute.xlu0 %1734
    %1736 = vrot.lane.b32.xlu0 %v1645, 120
    %v1737 = vpop.permute.xlu0 %1736
    %1738 = vrot.lane.b32.xlu0 %v1646, 120
    %v1739 = vpop.permute.xlu0 %1738
    %1740 = vrot.lane.b32.xlu0 %v1647, 120
    %v1741 = vpop.permute.xlu0 %1740
    %1742 = vrot.lane.b32.xlu0 %v1648, 120
    %v1743 = vpop.permute.xlu0 %1742
    %1744 = vrot.lane.b32.xlu0 %v1649, 120
    %v1745 = vpop.permute.xlu0 %1744
    %v1778 = vsel %vm420, %v1683, 0.0
    %1779 = vadd.xlane.f32.xlu0 %v1778
    %v1780 = vpop.xlane.xlu0 %1779
    %v1781 = vsel %vm420, %v1685, 0.0
    %1782 = vadd.xlane.f32.xlu0 %v1781
    %v1783 = vpop.xlane.xlu0 %1782
    %v1784 = vsel %vm420, %v1687, 0.0
    %1785 = vadd.xlane.f32.xlu0 %v1784
    %v1786 = vpop.xlane.xlu0 %1785
    %v1787 = vsel %vm420, %v1689, 0.0
    %1788 = vadd.xlane.f32.xlu0 %v1787
    %v1789 = vpop.xlane.xlu0 %1788
    %v1790 = vsel %vm420, %v1691, 0.0
    %1791 = vadd.xlane.f32.xlu0 %v1790
    %v1792 = vpop.xlane.xlu0 %1791
    %v1793 = vsel %vm420, %v1693, 0.0
    %1794 = vadd.xlane.f32.xlu0 %v1793
    %v1795 = vpop.xlane.xlu0 %1794
    %v1796 = vsel %vm420, %v1695, 0.0
    %1797 = vadd.xlane.f32.xlu0 %v1796
    %v1798 = vpop.xlane.xlu0 %1797
    %v1799 = vsel %vm420, %v1697, 0.0
    %1800 = vadd.xlane.f32.xlu0 %v1799
    %v1801 = vpop.xlane.xlu0 %1800
    %v1802 = vsel %vm420, %v1699, 0.0
    %1803 = vadd.xlane.f32.xlu0 %v1802
    %v1804 = vpop.xlane.xlu0 %1803
    %v1805 = vsel %vm420, %v1701, 0.0
    %1806 = vadd.xlane.f32.xlu0 %v1805
    %v1807 = vpop.xlane.xlu0 %1806
    %v1808 = vsel %vm420, %v1703, 0.0
    %1809 = vadd.xlane.f32.xlu0 %v1808
    %v1810 = vpop.xlane.xlu0 %1809
    %v1811 = vsel %vm420, %v1705, 0.0
    %1812 = vadd.xlane.f32.xlu0 %v1811
    %v1813 = vpop.xlane.xlu0 %1812
    %v1814 = vsel %vm420, %v1707, 0.0
    %1815 = vadd.xlane.f32.xlu0 %v1814
    %v1816 = vpop.xlane.xlu0 %1815
    %v1817 = vsel %vm420, %v1709, 0.0
    %1818 = vadd.xlane.f32.xlu0 %v1817
    %v1819 = vpop.xlane.xlu0 %1818
    %v1820 = vsel %vm420, %v1711, 0.0
    %1821 = vadd.xlane.f32.xlu0 %v1820
    %v1822 = vpop.xlane.xlu0 %1821
    %v1823 = vsel %vm420, %v1713, 0.0
    %1824 = vadd.xlane.f32.xlu0 %v1823
    %v1825 = vpop.xlane.xlu0 %1824
    %v1826 = vsel %vm420, %v1715, 0.0
    %1827 = vadd.xlane.f32.xlu0 %v1826
    %v1828 = vpop.xlane.xlu0 %1827
    %v1829 = vsel %vm420, %v1717, 0.0
    %1830 = vadd.xlane.f32.xlu0 %v1829
    %v1831 = vpop.xlane.xlu0 %1830
    %v1832 = vsel %vm420, %v1719, 0.0
    %1833 = vadd.xlane.f32.xlu0 %v1832
    %v1834 = vpop.xlane.xlu0 %1833
    %v1835 = vsel %vm420, %v1721, 0.0
    %1836 = vadd.xlane.f32.xlu0 %v1835
    %v1837 = vpop.xlane.xlu0 %1836
    %v1838 = vsel %vm420, %v1723, 0.0
    %1839 = vadd.xlane.f32.xlu0 %v1838
    %v1840 = vpop.xlane.xlu0 %1839
    %v1841 = vsel %vm420, %v1725, 0.0
    %1842 = vadd.xlane.f32.xlu0 %v1841
    %v1843 = vpop.xlane.xlu0 %1842
    %v1844 = vsel %vm420, %v1727, 0.0
    %1845 = vadd.xlane.f32.xlu0 %v1844
    %v1846 = vpop.xlane.xlu0 %1845
    %v1847 = vsel %vm420, %v1729, 0.0
    %1848 = vadd.xlane.f32.xlu0 %v1847
    %v1849 = vpop.xlane.xlu0 %1848
    %v1850 = vsel %vm420, %v1731, 0.0
    %1851 = vadd.xlane.f32.xlu0 %v1850
    %v1852 = vpop.xlane.xlu0 %1851
    %v1853 = vsel %vm420, %v1733, 0.0
    %1854 = vadd.xlane.f32.xlu0 %v1853
    %v1855 = vpop.xlane.xlu0 %1854
    %v1856 = vsel %vm420, %v1735, 0.0
    %1857 = vadd.xlane.f32.xlu0 %v1856
    %v1858 = vpop.xlane.xlu0 %1857
    %v1859 = vsel %vm420, %v1737, 0.0
    %1860 = vadd.xlane.f32.xlu0 %v1859
    %v1861 = vpop.xlane.xlu0 %1860
    %v1862 = vsel %vm420, %v1739, 0.0
    %1863 = vadd.xlane.f32.xlu0 %v1862
    %v1864 = vpop.xlane.xlu0 %1863
    %v1865 = vsel %vm420, %v1741, 0.0
    %1866 = vadd.xlane.f32.xlu0 %v1865
    %v1867 = vpop.xlane.xlu0 %1866
    %v1868 = vsel %vm420, %v1743, 0.0
    %1869 = vadd.xlane.f32.xlu0 %v1868
    %v1870 = vpop.xlane.xlu0 %1869
    %v1871 = vsel %vm420, %v1745, 0.0
    %1872 = vadd.xlane.f32.xlu0 %v1871
    %v1873 = vpop.xlane.xlu0 %1872
    %v1874 = vadd.f32 %v1780, %v525
    %v1875 = vadd.f32 %v1783, %v531
    %v1876 = vadd.f32 %v1786, %v538
    %v1877 = vadd.f32 %v1789, %v544
    %v1878 = vadd.f32 %v1792, %v551
    %v1879 = vadd.f32 %v1795, %v557
    %v1880 = vadd.f32 %v1798, %v564
    %v1881 = vadd.f32 %v1801, %v570
    %v1882 = vadd.f32 %v1804, %v577
    %v1883 = vadd.f32 %v1807, %v583
    %v1884 = vadd.f32 %v1810, %v590
    %v1885 = vadd.f32 %v1813, %v596
    %v1886 = vadd.f32 %v1816, %v603
    %v1887 = vadd.f32 %v1819, %v609
    %v1888 = vadd.f32 %v1822, %v616
    %v1889 = vadd.f32 %v1825, %v622
    %v1890 = vadd.f32 %v1828, %v629
    %v1891 = vadd.f32 %v1831, %v635
    %v1892 = vadd.f32 %v1834, %v642
    %v1893 = vadd.f32 %v1837, %v648
    %v1894 = vadd.f32 %v1840, %v655
    %v1895 = vadd.f32 %v1843, %v661
    %v1896 = vadd.f32 %v1846, %v668
    %v1897 = vadd.f32 %v1849, %v674
    %v1898 = vadd.f32 %v1852, %v681
    %v1899 = vadd.f32 %v1855, %v687
    %v1900 = vadd.f32 %v1858, %v694
    %v1901 = vadd.f32 %v1861, %v700
    %v1902 = vadd.f32 %v1864, %v707
    %v1903 = vadd.f32 %v1867, %v713
    %v1904 = vadd.f32 %v1870, %v720
    %v1905 = vadd.f32 %v1873, %v726
    %1938 = vset.pattern.permute.xlu0 0
    %1939 = vperm.xlu0 %1938, %v1874
    %v1940 = vpop.permute.xlu0 %1939
    %1941 = vset.pattern.permute.xlu0 0
    %1942 = vperm.xlu0 %1941, %v1875
    %v1943 = vpop.permute.xlu0 %1942
    %1944 = vset.pattern.permute.xlu0 0
    %1945 = vperm.xlu0 %1944, %v1876
    %v1946 = vpop.permute.xlu0 %1945
    %1947 = vset.pattern.permute.xlu0 0
    %1948 = vperm.xlu0 %1947, %v1877
    %v1949 = vpop.permute.xlu0 %1948
    %1950 = vset.pattern.permute.xlu0 0
    %1951 = vperm.xlu0 %1950, %v1878
    %v1952 = vpop.permute.xlu0 %1951
    %1953 = vset.pattern.permute.xlu0 0
    %1954 = vperm.xlu0 %1953, %v1879
    %v1955 = vpop.permute.xlu0 %1954
    %1956 = vset.pattern.permute.xlu0 0
    %1957 = vperm.xlu0 %1956, %v1880
    %v1958 = vpop.permute.xlu0 %1957
    %1959 = vset.pattern.permute.xlu0 0
    %1960 = vperm.xlu0 %1959, %v1881
    %v1961 = vpop.permute.xlu0 %1960
    %1962 = vset.pattern.permute.xlu0 0
    %1963 = vperm.xlu0 %1962, %v1882
    %v1964 = vpop.permute.xlu0 %1963
    %1965 = vset.pattern.permute.xlu0 0
    %1966 = vperm.xlu0 %1965, %v1883
    %v1967 = vpop.permute.xlu0 %1966
    %1968 = vset.pattern.permute.xlu0 0
    %1969 = vperm.xlu0 %1968, %v1884
    %v1970 = vpop.permute.xlu0 %1969
    %1971 = vset.pattern.permute.xlu0 0
    %1972 = vperm.xlu0 %1971, %v1885
    %v1973 = vpop.permute.xlu0 %1972
    %1974 = vset.pattern.permute.xlu0 0
    %1975 = vperm.xlu0 %1974, %v1886
    %v1976 = vpop.permute.xlu0 %1975
    %1977 = vset.pattern.permute.xlu0 0
    %1978 = vperm.xlu0 %1977, %v1887
    %v1979 = vpop.permute.xlu0 %1978
    %1980 = vset.pattern.permute.xlu0 0
    %1981 = vperm.xlu0 %1980, %v1888
    %v1982 = vpop.permute.xlu0 %1981
    %1983 = vset.pattern.permute.xlu0 0
    %1984 = vperm.xlu0 %1983, %v1889
    %v1985 = vpop.permute.xlu0 %1984
    %1986 = vset.pattern.permute.xlu0 0
    %1987 = vperm.xlu0 %1986, %v1890
    %v1988 = vpop.permute.xlu0 %1987
    %1989 = vset.pattern.permute.xlu0 0
    %1990 = vperm.xlu0 %1989, %v1891
    %v1991 = vpop.permute.xlu0 %1990
    %1992 = vset.pattern.permute.xlu0 0
    %1993 = vperm.xlu0 %1992, %v1892
    %v1994 = vpop.permute.xlu0 %1993
    %1995 = vset.pattern.permute.xlu0 0
    %1996 = vperm.xlu0 %1995, %v1893
    %v1997 = vpop.permute.xlu0 %1996
    %1998 = vset.pattern.permute.xlu0 0
    %1999 = vperm.xlu0 %1998, %v1894
    %v2000 = vpop.permute.xlu0 %1999
    %2001 = vset.pattern.permute.xlu0 0
    %2002 = vperm.xlu0 %2001, %v1895
    %v2003 = vpop.permute.xlu0 %2002
    %2004 = vset.pattern.permute.xlu0 0
    %2005 = vperm.xlu0 %2004, %v1896
    %v2006 = vpop.permute.xlu0 %2005
    %2007 = vset.pattern.permute.xlu0 0
    %2008 = vperm.xlu0 %2007, %v1897
    %v2009 = vpop.permute.xlu0 %2008
    %2010 = vset.pattern.permute.xlu0 0
    %2011 = vperm.xlu0 %2010, %v1898
    %v2012 = vpop.permute.xlu0 %2011
    %2013 = vset.pattern.permute.xlu0 0
    %2014 = vperm.xlu0 %2013, %v1899
    %v2015 = vpop.permute.xlu0 %2014
    %2016 = vset.pattern.permute.xlu0 0
    %2017 = vperm.xlu0 %2016, %v1900
    %v2018 = vpop.permute.xlu0 %2017
    %2019 = vset.pattern.permute.xlu0 0
    %2020 = vperm.xlu0 %2019, %v1901
    %v2021 = vpop.permute.xlu0 %2020
    %2022 = vset.pattern.permute.xlu0 0
    %2023 = vperm.xlu0 %2022, %v1902
    %v2024 = vpop.permute.xlu0 %2023
    %2025 = vset.pattern.permute.xlu0 0
    %2026 = vperm.xlu0 %2025, %v1903
    %v2027 = vpop.permute.xlu0 %2026
    %2028 = vset.pattern.permute.xlu0 0
    %2029 = vperm.xlu0 %2028, %v1904
    %v2030 = vpop.permute.xlu0 %2029
    %2031 = vset.pattern.permute.xlu0 0
    %2032 = vperm.xlu0 %2031, %v1905
    %v2033 = vpop.permute.xlu0 %2032
    %v2034 = vperm.slane %v1940, %v920
    %v2035 = vperm.slane %v1943, %v922
    %v2036 = vsel %vm924, %v2035, %v2034
    %v2037 = vperm.slane %v1946, %v920
    %v2038 = vperm.slane %v1949, %v922
    %v2039 = vsel %vm924, %v2038, %v2037
    %v2040 = vperm.slane %v1952, %v920
    %v2041 = vperm.slane %v1955, %v922
    %v2042 = vsel %vm924, %v2041, %v2040
    %v2043 = vperm.slane %v1958, %v920
    %v2044 = vperm.slane %v1961, %v922
    %v2045 = vsel %vm924, %v2044, %v2043
    %v2046 = vperm.slane %v1964, %v920
    %v2047 = vperm.slane %v1967, %v922
    %v2048 = vsel %vm924, %v2047, %v2046
    %v2049 = vperm.slane %v1970, %v920
    %v2050 = vperm.slane %v1973, %v922
    %v2051 = vsel %vm924, %v2050, %v2049
    %v2052 = vperm.slane %v1976, %v920
    %v2053 = vperm.slane %v1979, %v922
    %v2054 = vsel %vm924, %v2053, %v2052
    %v2055 = vperm.slane %v1982, %v920
    %v2056 = vperm.slane %v1985, %v922
    %v2057 = vsel %vm924, %v2056, %v2055
    %v2058 = vperm.slane %v1988, %v920
    %v2059 = vperm.slane %v1991, %v922
    %v2060 = vsel %vm924, %v2059, %v2058
    %v2061 = vperm.slane %v1994, %v920
    %v2062 = vperm.slane %v1997, %v922
    %v2063 = vsel %vm924, %v2062, %v2061
    %v2064 = vperm.slane %v2000, %v920
    %v2065 = vperm.slane %v2003, %v922
    %v2066 = vsel %vm924, %v2065, %v2064
    %v2067 = vperm.slane %v2006, %v920
    %v2068 = vperm.slane %v2009, %v922
    %v2069 = vsel %vm924, %v2068, %v2067
    %v2070 = vperm.slane %v2012, %v920
    %v2071 = vperm.slane %v2015, %v922
    %v2072 = vsel %vm924, %v2071, %v2070
    %v2073 = vperm.slane %v2018, %v920
    %v2074 = vperm.slane %v2021, %v922
    %v2075 = vsel %vm924, %v2074, %v2073
    %v2076 = vperm.slane %v2024, %v920
    %v2077 = vperm.slane %v2027, %v922
    %v2078 = vsel %vm924, %v2077, %v2076
    %v2079 = vperm.slane %v2030, %v920
    %v2080 = vperm.slane %v2033, %v922
    %v2081 = vsel %vm924, %v2080, %v2079
    %v2082 = vsel %vm971, %v2039, %v2036
    %v2083 = vsel %vm973, %v2042, %v2082
    %v2084 = vsel %vm975, %v2045, %v2083
    %v2085 = vsel %vm977, %v2048, %v2084
    %v2086 = vsel %vm979, %v2051, %v2085
    %v2087 = vsel %vm981, %v2054, %v2086
    %v2088 = vsel %vm983, %v2057, %v2087
    %v2089 = vsel %vm971, %v2063, %v2060
    %v2090 = vsel %vm973, %v2066, %v2089
    %v2091 = vsel %vm975, %v2069, %v2090
    %v2092 = vsel %vm977, %v2072, %v2091
    %v2093 = vsel %vm979, %v2075, %v2092
    %v2094 = vsel %vm981, %v2078, %v2093
    %v2095 = vsel %vm983, %v2081, %v2094
    %v2098 = vsel %vm151, %v2088, -inf
    %2099 = vmax.xlane.f32.xlu0 %v2098
    %v2100 = vpop.xlane.xlu0 %2099
    %v2101 = vsel %vm151, %v2095, -inf
    %2102 = vmax.xlane.f32.xlu0 %v2101
    %v2103 = vpop.xlane.xlu0 %2102
    %v2106 = vperm.slane %v2100, 0
    %v2107 = vperm.slane %v2100, 1
    %v2108 = vperm.slane %v2100, 2
    %v2109 = vperm.slane %v2100, 3
    %v2110 = vperm.slane %v2100, 4
    %v2111 = vperm.slane %v2100, 5
    %v2112 = vperm.slane %v2100, 6
    %v2113 = vperm.slane %v2100, 7
    %v2114 = vperm.slane %v2103, 0
    %v2115 = vperm.slane %v2103, 1
    %v2116 = vperm.slane %v2103, 2
    %v2117 = vperm.slane %v2103, 3
    %v2118 = vperm.slane %v2103, 4
    %v2119 = vperm.slane %v2103, 5
    %v2120 = vperm.slane %v2103, 6
    %v2121 = vperm.slane %v2103, 7
    %v2138 = vsub.f32 %v1874, %v2106
    %v2139 = vsub.f32 %v1875, %v2106
    %v2140 = vsub.f32 %v1876, %v2107
    %v2141 = vsub.f32 %v1877, %v2107
    %v2142 = vsub.f32 %v1878, %v2108
    %v2143 = vsub.f32 %v1879, %v2108
    %v2144 = vsub.f32 %v1880, %v2109
    %v2145 = vsub.f32 %v1881, %v2109
    %v2146 = vsub.f32 %v1882, %v2110
    %v2147 = vsub.f32 %v1883, %v2110
    %v2148 = vsub.f32 %v1884, %v2111
    %v2149 = vsub.f32 %v1885, %v2111
    %v2150 = vsub.f32 %v1886, %v2112
    %v2151 = vsub.f32 %v1887, %v2112
    %v2152 = vsub.f32 %v1888, %v2113
    %v2153 = vsub.f32 %v1889, %v2113
    %v2154 = vsub.f32 %v1890, %v2114
    %v2155 = vsub.f32 %v1891, %v2114
    %v2156 = vsub.f32 %v1892, %v2115
    %v2157 = vsub.f32 %v1893, %v2115
    %v2158 = vsub.f32 %v1894, %v2116
    %v2159 = vsub.f32 %v1895, %v2116
    %v2160 = vsub.f32 %v1896, %v2117
    %v2161 = vsub.f32 %v1897, %v2117
    %v2162 = vsub.f32 %v1898, %v2118
    %v2163 = vsub.f32 %v1899, %v2118
    %v2164 = vsub.f32 %v1900, %v2119
    %v2165 = vsub.f32 %v1901, %v2119
    %v2166 = vsub.f32 %v1902, %v2120
    %v2167 = vsub.f32 %v1903, %v2120
    %v2168 = vsub.f32 %v1904, %v2121
    %v2169 = vsub.f32 %v1905, %v2121
    %v2170 = vmul.f32 %v2138, 1.442695
    %v2171 = vpow.pop %v2170
    %v2172 = vmul.f32 %v2139, 1.442695
    %v2173 = vpow.pop %v2172
    %v2174 = vmul.f32 %v2140, 1.442695
    %v2175 = vpow.pop %v2174
    %v2176 = vmul.f32 %v2141, 1.442695
    %v2177 = vpow.pop %v2176
    %v2178 = vmul.f32 %v2142, 1.442695
    %v2179 = vpow.pop %v2178
    %v2180 = vmul.f32 %v2143, 1.442695
    %v2181 = vpow.pop %v2180
    %v2182 = vmul.f32 %v2144, 1.442695
    %v2183 = vpow.pop %v2182
    %v2184 = vmul.f32 %v2145, 1.442695
    %v2185 = vpow.pop %v2184
    %v2186 = vmul.f32 %v2146, 1.442695
    %v2187 = vpow.pop %v2186
    %v2188 = vmul.f32 %v2147, 1.442695
    %v2189 = vpow.pop %v2188
    %v2190 = vmul.f32 %v2148, 1.442695
    %v2191 = vpow.pop %v2190
    %v2192 = vmul.f32 %v2149, 1.442695
    %v2193 = vpow.pop %v2192
    %v2194 = vmul.f32 %v2150, 1.442695
    %v2195 = vpow.pop %v2194
    %v2196 = vmul.f32 %v2151, 1.442695
    %v2197 = vpow.pop %v2196
    %v2198 = vmul.f32 %v2152, 1.442695
    %v2199 = vpow.pop %v2198
    %v2200 = vmul.f32 %v2153, 1.442695
    %v2201 = vpow.pop %v2200
    %v2202 = vmul.f32 %v2154, 1.442695
    %v2203 = vpow.pop %v2202
    %v2204 = vmul.f32 %v2155, 1.442695
    %v2205 = vpow.pop %v2204
    %v2206 = vmul.f32 %v2156, 1.442695
    %v2207 = vpow.pop %v2206
    %v2208 = vmul.f32 %v2157, 1.442695
    %v2209 = vpow.pop %v2208
    %v2210 = vmul.f32 %v2158, 1.442695
    %v2211 = vpow.pop %v2210
    %v2212 = vmul.f32 %v2159, 1.442695
    %v2213 = vpow.pop %v2212
    %v2214 = vmul.f32 %v2160, 1.442695
    %v2215 = vpow.pop %v2214
    %v2216 = vmul.f32 %v2161, 1.442695
    %v2217 = vpow.pop %v2216
    %v2218 = vmul.f32 %v2162, 1.442695
    %v2219 = vpow.pop %v2218
    %v2220 = vmul.f32 %v2163, 1.442695
    %v2221 = vpow.pop %v2220
    %v2222 = vmul.f32 %v2164, 1.442695
    %v2223 = vpow.pop %v2222
    %v2224 = vmul.f32 %v2165, 1.442695
    %v2225 = vpow.pop %v2224
    %v2226 = vmul.f32 %v2166, 1.442695
    %v2227 = vpow.pop %v2226
    %v2228 = vmul.f32 %v2167, 1.442695
    %v2229 = vpow.pop %v2228
    %v2230 = vmul.f32 %v2168, 1.442695
    %v2231 = vpow.pop %v2230
    %v2232 = vmul.f32 %v2169, 1.442695
    %v2233 = vpow.pop %v2232
    %2266 = vset.pattern.permute.xlu0 0
    %2267 = vperm.xlu0 %2266, %v2171
    %v2268 = vpop.permute.xlu0 %2267
    %2269 = vset.pattern.permute.xlu0 0
    %2270 = vperm.xlu0 %2269, %v2173
    %v2271 = vpop.permute.xlu0 %2270
    %2272 = vset.pattern.permute.xlu0 0
    %2273 = vperm.xlu0 %2272, %v2175
    %v2274 = vpop.permute.xlu0 %2273
    %2275 = vset.pattern.permute.xlu0 0
    %2276 = vperm.xlu0 %2275, %v2177
    %v2277 = vpop.permute.xlu0 %2276
    %2278 = vset.pattern.permute.xlu0 0
    %2279 = vperm.xlu0 %2278, %v2179
    %v2280 = vpop.permute.xlu0 %2279
    %2281 = vset.pattern.permute.xlu0 0
    %2282 = vperm.xlu0 %2281, %v2181
    %v2283 = vpop.permute.xlu0 %2282
    %2284 = vset.pattern.permute.xlu0 0
    %2285 = vperm.xlu0 %2284, %v2183
    %v2286 = vpop.permute.xlu0 %2285
    %2287 = vset.pattern.permute.xlu0 0
    %2288 = vperm.xlu0 %2287, %v2185
    %v2289 = vpop.permute.xlu0 %2288
    %2290 = vset.pattern.permute.xlu0 0
    %2291 = vperm.xlu0 %2290, %v2187
    %v2292 = vpop.permute.xlu0 %2291
    %2293 = vset.pattern.permute.xlu0 0
    %2294 = vperm.xlu0 %2293, %v2189
    %v2295 = vpop.permute.xlu0 %2294
    %2296 = vset.pattern.permute.xlu0 0
    %2297 = vperm.xlu0 %2296, %v2191
    %v2298 = vpop.permute.xlu0 %2297
    %2299 = vset.pattern.permute.xlu0 0
    %2300 = vperm.xlu0 %2299, %v2193
    %v2301 = vpop.permute.xlu0 %2300
    %2302 = vset.pattern.permute.xlu0 0
    %2303 = vperm.xlu0 %2302, %v2195
    %v2304 = vpop.permute.xlu0 %2303
    %2305 = vset.pattern.permute.xlu0 0
    %2306 = vperm.xlu0 %2305, %v2197
    %v2307 = vpop.permute.xlu0 %2306
    %2308 = vset.pattern.permute.xlu0 0
    %2309 = vperm.xlu0 %2308, %v2199
    %v2310 = vpop.permute.xlu0 %2309
    %2311 = vset.pattern.permute.xlu0 0
    %2312 = vperm.xlu0 %2311, %v2201
    %v2313 = vpop.permute.xlu0 %2312
    %2314 = vset.pattern.permute.xlu0 0
    %2315 = vperm.xlu0 %2314, %v2203
    %v2316 = vpop.permute.xlu0 %2315
    %2317 = vset.pattern.permute.xlu0 0
    %2318 = vperm.xlu0 %2317, %v2205
    %v2319 = vpop.permute.xlu0 %2318
    %2320 = vset.pattern.permute.xlu0 0
    %2321 = vperm.xlu0 %2320, %v2207
    %v2322 = vpop.permute.xlu0 %2321
    %2323 = vset.pattern.permute.xlu0 0
    %2324 = vperm.xlu0 %2323, %v2209
    %v2325 = vpop.permute.xlu0 %2324
    %2326 = vset.pattern.permute.xlu0 0
    %2327 = vperm.xlu0 %2326, %v2211
    %v2328 = vpop.permute.xlu0 %2327
    %2329 = vset.pattern.permute.xlu0 0
    %2330 = vperm.xlu0 %2329, %v2213
    %v2331 = vpop.permute.xlu0 %2330
    %2332 = vset.pattern.permute.xlu0 0
    %2333 = vperm.xlu0 %2332, %v2215
    %v2334 = vpop.permute.xlu0 %2333
    %2335 = vset.pattern.permute.xlu0 0
    %2336 = vperm.xlu0 %2335, %v2217
    %v2337 = vpop.permute.xlu0 %2336
    %2338 = vset.pattern.permute.xlu0 0
    %2339 = vperm.xlu0 %2338, %v2219
    %v2340 = vpop.permute.xlu0 %2339
    %2341 = vset.pattern.permute.xlu0 0
    %2342 = vperm.xlu0 %2341, %v2221
    %v2343 = vpop.permute.xlu0 %2342
    %2344 = vset.pattern.permute.xlu0 0
    %2345 = vperm.xlu0 %2344, %v2223
    %v2346 = vpop.permute.xlu0 %2345
    %2347 = vset.pattern.permute.xlu0 0
    %2348 = vperm.xlu0 %2347, %v2225
    %v2349 = vpop.permute.xlu0 %2348
    %2350 = vset.pattern.permute.xlu0 0
    %2351 = vperm.xlu0 %2350, %v2227
    %v2352 = vpop.permute.xlu0 %2351
    %2353 = vset.pattern.permute.xlu0 0
    %2354 = vperm.xlu0 %2353, %v2229
    %v2355 = vpop.permute.xlu0 %2354
    %2356 = vset.pattern.permute.xlu0 0
    %2357 = vperm.xlu0 %2356, %v2231
    %v2358 = vpop.permute.xlu0 %2357
    %2359 = vset.pattern.permute.xlu0 0
    %2360 = vperm.xlu0 %2359, %v2233
    %v2361 = vpop.permute.xlu0 %2360
    %v2362 = vperm.slane %v2268, %v920
    %v2363 = vperm.slane %v2271, %v922
    %v2364 = vsel %vm924, %v2363, %v2362
    %v2365 = vperm.slane %v2274, %v920
    %v2366 = vperm.slane %v2277, %v922
    %v2367 = vsel %vm924, %v2366, %v2365
    %v2368 = vperm.slane %v2280, %v920
    %v2369 = vperm.slane %v2283, %v922
    %v2370 = vsel %vm924, %v2369, %v2368
    %v2371 = vperm.slane %v2286, %v920
    %v2372 = vperm.slane %v2289, %v922
    %v2373 = vsel %vm924, %v2372, %v2371
    %v2374 = vperm.slane %v2292, %v920
    %v2375 = vperm.slane %v2295, %v922
    %v2376 = vsel %vm924, %v2375, %v2374
    %v2377 = vperm.slane %v2298, %v920
    %v2378 = vperm.slane %v2301, %v922
    %v2379 = vsel %vm924, %v2378, %v2377
    %v2380 = vperm.slane %v2304, %v920
    %v2381 = vperm.slane %v2307, %v922
    %v2382 = vsel %vm924, %v2381, %v2380
    %v2383 = vperm.slane %v2310, %v920
    %v2384 = vperm.slane %v2313, %v922
    %v2385 = vsel %vm924, %v2384, %v2383
    %v2386 = vperm.slane %v2316, %v920
    %v2387 = vperm.slane %v2319, %v922
    %v2388 = vsel %vm924, %v2387, %v2386
    %v2389 = vperm.slane %v2322, %v920
    %v2390 = vperm.slane %v2325, %v922
    %v2391 = vsel %vm924, %v2390, %v2389
    %v2392 = vperm.slane %v2328, %v920
    %v2393 = vperm.slane %v2331, %v922
    %v2394 = vsel %vm924, %v2393, %v2392
    %v2395 = vperm.slane %v2334, %v920
    %v2396 = vperm.slane %v2337, %v922
    %v2397 = vsel %vm924, %v2396, %v2395
    %v2398 = vperm.slane %v2340, %v920
    %v2399 = vperm.slane %v2343, %v922
    %v2400 = vsel %vm924, %v2399, %v2398
    %v2401 = vperm.slane %v2346, %v920
    %v2402 = vperm.slane %v2349, %v922
    %v2403 = vsel %vm924, %v2402, %v2401
    %v2404 = vperm.slane %v2352, %v920
    %v2405 = vperm.slane %v2355, %v922
    %v2406 = vsel %vm924, %v2405, %v2404
    %v2407 = vperm.slane %v2358, %v920
    %v2408 = vperm.slane %v2361, %v922
    %v2409 = vsel %vm924, %v2408, %v2407
    %v2410 = vsel %vm971, %v2367, %v2364
    %v2411 = vsel %vm973, %v2370, %v2410
    %v2412 = vsel %vm975, %v2373, %v2411
    %v2413 = vsel %vm977, %v2376, %v2412
    %v2414 = vsel %vm979, %v2379, %v2413
    %v2415 = vsel %vm981, %v2382, %v2414
    %v2416 = vsel %vm983, %v2385, %v2415
    %v2417 = vsel %vm971, %v2391, %v2388
    %v2418 = vsel %vm973, %v2394, %v2417
    %v2419 = vsel %vm975, %v2397, %v2418
    %v2420 = vsel %vm977, %v2400, %v2419
    %v2421 = vsel %vm979, %v2403, %v2420
    %v2422 = vsel %vm981, %v2406, %v2421
    %v2423 = vsel %vm983, %v2409, %v2422
    %v2426 = vsel %vm151, %v2416, 0.0
    %2427 = vadd.xlane.f32.xlu0 %v2426
    %v2428 = vpop.xlane.xlu0 %2427
    %v2429 = vsel %vm151, %v2423, 0.0
    %2430 = vadd.xlane.f32.xlu0 %v2429
    %v2431 = vpop.xlane.xlu0 %2430
    %v2432 = vrcp.pop %v2428
    %v2433 = vrcp.pop %v2431
    %v2436 = vperm.slane %v2432, 0
    %v2437 = vperm.slane %v2432, 1
    %v2438 = vperm.slane %v2432, 2
    %v2439 = vperm.slane %v2432, 3
    %v2440 = vperm.slane %v2432, 4
    %v2441 = vperm.slane %v2432, 5
    %v2442 = vperm.slane %v2432, 6
    %v2443 = vperm.slane %v2432, 7
    %v2444 = vperm.slane %v2433, 0
    %v2445 = vperm.slane %v2433, 1
    %v2446 = vperm.slane %v2433, 2
    %v2447 = vperm.slane %v2433, 3
    %v2448 = vperm.slane %v2433, 4
    %v2449 = vperm.slane %v2433, 5
    %v2450 = vperm.slane %v2433, 6
    %v2451 = vperm.slane %v2433, 7
    %v2468 = vmul.f32 %v2171, %v2436
    %v2469 = vmul.f32 %v2173, %v2436
    %v2470 = vmul.f32 %v2175, %v2437
    %v2471 = vmul.f32 %v2177, %v2437
    %v2472 = vmul.f32 %v2179, %v2438
    %v2473 = vmul.f32 %v2181, %v2438
    %v2474 = vmul.f32 %v2183, %v2439
    %v2475 = vmul.f32 %v2185, %v2439
    %v2476 = vmul.f32 %v2187, %v2440
    %v2477 = vmul.f32 %v2189, %v2440
    %v2478 = vmul.f32 %v2191, %v2441
    %v2479 = vmul.f32 %v2193, %v2441
    %v2480 = vmul.f32 %v2195, %v2442
    %v2481 = vmul.f32 %v2197, %v2442
    %v2482 = vmul.f32 %v2199, %v2443
    %v2483 = vmul.f32 %v2201, %v2443
    %v2484 = vmul.f32 %v2203, %v2444
    %v2485 = vmul.f32 %v2205, %v2444
    %v2486 = vmul.f32 %v2207, %v2445
    %v2487 = vmul.f32 %v2209, %v2445
    %v2488 = vmul.f32 %v2211, %v2446
    %v2489 = vmul.f32 %v2213, %v2446
    %v2490 = vmul.f32 %v2215, %v2447
    %v2491 = vmul.f32 %v2217, %v2447
    %v2492 = vmul.f32 %v2219, %v2448
    %v2493 = vmul.f32 %v2221, %v2448
    %v2494 = vmul.f32 %v2223, %v2449
    %v2495 = vmul.f32 %v2225, %v2449
    %v2496 = vmul.f32 %v2227, %v2450
    %v2497 = vmul.f32 %v2229, %v2450
    %v2498 = vmul.f32 %v2231, %v2451
    %v2499 = vmul.f32 %v2233, %v2451
    %2532 = vset.pattern.permute.xlu0 0
    %2533 = vperm.xlu0 %2532, %v2468
    %v2534 = vpop.permute.xlu0 %2533
    %2535 = vset.pattern.permute.xlu0 0
    %2536 = vperm.xlu0 %2535, %v2469
    %v2537 = vpop.permute.xlu0 %2536
    %2538 = vset.pattern.permute.xlu0 0
    %2539 = vperm.xlu0 %2538, %v2470
    %v2540 = vpop.permute.xlu0 %2539
    %2541 = vset.pattern.permute.xlu0 0
    %2542 = vperm.xlu0 %2541, %v2471
    %v2543 = vpop.permute.xlu0 %2542
    %2544 = vset.pattern.permute.xlu0 0
    %2545 = vperm.xlu0 %2544, %v2472
    %v2546 = vpop.permute.xlu0 %2545
    %2547 = vset.pattern.permute.xlu0 0
    %2548 = vperm.xlu0 %2547, %v2473
    %v2549 = vpop.permute.xlu0 %2548
    %2550 = vset.pattern.permute.xlu0 0
    %2551 = vperm.xlu0 %2550, %v2474
    %v2552 = vpop.permute.xlu0 %2551
    %2553 = vset.pattern.permute.xlu0 0
    %2554 = vperm.xlu0 %2553, %v2475
    %v2555 = vpop.permute.xlu0 %2554
    %2556 = vset.pattern.permute.xlu0 0
    %2557 = vperm.xlu0 %2556, %v2476
    %v2558 = vpop.permute.xlu0 %2557
    %2559 = vset.pattern.permute.xlu0 0
    %2560 = vperm.xlu0 %2559, %v2477
    %v2561 = vpop.permute.xlu0 %2560
    %2562 = vset.pattern.permute.xlu0 0
    %2563 = vperm.xlu0 %2562, %v2478
    %v2564 = vpop.permute.xlu0 %2563
    %2565 = vset.pattern.permute.xlu0 0
    %2566 = vperm.xlu0 %2565, %v2479
    %v2567 = vpop.permute.xlu0 %2566
    %2568 = vset.pattern.permute.xlu0 0
    %2569 = vperm.xlu0 %2568, %v2480
    %v2570 = vpop.permute.xlu0 %2569
    %2571 = vset.pattern.permute.xlu0 0
    %2572 = vperm.xlu0 %2571, %v2481
    %v2573 = vpop.permute.xlu0 %2572
    %2574 = vset.pattern.permute.xlu0 0
    %2575 = vperm.xlu0 %2574, %v2482
    %v2576 = vpop.permute.xlu0 %2575
    %2577 = vset.pattern.permute.xlu0 0
    %2578 = vperm.xlu0 %2577, %v2483
    %v2579 = vpop.permute.xlu0 %2578
    %2580 = vset.pattern.permute.xlu0 0
    %2581 = vperm.xlu0 %2580, %v2484
    %v2582 = vpop.permute.xlu0 %2581
    %2583 = vset.pattern.permute.xlu0 0
    %2584 = vperm.xlu0 %2583, %v2485
    %v2585 = vpop.permute.xlu0 %2584
    %2586 = vset.pattern.permute.xlu0 0
    %2587 = vperm.xlu0 %2586, %v2486
    %v2588 = vpop.permute.xlu0 %2587
    %2589 = vset.pattern.permute.xlu0 0
    %2590 = vperm.xlu0 %2589, %v2487
    %v2591 = vpop.permute.xlu0 %2590
    %2592 = vset.pattern.permute.xlu0 0
    %2593 = vperm.xlu0 %2592, %v2488
    %v2594 = vpop.permute.xlu0 %2593
    %2595 = vset.pattern.permute.xlu0 0
    %2596 = vperm.xlu0 %2595, %v2489
    %v2597 = vpop.permute.xlu0 %2596
    %2598 = vset.pattern.permute.xlu0 0
    %2599 = vperm.xlu0 %2598, %v2490
    %v2600 = vpop.permute.xlu0 %2599
    %2601 = vset.pattern.permute.xlu0 0
    %2602 = vperm.xlu0 %2601, %v2491
    %v2603 = vpop.permute.xlu0 %2602
    %2604 = vset.pattern.permute.xlu0 0
    %2605 = vperm.xlu0 %2604, %v2492
    %v2606 = vpop.permute.xlu0 %2605
    %2607 = vset.pattern.permute.xlu0 0
    %2608 = vperm.xlu0 %2607, %v2493
    %v2609 = vpop.permute.xlu0 %2608
    %2610 = vset.pattern.permute.xlu0 0
    %2611 = vperm.xlu0 %2610, %v2494
    %v2612 = vpop.permute.xlu0 %2611
    %2613 = vset.pattern.permute.xlu0 0
    %2614 = vperm.xlu0 %2613, %v2495
    %v2615 = vpop.permute.xlu0 %2614
    %2616 = vset.pattern.permute.xlu0 0
    %2617 = vperm.xlu0 %2616, %v2496
    %v2618 = vpop.permute.xlu0 %2617
    %2619 = vset.pattern.permute.xlu0 0
    %2620 = vperm.xlu0 %2619, %v2497
    %v2621 = vpop.permute.xlu0 %2620
    %2622 = vset.pattern.permute.xlu0 0
    %2623 = vperm.xlu0 %2622, %v2498
    %v2624 = vpop.permute.xlu0 %2623
    %2625 = vset.pattern.permute.xlu0 0
    %2626 = vperm.xlu0 %2625, %v2499
    %v2627 = vpop.permute.xlu0 %2626
    %v2628 = vperm.slane %v2534, %v920
    %v2629 = vperm.slane %v2537, %v922
    %v2630 = vsel %vm924, %v2629, %v2628
    %v2631 = vperm.slane %v2540, %v920
    %v2632 = vperm.slane %v2543, %v922
    %v2633 = vsel %vm924, %v2632, %v2631
    %v2634 = vperm.slane %v2546, %v920
    %v2635 = vperm.slane %v2549, %v922
    %v2636 = vsel %vm924, %v2635, %v2634
    %v2637 = vperm.slane %v2552, %v920
    %v2638 = vperm.slane %v2555, %v922
    %v2639 = vsel %vm924, %v2638, %v2637
    %v2640 = vperm.slane %v2558, %v920
    %v2641 = vperm.slane %v2561, %v922
    %v2642 = vsel %vm924, %v2641, %v2640
    %v2643 = vperm.slane %v2564, %v920
    %v2644 = vperm.slane %v2567, %v922
    %v2645 = vsel %vm924, %v2644, %v2643
    %v2646 = vperm.slane %v2570, %v920
    %v2647 = vperm.slane %v2573, %v922
    %v2648 = vsel %vm924, %v2647, %v2646
    %v2649 = vperm.slane %v2576, %v920
    %v2650 = vperm.slane %v2579, %v922
    %v2651 = vsel %vm924, %v2650, %v2649
    %v2652 = vperm.slane %v2582, %v920
    %v2653 = vperm.slane %v2585, %v922
    %v2654 = vsel %vm924, %v2653, %v2652
    %v2655 = vperm.slane %v2588, %v920
    %v2656 = vperm.slane %v2591, %v922
    %v2657 = vsel %vm924, %v2656, %v2655
    %v2658 = vperm.slane %v2594, %v920
    %v2659 = vperm.slane %v2597, %v922
    %v2660 = vsel %vm924, %v2659, %v2658
    %v2661 = vperm.slane %v2600, %v920
    %v2662 = vperm.slane %v2603, %v922
    %v2663 = vsel %vm924, %v2662, %v2661
    %v2664 = vperm.slane %v2606, %v920
    %v2665 = vperm.slane %v2609, %v922
    %v2666 = vsel %vm924, %v2665, %v2664
    %v2667 = vperm.slane %v2612, %v920
    %v2668 = vperm.slane %v2615, %v922
    %v2669 = vsel %vm924, %v2668, %v2667
    %v2670 = vperm.slane %v2618, %v920
    %v2671 = vperm.slane %v2621, %v922
    %v2672 = vsel %vm924, %v2671, %v2670
    %v2673 = vperm.slane %v2624, %v920
    %v2674 = vperm.slane %v2627, %v922
    %v2675 = vsel %vm924, %v2674, %v2673
    %v2676 = vsel %vm971, %v2633, %v2630
    %v2677 = vsel %vm973, %v2636, %v2676
    %v2678 = vsel %vm975, %v2639, %v2677
    %v2679 = vsel %vm977, %v2642, %v2678
    %v2680 = vsel %vm979, %v2645, %v2679
    %v2681 = vsel %vm981, %v2648, %v2680
    %v2682 = vsel %vm983, %v2651, %v2681
    %v2683 = vsel %vm971, %v2657, %v2654
    %v2684 = vsel %vm973, %v2660, %v2683
    %v2685 = vsel %vm975, %v2663, %v2684
    %v2686 = vsel %vm977, %v2666, %v2685
    %v2687 = vsel %vm979, %v2669, %v2686
    %v2688 = vsel %vm981, %v2672, %v2687
    %v2689 = vsel %vm983, %v2675, %v2688
    %2692 = vrot.lane.b32.xlu0 %v176, 120
    %v2693 = vpop.permute.xlu0 %2692
    %2694 = vrot.lane.b32.xlu0 %v179, 120
    %v2695 = vpop.permute.xlu0 %2694
    %v2698 = vsel %vm151, %v2682, 0
    %v2700 = vsel %vm151, %v2689, 0
    %2702 = vmatpush.msra.mxu0 0.0
    %2703 = vmatpush.msra.mxu0 0.0
    %2704 = vmatpush.msra.mxu0 0.0
    %2705 = vmatpush.msra.mxu0 0.0
    %2706 = vmatpush.msra.mxu0 0.0
    %2707 = vmatpush.msra.mxu0 0.0
    %2708 = vmatpush.msra.mxu0 0.0
    %2709 = vmatpush.msra.mxu0 0.0
    %2710 = vmatpush.msra.mxu0 0.0
    %2711 = vmatpush.msra.mxu0 0.0
    %2712 = vmatpush.msra.mxu0 0.0
    %2713 = vmatpush.msra.mxu0 0.0
    %2714 = vmatpush.msra.mxu0 0.0
    %2715 = vmatpush.msra.mxu0 0.0
    %2716 = vmatpush.msra.mxu0 %v2695
    %2717 = vmatpush.msra.mxu0 %v2693
    %2718 = vmatmul.f32.gmra.mxu0 %v2698
    %v2719 = vpop.f32.mrf.mxu0
    %v2720 = vadd.f32 0.0, %v2719
    %2721 = vmatmul.f32.gmra.mxu0 %v2700
    %v2722 = vpop.f32.mrf.mxu0
    %v2723 = vadd.f32 0.0, %v2722
    %2724 = vdwg.mxu0
    %v2725 = vperm.slane %v210, 2
    %2727 = vrot.lane.b32.xlu0 %v2725, 16
    %v2728 = vpop.permute.xlu0 %2727
    %v2730 = vmul.f32 %v355, %v2728
    %v2731 = vmul.f32 %v356, %v2728
    %v2732 = vmul.f32 %v357, %v2728
    %v2733 = vmul.f32 %v358, %v2728
    %v2734 = vmul.f32 %v359, %v2728
    %v2735 = vmul.f32 %v360, %v2728
    %v2736 = vmul.f32 %v361, %v2728
    %v2737 = vmul.f32 %v362, %v2728
    %v2738 = vmul.f32 %v363, %v2728
    %v2739 = vmul.f32 %v364, %v2728
    %v2740 = vmul.f32 %v365, %v2728
    %v2741 = vmul.f32 %v366, %v2728
    %v2742 = vmul.f32 %v367, %v2728
    %v2743 = vmul.f32 %v368, %v2728
    %v2744 = vmul.f32 %v369, %v2728
    %v2745 = vmul.f32 %v370, %v2728
    %v2746 = vmul.f32 %v371, %v2728
    %v2747 = vmul.f32 %v372, %v2728
    %v2748 = vmul.f32 %v373, %v2728
    %v2749 = vmul.f32 %v374, %v2728
    %v2750 = vmul.f32 %v375, %v2728
    %v2751 = vmul.f32 %v376, %v2728
    %v2752 = vmul.f32 %v377, %v2728
    %v2753 = vmul.f32 %v378, %v2728
    %v2754 = vmul.f32 %v379, %v2728
    %v2755 = vmul.f32 %v380, %v2728
    %v2756 = vmul.f32 %v381, %v2728
    %v2757 = vmul.f32 %v382, %v2728
    %v2758 = vmul.f32 %v383, %v2728
    %v2759 = vmul.f32 %v384, %v2728
    %v2760 = vmul.f32 %v385, %v2728
    %v2761 = vmul.f32 %v386, %v2728
    %2794 = vrot.lane.b32.xlu0 %v2730, 112
    %v2795 = vpop.permute.xlu0 %2794
    %2796 = vrot.lane.b32.xlu0 %v2731, 112
    %v2797 = vpop.permute.xlu0 %2796
    %2798 = vrot.lane.b32.xlu0 %v2732, 112
    %v2799 = vpop.permute.xlu0 %2798
    %2800 = vrot.lane.b32.xlu0 %v2733, 112
    %v2801 = vpop.permute.xlu0 %2800
    %2802 = vrot.lane.b32.xlu0 %v2734, 112
    %v2803 = vpop.permute.xlu0 %2802
    %2804 = vrot.lane.b32.xlu0 %v2735, 112
    %v2805 = vpop.permute.xlu0 %2804
    %2806 = vrot.lane.b32.xlu0 %v2736, 112
    %v2807 = vpop.permute.xlu0 %2806
    %2808 = vrot.lane.b32.xlu0 %v2737, 112
    %v2809 = vpop.permute.xlu0 %2808
    %2810 = vrot.lane.b32.xlu0 %v2738, 112
    %v2811 = vpop.permute.xlu0 %2810
    %2812 = vrot.lane.b32.xlu0 %v2739, 112
    %v2813 = vpop.permute.xlu0 %2812
    %2814 = vrot.lane.b32.xlu0 %v2740, 112
    %v2815 = vpop.permute.xlu0 %2814
    %2816 = vrot.lane.b32.xlu0 %v2741, 112
    %v2817 = vpop.permute.xlu0 %2816
    %2818 = vrot.lane.b32.xlu0 %v2742, 112
    %v2819 = vpop.permute.xlu0 %2818
    %2820 = vrot.lane.b32.xlu0 %v2743, 112
    %v2821 = vpop.permute.xlu0 %2820
    %2822 = vrot.lane.b32.xlu0 %v2744, 112
    %v2823 = vpop.permute.xlu0 %2822
    %2824 = vrot.lane.b32.xlu0 %v2745, 112
    %v2825 = vpop.permute.xlu0 %2824
    %2826 = vrot.lane.b32.xlu0 %v2746, 112
    %v2827 = vpop.permute.xlu0 %2826
    %2828 = vrot.lane.b32.xlu0 %v2747, 112
    %v2829 = vpop.permute.xlu0 %2828
    %2830 = vrot.lane.b32.xlu0 %v2748, 112
    %v2831 = vpop.permute.xlu0 %2830
    %2832 = vrot.lane.b32.xlu0 %v2749, 112
    %v2833 = vpop.permute.xlu0 %2832
    %2834 = vrot.lane.b32.xlu0 %v2750, 112
    %v2835 = vpop.permute.xlu0 %2834
    %2836 = vrot.lane.b32.xlu0 %v2751, 112
    %v2837 = vpop.permute.xlu0 %2836
    %2838 = vrot.lane.b32.xlu0 %v2752, 112
    %v2839 = vpop.permute.xlu0 %2838
    %2840 = vrot.lane.b32.xlu0 %v2753, 112
    %v2841 = vpop.permute.xlu0 %2840
    %2842 = vrot.lane.b32.xlu0 %v2754, 112
    %v2843 = vpop.permute.xlu0 %2842
    %2844 = vrot.lane.b32.xlu0 %v2755, 112
    %v2845 = vpop.permute.xlu0 %2844
    %2846 = vrot.lane.b32.xlu0 %v2756, 112
    %v2847 = vpop.permute.xlu0 %2846
    %2848 = vrot.lane.b32.xlu0 %v2757, 112
    %v2849 = vpop.permute.xlu0 %2848
    %2850 = vrot.lane.b32.xlu0 %v2758, 112
    %v2851 = vpop.permute.xlu0 %2850
    %2852 = vrot.lane.b32.xlu0 %v2759, 112
    %v2853 = vpop.permute.xlu0 %2852
    %2854 = vrot.lane.b32.xlu0 %v2760, 112
    %v2855 = vpop.permute.xlu0 %2854
    %2856 = vrot.lane.b32.xlu0 %v2761, 112
    %v2857 = vpop.permute.xlu0 %2856
    %v2890 = vsel %vm420, %v2795, 0.0
    %2891 = vadd.xlane.f32.xlu0 %v2890
    %v2892 = vpop.xlane.xlu0 %2891
    %v2893 = vsel %vm420, %v2797, 0.0
    %2894 = vadd.xlane.f32.xlu0 %v2893
    %v2895 = vpop.xlane.xlu0 %2894
    %v2896 = vsel %vm420, %v2799, 0.0
    %2897 = vadd.xlane.f32.xlu0 %v2896
    %v2898 = vpop.xlane.xlu0 %2897
    %v2899 = vsel %vm420, %v2801, 0.0
    %2900 = vadd.xlane.f32.xlu0 %v2899
    %v2901 = vpop.xlane.xlu0 %2900
    %v2902 = vsel %vm420, %v2803, 0.0
    %2903 = vadd.xlane.f32.xlu0 %v2902
    %v2904 = vpop.xlane.xlu0 %2903
    %v2905 = vsel %vm420, %v2805, 0.0
    %2906 = vadd.xlane.f32.xlu0 %v2905
    %v2907 = vpop.xlane.xlu0 %2906
    %v2908 = vsel %vm420, %v2807, 0.0
    %2909 = vadd.xlane.f32.xlu0 %v2908
    %v2910 = vpop.xlane.xlu0 %2909
    %v2911 = vsel %vm420, %v2809, 0.0
    %2912 = vadd.xlane.f32.xlu0 %v2911
    %v2913 = vpop.xlane.xlu0 %2912
    %v2914 = vsel %vm420, %v2811, 0.0
    %2915 = vadd.xlane.f32.xlu0 %v2914
    %v2916 = vpop.xlane.xlu0 %2915
    %v2917 = vsel %vm420, %v2813, 0.0
    %2918 = vadd.xlane.f32.xlu0 %v2917
    %v2919 = vpop.xlane.xlu0 %2918
    %v2920 = vsel %vm420, %v2815, 0.0
    %2921 = vadd.xlane.f32.xlu0 %v2920
    %v2922 = vpop.xlane.xlu0 %2921
    %v2923 = vsel %vm420, %v2817, 0.0
    %2924 = vadd.xlane.f32.xlu0 %v2923
    %v2925 = vpop.xlane.xlu0 %2924
    %v2926 = vsel %vm420, %v2819, 0.0
    %2927 = vadd.xlane.f32.xlu0 %v2926
    %v2928 = vpop.xlane.xlu0 %2927
    %v2929 = vsel %vm420, %v2821, 0.0
    %2930 = vadd.xlane.f32.xlu0 %v2929
    %v2931 = vpop.xlane.xlu0 %2930
    %v2932 = vsel %vm420, %v2823, 0.0
    %2933 = vadd.xlane.f32.xlu0 %v2932
    %v2934 = vpop.xlane.xlu0 %2933
    %v2935 = vsel %vm420, %v2825, 0.0
    %2936 = vadd.xlane.f32.xlu0 %v2935
    %v2937 = vpop.xlane.xlu0 %2936
    %v2938 = vsel %vm420, %v2827, 0.0
    %2939 = vadd.xlane.f32.xlu0 %v2938
    %v2940 = vpop.xlane.xlu0 %2939
    %v2941 = vsel %vm420, %v2829, 0.0
    %2942 = vadd.xlane.f32.xlu0 %v2941
    %v2943 = vpop.xlane.xlu0 %2942
    %v2944 = vsel %vm420, %v2831, 0.0
    %2945 = vadd.xlane.f32.xlu0 %v2944
    %v2946 = vpop.xlane.xlu0 %2945
    %v2947 = vsel %vm420, %v2833, 0.0
    %2948 = vadd.xlane.f32.xlu0 %v2947
    %v2949 = vpop.xlane.xlu0 %2948
    %v2950 = vsel %vm420, %v2835, 0.0
    %2951 = vadd.xlane.f32.xlu0 %v2950
    %v2952 = vpop.xlane.xlu0 %2951
    %v2953 = vsel %vm420, %v2837, 0.0
    %2954 = vadd.xlane.f32.xlu0 %v2953
    %v2955 = vpop.xlane.xlu0 %2954
    %v2956 = vsel %vm420, %v2839, 0.0
    %2957 = vadd.xlane.f32.xlu0 %v2956
    %v2958 = vpop.xlane.xlu0 %2957
    %v2959 = vsel %vm420, %v2841, 0.0
    %2960 = vadd.xlane.f32.xlu0 %v2959
    %v2961 = vpop.xlane.xlu0 %2960
    %v2962 = vsel %vm420, %v2843, 0.0
    %2963 = vadd.xlane.f32.xlu0 %v2962
    %v2964 = vpop.xlane.xlu0 %2963
    %v2965 = vsel %vm420, %v2845, 0.0
    %2966 = vadd.xlane.f32.xlu0 %v2965
    %v2967 = vpop.xlane.xlu0 %2966
    %v2968 = vsel %vm420, %v2847, 0.0
    %2969 = vadd.xlane.f32.xlu0 %v2968
    %v2970 = vpop.xlane.xlu0 %2969
    %v2971 = vsel %vm420, %v2849, 0.0
    %2972 = vadd.xlane.f32.xlu0 %v2971
    %v2973 = vpop.xlane.xlu0 %2972
    %v2974 = vsel %vm420, %v2851, 0.0
    %2975 = vadd.xlane.f32.xlu0 %v2974
    %v2976 = vpop.xlane.xlu0 %2975
    %v2977 = vsel %vm420, %v2853, 0.0
    %2978 = vadd.xlane.f32.xlu0 %v2977
    %v2979 = vpop.xlane.xlu0 %2978
    %v2980 = vsel %vm420, %v2855, 0.0
    %2981 = vadd.xlane.f32.xlu0 %v2980
    %v2982 = vpop.xlane.xlu0 %2981
    %v2983 = vsel %vm420, %v2857, 0.0
    %2984 = vadd.xlane.f32.xlu0 %v2983
    %v2985 = vpop.xlane.xlu0 %2984
    %v2986 = vadd.f32 %v2892, %v525
    %v2987 = vadd.f32 %v2895, %v531
    %v2988 = vadd.f32 %v2898, %v538
    %v2989 = vadd.f32 %v2901, %v544
    %v2990 = vadd.f32 %v2904, %v551
    %v2991 = vadd.f32 %v2907, %v557
    %v2992 = vadd.f32 %v2910, %v564
    %v2993 = vadd.f32 %v2913, %v570
    %v2994 = vadd.f32 %v2916, %v577
    %v2995 = vadd.f32 %v2919, %v583
    %v2996 = vadd.f32 %v2922, %v590
    %v2997 = vadd.f32 %v2925, %v596
    %v2998 = vadd.f32 %v2928, %v603
    %v2999 = vadd.f32 %v2931, %v609
    %v3000 = vadd.f32 %v2934, %v616
    %v3001 = vadd.f32 %v2937, %v622
    %v3002 = vadd.f32 %v2940, %v629
    %v3003 = vadd.f32 %v2943, %v635
    %v3004 = vadd.f32 %v2946, %v642
    %v3005 = vadd.f32 %v2949, %v648
    %v3006 = vadd.f32 %v2952, %v655
    %v3007 = vadd.f32 %v2955, %v661
    %v3008 = vadd.f32 %v2958, %v668
    %v3009 = vadd.f32 %v2961, %v674
    %v3010 = vadd.f32 %v2964, %v681
    %v3011 = vadd.f32 %v2967, %v687
    %v3012 = vadd.f32 %v2970, %v694
    %v3013 = vadd.f32 %v2973, %v700
    %v3014 = vadd.f32 %v2976, %v707
    %v3015 = vadd.f32 %v2979, %v713
    %v3016 = vadd.f32 %v2982, %v720
    %v3017 = vadd.f32 %v2985, %v726
    %3050 = vset.pattern.permute.xlu0 0
    %3051 = vperm.xlu0 %3050, %v2986
    %v3052 = vpop.permute.xlu0 %3051
    %3053 = vset.pattern.permute.xlu0 0
    %3054 = vperm.xlu0 %3053, %v2987
    %v3055 = vpop.permute.xlu0 %3054
    %3056 = vset.pattern.permute.xlu0 0
    %3057 = vperm.xlu0 %3056, %v2988
    %v3058 = vpop.permute.xlu0 %3057
    %3059 = vset.pattern.permute.xlu0 0
    %3060 = vperm.xlu0 %3059, %v2989
    %v3061 = vpop.permute.xlu0 %3060
    %3062 = vset.pattern.permute.xlu0 0
    %3063 = vperm.xlu0 %3062, %v2990
    %v3064 = vpop.permute.xlu0 %3063
    %3065 = vset.pattern.permute.xlu0 0
    %3066 = vperm.xlu0 %3065, %v2991
    %v3067 = vpop.permute.xlu0 %3066
    %3068 = vset.pattern.permute.xlu0 0
    %3069 = vperm.xlu0 %3068, %v2992
    %v3070 = vpop.permute.xlu0 %3069
    %3071 = vset.pattern.permute.xlu0 0
    %3072 = vperm.xlu0 %3071, %v2993
    %v3073 = vpop.permute.xlu0 %3072
    %3074 = vset.pattern.permute.xlu0 0
    %3075 = vperm.xlu0 %3074, %v2994
    %v3076 = vpop.permute.xlu0 %3075
    %3077 = vset.pattern.permute.xlu0 0
    %3078 = vperm.xlu0 %3077, %v2995
    %v3079 = vpop.permute.xlu0 %3078
    %3080 = vset.pattern.permute.xlu0 0
    %3081 = vperm.xlu0 %3080, %v2996
    %v3082 = vpop.permute.xlu0 %3081
    %3083 = vset.pattern.permute.xlu0 0
    %3084 = vperm.xlu0 %3083, %v2997
    %v3085 = vpop.permute.xlu0 %3084
    %3086 = vset.pattern.permute.xlu0 0
    %3087 = vperm.xlu0 %3086, %v2998
    %v3088 = vpop.permute.xlu0 %3087
    %3089 = vset.pattern.permute.xlu0 0
    %3090 = vperm.xlu0 %3089, %v2999
    %v3091 = vpop.permute.xlu0 %3090
    %3092 = vset.pattern.permute.xlu0 0
    %3093 = vperm.xlu0 %3092, %v3000
    %v3094 = vpop.permute.xlu0 %3093
    %3095 = vset.pattern.permute.xlu0 0
    %3096 = vperm.xlu0 %3095, %v3001
    %v3097 = vpop.permute.xlu0 %3096
    %3098 = vset.pattern.permute.xlu0 0
    %3099 = vperm.xlu0 %3098, %v3002
    %v3100 = vpop.permute.xlu0 %3099
    %3101 = vset.pattern.permute.xlu0 0
    %3102 = vperm.xlu0 %3101, %v3003
    %v3103 = vpop.permute.xlu0 %3102
    %3104 = vset.pattern.permute.xlu0 0
    %3105 = vperm.xlu0 %3104, %v3004
    %v3106 = vpop.permute.xlu0 %3105
    %3107 = vset.pattern.permute.xlu0 0
    %3108 = vperm.xlu0 %3107, %v3005
    %v3109 = vpop.permute.xlu0 %3108
    %3110 = vset.pattern.permute.xlu0 0
    %3111 = vperm.xlu0 %3110, %v3006
    %v3112 = vpop.permute.xlu0 %3111
    %3113 = vset.pattern.permute.xlu0 0
    %3114 = vperm.xlu0 %3113, %v3007
    %v3115 = vpop.permute.xlu0 %3114
    %3116 = vset.pattern.permute.xlu0 0
    %3117 = vperm.xlu0 %3116, %v3008
    %v3118 = vpop.permute.xlu0 %3117
    %3119 = vset.pattern.permute.xlu0 0
    %3120 = vperm.xlu0 %3119, %v3009
    %v3121 = vpop.permute.xlu0 %3120
    %3122 = vset.pattern.permute.xlu0 0
    %3123 = vperm.xlu0 %3122, %v3010
    %v3124 = vpop.permute.xlu0 %3123
    %3125 = vset.pattern.permute.xlu0 0
    %3126 = vperm.xlu0 %3125, %v3011
    %v3127 = vpop.permute.xlu0 %3126
    %3128 = vset.pattern.permute.xlu0 0
    %3129 = vperm.xlu0 %3128, %v3012
    %v3130 = vpop.permute.xlu0 %3129
    %3131 = vset.pattern.permute.xlu0 0
    %3132 = vperm.xlu0 %3131, %v3013
    %v3133 = vpop.permute.xlu0 %3132
    %3134 = vset.pattern.permute.xlu0 0
    %3135 = vperm.xlu0 %3134, %v3014
    %v3136 = vpop.permute.xlu0 %3135
    %3137 = vset.pattern.permute.xlu0 0
    %3138 = vperm.xlu0 %3137, %v3015
    %v3139 = vpop.permute.xlu0 %3138
    %3140 = vset.pattern.permute.xlu0 0
    %3141 = vperm.xlu0 %3140, %v3016
    %v3142 = vpop.permute.xlu0 %3141
    %3143 = vset.pattern.permute.xlu0 0
    %3144 = vperm.xlu0 %3143, %v3017
    %v3145 = vpop.permute.xlu0 %3144
    %v3146 = vperm.slane %v3052, %v920
    %v3147 = vperm.slane %v3055, %v922
    %v3148 = vsel %vm924, %v3147, %v3146
    %v3149 = vperm.slane %v3058, %v920
    %v3150 = vperm.slane %v3061, %v922
    %v3151 = vsel %vm924, %v3150, %v3149
    %v3152 = vperm.slane %v3064, %v920
    %v3153 = vperm.slane %v3067, %v922
    %v3154 = vsel %vm924, %v3153, %v3152
    %v3155 = vperm.slane %v3070, %v920
    %v3156 = vperm.slane %v3073, %v922
    %v3157 = vsel %vm924, %v3156, %v3155
    %v3158 = vperm.slane %v3076, %v920
    %v3159 = vperm.slane %v3079, %v922
    %v3160 = vsel %vm924, %v3159, %v3158
    %v3161 = vperm.slane %v3082, %v920
    %v3162 = vperm.slane %v3085, %v922
    %v3163 = vsel %vm924, %v3162, %v3161
    %v3164 = vperm.slane %v3088, %v920
    %v3165 = vperm.slane %v3091, %v922
    %v3166 = vsel %vm924, %v3165, %v3164
    %v3167 = vperm.slane %v3094, %v920
    %v3168 = vperm.slane %v3097, %v922
    %v3169 = vsel %vm924, %v3168, %v3167
    %v3170 = vperm.slane %v3100, %v920
    %v3171 = vperm.slane %v3103, %v922
    %v3172 = vsel %vm924, %v3171, %v3170
    %v3173 = vperm.slane %v3106, %v920
    %v3174 = vperm.slane %v3109, %v922
    %v3175 = vsel %vm924, %v3174, %v3173
    %v3176 = vperm.slane %v3112, %v920
    %v3177 = vperm.slane %v3115, %v922
    %v3178 = vsel %vm924, %v3177, %v3176
    %v3179 = vperm.slane %v3118, %v920
    %v3180 = vperm.slane %v3121, %v922
    %v3181 = vsel %vm924, %v3180, %v3179
    %v3182 = vperm.slane %v3124, %v920
    %v3183 = vperm.slane %v3127, %v922
    %v3184 = vsel %vm924, %v3183, %v3182
    %v3185 = vperm.slane %v3130, %v920
    %v3186 = vperm.slane %v3133, %v922
    %v3187 = vsel %vm924, %v3186, %v3185
    %v3188 = vperm.slane %v3136, %v920
    %v3189 = vperm.slane %v3139, %v922
    %v3190 = vsel %vm924, %v3189, %v3188
    %v3191 = vperm.slane %v3142, %v920
    %v3192 = vperm.slane %v3145, %v922
    %v3193 = vsel %vm924, %v3192, %v3191
    %v3194 = vsel %vm971, %v3151, %v3148
    %v3195 = vsel %vm973, %v3154, %v3194
    %v3196 = vsel %vm975, %v3157, %v3195
    %v3197 = vsel %vm977, %v3160, %v3196
    %v3198 = vsel %vm979, %v3163, %v3197
    %v3199 = vsel %vm981, %v3166, %v3198
    %v3200 = vsel %vm983, %v3169, %v3199
    %v3201 = vsel %vm971, %v3175, %v3172
    %v3202 = vsel %vm973, %v3178, %v3201
    %v3203 = vsel %vm975, %v3181, %v3202
    %v3204 = vsel %vm977, %v3184, %v3203
    %v3205 = vsel %vm979, %v3187, %v3204
    %v3206 = vsel %vm981, %v3190, %v3205
    %v3207 = vsel %vm983, %v3193, %v3206
    %v3210 = vsel %vm151, %v3200, -inf
    %3211 = vmax.xlane.f32.xlu0 %v3210
    %v3212 = vpop.xlane.xlu0 %3211
    %v3213 = vsel %vm151, %v3207, -inf
    %3214 = vmax.xlane.f32.xlu0 %v3213
    %v3215 = vpop.xlane.xlu0 %3214
    %v3218 = vperm.slane %v3212, 0
    %v3219 = vperm.slane %v3212, 1
    %v3220 = vperm.slane %v3212, 2
    %v3221 = vperm.slane %v3212, 3
    %v3222 = vperm.slane %v3212, 4
    %v3223 = vperm.slane %v3212, 5
    %v3224 = vperm.slane %v3212, 6
    %v3225 = vperm.slane %v3212, 7
    %v3226 = vperm.slane %v3215, 0
    %v3227 = vperm.slane %v3215, 1
    %v3228 = vperm.slane %v3215, 2
    %v3229 = vperm.slane %v3215, 3
    %v3230 = vperm.slane %v3215, 4
    %v3231 = vperm.slane %v3215, 5
    %v3232 = vperm.slane %v3215, 6
    %v3233 = vperm.slane %v3215, 7
    %v3250 = vsub.f32 %v2986, %v3218
    %v3251 = vsub.f32 %v2987, %v3218
    %v3252 = vsub.f32 %v2988, %v3219
    %v3253 = vsub.f32 %v2989, %v3219
    %v3254 = vsub.f32 %v2990, %v3220
    %v3255 = vsub.f32 %v2991, %v3220
    %v3256 = vsub.f32 %v2992, %v3221
    %v3257 = vsub.f32 %v2993, %v3221
    %v3258 = vsub.f32 %v2994, %v3222
    %v3259 = vsub.f32 %v2995, %v3222
    %v3260 = vsub.f32 %v2996, %v3223
    %v3261 = vsub.f32 %v2997, %v3223
    %v3262 = vsub.f32 %v2998, %v3224
    %v3263 = vsub.f32 %v2999, %v3224
    %v3264 = vsub.f32 %v3000, %v3225
    %v3265 = vsub.f32 %v3001, %v3225
    %v3266 = vsub.f32 %v3002, %v3226
    %v3267 = vsub.f32 %v3003, %v3226
    %v3268 = vsub.f32 %v3004, %v3227
    %v3269 = vsub.f32 %v3005, %v3227
    %v3270 = vsub.f32 %v3006, %v3228
    %v3271 = vsub.f32 %v3007, %v3228
    %v3272 = vsub.f32 %v3008, %v3229
    %v3273 = vsub.f32 %v3009, %v3229
    %v3274 = vsub.f32 %v3010, %v3230
    %v3275 = vsub.f32 %v3011, %v3230
    %v3276 = vsub.f32 %v3012, %v3231
    %v3277 = vsub.f32 %v3013, %v3231
    %v3278 = vsub.f32 %v3014, %v3232
    %v3279 = vsub.f32 %v3015, %v3232
    %v3280 = vsub.f32 %v3016, %v3233
    %v3281 = vsub.f32 %v3017, %v3233
    %v3282 = vmul.f32 %v3250, 1.442695
    %v3283 = vpow.pop %v3282
    %v3284 = vmul.f32 %v3251, 1.442695
    %v3285 = vpow.pop %v3284
    %v3286 = vmul.f32 %v3252, 1.442695
    %v3287 = vpow.pop %v3286
    %v3288 = vmul.f32 %v3253, 1.442695
    %v3289 = vpow.pop %v3288
    %v3290 = vmul.f32 %v3254, 1.442695
    %v3291 = vpow.pop %v3290
    %v3292 = vmul.f32 %v3255, 1.442695
    %v3293 = vpow.pop %v3292
    %v3294 = vmul.f32 %v3256, 1.442695
    %v3295 = vpow.pop %v3294
    %v3296 = vmul.f32 %v3257, 1.442695
    %v3297 = vpow.pop %v3296
    %v3298 = vmul.f32 %v3258, 1.442695
    %v3299 = vpow.pop %v3298
    %v3300 = vmul.f32 %v3259, 1.442695
    %v3301 = vpow.pop %v3300
    %v3302 = vmul.f32 %v3260, 1.442695
    %v3303 = vpow.pop %v3302
    %v3304 = vmul.f32 %v3261, 1.442695
    %v3305 = vpow.pop %v3304
    %v3306 = vmul.f32 %v3262, 1.442695
    %v3307 = vpow.pop %v3306
    %v3308 = vmul.f32 %v3263, 1.442695
    %v3309 = vpow.pop %v3308
    %v3310 = vmul.f32 %v3264, 1.442695
    %v3311 = vpow.pop %v3310
    %v3312 = vmul.f32 %v3265, 1.442695
    %v3313 = vpow.pop %v3312
    %v3314 = vmul.f32 %v3266, 1.442695
    %v3315 = vpow.pop %v3314
    %v3316 = vmul.f32 %v3267, 1.442695
    %v3317 = vpow.pop %v3316
    %v3318 = vmul.f32 %v3268, 1.442695
    %v3319 = vpow.pop %v3318
    %v3320 = vmul.f32 %v3269, 1.442695
    %v3321 = vpow.pop %v3320
    %v3322 = vmul.f32 %v3270, 1.442695
    %v3323 = vpow.pop %v3322
    %v3324 = vmul.f32 %v3271, 1.442695
    %v3325 = vpow.pop %v3324
    %v3326 = vmul.f32 %v3272, 1.442695
    %v3327 = vpow.pop %v3326
    %v3328 = vmul.f32 %v3273, 1.442695
    %v3329 = vpow.pop %v3328
    %v3330 = vmul.f32 %v3274, 1.442695
    %v3331 = vpow.pop %v3330
    %v3332 = vmul.f32 %v3275, 1.442695
    %v3333 = vpow.pop %v3332
    %v3334 = vmul.f32 %v3276, 1.442695
    %v3335 = vpow.pop %v3334
    %v3336 = vmul.f32 %v3277, 1.442695
    %v3337 = vpow.pop %v3336
    %v3338 = vmul.f32 %v3278, 1.442695
    %v3339 = vpow.pop %v3338
    %v3340 = vmul.f32 %v3279, 1.442695
    %v3341 = vpow.pop %v3340
    %v3342 = vmul.f32 %v3280, 1.442695
    %v3343 = vpow.pop %v3342
    %v3344 = vmul.f32 %v3281, 1.442695
    %v3345 = vpow.pop %v3344
    %3378 = vset.pattern.permute.xlu0 0
    %3379 = vperm.xlu0 %3378, %v3283
    %v3380 = vpop.permute.xlu0 %3379
    %3381 = vset.pattern.permute.xlu0 0
    %3382 = vperm.xlu0 %3381, %v3285
    %v3383 = vpop.permute.xlu0 %3382
    %3384 = vset.pattern.permute.xlu0 0
    %3385 = vperm.xlu0 %3384, %v3287
    %v3386 = vpop.permute.xlu0 %3385
    %3387 = vset.pattern.permute.xlu0 0
    %3388 = vperm.xlu0 %3387, %v3289
    %v3389 = vpop.permute.xlu0 %3388
    %3390 = vset.pattern.permute.xlu0 0
    %3391 = vperm.xlu0 %3390, %v3291
    %v3392 = vpop.permute.xlu0 %3391
    %3393 = vset.pattern.permute.xlu0 0
    %3394 = vperm.xlu0 %3393, %v3293
    %v3395 = vpop.permute.xlu0 %3394
    %3396 = vset.pattern.permute.xlu0 0
    %3397 = vperm.xlu0 %3396, %v3295
    %v3398 = vpop.permute.xlu0 %3397
    %3399 = vset.pattern.permute.xlu0 0
    %3400 = vperm.xlu0 %3399, %v3297
    %v3401 = vpop.permute.xlu0 %3400
    %3402 = vset.pattern.permute.xlu0 0
    %3403 = vperm.xlu0 %3402, %v3299
    %v3404 = vpop.permute.xlu0 %3403
    %3405 = vset.pattern.permute.xlu0 0
    %3406 = vperm.xlu0 %3405, %v3301
    %v3407 = vpop.permute.xlu0 %3406
    %3408 = vset.pattern.permute.xlu0 0
    %3409 = vperm.xlu0 %3408, %v3303
    %v3410 = vpop.permute.xlu0 %3409
    %3411 = vset.pattern.permute.xlu0 0
    %3412 = vperm.xlu0 %3411, %v3305
    %v3413 = vpop.permute.xlu0 %3412
    %3414 = vset.pattern.permute.xlu0 0
    %3415 = vperm.xlu0 %3414, %v3307
    %v3416 = vpop.permute.xlu0 %3415
    %3417 = vset.pattern.permute.xlu0 0
    %3418 = vperm.xlu0 %3417, %v3309
    %v3419 = vpop.permute.xlu0 %3418
    %3420 = vset.pattern.permute.xlu0 0
    %3421 = vperm.xlu0 %3420, %v3311
    %v3422 = vpop.permute.xlu0 %3421
    %3423 = vset.pattern.permute.xlu0 0
    %3424 = vperm.xlu0 %3423, %v3313
    %v3425 = vpop.permute.xlu0 %3424
    %3426 = vset.pattern.permute.xlu0 0
    %3427 = vperm.xlu0 %3426, %v3315
    %v3428 = vpop.permute.xlu0 %3427
    %3429 = vset.pattern.permute.xlu0 0
    %3430 = vperm.xlu0 %3429, %v3317
    %v3431 = vpop.permute.xlu0 %3430
    %3432 = vset.pattern.permute.xlu0 0
    %3433 = vperm.xlu0 %3432, %v3319
    %v3434 = vpop.permute.xlu0 %3433
    %3435 = vset.pattern.permute.xlu0 0
    %3436 = vperm.xlu0 %3435, %v3321
    %v3437 = vpop.permute.xlu0 %3436
    %3438 = vset.pattern.permute.xlu0 0
    %3439 = vperm.xlu0 %3438, %v3323
    %v3440 = vpop.permute.xlu0 %3439
    %3441 = vset.pattern.permute.xlu0 0
    %3442 = vperm.xlu0 %3441, %v3325
    %v3443 = vpop.permute.xlu0 %3442
    %3444 = vset.pattern.permute.xlu0 0
    %3445 = vperm.xlu0 %3444, %v3327
    %v3446 = vpop.permute.xlu0 %3445
    %3447 = vset.pattern.permute.xlu0 0
    %3448 = vperm.xlu0 %3447, %v3329
    %v3449 = vpop.permute.xlu0 %3448
    %3450 = vset.pattern.permute.xlu0 0
    %3451 = vperm.xlu0 %3450, %v3331
    %v3452 = vpop.permute.xlu0 %3451
    %3453 = vset.pattern.permute.xlu0 0
    %3454 = vperm.xlu0 %3453, %v3333
    %v3455 = vpop.permute.xlu0 %3454
    %3456 = vset.pattern.permute.xlu0 0
    %3457 = vperm.xlu0 %3456, %v3335
    %v3458 = vpop.permute.xlu0 %3457
    %3459 = vset.pattern.permute.xlu0 0
    %3460 = vperm.xlu0 %3459, %v3337
    %v3461 = vpop.permute.xlu0 %3460
    %3462 = vset.pattern.permute.xlu0 0
    %3463 = vperm.xlu0 %3462, %v3339
    %v3464 = vpop.permute.xlu0 %3463
    %3465 = vset.pattern.permute.xlu0 0
    %3466 = vperm.xlu0 %3465, %v3341
    %v3467 = vpop.permute.xlu0 %3466
    %3468 = vset.pattern.permute.xlu0 0
    %3469 = vperm.xlu0 %3468, %v3343
    %v3470 = vpop.permute.xlu0 %3469
    %3471 = vset.pattern.permute.xlu0 0
    %3472 = vperm.xlu0 %3471, %v3345
    %v3473 = vpop.permute.xlu0 %3472
    %v3474 = vperm.slane %v3380, %v920
    %v3475 = vperm.slane %v3383, %v922
    %v3476 = vsel %vm924, %v3475, %v3474
    %v3477 = vperm.slane %v3386, %v920
    %v3478 = vperm.slane %v3389, %v922
    %v3479 = vsel %vm924, %v3478, %v3477
    %v3480 = vperm.slane %v3392, %v920
    %v3481 = vperm.slane %v3395, %v922
    %v3482 = vsel %vm924, %v3481, %v3480
    %v3483 = vperm.slane %v3398, %v920
    %v3484 = vperm.slane %v3401, %v922
    %v3485 = vsel %vm924, %v3484, %v3483
    %v3486 = vperm.slane %v3404, %v920
    %v3487 = vperm.slane %v3407, %v922
    %v3488 = vsel %vm924, %v3487, %v3486
    %v3489 = vperm.slane %v3410, %v920
    %v3490 = vperm.slane %v3413, %v922
    %v3491 = vsel %vm924, %v3490, %v3489
    %v3492 = vperm.slane %v3416, %v920
    %v3493 = vperm.slane %v3419, %v922
    %v3494 = vsel %vm924, %v3493, %v3492
    %v3495 = vperm.slane %v3422, %v920
    %v3496 = vperm.slane %v3425, %v922
    %v3497 = vsel %vm924, %v3496, %v3495
    %v3498 = vperm.slane %v3428, %v920
    %v3499 = vperm.slane %v3431, %v922
    %v3500 = vsel %vm924, %v3499, %v3498
    %v3501 = vperm.slane %v3434, %v920
    %v3502 = vperm.slane %v3437, %v922
    %v3503 = vsel %vm924, %v3502, %v3501
    %v3504 = vperm.slane %v3440, %v920
    %v3505 = vperm.slane %v3443, %v922
    %v3506 = vsel %vm924, %v3505, %v3504
    %v3507 = vperm.slane %v3446, %v920
    %v3508 = vperm.slane %v3449, %v922
    %v3509 = vsel %vm924, %v3508, %v3507
    %v3510 = vperm.slane %v3452, %v920
    %v3511 = vperm.slane %v3455, %v922
    %v3512 = vsel %vm924, %v3511, %v3510
    %v3513 = vperm.slane %v3458, %v920
    %v3514 = vperm.slane %v3461, %v922
    %v3515 = vsel %vm924, %v3514, %v3513
    %v3516 = vperm.slane %v3464, %v920
    %v3517 = vperm.slane %v3467, %v922
    %v3518 = vsel %vm924, %v3517, %v3516
    %v3519 = vperm.slane %v3470, %v920
    %v3520 = vperm.slane %v3473, %v922
    %v3521 = vsel %vm924, %v3520, %v3519
    %v3522 = vsel %vm971, %v3479, %v3476
    %v3523 = vsel %vm973, %v3482, %v3522
    %v3524 = vsel %vm975, %v3485, %v3523
    %v3525 = vsel %vm977, %v3488, %v3524
    %v3526 = vsel %vm979, %v3491, %v3525
    %v3527 = vsel %vm981, %v3494, %v3526
    %v3528 = vsel %vm983, %v3497, %v3527
    %v3529 = vsel %vm971, %v3503, %v3500
    %v3530 = vsel %vm973, %v3506, %v3529
    %v3531 = vsel %vm975, %v3509, %v3530
    %v3532 = vsel %vm977, %v3512, %v3531
    %v3533 = vsel %vm979, %v3515, %v3532
    %v3534 = vsel %vm981, %v3518, %v3533
    %v3535 = vsel %vm983, %v3521, %v3534
    %v3538 = vsel %vm151, %v3528, 0.0
    %3539 = vadd.xlane.f32.xlu0 %v3538
    %v3540 = vpop.xlane.xlu0 %3539
    %v3541 = vsel %vm151, %v3535, 0.0
    %3542 = vadd.xlane.f32.xlu0 %v3541
    %v3543 = vpop.xlane.xlu0 %3542
    %v3544 = vrcp.pop %v3540
    %v3545 = vrcp.pop %v3543
    %v3548 = vperm.slane %v3544, 0
    %v3549 = vperm.slane %v3544, 1
    %v3550 = vperm.slane %v3544, 2
    %v3551 = vperm.slane %v3544, 3
    %v3552 = vperm.slane %v3544, 4
    %v3553 = vperm.slane %v3544, 5
    %v3554 = vperm.slane %v3544, 6
    %v3555 = vperm.slane %v3544, 7
    %v3556 = vperm.slane %v3545, 0
    %v3557 = vperm.slane %v3545, 1
    %v3558 = vperm.slane %v3545, 2
    %v3559 = vperm.slane %v3545, 3
    %v3560 = vperm.slane %v3545, 4
    %v3561 = vperm.slane %v3545, 5
    %v3562 = vperm.slane %v3545, 6
    %v3563 = vperm.slane %v3545, 7
    %v3580 = vmul.f32 %v3283, %v3548
    %v3581 = vmul.f32 %v3285, %v3548
    %v3582 = vmul.f32 %v3287, %v3549
    %v3583 = vmul.f32 %v3289, %v3549
    %v3584 = vmul.f32 %v3291, %v3550
    %v3585 = vmul.f32 %v3293, %v3550
    %v3586 = vmul.f32 %v3295, %v3551
    %v3587 = vmul.f32 %v3297, %v3551
    %v3588 = vmul.f32 %v3299, %v3552
    %v3589 = vmul.f32 %v3301, %v3552
    %v3590 = vmul.f32 %v3303, %v3553
    %v3591 = vmul.f32 %v3305, %v3553
    %v3592 = vmul.f32 %v3307, %v3554
    %v3593 = vmul.f32 %v3309, %v3554
    %v3594 = vmul.f32 %v3311, %v3555
    %v3595 = vmul.f32 %v3313, %v3555
    %v3596 = vmul.f32 %v3315, %v3556
    %v3597 = vmul.f32 %v3317, %v3556
    %v3598 = vmul.f32 %v3319, %v3557
    %v3599 = vmul.f32 %v3321, %v3557
    %v3600 = vmul.f32 %v3323, %v3558
    %v3601 = vmul.f32 %v3325, %v3558
    %v3602 = vmul.f32 %v3327, %v3559
    %v3603 = vmul.f32 %v3329, %v3559
    %v3604 = vmul.f32 %v3331, %v3560
    %v3605 = vmul.f32 %v3333, %v3560
    %v3606 = vmul.f32 %v3335, %v3561
    %v3607 = vmul.f32 %v3337, %v3561
    %v3608 = vmul.f32 %v3339, %v3562
    %v3609 = vmul.f32 %v3341, %v3562
    %v3610 = vmul.f32 %v3343, %v3563
    %v3611 = vmul.f32 %v3345, %v3563
    %3644 = vset.pattern.permute.xlu0 0
    %3645 = vperm.xlu0 %3644, %v3580
    %v3646 = vpop.permute.xlu0 %3645
    %3647 = vset.pattern.permute.xlu0 0
    %3648 = vperm.xlu0 %3647, %v3581
    %v3649 = vpop.permute.xlu0 %3648
    %3650 = vset.pattern.permute.xlu0 0
    %3651 = vperm.xlu0 %3650, %v3582
    %v3652 = vpop.permute.xlu0 %3651
    %3653 = vset.pattern.permute.xlu0 0
    %3654 = vperm.xlu0 %3653, %v3583
    %v3655 = vpop.permute.xlu0 %3654
    %3656 = vset.pattern.permute.xlu0 0
    %3657 = vperm.xlu0 %3656, %v3584
    %v3658 = vpop.permute.xlu0 %3657
    %3659 = vset.pattern.permute.xlu0 0
    %3660 = vperm.xlu0 %3659, %v3585
    %v3661 = vpop.permute.xlu0 %3660
    %3662 = vset.pattern.permute.xlu0 0
    %3663 = vperm.xlu0 %3662, %v3586
    %v3664 = vpop.permute.xlu0 %3663
    %3665 = vset.pattern.permute.xlu0 0
    %3666 = vperm.xlu0 %3665, %v3587
    %v3667 = vpop.permute.xlu0 %3666
    %3668 = vset.pattern.permute.xlu0 0
    %3669 = vperm.xlu0 %3668, %v3588
    %v3670 = vpop.permute.xlu0 %3669
    %3671 = vset.pattern.permute.xlu0 0
    %3672 = vperm.xlu0 %3671, %v3589
    %v3673 = vpop.permute.xlu0 %3672
    %3674 = vset.pattern.permute.xlu0 0
    %3675 = vperm.xlu0 %3674, %v3590
    %v3676 = vpop.permute.xlu0 %3675
    %3677 = vset.pattern.permute.xlu0 0
    %3678 = vperm.xlu0 %3677, %v3591
    %v3679 = vpop.permute.xlu0 %3678
    %3680 = vset.pattern.permute.xlu0 0
    %3681 = vperm.xlu0 %3680, %v3592
    %v3682 = vpop.permute.xlu0 %3681
    %3683 = vset.pattern.permute.xlu0 0
    %3684 = vperm.xlu0 %3683, %v3593
    %v3685 = vpop.permute.xlu0 %3684
    %3686 = vset.pattern.permute.xlu0 0
    %3687 = vperm.xlu0 %3686, %v3594
    %v3688 = vpop.permute.xlu0 %3687
    %3689 = vset.pattern.permute.xlu0 0
    %3690 = vperm.xlu0 %3689, %v3595
    %v3691 = vpop.permute.xlu0 %3690
    %3692 = vset.pattern.permute.xlu0 0
    %3693 = vperm.xlu0 %3692, %v3596
    %v3694 = vpop.permute.xlu0 %3693
    %3695 = vset.pattern.permute.xlu0 0
    %3696 = vperm.xlu0 %3695, %v3597
    %v3697 = vpop.permute.xlu0 %3696
    %3698 = vset.pattern.permute.xlu0 0
    %3699 = vperm.xlu0 %3698, %v3598
    %v3700 = vpop.permute.xlu0 %3699
    %3701 = vset.pattern.permute.xlu0 0
    %3702 = vperm.xlu0 %3701, %v3599
    %v3703 = vpop.permute.xlu0 %3702
    %3704 = vset.pattern.permute.xlu0 0
    %3705 = vperm.xlu0 %3704, %v3600
    %v3706 = vpop.permute.xlu0 %3705
    %3707 = vset.pattern.permute.xlu0 0
    %3708 = vperm.xlu0 %3707, %v3601
    %v3709 = vpop.permute.xlu0 %3708
    %3710 = vset.pattern.permute.xlu0 0
    %3711 = vperm.xlu0 %3710, %v3602
    %v3712 = vpop.permute.xlu0 %3711
    %3713 = vset.pattern.permute.xlu0 0
    %3714 = vperm.xlu0 %3713, %v3603
    %v3715 = vpop.permute.xlu0 %3714
    %3716 = vset.pattern.permute.xlu0 0
    %3717 = vperm.xlu0 %3716, %v3604
    %v3718 = vpop.permute.xlu0 %3717
    %3719 = vset.pattern.permute.xlu0 0
    %3720 = vperm.xlu0 %3719, %v3605
    %v3721 = vpop.permute.xlu0 %3720
    %3722 = vset.pattern.permute.xlu0 0
    %3723 = vperm.xlu0 %3722, %v3606
    %v3724 = vpop.permute.xlu0 %3723
    %3725 = vset.pattern.permute.xlu0 0
    %3726 = vperm.xlu0 %3725, %v3607
    %v3727 = vpop.permute.xlu0 %3726
    %3728 = vset.pattern.permute.xlu0 0
    %3729 = vperm.xlu0 %3728, %v3608
    %v3730 = vpop.permute.xlu0 %3729
    %3731 = vset.pattern.permute.xlu0 0
    %3732 = vperm.xlu0 %3731, %v3609
    %v3733 = vpop.permute.xlu0 %3732
    %3734 = vset.pattern.permute.xlu0 0
    %3735 = vperm.xlu0 %3734, %v3610
    %v3736 = vpop.permute.xlu0 %3735
    %3737 = vset.pattern.permute.xlu0 0
    %3738 = vperm.xlu0 %3737, %v3611
    %v3739 = vpop.permute.xlu0 %3738
    %v3740 = vperm.slane %v3646, %v920
    %v3741 = vperm.slane %v3649, %v922
    %v3742 = vsel %vm924, %v3741, %v3740
    %v3743 = vperm.slane %v3652, %v920
    %v3744 = vperm.slane %v3655, %v922
    %v3745 = vsel %vm924, %v3744, %v3743
    %v3746 = vperm.slane %v3658, %v920
    %v3747 = vperm.slane %v3661, %v922
    %v3748 = vsel %vm924, %v3747, %v3746
    %v3749 = vperm.slane %v3664, %v920
    %v3750 = vperm.slane %v3667, %v922
    %v3751 = vsel %vm924, %v3750, %v3749
    %v3752 = vperm.slane %v3670, %v920
    %v3753 = vperm.slane %v3673, %v922
    %v3754 = vsel %vm924, %v3753, %v3752
    %v3755 = vperm.slane %v3676, %v920
    %v3756 = vperm.slane %v3679, %v922
    %v3757 = vsel %vm924, %v3756, %v3755
    %v3758 = vperm.slane %v3682, %v920
    %v3759 = vperm.slane %v3685, %v922
    %v3760 = vsel %vm924, %v3759, %v3758
    %v3761 = vperm.slane %v3688, %v920
    %v3762 = vperm.slane %v3691, %v922
    %v3763 = vsel %vm924, %v3762, %v3761
    %v3764 = vperm.slane %v3694, %v920
    %v3765 = vperm.slane %v3697, %v922
    %v3766 = vsel %vm924, %v3765, %v3764
    %v3767 = vperm.slane %v3700, %v920
    %v3768 = vperm.slane %v3703, %v922
    %v3769 = vsel %vm924, %v3768, %v3767
    %v3770 = vperm.slane %v3706, %v920
    %v3771 = vperm.slane %v3709, %v922
    %v3772 = vsel %vm924, %v3771, %v3770
    %v3773 = vperm.slane %v3712, %v920
    %v3774 = vperm.slane %v3715, %v922
    %v3775 = vsel %vm924, %v3774, %v3773
    %v3776 = vperm.slane %v3718, %v920
    %v3777 = vperm.slane %v3721, %v922
    %v3778 = vsel %vm924, %v3777, %v3776
    %v3779 = vperm.slane %v3724, %v920
    %v3780 = vperm.slane %v3727, %v922
    %v3781 = vsel %vm924, %v3780, %v3779
    %v3782 = vperm.slane %v3730, %v920
    %v3783 = vperm.slane %v3733, %v922
    %v3784 = vsel %vm924, %v3783, %v3782
    %v3785 = vperm.slane %v3736, %v920
    %v3786 = vperm.slane %v3739, %v922
    %v3787 = vsel %vm924, %v3786, %v3785
    %v3788 = vsel %vm971, %v3745, %v3742
    %v3789 = vsel %vm973, %v3748, %v3788
    %v3790 = vsel %vm975, %v3751, %v3789
    %v3791 = vsel %vm977, %v3754, %v3790
    %v3792 = vsel %vm979, %v3757, %v3791
    %v3793 = vsel %vm981, %v3760, %v3792
    %v3794 = vsel %vm983, %v3763, %v3793
    %v3795 = vsel %vm971, %v3769, %v3766
    %v3796 = vsel %vm973, %v3772, %v3795
    %v3797 = vsel %vm975, %v3775, %v3796
    %v3798 = vsel %vm977, %v3778, %v3797
    %v3799 = vsel %vm979, %v3781, %v3798
    %v3800 = vsel %vm981, %v3784, %v3799
    %v3801 = vsel %vm983, %v3787, %v3800
    %3802 = vrot.lane.b32.xlu0 %v176, 112
    %v3803 = vpop.permute.xlu0 %3802
    %3804 = vrot.lane.b32.xlu0 %v179, 112
    %v3805 = vpop.permute.xlu0 %3804
    %v3808 = vsel %vm151, %v3794, 0
    %v3810 = vsel %vm151, %v3801, 0
    %3812 = vmatpush.msra.mxu0 0.0
    %3813 = vmatpush.msra.mxu0 0.0
    %3814 = vmatpush.msra.mxu0 0.0
    %3815 = vmatpush.msra.mxu0 0.0
    %3816 = vmatpush.msra.mxu0 0.0
    %3817 = vmatpush.msra.mxu0 0.0
    %3818 = vmatpush.msra.mxu0 0.0
    %3819 = vmatpush.msra.mxu0 0.0
    %3820 = vmatpush.msra.mxu0 0.0
    %3821 = vmatpush.msra.mxu0 0.0
    %3822 = vmatpush.msra.mxu0 0.0
    %3823 = vmatpush.msra.mxu0 0.0
    %3824 = vmatpush.msra.mxu0 0.0
    %3825 = vmatpush.msra.mxu0 0.0
    %3826 = vmatpush.msra.mxu0 %v3805
    %3827 = vmatpush.msra.mxu0 %v3803
    %3828 = vmatmul.f32.gmra.mxu0 %v3808
    %v3829 = vpop.f32.mrf.mxu0
    %v3830 = vadd.f32 0.0, %v3829
    %3831 = vmatmul.f32.gmra.mxu0 %v3810
    %v3832 = vpop.f32.mrf.mxu0
    %v3833 = vadd.f32 0.0, %v3832
    %3834 = vdwg.mxu0
    %v3835 = vperm.slane %v210, 3
    %3837 = vrot.lane.b32.xlu0 %v3835, 24
    %v3838 = vpop.permute.xlu0 %3837
    %v3840 = vmul.f32 %v355, %v3838
    %v3841 = vmul.f32 %v356, %v3838
    %v3842 = vmul.f32 %v357, %v3838
    %v3843 = vmul.f32 %v358, %v3838
    %v3844 = vmul.f32 %v359, %v3838
    %v3845 = vmul.f32 %v360, %v3838
    %v3846 = vmul.f32 %v361, %v3838
    %v3847 = vmul.f32 %v362, %v3838
    %v3848 = vmul.f32 %v363, %v3838
    %v3849 = vmul.f32 %v364, %v3838
    %v3850 = vmul.f32 %v365, %v3838
    %v3851 = vmul.f32 %v366, %v3838
    %v3852 = vmul.f32 %v367, %v3838
    %v3853 = vmul.f32 %v368, %v3838
    %v3854 = vmul.f32 %v369, %v3838
    %v3855 = vmul.f32 %v370, %v3838
    %v3856 = vmul.f32 %v371, %v3838
    %v3857 = vmul.f32 %v372, %v3838
    %v3858 = vmul.f32 %v373, %v3838
    %v3859 = vmul.f32 %v374, %v3838
    %v3860 = vmul.f32 %v375, %v3838
    %v3861 = vmul.f32 %v376, %v3838
    %v3862 = vmul.f32 %v377, %v3838
    %v3863 = vmul.f32 %v378, %v3838
    %v3864 = vmul.f32 %v379, %v3838
    %v3865 = vmul.f32 %v380, %v3838
    %v3866 = vmul.f32 %v381, %v3838
    %v3867 = vmul.f32 %v382, %v3838
    %v3868 = vmul.f32 %v383, %v3838
    %v3869 = vmul.f32 %v384, %v3838
    %v3870 = vmul.f32 %v385, %v3838
    %v3871 = vmul.f32 %v386, %v3838
    %3904 = vrot.lane.b32.xlu0 %v3840, 104
    %v3905 = vpop.permute.xlu0 %3904
    %3906 = vrot.lane.b32.xlu0 %v3841, 104
    %v3907 = vpop.permute.xlu0 %3906
    %3908 = vrot.lane.b32.xlu0 %v3842, 104
    %v3909 = vpop.permute.xlu0 %3908
    %3910 = vrot.lane.b32.xlu0 %v3843, 104
    %v3911 = vpop.permute.xlu0 %3910
    %3912 = vrot.lane.b32.xlu0 %v3844, 104
    %v3913 = vpop.permute.xlu0 %3912
    %3914 = vrot.lane.b32.xlu0 %v3845, 104
    %v3915 = vpop.permute.xlu0 %3914
    %3916 = vrot.lane.b32.xlu0 %v3846, 104
    %v3917 = vpop.permute.xlu0 %3916
    %3918 = vrot.lane.b32.xlu0 %v3847, 104
    %v3919 = vpop.permute.xlu0 %3918
    %3920 = vrot.lane.b32.xlu0 %v3848, 104
    %v3921 = vpop.permute.xlu0 %3920
    %3922 = vrot.lane.b32.xlu0 %v3849, 104
    %v3923 = vpop.permute.xlu0 %3922
    %3924 = vrot.lane.b32.xlu0 %v3850, 104
    %v3925 = vpop.permute.xlu0 %3924
    %3926 = vrot.lane.b32.xlu0 %v3851, 104
    %v3927 = vpop.permute.xlu0 %3926
    %3928 = vrot.lane.b32.xlu0 %v3852, 104
    %v3929 = vpop.permute.xlu0 %3928
    %3930 = vrot.lane.b32.xlu0 %v3853, 104
    %v3931 = vpop.permute.xlu0 %3930
    %3932 = vrot.lane.b32.xlu0 %v3854, 104
    %v3933 = vpop.permute.xlu0 %3932
    %3934 = vrot.lane.b32.xlu0 %v3855, 104
    %v3935 = vpop.permute.xlu0 %3934
    %3936 = vrot.lane.b32.xlu0 %v3856, 104
    %v3937 = vpop.permute.xlu0 %3936
    %3938 = vrot.lane.b32.xlu0 %v3857, 104
    %v3939 = vpop.permute.xlu0 %3938
    %3940 = vrot.lane.b32.xlu0 %v3858, 104
    %v3941 = vpop.permute.xlu0 %3940
    %3942 = vrot.lane.b32.xlu0 %v3859, 104
    %v3943 = vpop.permute.xlu0 %3942
    %3944 = vrot.lane.b32.xlu0 %v3860, 104
    %v3945 = vpop.permute.xlu0 %3944
    %3946 = vrot.lane.b32.xlu0 %v3861, 104
    %v3947 = vpop.permute.xlu0 %3946
    %3948 = vrot.lane.b32.xlu0 %v3862, 104
    %v3949 = vpop.permute.xlu0 %3948
    %3950 = vrot.lane.b32.xlu0 %v3863, 104
    %v3951 = vpop.permute.xlu0 %3950
    %3952 = vrot.lane.b32.xlu0 %v3864, 104
    %v3953 = vpop.permute.xlu0 %3952
    %3954 = vrot.lane.b32.xlu0 %v3865, 104
    %v3955 = vpop.permute.xlu0 %3954
    %3956 = vrot.lane.b32.xlu0 %v3866, 104
    %v3957 = vpop.permute.xlu0 %3956
    %3958 = vrot.lane.b32.xlu0 %v3867, 104
    %v3959 = vpop.permute.xlu0 %3958
    %3960 = vrot.lane.b32.xlu0 %v3868, 104
    %v3961 = vpop.permute.xlu0 %3960
    %3962 = vrot.lane.b32.xlu0 %v3869, 104
    %v3963 = vpop.permute.xlu0 %3962
    %3964 = vrot.lane.b32.xlu0 %v3870, 104
    %v3965 = vpop.permute.xlu0 %3964
    %3966 = vrot.lane.b32.xlu0 %v3871, 104
    %v3967 = vpop.permute.xlu0 %3966
    %v4000 = vsel %vm420, %v3905, 0.0
    %4001 = vadd.xlane.f32.xlu0 %v4000
    %v4002 = vpop.xlane.xlu0 %4001
    %v4003 = vsel %vm420, %v3907, 0.0
    %4004 = vadd.xlane.f32.xlu0 %v4003
    %v4005 = vpop.xlane.xlu0 %4004
    %v4006 = vsel %vm420, %v3909, 0.0
    %4007 = vadd.xlane.f32.xlu0 %v4006
    %v4008 = vpop.xlane.xlu0 %4007
    %v4009 = vsel %vm420, %v3911, 0.0
    %4010 = vadd.xlane.f32.xlu0 %v4009
    %v4011 = vpop.xlane.xlu0 %4010
    %v4012 = vsel %vm420, %v3913, 0.0
    %4013 = vadd.xlane.f32.xlu0 %v4012
    %v4014 = vpop.xlane.xlu0 %4013
    %v4015 = vsel %vm420, %v3915, 0.0
    %4016 = vadd.xlane.f32.xlu0 %v4015
    %v4017 = vpop.xlane.xlu0 %4016
    %v4018 = vsel %vm420, %v3917, 0.0
    %4019 = vadd.xlane.f32.xlu0 %v4018
    %v4020 = vpop.xlane.xlu0 %4019
    %v4021 = vsel %vm420, %v3919, 0.0
    %4022 = vadd.xlane.f32.xlu0 %v4021
    %v4023 = vpop.xlane.xlu0 %4022
    %v4024 = vsel %vm420, %v3921, 0.0
    %4025 = vadd.xlane.f32.xlu0 %v4024
    %v4026 = vpop.xlane.xlu0 %4025
    %v4027 = vsel %vm420, %v3923, 0.0
    %4028 = vadd.xlane.f32.xlu0 %v4027
    %v4029 = vpop.xlane.xlu0 %4028
    %v4030 = vsel %vm420, %v3925, 0.0
    %4031 = vadd.xlane.f32.xlu0 %v4030
    %v4032 = vpop.xlane.xlu0 %4031
    %v4033 = vsel %vm420, %v3927, 0.0
    %4034 = vadd.xlane.f32.xlu0 %v4033
    %v4035 = vpop.xlane.xlu0 %4034
    %v4036 = vsel %vm420, %v3929, 0.0
    %4037 = vadd.xlane.f32.xlu0 %v4036
    %v4038 = vpop.xlane.xlu0 %4037
    %v4039 = vsel %vm420, %v3931, 0.0
    %4040 = vadd.xlane.f32.xlu0 %v4039
    %v4041 = vpop.xlane.xlu0 %4040
    %v4042 = vsel %vm420, %v3933, 0.0
    %4043 = vadd.xlane.f32.xlu0 %v4042
    %v4044 = vpop.xlane.xlu0 %4043
    %v4045 = vsel %vm420, %v3935, 0.0
    %4046 = vadd.xlane.f32.xlu0 %v4045
    %v4047 = vpop.xlane.xlu0 %4046
    %v4048 = vsel %vm420, %v3937, 0.0
    %4049 = vadd.xlane.f32.xlu0 %v4048
    %v4050 = vpop.xlane.xlu0 %4049
    %v4051 = vsel %vm420, %v3939, 0.0
    %4052 = vadd.xlane.f32.xlu0 %v4051
    %v4053 = vpop.xlane.xlu0 %4052
    %v4054 = vsel %vm420, %v3941, 0.0
    %4055 = vadd.xlane.f32.xlu0 %v4054
    %v4056 = vpop.xlane.xlu0 %4055
    %v4057 = vsel %vm420, %v3943, 0.0
    %4058 = vadd.xlane.f32.xlu0 %v4057
    %v4059 = vpop.xlane.xlu0 %4058
    %v4060 = vsel %vm420, %v3945, 0.0
    %4061 = vadd.xlane.f32.xlu0 %v4060
    %v4062 = vpop.xlane.xlu0 %4061
    %v4063 = vsel %vm420, %v3947, 0.0
    %4064 = vadd.xlane.f32.xlu0 %v4063
    %v4065 = vpop.xlane.xlu0 %4064
    %v4066 = vsel %vm420, %v3949, 0.0
    %4067 = vadd.xlane.f32.xlu0 %v4066
    %v4068 = vpop.xlane.xlu0 %4067
    %v4069 = vsel %vm420, %v3951, 0.0
    %4070 = vadd.xlane.f32.xlu0 %v4069
    %v4071 = vpop.xlane.xlu0 %4070
    %v4072 = vsel %vm420, %v3953, 0.0
    %4073 = vadd.xlane.f32.xlu0 %v4072
    %v4074 = vpop.xlane.xlu0 %4073
    %v4075 = vsel %vm420, %v3955, 0.0
    %4076 = vadd.xlane.f32.xlu0 %v4075
    %v4077 = vpop.xlane.xlu0 %4076
    %v4078 = vsel %vm420, %v3957, 0.0
    %4079 = vadd.xlane.f32.xlu0 %v4078
    %v4080 = vpop.xlane.xlu0 %4079
    %v4081 = vsel %vm420, %v3959, 0.0
    %4082 = vadd.xlane.f32.xlu0 %v4081
    %v4083 = vpop.xlane.xlu0 %4082
    %v4084 = vsel %vm420, %v3961, 0.0
    %4085 = vadd.xlane.f32.xlu0 %v4084
    %v4086 = vpop.xlane.xlu0 %4085
    %v4087 = vsel %vm420, %v3963, 0.0
    %4088 = vadd.xlane.f32.xlu0 %v4087
    %v4089 = vpop.xlane.xlu0 %4088
    %v4090 = vsel %vm420, %v3965, 0.0
    %4091 = vadd.xlane.f32.xlu0 %v4090
    %v4092 = vpop.xlane.xlu0 %4091
    %v4093 = vsel %vm420, %v3967, 0.0
    %4094 = vadd.xlane.f32.xlu0 %v4093
    %v4095 = vpop.xlane.xlu0 %4094
    %v4096 = vadd.f32 %v4002, %v525
    %v4097 = vadd.f32 %v4005, %v531
    %v4098 = vadd.f32 %v4008, %v538
    %v4099 = vadd.f32 %v4011, %v544
    %v4100 = vadd.f32 %v4014, %v551
    %v4101 = vadd.f32 %v4017, %v557
    %v4102 = vadd.f32 %v4020, %v564
    %v4103 = vadd.f32 %v4023, %v570
    %v4104 = vadd.f32 %v4026, %v577
    %v4105 = vadd.f32 %v4029, %v583
    %v4106 = vadd.f32 %v4032, %v590
    %v4107 = vadd.f32 %v4035, %v596
    %v4108 = vadd.f32 %v4038, %v603
    %v4109 = vadd.f32 %v4041, %v609
    %v4110 = vadd.f32 %v4044, %v616
    %v4111 = vadd.f32 %v4047, %v622
    %v4112 = vadd.f32 %v4050, %v629
    %v4113 = vadd.f32 %v4053, %v635
    %v4114 = vadd.f32 %v4056, %v642
    %v4115 = vadd.f32 %v4059, %v648
    %v4116 = vadd.f32 %v4062, %v655
    %v4117 = vadd.f32 %v4065, %v661
    %v4118 = vadd.f32 %v4068, %v668
    %v4119 = vadd.f32 %v4071, %v674
    %v4120 = vadd.f32 %v4074, %v681
    %v4121 = vadd.f32 %v4077, %v687
    %v4122 = vadd.f32 %v4080, %v694
    %v4123 = vadd.f32 %v4083, %v700
    %v4124 = vadd.f32 %v4086, %v707
    %v4125 = vadd.f32 %v4089, %v713
    %v4126 = vadd.f32 %v4092, %v720
    %v4127 = vadd.f32 %v4095, %v726
    %4160 = vset.pattern.permute.xlu0 0
    %4161 = vperm.xlu0 %4160, %v4096
    %v4162 = vpop.permute.xlu0 %4161
    %4163 = vset.pattern.permute.xlu0 0
    %4164 = vperm.xlu0 %4163, %v4097
    %v4165 = vpop.permute.xlu0 %4164
    %4166 = vset.pattern.permute.xlu0 0
    %4167 = vperm.xlu0 %4166, %v4098
    %v4168 = vpop.permute.xlu0 %4167
    %4169 = vset.pattern.permute.xlu0 0
    %4170 = vperm.xlu0 %4169, %v4099
    %v4171 = vpop.permute.xlu0 %4170
    %4172 = vset.pattern.permute.xlu0 0
    %4173 = vperm.xlu0 %4172, %v4100
    %v4174 = vpop.permute.xlu0 %4173
    %4175 = vset.pattern.permute.xlu0 0
    %4176 = vperm.xlu0 %4175, %v4101
    %v4177 = vpop.permute.xlu0 %4176
    %4178 = vset.pattern.permute.xlu0 0
    %4179 = vperm.xlu0 %4178, %v4102
    %v4180 = vpop.permute.xlu0 %4179
    %4181 = vset.pattern.permute.xlu0 0
    %4182 = vperm.xlu0 %4181, %v4103
    %v4183 = vpop.permute.xlu0 %4182
    %4184 = vset.pattern.permute.xlu0 0
    %4185 = vperm.xlu0 %4184, %v4104
    %v4186 = vpop.permute.xlu0 %4185
    %4187 = vset.pattern.permute.xlu0 0
    %4188 = vperm.xlu0 %4187, %v4105
    %v4189 = vpop.permute.xlu0 %4188
    %4190 = vset.pattern.permute.xlu0 0
    %4191 = vperm.xlu0 %4190, %v4106
    %v4192 = vpop.permute.xlu0 %4191
    %4193 = vset.pattern.permute.xlu0 0
    %4194 = vperm.xlu0 %4193, %v4107
    %v4195 = vpop.permute.xlu0 %4194
    %4196 = vset.pattern.permute.xlu0 0
    %4197 = vperm.xlu0 %4196, %v4108
    %v4198 = vpop.permute.xlu0 %4197
    %4199 = vset.pattern.permute.xlu0 0
    %4200 = vperm.xlu0 %4199, %v4109
    %v4201 = vpop.permute.xlu0 %4200
    %4202 = vset.pattern.permute.xlu0 0
    %4203 = vperm.xlu0 %4202, %v4110
    %v4204 = vpop.permute.xlu0 %4203
    %4205 = vset.pattern.permute.xlu0 0
    %4206 = vperm.xlu0 %4205, %v4111
    %v4207 = vpop.permute.xlu0 %4206
    %4208 = vset.pattern.permute.xlu0 0
    %4209 = vperm.xlu0 %4208, %v4112
    %v4210 = vpop.permute.xlu0 %4209
    %4211 = vset.pattern.permute.xlu0 0
    %4212 = vperm.xlu0 %4211, %v4113
    %v4213 = vpop.permute.xlu0 %4212
    %4214 = vset.pattern.permute.xlu0 0
    %4215 = vperm.xlu0 %4214, %v4114
    %v4216 = vpop.permute.xlu0 %4215
    %4217 = vset.pattern.permute.xlu0 0
    %4218 = vperm.xlu0 %4217, %v4115
    %v4219 = vpop.permute.xlu0 %4218
    %4220 = vset.pattern.permute.xlu0 0
    %4221 = vperm.xlu0 %4220, %v4116
    %v4222 = vpop.permute.xlu0 %4221
    %4223 = vset.pattern.permute.xlu0 0
    %4224 = vperm.xlu0 %4223, %v4117
    %v4225 = vpop.permute.xlu0 %4224
    %4226 = vset.pattern.permute.xlu0 0
    %4227 = vperm.xlu0 %4226, %v4118
    %v4228 = vpop.permute.xlu0 %4227
    %4229 = vset.pattern.permute.xlu0 0
    %4230 = vperm.xlu0 %4229, %v4119
    %v4231 = vpop.permute.xlu0 %4230
    %4232 = vset.pattern.permute.xlu0 0
    %4233 = vperm.xlu0 %4232, %v4120
    %v4234 = vpop.permute.xlu0 %4233
    %4235 = vset.pattern.permute.xlu0 0
    %4236 = vperm.xlu0 %4235, %v4121
    %v4237 = vpop.permute.xlu0 %4236
    %4238 = vset.pattern.permute.xlu0 0
    %4239 = vperm.xlu0 %4238, %v4122
    %v4240 = vpop.permute.xlu0 %4239
    %4241 = vset.pattern.permute.xlu0 0
    %4242 = vperm.xlu0 %4241, %v4123
    %v4243 = vpop.permute.xlu0 %4242
    %4244 = vset.pattern.permute.xlu0 0
    %4245 = vperm.xlu0 %4244, %v4124
    %v4246 = vpop.permute.xlu0 %4245
    %4247 = vset.pattern.permute.xlu0 0
    %4248 = vperm.xlu0 %4247, %v4125
    %v4249 = vpop.permute.xlu0 %4248
    %4250 = vset.pattern.permute.xlu0 0
    %4251 = vperm.xlu0 %4250, %v4126
    %v4252 = vpop.permute.xlu0 %4251
    %4253 = vset.pattern.permute.xlu0 0
    %4254 = vperm.xlu0 %4253, %v4127
    %v4255 = vpop.permute.xlu0 %4254
    %v4256 = vperm.slane %v4162, %v920
    %v4257 = vperm.slane %v4165, %v922
    %v4258 = vsel %vm924, %v4257, %v4256
    %v4259 = vperm.slane %v4168, %v920
    %v4260 = vperm.slane %v4171, %v922
    %v4261 = vsel %vm924, %v4260, %v4259
    %v4262 = vperm.slane %v4174, %v920
    %v4263 = vperm.slane %v4177, %v922
    %v4264 = vsel %vm924, %v4263, %v4262
    %v4265 = vperm.slane %v4180, %v920
    %v4266 = vperm.slane %v4183, %v922
    %v4267 = vsel %vm924, %v4266, %v4265
    %v4268 = vperm.slane %v4186, %v920
    %v4269 = vperm.slane %v4189, %v922
    %v4270 = vsel %vm924, %v4269, %v4268
    %v4271 = vperm.slane %v4192, %v920
    %v4272 = vperm.slane %v4195, %v922
    %v4273 = vsel %vm924, %v4272, %v4271
    %v4274 = vperm.slane %v4198, %v920
    %v4275 = vperm.slane %v4201, %v922
    %v4276 = vsel %vm924, %v4275, %v4274
    %v4277 = vperm.slane %v4204, %v920
    %v4278 = vperm.slane %v4207, %v922
    %v4279 = vsel %vm924, %v4278, %v4277
    %v4280 = vperm.slane %v4210, %v920
    %v4281 = vperm.slane %v4213, %v922
    %v4282 = vsel %vm924, %v4281, %v4280
    %v4283 = vperm.slane %v4216, %v920
    %v4284 = vperm.slane %v4219, %v922
    %v4285 = vsel %vm924, %v4284, %v4283
    %v4286 = vperm.slane %v4222, %v920
    %v4287 = vperm.slane %v4225, %v922
    %v4288 = vsel %vm924, %v4287, %v4286
    %v4289 = vperm.slane %v4228, %v920
    %v4290 = vperm.slane %v4231, %v922
    %v4291 = vsel %vm924, %v4290, %v4289
    %v4292 = vperm.slane %v4234, %v920
    %v4293 = vperm.slane %v4237, %v922
    %v4294 = vsel %vm924, %v4293, %v4292
    %v4295 = vperm.slane %v4240, %v920
    %v4296 = vperm.slane %v4243, %v922
    %v4297 = vsel %vm924, %v4296, %v4295
    %v4298 = vperm.slane %v4246, %v920
    %v4299 = vperm.slane %v4249, %v922
    %v4300 = vsel %vm924, %v4299, %v4298
    %v4301 = vperm.slane %v4252, %v920
    %v4302 = vperm.slane %v4255, %v922
    %v4303 = vsel %vm924, %v4302, %v4301
    %v4304 = vsel %vm971, %v4261, %v4258
    %v4305 = vsel %vm973, %v4264, %v4304
    %v4306 = vsel %vm975, %v4267, %v4305
    %v4307 = vsel %vm977, %v4270, %v4306
    %v4308 = vsel %vm979, %v4273, %v4307
    %v4309 = vsel %vm981, %v4276, %v4308
    %v4310 = vsel %vm983, %v4279, %v4309
    %v4311 = vsel %vm971, %v4285, %v4282
    %v4312 = vsel %vm973, %v4288, %v4311
    %v4313 = vsel %vm975, %v4291, %v4312
    %v4314 = vsel %vm977, %v4294, %v4313
    %v4315 = vsel %vm979, %v4297, %v4314
    %v4316 = vsel %vm981, %v4300, %v4315
    %v4317 = vsel %vm983, %v4303, %v4316
    %v4320 = vsel %vm151, %v4310, -inf
    %4321 = vmax.xlane.f32.xlu0 %v4320
    %v4322 = vpop.xlane.xlu0 %4321
    %v4323 = vsel %vm151, %v4317, -inf
    %4324 = vmax.xlane.f32.xlu0 %v4323
    %v4325 = vpop.xlane.xlu0 %4324
    %v4328 = vperm.slane %v4322, 0
    %v4329 = vperm.slane %v4322, 1
    %v4330 = vperm.slane %v4322, 2
    %v4331 = vperm.slane %v4322, 3
    %v4332 = vperm.slane %v4322, 4
    %v4333 = vperm.slane %v4322, 5
    %v4334 = vperm.slane %v4322, 6
    %v4335 = vperm.slane %v4322, 7
    %v4336 = vperm.slane %v4325, 0
    %v4337 = vperm.slane %v4325, 1
    %v4338 = vperm.slane %v4325, 2
    %v4339 = vperm.slane %v4325, 3
    %v4340 = vperm.slane %v4325, 4
    %v4341 = vperm.slane %v4325, 5
    %v4342 = vperm.slane %v4325, 6
    %v4343 = vperm.slane %v4325, 7
    %v4360 = vsub.f32 %v4096, %v4328
    %v4361 = vsub.f32 %v4097, %v4328
    %v4362 = vsub.f32 %v4098, %v4329
    %v4363 = vsub.f32 %v4099, %v4329
    %v4364 = vsub.f32 %v4100, %v4330
    %v4365 = vsub.f32 %v4101, %v4330
    %v4366 = vsub.f32 %v4102, %v4331
    %v4367 = vsub.f32 %v4103, %v4331
    %v4368 = vsub.f32 %v4104, %v4332
    %v4369 = vsub.f32 %v4105, %v4332
    %v4370 = vsub.f32 %v4106, %v4333
    %v4371 = vsub.f32 %v4107, %v4333
    %v4372 = vsub.f32 %v4108, %v4334
    %v4373 = vsub.f32 %v4109, %v4334
    %v4374 = vsub.f32 %v4110, %v4335
    %v4375 = vsub.f32 %v4111, %v4335
    %v4376 = vsub.f32 %v4112, %v4336
    %v4377 = vsub.f32 %v4113, %v4336
    %v4378 = vsub.f32 %v4114, %v4337
    %v4379 = vsub.f32 %v4115, %v4337
    %v4380 = vsub.f32 %v4116, %v4338
    %v4381 = vsub.f32 %v4117, %v4338
    %v4382 = vsub.f32 %v4118, %v4339
    %v4383 = vsub.f32 %v4119, %v4339
    %v4384 = vsub.f32 %v4120, %v4340
    %v4385 = vsub.f32 %v4121, %v4340
    %v4386 = vsub.f32 %v4122, %v4341
    %v4387 = vsub.f32 %v4123, %v4341
    %v4388 = vsub.f32 %v4124, %v4342
    %v4389 = vsub.f32 %v4125, %v4342
    %v4390 = vsub.f32 %v4126, %v4343
    %v4391 = vsub.f32 %v4127, %v4343
    %v4392 = vmul.f32 %v4360, 1.442695
    %v4393 = vpow.pop %v4392
    %v4394 = vmul.f32 %v4361, 1.442695
    %v4395 = vpow.pop %v4394
    %v4396 = vmul.f32 %v4362, 1.442695
    %v4397 = vpow.pop %v4396
    %v4398 = vmul.f32 %v4363, 1.442695
    %v4399 = vpow.pop %v4398
    %v4400 = vmul.f32 %v4364, 1.442695
    %v4401 = vpow.pop %v4400
    %v4402 = vmul.f32 %v4365, 1.442695
    %v4403 = vpow.pop %v4402
    %v4404 = vmul.f32 %v4366, 1.442695
    %v4405 = vpow.pop %v4404
    %v4406 = vmul.f32 %v4367, 1.442695
    %v4407 = vpow.pop %v4406
    %v4408 = vmul.f32 %v4368, 1.442695
    %v4409 = vpow.pop %v4408
    %v4410 = vmul.f32 %v4369, 1.442695
    %v4411 = vpow.pop %v4410
    %v4412 = vmul.f32 %v4370, 1.442695
    %v4413 = vpow.pop %v4412
    %v4414 = vmul.f32 %v4371, 1.442695
    %v4415 = vpow.pop %v4414
    %v4416 = vmul.f32 %v4372, 1.442695
    %v4417 = vpow.pop %v4416
    %v4418 = vmul.f32 %v4373, 1.442695
    %v4419 = vpow.pop %v4418
    %v4420 = vmul.f32 %v4374, 1.442695
    %v4421 = vpow.pop %v4420
    %v4422 = vmul.f32 %v4375, 1.442695
    %v4423 = vpow.pop %v4422
    %v4424 = vmul.f32 %v4376, 1.442695
    %v4425 = vpow.pop %v4424
    %v4426 = vmul.f32 %v4377, 1.442695
    %v4427 = vpow.pop %v4426
    %v4428 = vmul.f32 %v4378, 1.442695
    %v4429 = vpow.pop %v4428
    %v4430 = vmul.f32 %v4379, 1.442695
    %v4431 = vpow.pop %v4430
    %v4432 = vmul.f32 %v4380, 1.442695
    %v4433 = vpow.pop %v4432
    %v4434 = vmul.f32 %v4381, 1.442695
    %v4435 = vpow.pop %v4434
    %v4436 = vmul.f32 %v4382, 1.442695
    %v4437 = vpow.pop %v4436
    %v4438 = vmul.f32 %v4383, 1.442695
    %v4439 = vpow.pop %v4438
    %v4440 = vmul.f32 %v4384, 1.442695
    %v4441 = vpow.pop %v4440
    %v4442 = vmul.f32 %v4385, 1.442695
    %v4443 = vpow.pop %v4442
    %v4444 = vmul.f32 %v4386, 1.442695
    %v4445 = vpow.pop %v4444
    %v4446 = vmul.f32 %v4387, 1.442695
    %v4447 = vpow.pop %v4446
    %v4448 = vmul.f32 %v4388, 1.442695
    %v4449 = vpow.pop %v4448
    %v4450 = vmul.f32 %v4389, 1.442695
    %v4451 = vpow.pop %v4450
    %v4452 = vmul.f32 %v4390, 1.442695
    %v4453 = vpow.pop %v4452
    %v4454 = vmul.f32 %v4391, 1.442695
    %v4455 = vpow.pop %v4454
    %4488 = vset.pattern.permute.xlu0 0
    %4489 = vperm.xlu0 %4488, %v4393
    %v4490 = vpop.permute.xlu0 %4489
    %4491 = vset.pattern.permute.xlu0 0
    %4492 = vperm.xlu0 %4491, %v4395
    %v4493 = vpop.permute.xlu0 %4492
    %4494 = vset.pattern.permute.xlu0 0
    %4495 = vperm.xlu0 %4494, %v4397
    %v4496 = vpop.permute.xlu0 %4495
    %4497 = vset.pattern.permute.xlu0 0
    %4498 = vperm.xlu0 %4497, %v4399
    %v4499 = vpop.permute.xlu0 %4498
    %4500 = vset.pattern.permute.xlu0 0
    %4501 = vperm.xlu0 %4500, %v4401
    %v4502 = vpop.permute.xlu0 %4501
    %4503 = vset.pattern.permute.xlu0 0
    %4504 = vperm.xlu0 %4503, %v4403
    %v4505 = vpop.permute.xlu0 %4504
    %4506 = vset.pattern.permute.xlu0 0
    %4507 = vperm.xlu0 %4506, %v4405
    %v4508 = vpop.permute.xlu0 %4507
    %4509 = vset.pattern.permute.xlu0 0
    %4510 = vperm.xlu0 %4509, %v4407
    %v4511 = vpop.permute.xlu0 %4510
    %4512 = vset.pattern.permute.xlu0 0
    %4513 = vperm.xlu0 %4512, %v4409
    %v4514 = vpop.permute.xlu0 %4513
    %4515 = vset.pattern.permute.xlu0 0
    %4516 = vperm.xlu0 %4515, %v4411
    %v4517 = vpop.permute.xlu0 %4516
    %4518 = vset.pattern.permute.xlu0 0
    %4519 = vperm.xlu0 %4518, %v4413
    %v4520 = vpop.permute.xlu0 %4519
    %4521 = vset.pattern.permute.xlu0 0
    %4522 = vperm.xlu0 %4521, %v4415
    %v4523 = vpop.permute.xlu0 %4522
    %4524 = vset.pattern.permute.xlu0 0
    %4525 = vperm.xlu0 %4524, %v4417
    %v4526 = vpop.permute.xlu0 %4525
    %4527 = vset.pattern.permute.xlu0 0
    %4528 = vperm.xlu0 %4527, %v4419
    %v4529 = vpop.permute.xlu0 %4528
    %4530 = vset.pattern.permute.xlu0 0
    %4531 = vperm.xlu0 %4530, %v4421
    %v4532 = vpop.permute.xlu0 %4531
    %4533 = vset.pattern.permute.xlu0 0
    %4534 = vperm.xlu0 %4533, %v4423
    %v4535 = vpop.permute.xlu0 %4534
    %4536 = vset.pattern.permute.xlu0 0
    %4537 = vperm.xlu0 %4536, %v4425
    %v4538 = vpop.permute.xlu0 %4537
    %4539 = vset.pattern.permute.xlu0 0
    %4540 = vperm.xlu0 %4539, %v4427
    %v4541 = vpop.permute.xlu0 %4540
    %4542 = vset.pattern.permute.xlu0 0
    %4543 = vperm.xlu0 %4542, %v4429
    %v4544 = vpop.permute.xlu0 %4543
    %4545 = vset.pattern.permute.xlu0 0
    %4546 = vperm.xlu0 %4545, %v4431
    %v4547 = vpop.permute.xlu0 %4546
    %4548 = vset.pattern.permute.xlu0 0
    %4549 = vperm.xlu0 %4548, %v4433
    %v4550 = vpop.permute.xlu0 %4549
    %4551 = vset.pattern.permute.xlu0 0
    %4552 = vperm.xlu0 %4551, %v4435
    %v4553 = vpop.permute.xlu0 %4552
    %4554 = vset.pattern.permute.xlu0 0
    %4555 = vperm.xlu0 %4554, %v4437
    %v4556 = vpop.permute.xlu0 %4555
    %4557 = vset.pattern.permute.xlu0 0
    %4558 = vperm.xlu0 %4557, %v4439
    %v4559 = vpop.permute.xlu0 %4558
    %4560 = vset.pattern.permute.xlu0 0
    %4561 = vperm.xlu0 %4560, %v4441
    %v4562 = vpop.permute.xlu0 %4561
    %4563 = vset.pattern.permute.xlu0 0
    %4564 = vperm.xlu0 %4563, %v4443
    %v4565 = vpop.permute.xlu0 %4564
    %4566 = vset.pattern.permute.xlu0 0
    %4567 = vperm.xlu0 %4566, %v4445
    %v4568 = vpop.permute.xlu0 %4567
    %4569 = vset.pattern.permute.xlu0 0
    %4570 = vperm.xlu0 %4569, %v4447
    %v4571 = vpop.permute.xlu0 %4570
    %4572 = vset.pattern.permute.xlu0 0
    %4573 = vperm.xlu0 %4572, %v4449
    %v4574 = vpop.permute.xlu0 %4573
    %4575 = vset.pattern.permute.xlu0 0
    %4576 = vperm.xlu0 %4575, %v4451
    %v4577 = vpop.permute.xlu0 %4576
    %4578 = vset.pattern.permute.xlu0 0
    %4579 = vperm.xlu0 %4578, %v4453
    %v4580 = vpop.permute.xlu0 %4579
    %4581 = vset.pattern.permute.xlu0 0
    %4582 = vperm.xlu0 %4581, %v4455
    %v4583 = vpop.permute.xlu0 %4582
    %v4584 = vperm.slane %v4490, %v920
    %v4585 = vperm.slane %v4493, %v922
    %v4586 = vsel %vm924, %v4585, %v4584
    %v4587 = vperm.slane %v4496, %v920
    %v4588 = vperm.slane %v4499, %v922
    %v4589 = vsel %vm924, %v4588, %v4587
    %v4590 = vperm.slane %v4502, %v920
    %v4591 = vperm.slane %v4505, %v922
    %v4592 = vsel %vm924, %v4591, %v4590
    %v4593 = vperm.slane %v4508, %v920
    %v4594 = vperm.slane %v4511, %v922
    %v4595 = vsel %vm924, %v4594, %v4593
    %v4596 = vperm.slane %v4514, %v920
    %v4597 = vperm.slane %v4517, %v922
    %v4598 = vsel %vm924, %v4597, %v4596
    %v4599 = vperm.slane %v4520, %v920
    %v4600 = vperm.slane %v4523, %v922
    %v4601 = vsel %vm924, %v4600, %v4599
    %v4602 = vperm.slane %v4526, %v920
    %v4603 = vperm.slane %v4529, %v922
    %v4604 = vsel %vm924, %v4603, %v4602
    %v4605 = vperm.slane %v4532, %v920
    %v4606 = vperm.slane %v4535, %v922
    %v4607 = vsel %vm924, %v4606, %v4605
    %v4608 = vperm.slane %v4538, %v920
    %v4609 = vperm.slane %v4541, %v922
    %v4610 = vsel %vm924, %v4609, %v4608
    %v4611 = vperm.slane %v4544, %v920
    %v4612 = vperm.slane %v4547, %v922
    %v4613 = vsel %vm924, %v4612, %v4611
    %v4614 = vperm.slane %v4550, %v920
    %v4615 = vperm.slane %v4553, %v922
    %v4616 = vsel %vm924, %v4615, %v4614
    %v4617 = vperm.slane %v4556, %v920
    %v4618 = vperm.slane %v4559, %v922
    %v4619 = vsel %vm924, %v4618, %v4617
    %v4620 = vperm.slane %v4562, %v920
    %v4621 = vperm.slane %v4565, %v922
    %v4622 = vsel %vm924, %v4621, %v4620
    %v4623 = vperm.slane %v4568, %v920
    %v4624 = vperm.slane %v4571, %v922
    %v4625 = vsel %vm924, %v4624, %v4623
    %v4626 = vperm.slane %v4574, %v920
    %v4627 = vperm.slane %v4577, %v922
    %v4628 = vsel %vm924, %v4627, %v4626
    %v4629 = vperm.slane %v4580, %v920
    %v4630 = vperm.slane %v4583, %v922
    %v4631 = vsel %vm924, %v4630, %v4629
    %v4632 = vsel %vm971, %v4589, %v4586
    %v4633 = vsel %vm973, %v4592, %v4632
    %v4634 = vsel %vm975, %v4595, %v4633
    %v4635 = vsel %vm977, %v4598, %v4634
    %v4636 = vsel %vm979, %v4601, %v4635
    %v4637 = vsel %vm981, %v4604, %v4636
    %v4638 = vsel %vm983, %v4607, %v4637
    %v4639 = vsel %vm971, %v4613, %v4610
    %v4640 = vsel %vm973, %v4616, %v4639
    %v4641 = vsel %vm975, %v4619, %v4640
    %v4642 = vsel %vm977, %v4622, %v4641
    %v4643 = vsel %vm979, %v4625, %v4642
    %v4644 = vsel %vm981, %v4628, %v4643
    %v4645 = vsel %vm983, %v4631, %v4644
    %v4648 = vsel %vm151, %v4638, 0.0
    %4649 = vadd.xlane.f32.xlu0 %v4648
    %v4650 = vpop.xlane.xlu0 %4649
    %v4651 = vsel %vm151, %v4645, 0.0
    %4652 = vadd.xlane.f32.xlu0 %v4651
    %v4653 = vpop.xlane.xlu0 %4652
    %v4654 = vrcp.pop %v4650
    %v4655 = vrcp.pop %v4653
    %v4658 = vperm.slane %v4654, 0
    %v4659 = vperm.slane %v4654, 1
    %v4660 = vperm.slane %v4654, 2
    %v4661 = vperm.slane %v4654, 3
    %v4662 = vperm.slane %v4654, 4
    %v4663 = vperm.slane %v4654, 5
    %v4664 = vperm.slane %v4654, 6
    %v4665 = vperm.slane %v4654, 7
    %v4666 = vperm.slane %v4655, 0
    %v4667 = vperm.slane %v4655, 1
    %v4668 = vperm.slane %v4655, 2
    %v4669 = vperm.slane %v4655, 3
    %v4670 = vperm.slane %v4655, 4
    %v4671 = vperm.slane %v4655, 5
    %v4672 = vperm.slane %v4655, 6
    %v4673 = vperm.slane %v4655, 7
    %v4690 = vmul.f32 %v4393, %v4658
    %v4691 = vmul.f32 %v4395, %v4658
    %v4692 = vmul.f32 %v4397, %v4659
    %v4693 = vmul.f32 %v4399, %v4659
    %v4694 = vmul.f32 %v4401, %v4660
    %v4695 = vmul.f32 %v4403, %v4660
    %v4696 = vmul.f32 %v4405, %v4661
    %v4697 = vmul.f32 %v4407, %v4661
    %v4698 = vmul.f32 %v4409, %v4662
    %v4699 = vmul.f32 %v4411, %v4662
    %v4700 = vmul.f32 %v4413, %v4663
    %v4701 = vmul.f32 %v4415, %v4663
    %v4702 = vmul.f32 %v4417, %v4664
    %v4703 = vmul.f32 %v4419, %v4664
    %v4704 = vmul.f32 %v4421, %v4665
    %v4705 = vmul.f32 %v4423, %v4665
    %v4706 = vmul.f32 %v4425, %v4666
    %v4707 = vmul.f32 %v4427, %v4666
    %v4708 = vmul.f32 %v4429, %v4667
    %v4709 = vmul.f32 %v4431, %v4667
    %v4710 = vmul.f32 %v4433, %v4668
    %v4711 = vmul.f32 %v4435, %v4668
    %v4712 = vmul.f32 %v4437, %v4669
    %v4713 = vmul.f32 %v4439, %v4669
    %v4714 = vmul.f32 %v4441, %v4670
    %v4715 = vmul.f32 %v4443, %v4670
    %v4716 = vmul.f32 %v4445, %v4671
    %v4717 = vmul.f32 %v4447, %v4671
    %v4718 = vmul.f32 %v4449, %v4672
    %v4719 = vmul.f32 %v4451, %v4672
    %v4720 = vmul.f32 %v4453, %v4673
    %v4721 = vmul.f32 %v4455, %v4673
    %4754 = vset.pattern.permute.xlu0 0
    %4755 = vperm.xlu0 %4754, %v4690
    %v4756 = vpop.permute.xlu0 %4755
    %4757 = vset.pattern.permute.xlu0 0
    %4758 = vperm.xlu0 %4757, %v4691
    %v4759 = vpop.permute.xlu0 %4758
    %4760 = vset.pattern.permute.xlu0 0
    %4761 = vperm.xlu0 %4760, %v4692
    %v4762 = vpop.permute.xlu0 %4761
    %4763 = vset.pattern.permute.xlu0 0
    %4764 = vperm.xlu0 %4763, %v4693
    %v4765 = vpop.permute.xlu0 %4764
    %4766 = vset.pattern.permute.xlu0 0
    %4767 = vperm.xlu0 %4766, %v4694
    %v4768 = vpop.permute.xlu0 %4767
    %4769 = vset.pattern.permute.xlu0 0
    %4770 = vperm.xlu0 %4769, %v4695
    %v4771 = vpop.permute.xlu0 %4770
    %4772 = vset.pattern.permute.xlu0 0
    %4773 = vperm.xlu0 %4772, %v4696
    %v4774 = vpop.permute.xlu0 %4773
    %4775 = vset.pattern.permute.xlu0 0
    %4776 = vperm.xlu0 %4775, %v4697
    %v4777 = vpop.permute.xlu0 %4776
    %4778 = vset.pattern.permute.xlu0 0
    %4779 = vperm.xlu0 %4778, %v4698
    %v4780 = vpop.permute.xlu0 %4779
    %4781 = vset.pattern.permute.xlu0 0
    %4782 = vperm.xlu0 %4781, %v4699
    %v4783 = vpop.permute.xlu0 %4782
    %4784 = vset.pattern.permute.xlu0 0
    %4785 = vperm.xlu0 %4784, %v4700
    %v4786 = vpop.permute.xlu0 %4785
    %4787 = vset.pattern.permute.xlu0 0
    %4788 = vperm.xlu0 %4787, %v4701
    %v4789 = vpop.permute.xlu0 %4788
    %4790 = vset.pattern.permute.xlu0 0
    %4791 = vperm.xlu0 %4790, %v4702
    %v4792 = vpop.permute.xlu0 %4791
    %4793 = vset.pattern.permute.xlu0 0
    %4794 = vperm.xlu0 %4793, %v4703
    %v4795 = vpop.permute.xlu0 %4794
    %4796 = vset.pattern.permute.xlu0 0
    %4797 = vperm.xlu0 %4796, %v4704
    %v4798 = vpop.permute.xlu0 %4797
    %4799 = vset.pattern.permute.xlu0 0
    %4800 = vperm.xlu0 %4799, %v4705
    %v4801 = vpop.permute.xlu0 %4800
    %4802 = vset.pattern.permute.xlu0 0
    %4803 = vperm.xlu0 %4802, %v4706
    %v4804 = vpop.permute.xlu0 %4803
    %4805 = vset.pattern.permute.xlu0 0
    %4806 = vperm.xlu0 %4805, %v4707
    %v4807 = vpop.permute.xlu0 %4806
    %4808 = vset.pattern.permute.xlu0 0
    %4809 = vperm.xlu0 %4808, %v4708
    %v4810 = vpop.permute.xlu0 %4809
    %4811 = vset.pattern.permute.xlu0 0
    %4812 = vperm.xlu0 %4811, %v4709
    %v4813 = vpop.permute.xlu0 %4812
    %4814 = vset.pattern.permute.xlu0 0
    %4815 = vperm.xlu0 %4814, %v4710
    %v4816 = vpop.permute.xlu0 %4815
    %4817 = vset.pattern.permute.xlu0 0
    %4818 = vperm.xlu0 %4817, %v4711
    %v4819 = vpop.permute.xlu0 %4818
    %4820 = vset.pattern.permute.xlu0 0
    %4821 = vperm.xlu0 %4820, %v4712
    %v4822 = vpop.permute.xlu0 %4821
    %4823 = vset.pattern.permute.xlu0 0
    %4824 = vperm.xlu0 %4823, %v4713
    %v4825 = vpop.permute.xlu0 %4824
    %4826 = vset.pattern.permute.xlu0 0
    %4827 = vperm.xlu0 %4826, %v4714
    %v4828 = vpop.permute.xlu0 %4827
    %4829 = vset.pattern.permute.xlu0 0
    %4830 = vperm.xlu0 %4829, %v4715
    %v4831 = vpop.permute.xlu0 %4830
    %4832 = vset.pattern.permute.xlu0 0
    %4833 = vperm.xlu0 %4832, %v4716
    %v4834 = vpop.permute.xlu0 %4833
    %4835 = vset.pattern.permute.xlu0 0
    %4836 = vperm.xlu0 %4835, %v4717
    %v4837 = vpop.permute.xlu0 %4836
    %4838 = vset.pattern.permute.xlu0 0
    %4839 = vperm.xlu0 %4838, %v4718
    %v4840 = vpop.permute.xlu0 %4839
    %4841 = vset.pattern.permute.xlu0 0
    %4842 = vperm.xlu0 %4841, %v4719
    %v4843 = vpop.permute.xlu0 %4842
    %4844 = vset.pattern.permute.xlu0 0
    %4845 = vperm.xlu0 %4844, %v4720
    %v4846 = vpop.permute.xlu0 %4845
    %4847 = vset.pattern.permute.xlu0 0
    %4848 = vperm.xlu0 %4847, %v4721
    %v4849 = vpop.permute.xlu0 %4848
    %v4850 = vperm.slane %v4756, %v920
    %v4851 = vperm.slane %v4759, %v922
    %v4852 = vsel %vm924, %v4851, %v4850
    %v4853 = vperm.slane %v4762, %v920
    %v4854 = vperm.slane %v4765, %v922
    %v4855 = vsel %vm924, %v4854, %v4853
    %v4856 = vperm.slane %v4768, %v920
    %v4857 = vperm.slane %v4771, %v922
    %v4858 = vsel %vm924, %v4857, %v4856
    %v4859 = vperm.slane %v4774, %v920
    %v4860 = vperm.slane %v4777, %v922
    %v4861 = vsel %vm924, %v4860, %v4859
    %v4862 = vperm.slane %v4780, %v920
    %v4863 = vperm.slane %v4783, %v922
    %v4864 = vsel %vm924, %v4863, %v4862
    %v4865 = vperm.slane %v4786, %v920
    %v4866 = vperm.slane %v4789, %v922
    %v4867 = vsel %vm924, %v4866, %v4865
    %v4868 = vperm.slane %v4792, %v920
    %v4869 = vperm.slane %v4795, %v922
    %v4870 = vsel %vm924, %v4869, %v4868
    %v4871 = vperm.slane %v4798, %v920
    %v4872 = vperm.slane %v4801, %v922
    %v4873 = vsel %vm924, %v4872, %v4871
    %v4874 = vperm.slane %v4804, %v920
    %v4875 = vperm.slane %v4807, %v922
    %v4876 = vsel %vm924, %v4875, %v4874
    %v4877 = vperm.slane %v4810, %v920
    %v4878 = vperm.slane %v4813, %v922
    %v4879 = vsel %vm924, %v4878, %v4877
    %v4880 = vperm.slane %v4816, %v920
    %v4881 = vperm.slane %v4819, %v922
    %v4882 = vsel %vm924, %v4881, %v4880
    %v4883 = vperm.slane %v4822, %v920
    %v4884 = vperm.slane %v4825, %v922
    %v4885 = vsel %vm924, %v4884, %v4883
    %v4886 = vperm.slane %v4828, %v920
    %v4887 = vperm.slane %v4831, %v922
    %v4888 = vsel %vm924, %v4887, %v4886
    %v4889 = vperm.slane %v4834, %v920
    %v4890 = vperm.slane %v4837, %v922
    %v4891 = vsel %vm924, %v4890, %v4889
    %v4892 = vperm.slane %v4840, %v920
    %v4893 = vperm.slane %v4843, %v922
    %v4894 = vsel %vm924, %v4893, %v4892
    %v4895 = vperm.slane %v4846, %v920
    %v4896 = vperm.slane %v4849, %v922
    %v4897 = vsel %vm924, %v4896, %v4895
    %v4898 = vsel %vm971, %v4855, %v4852
    %v4899 = vsel %vm973, %v4858, %v4898
    %v4900 = vsel %vm975, %v4861, %v4899
    %v4901 = vsel %vm977, %v4864, %v4900
    %v4902 = vsel %vm979, %v4867, %v4901
    %v4903 = vsel %vm981, %v4870, %v4902
    %v4904 = vsel %vm983, %v4873, %v4903
    %v4905 = vsel %vm971, %v4879, %v4876
    %v4906 = vsel %vm973, %v4882, %v4905
    %v4907 = vsel %vm975, %v4885, %v4906
    %v4908 = vsel %vm977, %v4888, %v4907
    %v4909 = vsel %vm979, %v4891, %v4908
    %v4910 = vsel %vm981, %v4894, %v4909
    %v4911 = vsel %vm983, %v4897, %v4910
    %4912 = vrot.lane.b32.xlu0 %v176, 104
    %v4913 = vpop.permute.xlu0 %4912
    %4914 = vrot.lane.b32.xlu0 %v179, 104
    %v4915 = vpop.permute.xlu0 %4914
    %v4918 = vsel %vm151, %v4904, 0
    %v4920 = vsel %vm151, %v4911, 0
    %4922 = vmatpush.msra.mxu0 0.0
    %4923 = vmatpush.msra.mxu0 0.0
    %4924 = vmatpush.msra.mxu0 0.0
    %4925 = vmatpush.msra.mxu0 0.0
    %4926 = vmatpush.msra.mxu0 0.0
    %4927 = vmatpush.msra.mxu0 0.0
    %4928 = vmatpush.msra.mxu0 0.0
    %4929 = vmatpush.msra.mxu0 0.0
    %4930 = vmatpush.msra.mxu0 0.0
    %4931 = vmatpush.msra.mxu0 0.0
    %4932 = vmatpush.msra.mxu0 0.0
    %4933 = vmatpush.msra.mxu0 0.0
    %4934 = vmatpush.msra.mxu0 0.0
    %4935 = vmatpush.msra.mxu0 0.0
    %4936 = vmatpush.msra.mxu0 %v4915
    %4937 = vmatpush.msra.mxu0 %v4913
    %4938 = vmatmul.f32.gmra.mxu0 %v4918
    %v4939 = vpop.f32.mrf.mxu0
    %v4940 = vadd.f32 0.0, %v4939
    %4941 = vmatmul.f32.gmra.mxu0 %v4920
    %v4942 = vpop.f32.mrf.mxu0
    %v4943 = vadd.f32 0.0, %v4942
    %4944 = vdwg.mxu0
    %4947 = vrot.lane.b32.xlu0 %v2720, 8
    %v4948 = vpop.permute.xlu0 %4947
    %4949 = vrot.lane.b32.xlu0 %v2723, 8
    %v4950 = vpop.permute.xlu0 %4949
    %4955 = vrot.lane.b32.xlu0 %v3830, 16
    %v4956 = vpop.permute.xlu0 %4955
    %4957 = vrot.lane.b32.xlu0 %v3833, 16
    %v4958 = vpop.permute.xlu0 %4957
    %4963 = vrot.lane.b32.xlu0 %v4940, 24
    %v4964 = vpop.permute.xlu0 %4963
    %4965 = vrot.lane.b32.xlu0 %v4943, 24
    %v4966 = vpop.permute.xlu0 %4965
    %v4969 = vsel %vm420, %v1608, %v4948
    %v4970 = vsel %vm420, %v1611, %v4950
    %v4971 = vsel %vm151, %v4969, %v4956
    %v4972 = vsel %vm151, %v4970, %v4958
    %vm4973 = vcmask 195584
    %v4974 = vsel %vm4973, %v4971, %v4964
    %v4975 = vsel %vm4973, %v4972, %v4966
    %v4976 = vld [vmem:[%s15] sm:$0x1]
    %v4978 = vperm.slane %v4976, 0
    %v4980 = vadd.f32 %v4974, %v4978
    %v4981 = vadd.f32 %v4975, %v4978
    %vm4982 = vcmp.gt.f32.partialorder %v4980, 0.0
    %vm4983 = vcmp.gt.f32.partialorder %v4981, 0.0
    %v4984 = vmin.f32 %v4980, 0.0
    %v4985 = vmin.f32 %v4981, 0.0
    %v4986 = vmul.f32 %v4984, 1.442695
    %v4987 = vpow.pop %v4986
    %v4988 = vmul.f32 %v4985, 1.442695
    %v4989 = vpow.pop %v4988
    %v4990 = vsub.f32 %v4987, 1.0
    %v4991 = vsub.f32 %v4989, 1.0
    %v4992 = vsel %vm4982, %v4980, %v4990
    %v4993 = vsel %vm4983, %v4981, %v4991
    %vm4994 = vcmask 261120
    %4995 = vst.msk [vmem:[#allocation3] sm:$0xff] %vm4994, %v4992
    %4996 = vst.msk [vmem:[#allocation3 + $0x8] sm:$0xff] %vm4994, %v4993
    %v4997 = vld [vmem:[%s17] sm:$0xff]
    %v4998 = vld [vmem:[%s17 + $0x8] sm:$0xff]
    %v4999 = vld [vmem:[%s17 + $0x10] sm:$0xff]
    %v5000 = vld [vmem:[%s17 + $0x18] sm:$0xff]
    %v5001 = vld [vmem:[%s19] sm:$0x1]
    %v5003 = vperm.slane %v5001, 0
    %v5006 = vsel %vm4994, %v4992, 0
    %v5009 = vsel %vm4994, %v4993, 0
    %5011 = vmatpush.msra.mxu0 0.0
    %5012 = vmatpush.msra.mxu0 0.0
    %5013 = vmatpush.msra.mxu0 0.0
    %5014 = vmatpush.msra.mxu0 0.0
    %5015 = vmatpush.msra.mxu0 0.0
    %5016 = vmatpush.msra.mxu0 0.0
    %5017 = vmatpush.msra.mxu0 0.0
    %5018 = vmatpush.msra.mxu0 0.0
    %5019 = vmatpush.msra.mxu0 0.0
    %5020 = vmatpush.msra.mxu0 0.0
    %5021 = vmatpush.msra.mxu0 0.0
    %5022 = vmatpush.msra.mxu0 0.0
    %5023 = vmatpush.msra.mxu0 %v5000
    %5024 = vmatpush.msra.mxu0 %v4999
    %5025 = vmatpush.msra.mxu0 %v4998
    %5026 = vmatpush.msra.mxu0 %v4997
    %5027 = vmatmul.f32.gmra.mxu0 %v5006
    %v5028 = vpop.f32.mrf.mxu0
    %v5029 = vadd.f32 %v5003, %v5028
    %5030 = vmatmul.f32.gmra.mxu0 %v5009
    %v5031 = vpop.f32.mrf.mxu0
    %v5032 = vadd.f32 %v5003, %v5031
    %5033 = vdwg.mxu0
    %v5034 = vld [vmem:[%s21] sm:$0xff]
    %v5035 = vld [vmem:[%s21 + $0x8] sm:$0xff]
    %v5036 = vld [vmem:[%s21 + $0x10] sm:$0xff]
    %v5037 = vld [vmem:[%s21 + $0x18] sm:$0xff]
    %v5038 = vld [vmem:[%s23] sm:$0x1]
    %v5040 = vperm.slane %v5038, 0
    %5042 = vmatpush.msra.mxu0 0.0
    %5043 = vmatpush.msra.mxu0 0.0
    %5044 = vmatpush.msra.mxu0 0.0
    %5045 = vmatpush.msra.mxu0 0.0
    %5046 = vmatpush.msra.mxu0 0.0
    %5047 = vmatpush.msra.mxu0 0.0
    %5048 = vmatpush.msra.mxu0 0.0
    %5049 = vmatpush.msra.mxu0 0.0
    %5050 = vmatpush.msra.mxu0 0.0
    %5051 = vmatpush.msra.mxu0 0.0
    %5052 = vmatpush.msra.mxu0 0.0
    %5053 = vmatpush.msra.mxu0 0.0
    %5054 = vmatpush.msra.mxu0 %v5037
    %5055 = vmatpush.msra.mxu0 %v5036
    %5056 = vmatpush.msra.mxu0 %v5035
    %5057 = vmatpush.msra.mxu0 %v5034
    %5058 = vmatmul.f32.gmra.mxu0 %v5006
    %v5059 = vpop.f32.mrf.mxu0
    %v5060 = vadd.f32 %v5040, %v5059
    %5061 = vmatmul.f32.gmra.mxu0 %v5009
    %v5062 = vpop.f32.mrf.mxu0
    %v5063 = vadd.f32 %v5040, %v5062
    %5064 = vdwg.mxu0
    %v5065 = vld [vmem:[%s25] sm:$0xf]
    %v5068 = vrot.slane %v5060, 1
    %v5069 = vrot.slane %v5060, 2
    %v5070 = vrot.slane %v5060, 3
    %v5071 = vrot.slane %v5060, 4
    %v5072 = vrot.slane %v5060, 5
    %v5073 = vrot.slane %v5060, 6
    %v5074 = vrot.slane %v5060, 7
    %v5075 = vrot.slane %v5063, 1
    %v5076 = vrot.slane %v5063, 2
    %v5077 = vrot.slane %v5063, 3
    %v5078 = vrot.slane %v5063, 4
    %v5079 = vrot.slane %v5063, 5
    %v5080 = vrot.slane %v5063, 6
    %v5081 = vrot.slane %v5063, 7
    %v5082 = vperm.slane %v5060, 0
    %v5083 = vperm.slane %v5068, 0
    %v5084 = vperm.slane %v5069, 0
    %v5085 = vperm.slane %v5070, 0
    %v5086 = vperm.slane %v5071, 0
    %v5087 = vperm.slane %v5072, 0
    %v5088 = vperm.slane %v5073, 0
    %v5089 = vperm.slane %v5074, 0
    %v5090 = vperm.slane %v5063, 0
    %v5091 = vperm.slane %v5075, 0
    %v5092 = vperm.slane %v5076, 0
    %v5093 = vperm.slane %v5077, 0
    %v5094 = vperm.slane %v5078, 0
    %v5095 = vperm.slane %v5079, 0
    %v5096 = vperm.slane %v5080, 0
    %v5097 = vperm.slane %v5081, 0
    %v5114 = vadd.f32 %v5082, %v5029
    %v5115 = vadd.f32 %v5082, %v5032
    %v5116 = vadd.f32 %v5083, %v5029
    %v5117 = vadd.f32 %v5083, %v5032
    %v5118 = vadd.f32 %v5084, %v5029
    %v5119 = vadd.f32 %v5084, %v5032
    %v5120 = vadd.f32 %v5085, %v5029
    %v5121 = vadd.f32 %v5085, %v5032
    %v5122 = vadd.f32 %v5086, %v5029
    %v5123 = vadd.f32 %v5086, %v5032
    %v5124 = vadd.f32 %v5087, %v5029
    %v5125 = vadd.f32 %v5087, %v5032
    %v5126 = vadd.f32 %v5088, %v5029
    %v5127 = vadd.f32 %v5088, %v5032
    %v5128 = vadd.f32 %v5089, %v5029
    %v5129 = vadd.f32 %v5089, %v5032
    %v5130 = vadd.f32 %v5090, %v5029
    %v5131 = vadd.f32 %v5090, %v5032
    %v5132 = vadd.f32 %v5091, %v5029
    %v5133 = vadd.f32 %v5091, %v5032
    %v5134 = vadd.f32 %v5092, %v5029
    %v5135 = vadd.f32 %v5092, %v5032
    %v5136 = vadd.f32 %v5093, %v5029
    %v5137 = vadd.f32 %v5093, %v5032
    %v5138 = vadd.f32 %v5094, %v5029
    %v5139 = vadd.f32 %v5094, %v5032
    %v5140 = vadd.f32 %v5095, %v5029
    %v5141 = vadd.f32 %v5095, %v5032
    %v5142 = vadd.f32 %v5096, %v5029
    %v5143 = vadd.f32 %v5096, %v5032
    %v5144 = vadd.f32 %v5097, %v5029
    %v5145 = vadd.f32 %v5097, %v5032
    %vm5146 = vcmp.gt.f32.partialorder %v5114, 0.0
    %vm5147 = vcmp.gt.f32.partialorder %v5115, 0.0
    %vm5148 = vcmp.gt.f32.partialorder %v5116, 0.0
    %vm5149 = vcmp.gt.f32.partialorder %v5117, 0.0
    %vm5150 = vcmp.gt.f32.partialorder %v5118, 0.0
    %vm5151 = vcmp.gt.f32.partialorder %v5119, 0.0
    %vm5152 = vcmp.gt.f32.partialorder %v5120, 0.0
    %vm5153 = vcmp.gt.f32.partialorder %v5121, 0.0
    %vm5154 = vcmp.gt.f32.partialorder %v5122, 0.0
    %vm5155 = vcmp.gt.f32.partialorder %v5123, 0.0
    %vm5156 = vcmp.gt.f32.partialorder %v5124, 0.0
    %vm5157 = vcmp.gt.f32.partialorder %v5125, 0.0
    %vm5158 = vcmp.gt.f32.partialorder %v5126, 0.0
    %vm5159 = vcmp.gt.f32.partialorder %v5127, 0.0
    %vm5160 = vcmp.gt.f32.partialorder %v5128, 0.0
    %vm5161 = vcmp.gt.f32.partialorder %v5129, 0.0
    %vm5162 = vcmp.gt.f32.partialorder %v5130, 0.0
    %vm5163 = vcmp.gt.f32.partialorder %v5131, 0.0
    %vm5164 = vcmp.gt.f32.partialorder %v5132, 0.0
    %vm5165 = vcmp.gt.f32.partialorder %v5133, 0.0
    %vm5166 = vcmp.gt.f32.partialorder %v5134, 0.0
    %vm5167 = vcmp.gt.f32.partialorder %v5135, 0.0
    %vm5168 = vcmp.gt.f32.partialorder %v5136, 0.0
    %vm5169 = vcmp.gt.f32.partialorder %v5137, 0.0
    %vm5170 = vcmp.gt.f32.partialorder %v5138, 0.0
    %vm5171 = vcmp.gt.f32.partialorder %v5139, 0.0
    %vm5172 = vcmp.gt.f32.partialorder %v5140, 0.0
    %vm5173 = vcmp.gt.f32.partialorder %v5141, 0.0
    %vm5174 = vcmp.gt.f32.partialorder %v5142, 0.0
    %vm5175 = vcmp.gt.f32.partialorder %v5143, 0.0
    %vm5176 = vcmp.gt.f32.partialorder %v5144, 0.0
    %vm5177 = vcmp.gt.f32.partialorder %v5145, 0.0
    %v5178 = vmul.f32 %v5114, 0.2
    %v5179 = vmul.f32 %v5115, 0.2
    %v5180 = vmul.f32 %v5116, 0.2
    %v5181 = vmul.f32 %v5117, 0.2
    %v5182 = vmul.f32 %v5118, 0.2
    %v5183 = vmul.f32 %v5119, 0.2
    %v5184 = vmul.f32 %v5120, 0.2
    %v5185 = vmul.f32 %v5121, 0.2
    %v5186 = vmul.f32 %v5122, 0.2
    %v5187 = vmul.f32 %v5123, 0.2
    %v5188 = vmul.f32 %v5124, 0.2
    %v5189 = vmul.f32 %v5125, 0.2
    %v5190 = vmul.f32 %v5126, 0.2
    %v5191 = vmul.f32 %v5127, 0.2
    %v5192 = vmul.f32 %v5128, 0.2
    %v5193 = vmul.f32 %v5129, 0.2
    %v5194 = vmul.f32 %v5130, 0.2
    %v5195 = vmul.f32 %v5131, 0.2
    %v5196 = vmul.f32 %v5132, 0.2
    %v5197 = vmul.f32 %v5133, 0.2
    %v5198 = vmul.f32 %v5134, 0.2
    %v5199 = vmul.f32 %v5135, 0.2
    %v5200 = vmul.f32 %v5136, 0.2
    %v5201 = vmul.f32 %v5137, 0.2
    %v5202 = vmul.f32 %v5138, 0.2
    %v5203 = vmul.f32 %v5139, 0.2
    %v5204 = vmul.f32 %v5140, 0.2
    %v5205 = vmul.f32 %v5141, 0.2
    %v5206 = vmul.f32 %v5142, 0.2
    %v5207 = vmul.f32 %v5143, 0.2
    %v5208 = vmul.f32 %v5144, 0.2
    %v5209 = vmul.f32 %v5145, 0.2
    %v5210 = vsel %vm5146, %v5114, %v5178
    %v5211 = vsel %vm5147, %v5115, %v5179
    %v5212 = vsel %vm5148, %v5116, %v5180
    %v5213 = vsel %vm5149, %v5117, %v5181
    %v5214 = vsel %vm5150, %v5118, %v5182
    %v5215 = vsel %vm5151, %v5119, %v5183
    %v5216 = vsel %vm5152, %v5120, %v5184
    %v5217 = vsel %vm5153, %v5121, %v5185
    %v5218 = vsel %vm5154, %v5122, %v5186
    %v5219 = vsel %vm5155, %v5123, %v5187
    %v5220 = vsel %vm5156, %v5124, %v5188
    %v5221 = vsel %vm5157, %v5125, %v5189
    %v5222 = vsel %vm5158, %v5126, %v5190
    %v5223 = vsel %vm5159, %v5127, %v5191
    %v5224 = vsel %vm5160, %v5128, %v5192
    %v5225 = vsel %vm5161, %v5129, %v5193
    %v5226 = vsel %vm5162, %v5130, %v5194
    %v5227 = vsel %vm5163, %v5131, %v5195
    %v5228 = vsel %vm5164, %v5132, %v5196
    %v5229 = vsel %vm5165, %v5133, %v5197
    %v5230 = vsel %vm5166, %v5134, %v5198
    %v5231 = vsel %vm5167, %v5135, %v5199
    %v5232 = vsel %vm5168, %v5136, %v5200
    %v5233 = vsel %vm5169, %v5137, %v5201
    %v5234 = vsel %vm5170, %v5138, %v5202
    %v5235 = vsel %vm5171, %v5139, %v5203
    %v5236 = vsel %vm5172, %v5140, %v5204
    %v5237 = vsel %vm5173, %v5141, %v5205
    %v5238 = vsel %vm5174, %v5142, %v5206
    %v5239 = vsel %vm5175, %v5143, %v5207
    %v5240 = vsel %vm5176, %v5144, %v5208
    %v5241 = vsel %vm5177, %v5145, %v5209
    %v5242 = vperm.slane %v5065, 0
    %v5243 = vmul.f32 %v5210, %v5242
    %v5244 = vmul.f32 %v5211, %v5242
    %v5245 = vmul.f32 %v5212, %v5242
    %v5246 = vmul.f32 %v5213, %v5242
    %v5247 = vmul.f32 %v5214, %v5242
    %v5248 = vmul.f32 %v5215, %v5242
    %v5249 = vmul.f32 %v5216, %v5242
    %v5250 = vmul.f32 %v5217, %v5242
    %v5251 = vmul.f32 %v5218, %v5242
    %v5252 = vmul.f32 %v5219, %v5242
    %v5253 = vmul.f32 %v5220, %v5242
    %v5254 = vmul.f32 %v5221, %v5242
    %v5255 = vmul.f32 %v5222, %v5242
    %v5256 = vmul.f32 %v5223, %v5242
    %v5257 = vmul.f32 %v5224, %v5242
    %v5258 = vmul.f32 %v5225, %v5242
    %v5259 = vmul.f32 %v5226, %v5242
    %v5260 = vmul.f32 %v5227, %v5242
    %v5261 = vmul.f32 %v5228, %v5242
    %v5262 = vmul.f32 %v5229, %v5242
    %v5263 = vmul.f32 %v5230, %v5242
    %v5264 = vmul.f32 %v5231, %v5242
    %v5265 = vmul.f32 %v5232, %v5242
    %v5266 = vmul.f32 %v5233, %v5242
    %v5267 = vmul.f32 %v5234, %v5242
    %v5268 = vmul.f32 %v5235, %v5242
    %v5269 = vmul.f32 %v5236, %v5242
    %v5270 = vmul.f32 %v5237, %v5242
    %v5271 = vmul.f32 %v5238, %v5242
    %v5272 = vmul.f32 %v5239, %v5242
    %v5273 = vmul.f32 %v5240, %v5242
    %v5274 = vmul.f32 %v5241, %v5242
    %v5275 = vsel %vm420, %v5243, 0.0
    %5276 = vadd.xlane.f32.xlu0 %v5275
    %v5277 = vpop.xlane.xlu0 %5276
    %v5278 = vsel %vm420, %v5244, 0.0
    %5279 = vadd.xlane.f32.xlu0 %v5278
    %v5280 = vpop.xlane.xlu0 %5279
    %v5281 = vsel %vm420, %v5245, 0.0
    %5282 = vadd.xlane.f32.xlu0 %v5281
    %v5283 = vpop.xlane.xlu0 %5282
    %v5284 = vsel %vm420, %v5246, 0.0
    %5285 = vadd.xlane.f32.xlu0 %v5284
    %v5286 = vpop.xlane.xlu0 %5285
    %v5287 = vsel %vm420, %v5247, 0.0
    %5288 = vadd.xlane.f32.xlu0 %v5287
    %v5289 = vpop.xlane.xlu0 %5288
    %v5290 = vsel %vm420, %v5248, 0.0
    %5291 = vadd.xlane.f32.xlu0 %v5290
    %v5292 = vpop.xlane.xlu0 %5291
    %v5293 = vsel %vm420, %v5249, 0.0
    %5294 = vadd.xlane.f32.xlu0 %v5293
    %v5295 = vpop.xlane.xlu0 %5294
    %v5296 = vsel %vm420, %v5250, 0.0
    %5297 = vadd.xlane.f32.xlu0 %v5296
    %v5298 = vpop.xlane.xlu0 %5297
    %v5299 = vsel %vm420, %v5251, 0.0
    %5300 = vadd.xlane.f32.xlu0 %v5299
    %v5301 = vpop.xlane.xlu0 %5300
    %v5302 = vsel %vm420, %v5252, 0.0
    %5303 = vadd.xlane.f32.xlu0 %v5302
    %v5304 = vpop.xlane.xlu0 %5303
    %v5305 = vsel %vm420, %v5253, 0.0
    %5306 = vadd.xlane.f32.xlu0 %v5305
    %v5307 = vpop.xlane.xlu0 %5306
    %v5308 = vsel %vm420, %v5254, 0.0
    %5309 = vadd.xlane.f32.xlu0 %v5308
    %v5310 = vpop.xlane.xlu0 %5309
    %v5311 = vsel %vm420, %v5255, 0.0
    %5312 = vadd.xlane.f32.xlu0 %v5311
    %v5313 = vpop.xlane.xlu0 %5312
    %v5314 = vsel %vm420, %v5256, 0.0
    %5315 = vadd.xlane.f32.xlu0 %v5314
    %v5316 = vpop.xlane.xlu0 %5315
    %v5317 = vsel %vm420, %v5257, 0.0
    %5318 = vadd.xlane.f32.xlu0 %v5317
    %v5319 = vpop.xlane.xlu0 %5318
    %v5320 = vsel %vm420, %v5258, 0.0
    %5321 = vadd.xlane.f32.xlu0 %v5320
    %v5322 = vpop.xlane.xlu0 %5321
    %v5323 = vsel %vm420, %v5259, 0.0
    %5324 = vadd.xlane.f32.xlu0 %v5323
    %v5325 = vpop.xlane.xlu0 %5324
    %v5326 = vsel %vm420, %v5260, 0.0
    %5327 = vadd.xlane.f32.xlu0 %v5326
    %v5328 = vpop.xlane.xlu0 %5327
    %v5329 = vsel %vm420, %v5261, 0.0
    %5330 = vadd.xlane.f32.xlu0 %v5329
    %v5331 = vpop.xlane.xlu0 %5330
    %v5332 = vsel %vm420, %v5262, 0.0
    %5333 = vadd.xlane.f32.xlu0 %v5332
    %v5334 = vpop.xlane.xlu0 %5333
    %v5335 = vsel %vm420, %v5263, 0.0
    %5336 = vadd.xlane.f32.xlu0 %v5335
    %v5337 = vpop.xlane.xlu0 %5336
    %v5338 = vsel %vm420, %v5264, 0.0
    %5339 = vadd.xlane.f32.xlu0 %v5338
    %v5340 = vpop.xlane.xlu0 %5339
    %v5341 = vsel %vm420, %v5265, 0.0
    %5342 = vadd.xlane.f32.xlu0 %v5341
    %v5343 = vpop.xlane.xlu0 %5342
    %v5344 = vsel %vm420, %v5266, 0.0
    %5345 = vadd.xlane.f32.xlu0 %v5344
    %v5346 = vpop.xlane.xlu0 %5345
    %v5347 = vsel %vm420, %v5267, 0.0
    %5348 = vadd.xlane.f32.xlu0 %v5347
    %v5349 = vpop.xlane.xlu0 %5348
    %v5350 = vsel %vm420, %v5268, 0.0
    %5351 = vadd.xlane.f32.xlu0 %v5350
    %v5352 = vpop.xlane.xlu0 %5351
    %v5353 = vsel %vm420, %v5269, 0.0
    %5354 = vadd.xlane.f32.xlu0 %v5353
    %v5355 = vpop.xlane.xlu0 %5354
    %v5356 = vsel %vm420, %v5270, 0.0
    %5357 = vadd.xlane.f32.xlu0 %v5356
    %v5358 = vpop.xlane.xlu0 %5357
    %v5359 = vsel %vm420, %v5271, 0.0
    %5360 = vadd.xlane.f32.xlu0 %v5359
    %v5361 = vpop.xlane.xlu0 %5360
    %v5362 = vsel %vm420, %v5272, 0.0
    %5363 = vadd.xlane.f32.xlu0 %v5362
    %v5364 = vpop.xlane.xlu0 %5363
    %v5365 = vsel %vm420, %v5273, 0.0
    %5366 = vadd.xlane.f32.xlu0 %v5365
    %v5367 = vpop.xlane.xlu0 %5366
    %v5368 = vsel %vm420, %v5274, 0.0
    %5369 = vadd.xlane.f32.xlu0 %v5368
    %v5370 = vpop.xlane.xlu0 %5369
    %v5371 = vadd.f32 %v5277, %v525
    %v5372 = vadd.f32 %v5280, %v531
    %v5373 = vadd.f32 %v5283, %v538
    %v5374 = vadd.f32 %v5286, %v544
    %v5375 = vadd.f32 %v5289, %v551
    %v5376 = vadd.f32 %v5292, %v557
    %v5377 = vadd.f32 %v5295, %v564
    %v5378 = vadd.f32 %v5298, %v570
    %v5379 = vadd.f32 %v5301, %v577
    %v5380 = vadd.f32 %v5304, %v583
    %v5381 = vadd.f32 %v5307, %v590
    %v5382 = vadd.f32 %v5310, %v596
    %v5383 = vadd.f32 %v5313, %v603
    %v5384 = vadd.f32 %v5316, %v609
    %v5385 = vadd.f32 %v5319, %v616
    %v5386 = vadd.f32 %v5322, %v622
    %v5387 = vadd.f32 %v5325, %v629
    %v5388 = vadd.f32 %v5328, %v635
    %v5389 = vadd.f32 %v5331, %v642
    %v5390 = vadd.f32 %v5334, %v648
    %v5391 = vadd.f32 %v5337, %v655
    %v5392 = vadd.f32 %v5340, %v661
    %v5393 = vadd.f32 %v5343, %v668
    %v5394 = vadd.f32 %v5346, %v674
    %v5395 = vadd.f32 %v5349, %v681
    %v5396 = vadd.f32 %v5352, %v687
    %v5397 = vadd.f32 %v5355, %v694
    %v5398 = vadd.f32 %v5358, %v700
    %v5399 = vadd.f32 %v5361, %v707
    %v5400 = vadd.f32 %v5364, %v713
    %v5401 = vadd.f32 %v5367, %v720
    %v5402 = vadd.f32 %v5370, %v726
    %5435 = vset.pattern.permute.xlu0 0
    %5436 = vperm.xlu0 %5435, %v5371
    %v5437 = vpop.permute.xlu0 %5436
    %5438 = vset.pattern.permute.xlu0 0
    %5439 = vperm.xlu0 %5438, %v5372
    %v5440 = vpop.permute.xlu0 %5439
    %5441 = vset.pattern.permute.xlu0 0
    %5442 = vperm.xlu0 %5441, %v5373
    %v5443 = vpop.permute.xlu0 %5442
    %5444 = vset.pattern.permute.xlu0 0
    %5445 = vperm.xlu0 %5444, %v5374
    %v5446 = vpop.permute.xlu0 %5445
    %5447 = vset.pattern.permute.xlu0 0
    %5448 = vperm.xlu0 %5447, %v5375
    %v5449 = vpop.permute.xlu0 %5448
    %5450 = vset.pattern.permute.xlu0 0
    %5451 = vperm.xlu0 %5450, %v5376
    %v5452 = vpop.permute.xlu0 %5451
    %5453 = vset.pattern.permute.xlu0 0
    %5454 = vperm.xlu0 %5453, %v5377
    %v5455 = vpop.permute.xlu0 %5454
    %5456 = vset.pattern.permute.xlu0 0
    %5457 = vperm.xlu0 %5456, %v5378
    %v5458 = vpop.permute.xlu0 %5457
    %5459 = vset.pattern.permute.xlu0 0
    %5460 = vperm.xlu0 %5459, %v5379
    %v5461 = vpop.permute.xlu0 %5460
    %5462 = vset.pattern.permute.xlu0 0
    %5463 = vperm.xlu0 %5462, %v5380
    %v5464 = vpop.permute.xlu0 %5463
    %5465 = vset.pattern.permute.xlu0 0
    %5466 = vperm.xlu0 %5465, %v5381
    %v5467 = vpop.permute.xlu0 %5466
    %5468 = vset.pattern.permute.xlu0 0
    %5469 = vperm.xlu0 %5468, %v5382
    %v5470 = vpop.permute.xlu0 %5469
    %5471 = vset.pattern.permute.xlu0 0
    %5472 = vperm.xlu0 %5471, %v5383
    %v5473 = vpop.permute.xlu0 %5472
    %5474 = vset.pattern.permute.xlu0 0
    %5475 = vperm.xlu0 %5474, %v5384
    %v5476 = vpop.permute.xlu0 %5475
    %5477 = vset.pattern.permute.xlu0 0
    %5478 = vperm.xlu0 %5477, %v5385
    %v5479 = vpop.permute.xlu0 %5478
    %5480 = vset.pattern.permute.xlu0 0
    %5481 = vperm.xlu0 %5480, %v5386
    %v5482 = vpop.permute.xlu0 %5481
    %5483 = vset.pattern.permute.xlu0 0
    %5484 = vperm.xlu0 %5483, %v5387
    %v5485 = vpop.permute.xlu0 %5484
    %5486 = vset.pattern.permute.xlu0 0
    %5487 = vperm.xlu0 %5486, %v5388
    %v5488 = vpop.permute.xlu0 %5487
    %5489 = vset.pattern.permute.xlu0 0
    %5490 = vperm.xlu0 %5489, %v5389
    %v5491 = vpop.permute.xlu0 %5490
    %5492 = vset.pattern.permute.xlu0 0
    %5493 = vperm.xlu0 %5492, %v5390
    %v5494 = vpop.permute.xlu0 %5493
    %5495 = vset.pattern.permute.xlu0 0
    %5496 = vperm.xlu0 %5495, %v5391
    %v5497 = vpop.permute.xlu0 %5496
    %5498 = vset.pattern.permute.xlu0 0
    %5499 = vperm.xlu0 %5498, %v5392
    %v5500 = vpop.permute.xlu0 %5499
    %5501 = vset.pattern.permute.xlu0 0
    %5502 = vperm.xlu0 %5501, %v5393
    %v5503 = vpop.permute.xlu0 %5502
    %5504 = vset.pattern.permute.xlu0 0
    %5505 = vperm.xlu0 %5504, %v5394
    %v5506 = vpop.permute.xlu0 %5505
    %5507 = vset.pattern.permute.xlu0 0
    %5508 = vperm.xlu0 %5507, %v5395
    %v5509 = vpop.permute.xlu0 %5508
    %5510 = vset.pattern.permute.xlu0 0
    %5511 = vperm.xlu0 %5510, %v5396
    %v5512 = vpop.permute.xlu0 %5511
    %5513 = vset.pattern.permute.xlu0 0
    %5514 = vperm.xlu0 %5513, %v5397
    %v5515 = vpop.permute.xlu0 %5514
    %5516 = vset.pattern.permute.xlu0 0
    %5517 = vperm.xlu0 %5516, %v5398
    %v5518 = vpop.permute.xlu0 %5517
    %5519 = vset.pattern.permute.xlu0 0
    %5520 = vperm.xlu0 %5519, %v5399
    %v5521 = vpop.permute.xlu0 %5520
    %5522 = vset.pattern.permute.xlu0 0
    %5523 = vperm.xlu0 %5522, %v5400
    %v5524 = vpop.permute.xlu0 %5523
    %5525 = vset.pattern.permute.xlu0 0
    %5526 = vperm.xlu0 %5525, %v5401
    %v5527 = vpop.permute.xlu0 %5526
    %5528 = vset.pattern.permute.xlu0 0
    %5529 = vperm.xlu0 %5528, %v5402
    %v5530 = vpop.permute.xlu0 %5529
    %v5531 = vperm.slane %v5437, %v920
    %v5532 = vperm.slane %v5440, %v922
    %v5533 = vsel %vm924, %v5532, %v5531
    %v5534 = vperm.slane %v5443, %v920
    %v5535 = vperm.slane %v5446, %v922
    %v5536 = vsel %vm924, %v5535, %v5534
    %v5537 = vperm.slane %v5449, %v920
    %v5538 = vperm.slane %v5452, %v922
    %v5539 = vsel %vm924, %v5538, %v5537
    %v5540 = vperm.slane %v5455, %v920
    %v5541 = vperm.slane %v5458, %v922
    %v5542 = vsel %vm924, %v5541, %v5540
    %v5543 = vperm.slane %v5461, %v920
    %v5544 = vperm.slane %v5464, %v922
    %v5545 = vsel %vm924, %v5544, %v5543
    %v5546 = vperm.slane %v5467, %v920
    %v5547 = vperm.slane %v5470, %v922
    %v5548 = vsel %vm924, %v5547, %v5546
    %v5549 = vperm.slane %v5473, %v920
    %v5550 = vperm.slane %v5476, %v922
    %v5551 = vsel %vm924, %v5550, %v5549
    %v5552 = vperm.slane %v5479, %v920
    %v5553 = vperm.slane %v5482, %v922
    %v5554 = vsel %vm924, %v5553, %v5552
    %v5555 = vperm.slane %v5485, %v920
    %v5556 = vperm.slane %v5488, %v922
    %v5557 = vsel %vm924, %v5556, %v5555
    %v5558 = vperm.slane %v5491, %v920
    %v5559 = vperm.slane %v5494, %v922
    %v5560 = vsel %vm924, %v5559, %v5558
    %v5561 = vperm.slane %v5497, %v920
    %v5562 = vperm.slane %v5500, %v922
    %v5563 = vsel %vm924, %v5562, %v5561
    %v5564 = vperm.slane %v5503, %v920
    %v5565 = vperm.slane %v5506, %v922
    %v5566 = vsel %vm924, %v5565, %v5564
    %v5567 = vperm.slane %v5509, %v920
    %v5568 = vperm.slane %v5512, %v922
    %v5569 = vsel %vm924, %v5568, %v5567
    %v5570 = vperm.slane %v5515, %v920
    %v5571 = vperm.slane %v5518, %v922
    %v5572 = vsel %vm924, %v5571, %v5570
    %v5573 = vperm.slane %v5521, %v920
    %v5574 = vperm.slane %v5524, %v922
    %v5575 = vsel %vm924, %v5574, %v5573
    %v5576 = vperm.slane %v5527, %v920
    %v5577 = vperm.slane %v5530, %v922
    %v5578 = vsel %vm924, %v5577, %v5576
    %v5579 = vsel %vm971, %v5536, %v5533
    %v5580 = vsel %vm973, %v5539, %v5579
    %v5581 = vsel %vm975, %v5542, %v5580
    %v5582 = vsel %vm977, %v5545, %v5581
    %v5583 = vsel %vm979, %v5548, %v5582
    %v5584 = vsel %vm981, %v5551, %v5583
    %v5585 = vsel %vm983, %v5554, %v5584
    %v5586 = vsel %vm971, %v5560, %v5557
    %v5587 = vsel %vm973, %v5563, %v5586
    %v5588 = vsel %vm975, %v5566, %v5587
    %v5589 = vsel %vm977, %v5569, %v5588
    %v5590 = vsel %vm979, %v5572, %v5589
    %v5591 = vsel %vm981, %v5575, %v5590
    %v5592 = vsel %vm983, %v5578, %v5591
    %v5595 = vsel %vm151, %v5585, -inf
    %5596 = vmax.xlane.f32.xlu0 %v5595
    %v5597 = vpop.xlane.xlu0 %5596
    %v5598 = vsel %vm151, %v5592, -inf
    %5599 = vmax.xlane.f32.xlu0 %v5598
    %v5600 = vpop.xlane.xlu0 %5599
    %v5603 = vperm.slane %v5597, 0
    %v5604 = vperm.slane %v5597, 1
    %v5605 = vperm.slane %v5597, 2
    %v5606 = vperm.slane %v5597, 3
    %v5607 = vperm.slane %v5597, 4
    %v5608 = vperm.slane %v5597, 5
    %v5609 = vperm.slane %v5597, 6
    %v5610 = vperm.slane %v5597, 7
    %v5611 = vperm.slane %v5600, 0
    %v5612 = vperm.slane %v5600, 1
    %v5613 = vperm.slane %v5600, 2
    %v5614 = vperm.slane %v5600, 3
    %v5615 = vperm.slane %v5600, 4
    %v5616 = vperm.slane %v5600, 5
    %v5617 = vperm.slane %v5600, 6
    %v5618 = vperm.slane %v5600, 7
    %v5635 = vsub.f32 %v5371, %v5603
    %v5636 = vsub.f32 %v5372, %v5603
    %v5637 = vsub.f32 %v5373, %v5604
    %v5638 = vsub.f32 %v5374, %v5604
    %v5639 = vsub.f32 %v5375, %v5605
    %v5640 = vsub.f32 %v5376, %v5605
    %v5641 = vsub.f32 %v5377, %v5606
    %v5642 = vsub.f32 %v5378, %v5606
    %v5643 = vsub.f32 %v5379, %v5607
    %v5644 = vsub.f32 %v5380, %v5607
    %v5645 = vsub.f32 %v5381, %v5608
    %v5646 = vsub.f32 %v5382, %v5608
    %v5647 = vsub.f32 %v5383, %v5609
    %v5648 = vsub.f32 %v5384, %v5609
    %v5649 = vsub.f32 %v5385, %v5610
    %v5650 = vsub.f32 %v5386, %v5610
    %v5651 = vsub.f32 %v5387, %v5611
    %v5652 = vsub.f32 %v5388, %v5611
    %v5653 = vsub.f32 %v5389, %v5612
    %v5654 = vsub.f32 %v5390, %v5612
    %v5655 = vsub.f32 %v5391, %v5613
    %v5656 = vsub.f32 %v5392, %v5613
    %v5657 = vsub.f32 %v5393, %v5614
    %v5658 = vsub.f32 %v5394, %v5614
    %v5659 = vsub.f32 %v5395, %v5615
    %v5660 = vsub.f32 %v5396, %v5615
    %v5661 = vsub.f32 %v5397, %v5616
    %v5662 = vsub.f32 %v5398, %v5616
    %v5663 = vsub.f32 %v5399, %v5617
    %v5664 = vsub.f32 %v5400, %v5617
    %v5665 = vsub.f32 %v5401, %v5618
    %v5666 = vsub.f32 %v5402, %v5618
    %v5667 = vmul.f32 %v5635, 1.442695
    %v5668 = vpow.pop %v5667
    %v5669 = vmul.f32 %v5636, 1.442695
    %v5670 = vpow.pop %v5669
    %v5671 = vmul.f32 %v5637, 1.442695
    %v5672 = vpow.pop %v5671
    %v5673 = vmul.f32 %v5638, 1.442695
    %v5674 = vpow.pop %v5673
    %v5675 = vmul.f32 %v5639, 1.442695
    %v5676 = vpow.pop %v5675
    %v5677 = vmul.f32 %v5640, 1.442695
    %v5678 = vpow.pop %v5677
    %v5679 = vmul.f32 %v5641, 1.442695
    %v5680 = vpow.pop %v5679
    %v5681 = vmul.f32 %v5642, 1.442695
    %v5682 = vpow.pop %v5681
    %v5683 = vmul.f32 %v5643, 1.442695
    %v5684 = vpow.pop %v5683
    %v5685 = vmul.f32 %v5644, 1.442695
    %v5686 = vpow.pop %v5685
    %v5687 = vmul.f32 %v5645, 1.442695
    %v5688 = vpow.pop %v5687
    %v5689 = vmul.f32 %v5646, 1.442695
    %v5690 = vpow.pop %v5689
    %v5691 = vmul.f32 %v5647, 1.442695
    %v5692 = vpow.pop %v5691
    %v5693 = vmul.f32 %v5648, 1.442695
    %v5694 = vpow.pop %v5693
    %v5695 = vmul.f32 %v5649, 1.442695
    %v5696 = vpow.pop %v5695
    %v5697 = vmul.f32 %v5650, 1.442695
    %v5698 = vpow.pop %v5697
    %v5699 = vmul.f32 %v5651, 1.442695
    %v5700 = vpow.pop %v5699
    %v5701 = vmul.f32 %v5652, 1.442695
    %v5702 = vpow.pop %v5701
    %v5703 = vmul.f32 %v5653, 1.442695
    %v5704 = vpow.pop %v5703
    %v5705 = vmul.f32 %v5654, 1.442695
    %v5706 = vpow.pop %v5705
    %v5707 = vmul.f32 %v5655, 1.442695
    %v5708 = vpow.pop %v5707
    %v5709 = vmul.f32 %v5656, 1.442695
    %v5710 = vpow.pop %v5709
    %v5711 = vmul.f32 %v5657, 1.442695
    %v5712 = vpow.pop %v5711
    %v5713 = vmul.f32 %v5658, 1.442695
    %v5714 = vpow.pop %v5713
    %v5715 = vmul.f32 %v5659, 1.442695
    %v5716 = vpow.pop %v5715
    %v5717 = vmul.f32 %v5660, 1.442695
    %v5718 = vpow.pop %v5717
    %v5719 = vmul.f32 %v5661, 1.442695
    %v5720 = vpow.pop %v5719
    %v5721 = vmul.f32 %v5662, 1.442695
    %v5722 = vpow.pop %v5721
    %v5723 = vmul.f32 %v5663, 1.442695
    %v5724 = vpow.pop %v5723
    %v5725 = vmul.f32 %v5664, 1.442695
    %v5726 = vpow.pop %v5725
    %v5727 = vmul.f32 %v5665, 1.442695
    %v5728 = vpow.pop %v5727
    %v5729 = vmul.f32 %v5666, 1.442695
    %v5730 = vpow.pop %v5729
    %5763 = vset.pattern.permute.xlu0 0
    %5764 = vperm.xlu0 %5763, %v5668
    %v5765 = vpop.permute.xlu0 %5764
    %5766 = vset.pattern.permute.xlu0 0
    %5767 = vperm.xlu0 %5766, %v5670
    %v5768 = vpop.permute.xlu0 %5767
    %5769 = vset.pattern.permute.xlu0 0
    %5770 = vperm.xlu0 %5769, %v5672
    %v5771 = vpop.permute.xlu0 %5770
    %5772 = vset.pattern.permute.xlu0 0
    %5773 = vperm.xlu0 %5772, %v5674
    %v5774 = vpop.permute.xlu0 %5773
    %5775 = vset.pattern.permute.xlu0 0
    %5776 = vperm.xlu0 %5775, %v5676
    %v5777 = vpop.permute.xlu0 %5776
    %5778 = vset.pattern.permute.xlu0 0
    %5779 = vperm.xlu0 %5778, %v5678
    %v5780 = vpop.permute.xlu0 %5779
    %5781 = vset.pattern.permute.xlu0 0
    %5782 = vperm.xlu0 %5781, %v5680
    %v5783 = vpop.permute.xlu0 %5782
    %5784 = vset.pattern.permute.xlu0 0
    %5785 = vperm.xlu0 %5784, %v5682
    %v5786 = vpop.permute.xlu0 %5785
    %5787 = vset.pattern.permute.xlu0 0
    %5788 = vperm.xlu0 %5787, %v5684
    %v5789 = vpop.permute.xlu0 %5788
    %5790 = vset.pattern.permute.xlu0 0
    %5791 = vperm.xlu0 %5790, %v5686
    %v5792 = vpop.permute.xlu0 %5791
    %5793 = vset.pattern.permute.xlu0 0
    %5794 = vperm.xlu0 %5793, %v5688
    %v5795 = vpop.permute.xlu0 %5794
    %5796 = vset.pattern.permute.xlu0 0
    %5797 = vperm.xlu0 %5796, %v5690
    %v5798 = vpop.permute.xlu0 %5797
    %5799 = vset.pattern.permute.xlu0 0
    %5800 = vperm.xlu0 %5799, %v5692
    %v5801 = vpop.permute.xlu0 %5800
    %5802 = vset.pattern.permute.xlu0 0
    %5803 = vperm.xlu0 %5802, %v5694
    %v5804 = vpop.permute.xlu0 %5803
    %5805 = vset.pattern.permute.xlu0 0
    %5806 = vperm.xlu0 %5805, %v5696
    %v5807 = vpop.permute.xlu0 %5806
    %5808 = vset.pattern.permute.xlu0 0
    %5809 = vperm.xlu0 %5808, %v5698
    %v5810 = vpop.permute.xlu0 %5809
    %5811 = vset.pattern.permute.xlu0 0
    %5812 = vperm.xlu0 %5811, %v5700
    %v5813 = vpop.permute.xlu0 %5812
    %5814 = vset.pattern.permute.xlu0 0
    %5815 = vperm.xlu0 %5814, %v5702
    %v5816 = vpop.permute.xlu0 %5815
    %5817 = vset.pattern.permute.xlu0 0
    %5818 = vperm.xlu0 %5817, %v5704
    %v5819 = vpop.permute.xlu0 %5818
    %5820 = vset.pattern.permute.xlu0 0
    %5821 = vperm.xlu0 %5820, %v5706
    %v5822 = vpop.permute.xlu0 %5821
    %5823 = vset.pattern.permute.xlu0 0
    %5824 = vperm.xlu0 %5823, %v5708
    %v5825 = vpop.permute.xlu0 %5824
    %5826 = vset.pattern.permute.xlu0 0
    %5827 = vperm.xlu0 %5826, %v5710
    %v5828 = vpop.permute.xlu0 %5827
    %5829 = vset.pattern.permute.xlu0 0
    %5830 = vperm.xlu0 %5829, %v5712
    %v5831 = vpop.permute.xlu0 %5830
    %5832 = vset.pattern.permute.xlu0 0
    %5833 = vperm.xlu0 %5832, %v5714
    %v5834 = vpop.permute.xlu0 %5833
    %5835 = vset.pattern.permute.xlu0 0
    %5836 = vperm.xlu0 %5835, %v5716
    %v5837 = vpop.permute.xlu0 %5836
    %5838 = vset.pattern.permute.xlu0 0
    %5839 = vperm.xlu0 %5838, %v5718
    %v5840 = vpop.permute.xlu0 %5839
    %5841 = vset.pattern.permute.xlu0 0
    %5842 = vperm.xlu0 %5841, %v5720
    %v5843 = vpop.permute.xlu0 %5842
    %5844 = vset.pattern.permute.xlu0 0
    %5845 = vperm.xlu0 %5844, %v5722
    %v5846 = vpop.permute.xlu0 %5845
    %5847 = vset.pattern.permute.xlu0 0
    %5848 = vperm.xlu0 %5847, %v5724
    %v5849 = vpop.permute.xlu0 %5848
    %5850 = vset.pattern.permute.xlu0 0
    %5851 = vperm.xlu0 %5850, %v5726
    %v5852 = vpop.permute.xlu0 %5851
    %5853 = vset.pattern.permute.xlu0 0
    %5854 = vperm.xlu0 %5853, %v5728
    %v5855 = vpop.permute.xlu0 %5854
    %5856 = vset.pattern.permute.xlu0 0
    %5857 = vperm.xlu0 %5856, %v5730
    %v5858 = vpop.permute.xlu0 %5857
    %v5859 = vperm.slane %v5765, %v920
    %v5860 = vperm.slane %v5768, %v922
    %v5861 = vsel %vm924, %v5860, %v5859
    %v5862 = vperm.slane %v5771, %v920
    %v5863 = vperm.slane %v5774, %v922
    %v5864 = vsel %vm924, %v5863, %v5862
    %v5865 = vperm.slane %v5777, %v920
    %v5866 = vperm.slane %v5780, %v922
    %v5867 = vsel %vm924, %v5866, %v5865
    %v5868 = vperm.slane %v5783, %v920
    %v5869 = vperm.slane %v5786, %v922
    %v5870 = vsel %vm924, %v5869, %v5868
    %v5871 = vperm.slane %v5789, %v920
    %v5872 = vperm.slane %v5792, %v922
    %v5873 = vsel %vm924, %v5872, %v5871
    %v5874 = vperm.slane %v5795, %v920
    %v5875 = vperm.slane %v5798, %v922
    %v5876 = vsel %vm924, %v5875, %v5874
    %v5877 = vperm.slane %v5801, %v920
    %v5878 = vperm.slane %v5804, %v922
    %v5879 = vsel %vm924, %v5878, %v5877
    %v5880 = vperm.slane %v5807, %v920
    %v5881 = vperm.slane %v5810, %v922
    %v5882 = vsel %vm924, %v5881, %v5880
    %v5883 = vperm.slane %v5813, %v920
    %v5884 = vperm.slane %v5816, %v922
    %v5885 = vsel %vm924, %v5884, %v5883
    %v5886 = vperm.slane %v5819, %v920
    %v5887 = vperm.slane %v5822, %v922
    %v5888 = vsel %vm924, %v5887, %v5886
    %v5889 = vperm.slane %v5825, %v920
    %v5890 = vperm.slane %v5828, %v922
    %v5891 = vsel %vm924, %v5890, %v5889
    %v5892 = vperm.slane %v5831, %v920
    %v5893 = vperm.slane %v5834, %v922
    %v5894 = vsel %vm924, %v5893, %v5892
    %v5895 = vperm.slane %v5837, %v920
    %v5896 = vperm.slane %v5840, %v922
    %v5897 = vsel %vm924, %v5896, %v5895
    %v5898 = vperm.slane %v5843, %v920
    %v5899 = vperm.slane %v5846, %v922
    %v5900 = vsel %vm924, %v5899, %v5898
    %v5901 = vperm.slane %v5849, %v920
    %v5902 = vperm.slane %v5852, %v922
    %v5903 = vsel %vm924, %v5902, %v5901
    %v5904 = vperm.slane %v5855, %v920
    %v5905 = vperm.slane %v5858, %v922
    %v5906 = vsel %vm924, %v5905, %v5904
    %v5907 = vsel %vm971, %v5864, %v5861
    %v5908 = vsel %vm973, %v5867, %v5907
    %v5909 = vsel %vm975, %v5870, %v5908
    %v5910 = vsel %vm977, %v5873, %v5909
    %v5911 = vsel %vm979, %v5876, %v5910
    %v5912 = vsel %vm981, %v5879, %v5911
    %v5913 = vsel %vm983, %v5882, %v5912
    %v5914 = vsel %vm971, %v5888, %v5885
    %v5915 = vsel %vm973, %v5891, %v5914
    %v5916 = vsel %vm975, %v5894, %v5915
    %v5917 = vsel %vm977, %v5897, %v5916
    %v5918 = vsel %vm979, %v5900, %v5917
    %v5919 = vsel %vm981, %v5903, %v5918
    %v5920 = vsel %vm983, %v5906, %v5919
    %v5923 = vsel %vm151, %v5913, 0.0
    %5924 = vadd.xlane.f32.xlu0 %v5923
    %v5925 = vpop.xlane.xlu0 %5924
    %v5926 = vsel %vm151, %v5920, 0.0
    %5927 = vadd.xlane.f32.xlu0 %v5926
    %v5928 = vpop.xlane.xlu0 %5927
    %v5929 = vrcp.pop %v5925
    %v5930 = vrcp.pop %v5928
    %v5933 = vperm.slane %v5929, 0
    %v5934 = vperm.slane %v5929, 1
    %v5935 = vperm.slane %v5929, 2
    %v5936 = vperm.slane %v5929, 3
    %v5937 = vperm.slane %v5929, 4
    %v5938 = vperm.slane %v5929, 5
    %v5939 = vperm.slane %v5929, 6
    %v5940 = vperm.slane %v5929, 7
    %v5941 = vperm.slane %v5930, 0
    %v5942 = vperm.slane %v5930, 1
    %v5943 = vperm.slane %v5930, 2
    %v5944 = vperm.slane %v5930, 3
    %v5945 = vperm.slane %v5930, 4
    %v5946 = vperm.slane %v5930, 5
    %v5947 = vperm.slane %v5930, 6
    %v5948 = vperm.slane %v5930, 7
    %v5965 = vmul.f32 %v5668, %v5933
    %v5966 = vmul.f32 %v5670, %v5933
    %v5967 = vmul.f32 %v5672, %v5934
    %v5968 = vmul.f32 %v5674, %v5934
    %v5969 = vmul.f32 %v5676, %v5935
    %v5970 = vmul.f32 %v5678, %v5935
    %v5971 = vmul.f32 %v5680, %v5936
    %v5972 = vmul.f32 %v5682, %v5936
    %v5973 = vmul.f32 %v5684, %v5937
    %v5974 = vmul.f32 %v5686, %v5937
    %v5975 = vmul.f32 %v5688, %v5938
    %v5976 = vmul.f32 %v5690, %v5938
    %v5977 = vmul.f32 %v5692, %v5939
    %v5978 = vmul.f32 %v5694, %v5939
    %v5979 = vmul.f32 %v5696, %v5940
    %v5980 = vmul.f32 %v5698, %v5940
    %v5981 = vmul.f32 %v5700, %v5941
    %v5982 = vmul.f32 %v5702, %v5941
    %v5983 = vmul.f32 %v5704, %v5942
    %v5984 = vmul.f32 %v5706, %v5942
    %v5985 = vmul.f32 %v5708, %v5943
    %v5986 = vmul.f32 %v5710, %v5943
    %v5987 = vmul.f32 %v5712, %v5944
    %v5988 = vmul.f32 %v5714, %v5944
    %v5989 = vmul.f32 %v5716, %v5945
    %v5990 = vmul.f32 %v5718, %v5945
    %v5991 = vmul.f32 %v5720, %v5946
    %v5992 = vmul.f32 %v5722, %v5946
    %v5993 = vmul.f32 %v5724, %v5947
    %v5994 = vmul.f32 %v5726, %v5947
    %v5995 = vmul.f32 %v5728, %v5948
    %v5996 = vmul.f32 %v5730, %v5948
    %6029 = vset.pattern.permute.xlu0 0
    %6030 = vperm.xlu0 %6029, %v5965
    %v6031 = vpop.permute.xlu0 %6030
    %6032 = vset.pattern.permute.xlu0 0
    %6033 = vperm.xlu0 %6032, %v5966
    %v6034 = vpop.permute.xlu0 %6033
    %6035 = vset.pattern.permute.xlu0 0
    %6036 = vperm.xlu0 %6035, %v5967
    %v6037 = vpop.permute.xlu0 %6036
    %6038 = vset.pattern.permute.xlu0 0
    %6039 = vperm.xlu0 %6038, %v5968
    %v6040 = vpop.permute.xlu0 %6039
    %6041 = vset.pattern.permute.xlu0 0
    %6042 = vperm.xlu0 %6041, %v5969
    %v6043 = vpop.permute.xlu0 %6042
    %6044 = vset.pattern.permute.xlu0 0
    %6045 = vperm.xlu0 %6044, %v5970
    %v6046 = vpop.permute.xlu0 %6045
    %6047 = vset.pattern.permute.xlu0 0
    %6048 = vperm.xlu0 %6047, %v5971
    %v6049 = vpop.permute.xlu0 %6048
    %6050 = vset.pattern.permute.xlu0 0
    %6051 = vperm.xlu0 %6050, %v5972
    %v6052 = vpop.permute.xlu0 %6051
    %6053 = vset.pattern.permute.xlu0 0
    %6054 = vperm.xlu0 %6053, %v5973
    %v6055 = vpop.permute.xlu0 %6054
    %6056 = vset.pattern.permute.xlu0 0
    %6057 = vperm.xlu0 %6056, %v5974
    %v6058 = vpop.permute.xlu0 %6057
    %6059 = vset.pattern.permute.xlu0 0
    %6060 = vperm.xlu0 %6059, %v5975
    %v6061 = vpop.permute.xlu0 %6060
    %6062 = vset.pattern.permute.xlu0 0
    %6063 = vperm.xlu0 %6062, %v5976
    %v6064 = vpop.permute.xlu0 %6063
    %6065 = vset.pattern.permute.xlu0 0
    %6066 = vperm.xlu0 %6065, %v5977
    %v6067 = vpop.permute.xlu0 %6066
    %6068 = vset.pattern.permute.xlu0 0
    %6069 = vperm.xlu0 %6068, %v5978
    %v6070 = vpop.permute.xlu0 %6069
    %6071 = vset.pattern.permute.xlu0 0
    %6072 = vperm.xlu0 %6071, %v5979
    %v6073 = vpop.permute.xlu0 %6072
    %6074 = vset.pattern.permute.xlu0 0
    %6075 = vperm.xlu0 %6074, %v5980
    %v6076 = vpop.permute.xlu0 %6075
    %6077 = vset.pattern.permute.xlu0 0
    %6078 = vperm.xlu0 %6077, %v5981
    %v6079 = vpop.permute.xlu0 %6078
    %6080 = vset.pattern.permute.xlu0 0
    %6081 = vperm.xlu0 %6080, %v5982
    %v6082 = vpop.permute.xlu0 %6081
    %6083 = vset.pattern.permute.xlu0 0
    %6084 = vperm.xlu0 %6083, %v5983
    %v6085 = vpop.permute.xlu0 %6084
    %6086 = vset.pattern.permute.xlu0 0
    %6087 = vperm.xlu0 %6086, %v5984
    %v6088 = vpop.permute.xlu0 %6087
    %6089 = vset.pattern.permute.xlu0 0
    %6090 = vperm.xlu0 %6089, %v5985
    %v6091 = vpop.permute.xlu0 %6090
    %6092 = vset.pattern.permute.xlu0 0
    %6093 = vperm.xlu0 %6092, %v5986
    %v6094 = vpop.permute.xlu0 %6093
    %6095 = vset.pattern.permute.xlu0 0
    %6096 = vperm.xlu0 %6095, %v5987
    %v6097 = vpop.permute.xlu0 %6096
    %6098 = vset.pattern.permute.xlu0 0
    %6099 = vperm.xlu0 %6098, %v5988
    %v6100 = vpop.permute.xlu0 %6099
    %6101 = vset.pattern.permute.xlu0 0
    %6102 = vperm.xlu0 %6101, %v5989
    %v6103 = vpop.permute.xlu0 %6102
    %6104 = vset.pattern.permute.xlu0 0
    %6105 = vperm.xlu0 %6104, %v5990
    %v6106 = vpop.permute.xlu0 %6105
    %6107 = vset.pattern.permute.xlu0 0
    %6108 = vperm.xlu0 %6107, %v5991
    %v6109 = vpop.permute.xlu0 %6108
    %6110 = vset.pattern.permute.xlu0 0
    %6111 = vperm.xlu0 %6110, %v5992
    %v6112 = vpop.permute.xlu0 %6111
    %6113 = vset.pattern.permute.xlu0 0
    %6114 = vperm.xlu0 %6113, %v5993
    %v6115 = vpop.permute.xlu0 %6114
    %6116 = vset.pattern.permute.xlu0 0
    %6117 = vperm.xlu0 %6116, %v5994
    %v6118 = vpop.permute.xlu0 %6117
    %6119 = vset.pattern.permute.xlu0 0
    %6120 = vperm.xlu0 %6119, %v5995
    %v6121 = vpop.permute.xlu0 %6120
    %6122 = vset.pattern.permute.xlu0 0
    %6123 = vperm.xlu0 %6122, %v5996
    %v6124 = vpop.permute.xlu0 %6123
    %v6125 = vperm.slane %v6031, %v920
    %v6126 = vperm.slane %v6034, %v922
    %v6127 = vsel %vm924, %v6126, %v6125
    %v6128 = vperm.slane %v6037, %v920
    %v6129 = vperm.slane %v6040, %v922
    %v6130 = vsel %vm924, %v6129, %v6128
    %v6131 = vperm.slane %v6043, %v920
    %v6132 = vperm.slane %v6046, %v922
    %v6133 = vsel %vm924, %v6132, %v6131
    %v6134 = vperm.slane %v6049, %v920
    %v6135 = vperm.slane %v6052, %v922
    %v6136 = vsel %vm924, %v6135, %v6134
    %v6137 = vperm.slane %v6055, %v920
    %v6138 = vperm.slane %v6058, %v922
    %v6139 = vsel %vm924, %v6138, %v6137
    %v6140 = vperm.slane %v6061, %v920
    %v6141 = vperm.slane %v6064, %v922
    %v6142 = vsel %vm924, %v6141, %v6140
    %v6143 = vperm.slane %v6067, %v920
    %v6144 = vperm.slane %v6070, %v922
    %v6145 = vsel %vm924, %v6144, %v6143
    %v6146 = vperm.slane %v6073, %v920
    %v6147 = vperm.slane %v6076, %v922
    %v6148 = vsel %vm924, %v6147, %v6146
    %v6149 = vperm.slane %v6079, %v920
    %v6150 = vperm.slane %v6082, %v922
    %v6151 = vsel %vm924, %v6150, %v6149
    %v6152 = vperm.slane %v6085, %v920
    %v6153 = vperm.slane %v6088, %v922
    %v6154 = vsel %vm924, %v6153, %v6152
    %v6155 = vperm.slane %v6091, %v920
    %v6156 = vperm.slane %v6094, %v922
    %v6157 = vsel %vm924, %v6156, %v6155
    %v6158 = vperm.slane %v6097, %v920
    %v6159 = vperm.slane %v6100, %v922
    %v6160 = vsel %vm924, %v6159, %v6158
    %v6161 = vperm.slane %v6103, %v920
    %v6162 = vperm.slane %v6106, %v922
    %v6163 = vsel %vm924, %v6162, %v6161
    %v6164 = vperm.slane %v6109, %v920
    %v6165 = vperm.slane %v6112, %v922
    %v6166 = vsel %vm924, %v6165, %v6164
    %v6167 = vperm.slane %v6115, %v920
    %v6168 = vperm.slane %v6118, %v922
    %v6169 = vsel %vm924, %v6168, %v6167
    %v6170 = vperm.slane %v6121, %v920
    %v6171 = vperm.slane %v6124, %v922
    %v6172 = vsel %vm924, %v6171, %v6170
    %v6173 = vsel %vm971, %v6130, %v6127
    %v6174 = vsel %vm973, %v6133, %v6173
    %v6175 = vsel %vm975, %v6136, %v6174
    %v6176 = vsel %vm977, %v6139, %v6175
    %v6177 = vsel %vm979, %v6142, %v6176
    %v6178 = vsel %vm981, %v6145, %v6177
    %v6179 = vsel %vm983, %v6148, %v6178
    %v6180 = vsel %vm971, %v6154, %v6151
    %v6181 = vsel %vm973, %v6157, %v6180
    %v6182 = vsel %vm975, %v6160, %v6181
    %v6183 = vsel %vm977, %v6163, %v6182
    %v6184 = vsel %vm979, %v6166, %v6183
    %v6185 = vsel %vm981, %v6169, %v6184
    %v6186 = vsel %vm983, %v6172, %v6185
    %v6187 = vsel %vm151, %v6179, 0
    %v6189 = vsel %vm151, %v6186, 0
    %6191 = vmatpush.msra.mxu0 0.0
    %6192 = vmatpush.msra.mxu0 0.0
    %6193 = vmatpush.msra.mxu0 0.0
    %6194 = vmatpush.msra.mxu0 0.0
    %6195 = vmatpush.msra.mxu0 0.0
    %6196 = vmatpush.msra.mxu0 0.0
    %6197 = vmatpush.msra.mxu0 0.0
    %6198 = vmatpush.msra.mxu0 0.0
    %6199 = vmatpush.msra.mxu0 0.0
    %6200 = vmatpush.msra.mxu0 0.0
    %6201 = vmatpush.msra.mxu0 0.0
    %6202 = vmatpush.msra.mxu0 0.0
    %6203 = vmatpush.msra.mxu0 0.0
    %6204 = vmatpush.msra.mxu0 0.0
    %6205 = vmatpush.msra.mxu0 %v5032
    %6206 = vmatpush.msra.mxu0 %v5029
    %6207 = vmatmul.f32.gmra.mxu0 %v6187
    %v6208 = vpop.f32.mrf.mxu0
    %v6209 = vadd.f32 0.0, %v6208
    %6210 = vmatmul.f32.gmra.mxu0 %v6189
    %v6211 = vpop.f32.mrf.mxu0
    %v6212 = vadd.f32 0.0, %v6211
    %6213 = vdwg.mxu0
    %v6214 = vperm.slane %v5065, 1
    %6216 = vrot.lane.b32.xlu0 %v6214, 8
    %v6217 = vpop.permute.xlu0 %6216
    %v6219 = vmul.f32 %v5210, %v6217
    %v6220 = vmul.f32 %v5211, %v6217
    %v6221 = vmul.f32 %v5212, %v6217
    %v6222 = vmul.f32 %v5213, %v6217
    %v6223 = vmul.f32 %v5214, %v6217
    %v6224 = vmul.f32 %v5215, %v6217
    %v6225 = vmul.f32 %v5216, %v6217
    %v6226 = vmul.f32 %v5217, %v6217
    %v6227 = vmul.f32 %v5218, %v6217
    %v6228 = vmul.f32 %v5219, %v6217
    %v6229 = vmul.f32 %v5220, %v6217
    %v6230 = vmul.f32 %v5221, %v6217
    %v6231 = vmul.f32 %v5222, %v6217
    %v6232 = vmul.f32 %v5223, %v6217
    %v6233 = vmul.f32 %v5224, %v6217
    %v6234 = vmul.f32 %v5225, %v6217
    %v6235 = vmul.f32 %v5226, %v6217
    %v6236 = vmul.f32 %v5227, %v6217
    %v6237 = vmul.f32 %v5228, %v6217
    %v6238 = vmul.f32 %v5229, %v6217
    %v6239 = vmul.f32 %v5230, %v6217
    %v6240 = vmul.f32 %v5231, %v6217
    %v6241 = vmul.f32 %v5232, %v6217
    %v6242 = vmul.f32 %v5233, %v6217
    %v6243 = vmul.f32 %v5234, %v6217
    %v6244 = vmul.f32 %v5235, %v6217
    %v6245 = vmul.f32 %v5236, %v6217
    %v6246 = vmul.f32 %v5237, %v6217
    %v6247 = vmul.f32 %v5238, %v6217
    %v6248 = vmul.f32 %v5239, %v6217
    %v6249 = vmul.f32 %v5240, %v6217
    %v6250 = vmul.f32 %v5241, %v6217
    %6283 = vrot.lane.b32.xlu0 %v6219, 120
    %v6284 = vpop.permute.xlu0 %6283
    %6285 = vrot.lane.b32.xlu0 %v6220, 120
    %v6286 = vpop.permute.xlu0 %6285
    %6287 = vrot.lane.b32.xlu0 %v6221, 120
    %v6288 = vpop.permute.xlu0 %6287
    %6289 = vrot.lane.b32.xlu0 %v6222, 120
    %v6290 = vpop.permute.xlu0 %6289
    %6291 = vrot.lane.b32.xlu0 %v6223, 120
    %v6292 = vpop.permute.xlu0 %6291
    %6293 = vrot.lane.b32.xlu0 %v6224, 120
    %v6294 = vpop.permute.xlu0 %6293
    %6295 = vrot.lane.b32.xlu0 %v6225, 120
    %v6296 = vpop.permute.xlu0 %6295
    %6297 = vrot.lane.b32.xlu0 %v6226, 120
    %v6298 = vpop.permute.xlu0 %6297
    %6299 = vrot.lane.b32.xlu0 %v6227, 120
    %v6300 = vpop.permute.xlu0 %6299
    %6301 = vrot.lane.b32.xlu0 %v6228, 120
    %v6302 = vpop.permute.xlu0 %6301
    %6303 = vrot.lane.b32.xlu0 %v6229, 120
    %v6304 = vpop.permute.xlu0 %6303
    %6305 = vrot.lane.b32.xlu0 %v6230, 120
    %v6306 = vpop.permute.xlu0 %6305
    %6307 = vrot.lane.b32.xlu0 %v6231, 120
    %v6308 = vpop.permute.xlu0 %6307
    %6309 = vrot.lane.b32.xlu0 %v6232, 120
    %v6310 = vpop.permute.xlu0 %6309
    %6311 = vrot.lane.b32.xlu0 %v6233, 120
    %v6312 = vpop.permute.xlu0 %6311
    %6313 = vrot.lane.b32.xlu0 %v6234, 120
    %v6314 = vpop.permute.xlu0 %6313
    %6315 = vrot.lane.b32.xlu0 %v6235, 120
    %v6316 = vpop.permute.xlu0 %6315
    %6317 = vrot.lane.b32.xlu0 %v6236, 120
    %v6318 = vpop.permute.xlu0 %6317
    %6319 = vrot.lane.b32.xlu0 %v6237, 120
    %v6320 = vpop.permute.xlu0 %6319
    %6321 = vrot.lane.b32.xlu0 %v6238, 120
    %v6322 = vpop.permute.xlu0 %6321
    %6323 = vrot.lane.b32.xlu0 %v6239, 120
    %v6324 = vpop.permute.xlu0 %6323
    %6325 = vrot.lane.b32.xlu0 %v6240, 120
    %v6326 = vpop.permute.xlu0 %6325
    %6327 = vrot.lane.b32.xlu0 %v6241, 120
    %v6328 = vpop.permute.xlu0 %6327
    %6329 = vrot.lane.b32.xlu0 %v6242, 120
    %v6330 = vpop.permute.xlu0 %6329
    %6331 = vrot.lane.b32.xlu0 %v6243, 120
    %v6332 = vpop.permute.xlu0 %6331
    %6333 = vrot.lane.b32.xlu0 %v6244, 120
    %v6334 = vpop.permute.xlu0 %6333
    %6335 = vrot.lane.b32.xlu0 %v6245, 120
    %v6336 = vpop.permute.xlu0 %6335
    %6337 = vrot.lane.b32.xlu0 %v6246, 120
    %v6338 = vpop.permute.xlu0 %6337
    %6339 = vrot.lane.b32.xlu0 %v6247, 120
    %v6340 = vpop.permute.xlu0 %6339
    %6341 = vrot.lane.b32.xlu0 %v6248, 120
    %v6342 = vpop.permute.xlu0 %6341
    %6343 = vrot.lane.b32.xlu0 %v6249, 120
    %v6344 = vpop.permute.xlu0 %6343
    %6345 = vrot.lane.b32.xlu0 %v6250, 120
    %v6346 = vpop.permute.xlu0 %6345
    %v6379 = vsel %vm420, %v6284, 0.0
    %6380 = vadd.xlane.f32.xlu0 %v6379
    %v6381 = vpop.xlane.xlu0 %6380
    %v6382 = vsel %vm420, %v6286, 0.0
    %6383 = vadd.xlane.f32.xlu0 %v6382
    %v6384 = vpop.xlane.xlu0 %6383
    %v6385 = vsel %vm420, %v6288, 0.0
    %6386 = vadd.xlane.f32.xlu0 %v6385
    %v6387 = vpop.xlane.xlu0 %6386
    %v6388 = vsel %vm420, %v6290, 0.0
    %6389 = vadd.xlane.f32.xlu0 %v6388
    %v6390 = vpop.xlane.xlu0 %6389
    %v6391 = vsel %vm420, %v6292, 0.0
    %6392 = vadd.xlane.f32.xlu0 %v6391
    %v6393 = vpop.xlane.xlu0 %6392
    %v6394 = vsel %vm420, %v6294, 0.0
    %6395 = vadd.xlane.f32.xlu0 %v6394
    %v6396 = vpop.xlane.xlu0 %6395
    %v6397 = vsel %vm420, %v6296, 0.0
    %6398 = vadd.xlane.f32.xlu0 %v6397
    %v6399 = vpop.xlane.xlu0 %6398
    %v6400 = vsel %vm420, %v6298, 0.0
    %6401 = vadd.xlane.f32.xlu0 %v6400
    %v6402 = vpop.xlane.xlu0 %6401
    %v6403 = vsel %vm420, %v6300, 0.0
    %6404 = vadd.xlane.f32.xlu0 %v6403
    %v6405 = vpop.xlane.xlu0 %6404
    %v6406 = vsel %vm420, %v6302, 0.0
    %6407 = vadd.xlane.f32.xlu0 %v6406
    %v6408 = vpop.xlane.xlu0 %6407
    %v6409 = vsel %vm420, %v6304, 0.0
    %6410 = vadd.xlane.f32.xlu0 %v6409
    %v6411 = vpop.xlane.xlu0 %6410
    %v6412 = vsel %vm420, %v6306, 0.0
    %6413 = vadd.xlane.f32.xlu0 %v6412
    %v6414 = vpop.xlane.xlu0 %6413
    %v6415 = vsel %vm420, %v6308, 0.0
    %6416 = vadd.xlane.f32.xlu0 %v6415
    %v6417 = vpop.xlane.xlu0 %6416
    %v6418 = vsel %vm420, %v6310, 0.0
    %6419 = vadd.xlane.f32.xlu0 %v6418
    %v6420 = vpop.xlane.xlu0 %6419
    %v6421 = vsel %vm420, %v6312, 0.0
    %6422 = vadd.xlane.f32.xlu0 %v6421
    %v6423 = vpop.xlane.xlu0 %6422
    %v6424 = vsel %vm420, %v6314, 0.0
    %6425 = vadd.xlane.f32.xlu0 %v6424
    %v6426 = vpop.xlane.xlu0 %6425
    %v6427 = vsel %vm420, %v6316, 0.0
    %6428 = vadd.xlane.f32.xlu0 %v6427
    %v6429 = vpop.xlane.xlu0 %6428
    %v6430 = vsel %vm420, %v6318, 0.0
    %6431 = vadd.xlane.f32.xlu0 %v6430
    %v6432 = vpop.xlane.xlu0 %6431
    %v6433 = vsel %vm420, %v6320, 0.0
    %6434 = vadd.xlane.f32.xlu0 %v6433
    %v6435 = vpop.xlane.xlu0 %6434
    %v6436 = vsel %vm420, %v6322, 0.0
    %6437 = vadd.xlane.f32.xlu0 %v6436
    %v6438 = vpop.xlane.xlu0 %6437
    %v6439 = vsel %vm420, %v6324, 0.0
    %6440 = vadd.xlane.f32.xlu0 %v6439
    %v6441 = vpop.xlane.xlu0 %6440
    %v6442 = vsel %vm420, %v6326, 0.0
    %6443 = vadd.xlane.f32.xlu0 %v6442
    %v6444 = vpop.xlane.xlu0 %6443
    %v6445 = vsel %vm420, %v6328, 0.0
    %6446 = vadd.xlane.f32.xlu0 %v6445
    %v6447 = vpop.xlane.xlu0 %6446
    %v6448 = vsel %vm420, %v6330, 0.0
    %6449 = vadd.xlane.f32.xlu0 %v6448
    %v6450 = vpop.xlane.xlu0 %6449
    %v6451 = vsel %vm420, %v6332, 0.0
    %6452 = vadd.xlane.f32.xlu0 %v6451
    %v6453 = vpop.xlane.xlu0 %6452
    %v6454 = vsel %vm420, %v6334, 0.0
    %6455 = vadd.xlane.f32.xlu0 %v6454
    %v6456 = vpop.xlane.xlu0 %6455
    %v6457 = vsel %vm420, %v6336, 0.0
    %6458 = vadd.xlane.f32.xlu0 %v6457
    %v6459 = vpop.xlane.xlu0 %6458
    %v6460 = vsel %vm420, %v6338, 0.0
    %6461 = vadd.xlane.f32.xlu0 %v6460
    %v6462 = vpop.xlane.xlu0 %6461
    %v6463 = vsel %vm420, %v6340, 0.0
    %6464 = vadd.xlane.f32.xlu0 %v6463
    %v6465 = vpop.xlane.xlu0 %6464
    %v6466 = vsel %vm420, %v6342, 0.0
    %6467 = vadd.xlane.f32.xlu0 %v6466
    %v6468 = vpop.xlane.xlu0 %6467
    %v6469 = vsel %vm420, %v6344, 0.0
    %6470 = vadd.xlane.f32.xlu0 %v6469
    %v6471 = vpop.xlane.xlu0 %6470
    %v6472 = vsel %vm420, %v6346, 0.0
    %6473 = vadd.xlane.f32.xlu0 %v6472
    %v6474 = vpop.xlane.xlu0 %6473
    %v6475 = vadd.f32 %v6381, %v525
    %v6476 = vadd.f32 %v6384, %v531
    %v6477 = vadd.f32 %v6387, %v538
    %v6478 = vadd.f32 %v6390, %v544
    %v6479 = vadd.f32 %v6393, %v551
    %v6480 = vadd.f32 %v6396, %v557
    %v6481 = vadd.f32 %v6399, %v564
    %v6482 = vadd.f32 %v6402, %v570
    %v6483 = vadd.f32 %v6405, %v577
    %v6484 = vadd.f32 %v6408, %v583
    %v6485 = vadd.f32 %v6411, %v590
    %v6486 = vadd.f32 %v6414, %v596
    %v6487 = vadd.f32 %v6417, %v603
    %v6488 = vadd.f32 %v6420, %v609
    %v6489 = vadd.f32 %v6423, %v616
    %v6490 = vadd.f32 %v6426, %v622
    %v6491 = vadd.f32 %v6429, %v629
    %v6492 = vadd.f32 %v6432, %v635
    %v6493 = vadd.f32 %v6435, %v642
    %v6494 = vadd.f32 %v6438, %v648
    %v6495 = vadd.f32 %v6441, %v655
    %v6496 = vadd.f32 %v6444, %v661
    %v6497 = vadd.f32 %v6447, %v668
    %v6498 = vadd.f32 %v6450, %v674
    %v6499 = vadd.f32 %v6453, %v681
    %v6500 = vadd.f32 %v6456, %v687
    %v6501 = vadd.f32 %v6459, %v694
    %v6502 = vadd.f32 %v6462, %v700
    %v6503 = vadd.f32 %v6465, %v707
    %v6504 = vadd.f32 %v6468, %v713
    %v6505 = vadd.f32 %v6471, %v720
    %v6506 = vadd.f32 %v6474, %v726
    %6539 = vset.pattern.permute.xlu0 0
    %6540 = vperm.xlu0 %6539, %v6475
    %v6541 = vpop.permute.xlu0 %6540
    %6542 = vset.pattern.permute.xlu0 0
    %6543 = vperm.xlu0 %6542, %v6476
    %v6544 = vpop.permute.xlu0 %6543
    %6545 = vset.pattern.permute.xlu0 0
    %6546 = vperm.xlu0 %6545, %v6477
    %v6547 = vpop.permute.xlu0 %6546
    %6548 = vset.pattern.permute.xlu0 0
    %6549 = vperm.xlu0 %6548, %v6478
    %v6550 = vpop.permute.xlu0 %6549
    %6551 = vset.pattern.permute.xlu0 0
    %6552 = vperm.xlu0 %6551, %v6479
    %v6553 = vpop.permute.xlu0 %6552
    %6554 = vset.pattern.permute.xlu0 0
    %6555 = vperm.xlu0 %6554, %v6480
    %v6556 = vpop.permute.xlu0 %6555
    %6557 = vset.pattern.permute.xlu0 0
    %6558 = vperm.xlu0 %6557, %v6481
    %v6559 = vpop.permute.xlu0 %6558
    %6560 = vset.pattern.permute.xlu0 0
    %6561 = vperm.xlu0 %6560, %v6482
    %v6562 = vpop.permute.xlu0 %6561
    %6563 = vset.pattern.permute.xlu0 0
    %6564 = vperm.xlu0 %6563, %v6483
    %v6565 = vpop.permute.xlu0 %6564
    %6566 = vset.pattern.permute.xlu0 0
    %6567 = vperm.xlu0 %6566, %v6484
    %v6568 = vpop.permute.xlu0 %6567
    %6569 = vset.pattern.permute.xlu0 0
    %6570 = vperm.xlu0 %6569, %v6485
    %v6571 = vpop.permute.xlu0 %6570
    %6572 = vset.pattern.permute.xlu0 0
    %6573 = vperm.xlu0 %6572, %v6486
    %v6574 = vpop.permute.xlu0 %6573
    %6575 = vset.pattern.permute.xlu0 0
    %6576 = vperm.xlu0 %6575, %v6487
    %v6577 = vpop.permute.xlu0 %6576
    %6578 = vset.pattern.permute.xlu0 0
    %6579 = vperm.xlu0 %6578, %v6488
    %v6580 = vpop.permute.xlu0 %6579
    %6581 = vset.pattern.permute.xlu0 0
    %6582 = vperm.xlu0 %6581, %v6489
    %v6583 = vpop.permute.xlu0 %6582
    %6584 = vset.pattern.permute.xlu0 0
    %6585 = vperm.xlu0 %6584, %v6490
    %v6586 = vpop.permute.xlu0 %6585
    %6587 = vset.pattern.permute.xlu0 0
    %6588 = vperm.xlu0 %6587, %v6491
    %v6589 = vpop.permute.xlu0 %6588
    %6590 = vset.pattern.permute.xlu0 0
    %6591 = vperm.xlu0 %6590, %v6492
    %v6592 = vpop.permute.xlu0 %6591
    %6593 = vset.pattern.permute.xlu0 0
    %6594 = vperm.xlu0 %6593, %v6493
    %v6595 = vpop.permute.xlu0 %6594
    %6596 = vset.pattern.permute.xlu0 0
    %6597 = vperm.xlu0 %6596, %v6494
    %v6598 = vpop.permute.xlu0 %6597
    %6599 = vset.pattern.permute.xlu0 0
    %6600 = vperm.xlu0 %6599, %v6495
    %v6601 = vpop.permute.xlu0 %6600
    %6602 = vset.pattern.permute.xlu0 0
    %6603 = vperm.xlu0 %6602, %v6496
    %v6604 = vpop.permute.xlu0 %6603
    %6605 = vset.pattern.permute.xlu0 0
    %6606 = vperm.xlu0 %6605, %v6497
    %v6607 = vpop.permute.xlu0 %6606
    %6608 = vset.pattern.permute.xlu0 0
    %6609 = vperm.xlu0 %6608, %v6498
    %v6610 = vpop.permute.xlu0 %6609
    %6611 = vset.pattern.permute.xlu0 0
    %6612 = vperm.xlu0 %6611, %v6499
    %v6613 = vpop.permute.xlu0 %6612
    %6614 = vset.pattern.permute.xlu0 0
    %6615 = vperm.xlu0 %6614, %v6500
    %v6616 = vpop.permute.xlu0 %6615
    %6617 = vset.pattern.permute.xlu0 0
    %6618 = vperm.xlu0 %6617, %v6501
    %v6619 = vpop.permute.xlu0 %6618
    %6620 = vset.pattern.permute.xlu0 0
    %6621 = vperm.xlu0 %6620, %v6502
    %v6622 = vpop.permute.xlu0 %6621
    %6623 = vset.pattern.permute.xlu0 0
    %6624 = vperm.xlu0 %6623, %v6503
    %v6625 = vpop.permute.xlu0 %6624
    %6626 = vset.pattern.permute.xlu0 0
    %6627 = vperm.xlu0 %6626, %v6504
    %v6628 = vpop.permute.xlu0 %6627
    %6629 = vset.pattern.permute.xlu0 0
    %6630 = vperm.xlu0 %6629, %v6505
    %v6631 = vpop.permute.xlu0 %6630
    %6632 = vset.pattern.permute.xlu0 0
    %6633 = vperm.xlu0 %6632, %v6506
    %v6634 = vpop.permute.xlu0 %6633
    %v6635 = vperm.slane %v6541, %v920
    %v6636 = vperm.slane %v6544, %v922
    %v6637 = vsel %vm924, %v6636, %v6635
    %v6638 = vperm.slane %v6547, %v920
    %v6639 = vperm.slane %v6550, %v922
    %v6640 = vsel %vm924, %v6639, %v6638
    %v6641 = vperm.slane %v6553, %v920
    %v6642 = vperm.slane %v6556, %v922
    %v6643 = vsel %vm924, %v6642, %v6641
    %v6644 = vperm.slane %v6559, %v920
    %v6645 = vperm.slane %v6562, %v922
    %v6646 = vsel %vm924, %v6645, %v6644
    %v6647 = vperm.slane %v6565, %v920
    %v6648 = vperm.slane %v6568, %v922
    %v6649 = vsel %vm924, %v6648, %v6647
    %v6650 = vperm.slane %v6571, %v920
    %v6651 = vperm.slane %v6574, %v922
    %v6652 = vsel %vm924, %v6651, %v6650
    %v6653 = vperm.slane %v6577, %v920
    %v6654 = vperm.slane %v6580, %v922
    %v6655 = vsel %vm924, %v6654, %v6653
    %v6656 = vperm.slane %v6583, %v920
    %v6657 = vperm.slane %v6586, %v922
    %v6658 = vsel %vm924, %v6657, %v6656
    %v6659 = vperm.slane %v6589, %v920
    %v6660 = vperm.slane %v6592, %v922
    %v6661 = vsel %vm924, %v6660, %v6659
    %v6662 = vperm.slane %v6595, %v920
    %v6663 = vperm.slane %v6598, %v922
    %v6664 = vsel %vm924, %v6663, %v6662
    %v6665 = vperm.slane %v6601, %v920
    %v6666 = vperm.slane %v6604, %v922
    %v6667 = vsel %vm924, %v6666, %v6665
    %v6668 = vperm.slane %v6607, %v920
    %v6669 = vperm.slane %v6610, %v922
    %v6670 = vsel %vm924, %v6669, %v6668
    %v6671 = vperm.slane %v6613, %v920
    %v6672 = vperm.slane %v6616, %v922
    %v6673 = vsel %vm924, %v6672, %v6671
    %v6674 = vperm.slane %v6619, %v920
    %v6675 = vperm.slane %v6622, %v922
    %v6676 = vsel %vm924, %v6675, %v6674
    %v6677 = vperm.slane %v6625, %v920
    %v6678 = vperm.slane %v6628, %v922
    %v6679 = vsel %vm924, %v6678, %v6677
    %v6680 = vperm.slane %v6631, %v920
    %v6681 = vperm.slane %v6634, %v922
    %v6682 = vsel %vm924, %v6681, %v6680
    %v6683 = vsel %vm971, %v6640, %v6637
    %v6684 = vsel %vm973, %v6643, %v6683
    %v6685 = vsel %vm975, %v6646, %v6684
    %v6686 = vsel %vm977, %v6649, %v6685
    %v6687 = vsel %vm979, %v6652, %v6686
    %v6688 = vsel %vm981, %v6655, %v6687
    %v6689 = vsel %vm983, %v6658, %v6688
    %v6690 = vsel %vm971, %v6664, %v6661
    %v6691 = vsel %vm973, %v6667, %v6690
    %v6692 = vsel %vm975, %v6670, %v6691
    %v6693 = vsel %vm977, %v6673, %v6692
    %v6694 = vsel %vm979, %v6676, %v6693
    %v6695 = vsel %vm981, %v6679, %v6694
    %v6696 = vsel %vm983, %v6682, %v6695
    %v6699 = vsel %vm151, %v6689, -inf
    %6700 = vmax.xlane.f32.xlu0 %v6699
    %v6701 = vpop.xlane.xlu0 %6700
    %v6702 = vsel %vm151, %v6696, -inf
    %6703 = vmax.xlane.f32.xlu0 %v6702
    %v6704 = vpop.xlane.xlu0 %6703
    %v6707 = vperm.slane %v6701, 0
    %v6708 = vperm.slane %v6701, 1
    %v6709 = vperm.slane %v6701, 2
    %v6710 = vperm.slane %v6701, 3
    %v6711 = vperm.slane %v6701, 4
    %v6712 = vperm.slane %v6701, 5
    %v6713 = vperm.slane %v6701, 6
    %v6714 = vperm.slane %v6701, 7
    %v6715 = vperm.slane %v6704, 0
    %v6716 = vperm.slane %v6704, 1
    %v6717 = vperm.slane %v6704, 2
    %v6718 = vperm.slane %v6704, 3
    %v6719 = vperm.slane %v6704, 4
    %v6720 = vperm.slane %v6704, 5
    %v6721 = vperm.slane %v6704, 6
    %v6722 = vperm.slane %v6704, 7
    %v6739 = vsub.f32 %v6475, %v6707
    %v6740 = vsub.f32 %v6476, %v6707
    %v6741 = vsub.f32 %v6477, %v6708
    %v6742 = vsub.f32 %v6478, %v6708
    %v6743 = vsub.f32 %v6479, %v6709
    %v6744 = vsub.f32 %v6480, %v6709
    %v6745 = vsub.f32 %v6481, %v6710
    %v6746 = vsub.f32 %v6482, %v6710
    %v6747 = vsub.f32 %v6483, %v6711
    %v6748 = vsub.f32 %v6484, %v6711
    %v6749 = vsub.f32 %v6485, %v6712
    %v6750 = vsub.f32 %v6486, %v6712
    %v6751 = vsub.f32 %v6487, %v6713
    %v6752 = vsub.f32 %v6488, %v6713
    %v6753 = vsub.f32 %v6489, %v6714
    %v6754 = vsub.f32 %v6490, %v6714
    %v6755 = vsub.f32 %v6491, %v6715
    %v6756 = vsub.f32 %v6492, %v6715
    %v6757 = vsub.f32 %v6493, %v6716
    %v6758 = vsub.f32 %v6494, %v6716
    %v6759 = vsub.f32 %v6495, %v6717
    %v6760 = vsub.f32 %v6496, %v6717
    %v6761 = vsub.f32 %v6497, %v6718
    %v6762 = vsub.f32 %v6498, %v6718
    %v6763 = vsub.f32 %v6499, %v6719
    %v6764 = vsub.f32 %v6500, %v6719
    %v6765 = vsub.f32 %v6501, %v6720
    %v6766 = vsub.f32 %v6502, %v6720
    %v6767 = vsub.f32 %v6503, %v6721
    %v6768 = vsub.f32 %v6504, %v6721
    %v6769 = vsub.f32 %v6505, %v6722
    %v6770 = vsub.f32 %v6506, %v6722
    %v6771 = vmul.f32 %v6739, 1.442695
    %v6772 = vpow.pop %v6771
    %v6773 = vmul.f32 %v6740, 1.442695
    %v6774 = vpow.pop %v6773
    %v6775 = vmul.f32 %v6741, 1.442695
    %v6776 = vpow.pop %v6775
    %v6777 = vmul.f32 %v6742, 1.442695
    %v6778 = vpow.pop %v6777
    %v6779 = vmul.f32 %v6743, 1.442695
    %v6780 = vpow.pop %v6779
    %v6781 = vmul.f32 %v6744, 1.442695
    %v6782 = vpow.pop %v6781
    %v6783 = vmul.f32 %v6745, 1.442695
    %v6784 = vpow.pop %v6783
    %v6785 = vmul.f32 %v6746, 1.442695
    %v6786 = vpow.pop %v6785
    %v6787 = vmul.f32 %v6747, 1.442695
    %v6788 = vpow.pop %v6787
    %v6789 = vmul.f32 %v6748, 1.442695
    %v6790 = vpow.pop %v6789
    %v6791 = vmul.f32 %v6749, 1.442695
    %v6792 = vpow.pop %v6791
    %v6793 = vmul.f32 %v6750, 1.442695
    %v6794 = vpow.pop %v6793
    %v6795 = vmul.f32 %v6751, 1.442695
    %v6796 = vpow.pop %v6795
    %v6797 = vmul.f32 %v6752, 1.442695
    %v6798 = vpow.pop %v6797
    %v6799 = vmul.f32 %v6753, 1.442695
    %v6800 = vpow.pop %v6799
    %v6801 = vmul.f32 %v6754, 1.442695
    %v6802 = vpow.pop %v6801
    %v6803 = vmul.f32 %v6755, 1.442695
    %v6804 = vpow.pop %v6803
    %v6805 = vmul.f32 %v6756, 1.442695
    %v6806 = vpow.pop %v6805
    %v6807 = vmul.f32 %v6757, 1.442695
    %v6808 = vpow.pop %v6807
    %v6809 = vmul.f32 %v6758, 1.442695
    %v6810 = vpow.pop %v6809
    %v6811 = vmul.f32 %v6759, 1.442695
    %v6812 = vpow.pop %v6811
    %v6813 = vmul.f32 %v6760, 1.442695
    %v6814 = vpow.pop %v6813
    %v6815 = vmul.f32 %v6761, 1.442695
    %v6816 = vpow.pop %v6815
    %v6817 = vmul.f32 %v6762, 1.442695
    %v6818 = vpow.pop %v6817
    %v6819 = vmul.f32 %v6763, 1.442695
    %v6820 = vpow.pop %v6819
    %v6821 = vmul.f32 %v6764, 1.442695
    %v6822 = vpow.pop %v6821
    %v6823 = vmul.f32 %v6765, 1.442695
    %v6824 = vpow.pop %v6823
    %v6825 = vmul.f32 %v6766, 1.442695
    %v6826 = vpow.pop %v6825
    %v6827 = vmul.f32 %v6767, 1.442695
    %v6828 = vpow.pop %v6827
    %v6829 = vmul.f32 %v6768, 1.442695
    %v6830 = vpow.pop %v6829
    %v6831 = vmul.f32 %v6769, 1.442695
    %v6832 = vpow.pop %v6831
    %v6833 = vmul.f32 %v6770, 1.442695
    %v6834 = vpow.pop %v6833
    %6867 = vset.pattern.permute.xlu0 0
    %6868 = vperm.xlu0 %6867, %v6772
    %v6869 = vpop.permute.xlu0 %6868
    %6870 = vset.pattern.permute.xlu0 0
    %6871 = vperm.xlu0 %6870, %v6774
    %v6872 = vpop.permute.xlu0 %6871
    %6873 = vset.pattern.permute.xlu0 0
    %6874 = vperm.xlu0 %6873, %v6776
    %v6875 = vpop.permute.xlu0 %6874
    %6876 = vset.pattern.permute.xlu0 0
    %6877 = vperm.xlu0 %6876, %v6778
    %v6878 = vpop.permute.xlu0 %6877
    %6879 = vset.pattern.permute.xlu0 0
    %6880 = vperm.xlu0 %6879, %v6780
    %v6881 = vpop.permute.xlu0 %6880
    %6882 = vset.pattern.permute.xlu0 0
    %6883 = vperm.xlu0 %6882, %v6782
    %v6884 = vpop.permute.xlu0 %6883
    %6885 = vset.pattern.permute.xlu0 0
    %6886 = vperm.xlu0 %6885, %v6784
    %v6887 = vpop.permute.xlu0 %6886
    %6888 = vset.pattern.permute.xlu0 0
    %6889 = vperm.xlu0 %6888, %v6786
    %v6890 = vpop.permute.xlu0 %6889
    %6891 = vset.pattern.permute.xlu0 0
    %6892 = vperm.xlu0 %6891, %v6788
    %v6893 = vpop.permute.xlu0 %6892
    %6894 = vset.pattern.permute.xlu0 0
    %6895 = vperm.xlu0 %6894, %v6790
    %v6896 = vpop.permute.xlu0 %6895
    %6897 = vset.pattern.permute.xlu0 0
    %6898 = vperm.xlu0 %6897, %v6792
    %v6899 = vpop.permute.xlu0 %6898
    %6900 = vset.pattern.permute.xlu0 0
    %6901 = vperm.xlu0 %6900, %v6794
    %v6902 = vpop.permute.xlu0 %6901
    %6903 = vset.pattern.permute.xlu0 0
    %6904 = vperm.xlu0 %6903, %v6796
    %v6905 = vpop.permute.xlu0 %6904
    %6906 = vset.pattern.permute.xlu0 0
    %6907 = vperm.xlu0 %6906, %v6798
    %v6908 = vpop.permute.xlu0 %6907
    %6909 = vset.pattern.permute.xlu0 0
    %6910 = vperm.xlu0 %6909, %v6800
    %v6911 = vpop.permute.xlu0 %6910
    %6912 = vset.pattern.permute.xlu0 0
    %6913 = vperm.xlu0 %6912, %v6802
    %v6914 = vpop.permute.xlu0 %6913
    %6915 = vset.pattern.permute.xlu0 0
    %6916 = vperm.xlu0 %6915, %v6804
    %v6917 = vpop.permute.xlu0 %6916
    %6918 = vset.pattern.permute.xlu0 0
    %6919 = vperm.xlu0 %6918, %v6806
    %v6920 = vpop.permute.xlu0 %6919
    %6921 = vset.pattern.permute.xlu0 0
    %6922 = vperm.xlu0 %6921, %v6808
    %v6923 = vpop.permute.xlu0 %6922
    %6924 = vset.pattern.permute.xlu0 0
    %6925 = vperm.xlu0 %6924, %v6810
    %v6926 = vpop.permute.xlu0 %6925
    %6927 = vset.pattern.permute.xlu0 0
    %6928 = vperm.xlu0 %6927, %v6812
    %v6929 = vpop.permute.xlu0 %6928
    %6930 = vset.pattern.permute.xlu0 0
    %6931 = vperm.xlu0 %6930, %v6814
    %v6932 = vpop.permute.xlu0 %6931
    %6933 = vset.pattern.permute.xlu0 0
    %6934 = vperm.xlu0 %6933, %v6816
    %v6935 = vpop.permute.xlu0 %6934
    %6936 = vset.pattern.permute.xlu0 0
    %6937 = vperm.xlu0 %6936, %v6818
    %v6938 = vpop.permute.xlu0 %6937
    %6939 = vset.pattern.permute.xlu0 0
    %6940 = vperm.xlu0 %6939, %v6820
    %v6941 = vpop.permute.xlu0 %6940
    %6942 = vset.pattern.permute.xlu0 0
    %6943 = vperm.xlu0 %6942, %v6822
    %v6944 = vpop.permute.xlu0 %6943
    %6945 = vset.pattern.permute.xlu0 0
    %6946 = vperm.xlu0 %6945, %v6824
    %v6947 = vpop.permute.xlu0 %6946
    %6948 = vset.pattern.permute.xlu0 0
    %6949 = vperm.xlu0 %6948, %v6826
    %v6950 = vpop.permute.xlu0 %6949
    %6951 = vset.pattern.permute.xlu0 0
    %6952 = vperm.xlu0 %6951, %v6828
    %v6953 = vpop.permute.xlu0 %6952
    %6954 = vset.pattern.permute.xlu0 0
    %6955 = vperm.xlu0 %6954, %v6830
    %v6956 = vpop.permute.xlu0 %6955
    %6957 = vset.pattern.permute.xlu0 0
    %6958 = vperm.xlu0 %6957, %v6832
    %v6959 = vpop.permute.xlu0 %6958
    %6960 = vset.pattern.permute.xlu0 0
    %6961 = vperm.xlu0 %6960, %v6834
    %v6962 = vpop.permute.xlu0 %6961
    %v6963 = vperm.slane %v6869, %v920
    %v6964 = vperm.slane %v6872, %v922
    %v6965 = vsel %vm924, %v6964, %v6963
    %v6966 = vperm.slane %v6875, %v920
    %v6967 = vperm.slane %v6878, %v922
    %v6968 = vsel %vm924, %v6967, %v6966
    %v6969 = vperm.slane %v6881, %v920
    %v6970 = vperm.slane %v6884, %v922
    %v6971 = vsel %vm924, %v6970, %v6969
    %v6972 = vperm.slane %v6887, %v920
    %v6973 = vperm.slane %v6890, %v922
    %v6974 = vsel %vm924, %v6973, %v6972
    %v6975 = vperm.slane %v6893, %v920
    %v6976 = vperm.slane %v6896, %v922
    %v6977 = vsel %vm924, %v6976, %v6975
    %v6978 = vperm.slane %v6899, %v920
    %v6979 = vperm.slane %v6902, %v922
    %v6980 = vsel %vm924, %v6979, %v6978
    %v6981 = vperm.slane %v6905, %v920
    %v6982 = vperm.slane %v6908, %v922
    %v6983 = vsel %vm924, %v6982, %v6981
    %v6984 = vperm.slane %v6911, %v920
    %v6985 = vperm.slane %v6914, %v922
    %v6986 = vsel %vm924, %v6985, %v6984
    %v6987 = vperm.slane %v6917, %v920
    %v6988 = vperm.slane %v6920, %v922
    %v6989 = vsel %vm924, %v6988, %v6987
    %v6990 = vperm.slane %v6923, %v920
    %v6991 = vperm.slane %v6926, %v922
    %v6992 = vsel %vm924, %v6991, %v6990
    %v6993 = vperm.slane %v6929, %v920
    %v6994 = vperm.slane %v6932, %v922
    %v6995 = vsel %vm924, %v6994, %v6993
    %v6996 = vperm.slane %v6935, %v920
    %v6997 = vperm.slane %v6938, %v922
    %v6998 = vsel %vm924, %v6997, %v6996
    %v6999 = vperm.slane %v6941, %v920
    %v7000 = vperm.slane %v6944, %v922
    %v7001 = vsel %vm924, %v7000, %v6999
    %v7002 = vperm.slane %v6947, %v920
    %v7003 = vperm.slane %v6950, %v922
    %v7004 = vsel %vm924, %v7003, %v7002
    %v7005 = vperm.slane %v6953, %v920
    %v7006 = vperm.slane %v6956, %v922
    %v7007 = vsel %vm924, %v7006, %v7005
    %v7008 = vperm.slane %v6959, %v920
    %v7009 = vperm.slane %v6962, %v922
    %v7010 = vsel %vm924, %v7009, %v7008
    %v7011 = vsel %vm971, %v6968, %v6965
    %v7012 = vsel %vm973, %v6971, %v7011
    %v7013 = vsel %vm975, %v6974, %v7012
    %v7014 = vsel %vm977, %v6977, %v7013
    %v7015 = vsel %vm979, %v6980, %v7014
    %v7016 = vsel %vm981, %v6983, %v7015
    %v7017 = vsel %vm983, %v6986, %v7016
    %v7018 = vsel %vm971, %v6992, %v6989
    %v7019 = vsel %vm973, %v6995, %v7018
    %v7020 = vsel %vm975, %v6998, %v7019
    %v7021 = vsel %vm977, %v7001, %v7020
    %v7022 = vsel %vm979, %v7004, %v7021
    %v7023 = vsel %vm981, %v7007, %v7022
    %v7024 = vsel %vm983, %v7010, %v7023
    %v7027 = vsel %vm151, %v7017, 0.0
    %7028 = vadd.xlane.f32.xlu0 %v7027
    %v7029 = vpop.xlane.xlu0 %7028
    %v7030 = vsel %vm151, %v7024, 0.0
    %7031 = vadd.xlane.f32.xlu0 %v7030
    %v7032 = vpop.xlane.xlu0 %7031
    %v7033 = vrcp.pop %v7029
    %v7034 = vrcp.pop %v7032
    %v7037 = vperm.slane %v7033, 0
    %v7038 = vperm.slane %v7033, 1
    %v7039 = vperm.slane %v7033, 2
    %v7040 = vperm.slane %v7033, 3
    %v7041 = vperm.slane %v7033, 4
    %v7042 = vperm.slane %v7033, 5
    %v7043 = vperm.slane %v7033, 6
    %v7044 = vperm.slane %v7033, 7
    %v7045 = vperm.slane %v7034, 0
    %v7046 = vperm.slane %v7034, 1
    %v7047 = vperm.slane %v7034, 2
    %v7048 = vperm.slane %v7034, 3
    %v7049 = vperm.slane %v7034, 4
    %v7050 = vperm.slane %v7034, 5
    %v7051 = vperm.slane %v7034, 6
    %v7052 = vperm.slane %v7034, 7
    %v7069 = vmul.f32 %v6772, %v7037
    %v7070 = vmul.f32 %v6774, %v7037
    %v7071 = vmul.f32 %v6776, %v7038
    %v7072 = vmul.f32 %v6778, %v7038
    %v7073 = vmul.f32 %v6780, %v7039
    %v7074 = vmul.f32 %v6782, %v7039
    %v7075 = vmul.f32 %v6784, %v7040
    %v7076 = vmul.f32 %v6786, %v7040
    %v7077 = vmul.f32 %v6788, %v7041
    %v7078 = vmul.f32 %v6790, %v7041
    %v7079 = vmul.f32 %v6792, %v7042
    %v7080 = vmul.f32 %v6794, %v7042
    %v7081 = vmul.f32 %v6796, %v7043
    %v7082 = vmul.f32 %v6798, %v7043
    %v7083 = vmul.f32 %v6800, %v7044
    %v7084 = vmul.f32 %v6802, %v7044
    %v7085 = vmul.f32 %v6804, %v7045
    %v7086 = vmul.f32 %v6806, %v7045
    %v7087 = vmul.f32 %v6808, %v7046
    %v7088 = vmul.f32 %v6810, %v7046
    %v7089 = vmul.f32 %v6812, %v7047
    %v7090 = vmul.f32 %v6814, %v7047
    %v7091 = vmul.f32 %v6816, %v7048
    %v7092 = vmul.f32 %v6818, %v7048
    %v7093 = vmul.f32 %v6820, %v7049
    %v7094 = vmul.f32 %v6822, %v7049
    %v7095 = vmul.f32 %v6824, %v7050
    %v7096 = vmul.f32 %v6826, %v7050
    %v7097 = vmul.f32 %v6828, %v7051
    %v7098 = vmul.f32 %v6830, %v7051
    %v7099 = vmul.f32 %v6832, %v7052
    %v7100 = vmul.f32 %v6834, %v7052
    %7133 = vset.pattern.permute.xlu0 0
    %7134 = vperm.xlu0 %7133, %v7069
    %v7135 = vpop.permute.xlu0 %7134
    %7136 = vset.pattern.permute.xlu0 0
    %7137 = vperm.xlu0 %7136, %v7070
    %v7138 = vpop.permute.xlu0 %7137
    %7139 = vset.pattern.permute.xlu0 0
    %7140 = vperm.xlu0 %7139, %v7071
    %v7141 = vpop.permute.xlu0 %7140
    %7142 = vset.pattern.permute.xlu0 0
    %7143 = vperm.xlu0 %7142, %v7072
    %v7144 = vpop.permute.xlu0 %7143
    %7145 = vset.pattern.permute.xlu0 0
    %7146 = vperm.xlu0 %7145, %v7073
    %v7147 = vpop.permute.xlu0 %7146
    %7148 = vset.pattern.permute.xlu0 0
    %7149 = vperm.xlu0 %7148, %v7074
    %v7150 = vpop.permute.xlu0 %7149
    %7151 = vset.pattern.permute.xlu0 0
    %7152 = vperm.xlu0 %7151, %v7075
    %v7153 = vpop.permute.xlu0 %7152
    %7154 = vset.pattern.permute.xlu0 0
    %7155 = vperm.xlu0 %7154, %v7076
    %v7156 = vpop.permute.xlu0 %7155
    %7157 = vset.pattern.permute.xlu0 0
    %7158 = vperm.xlu0 %7157, %v7077
    %v7159 = vpop.permute.xlu0 %7158
    %7160 = vset.pattern.permute.xlu0 0
    %7161 = vperm.xlu0 %7160, %v7078
    %v7162 = vpop.permute.xlu0 %7161
    %7163 = vset.pattern.permute.xlu0 0
    %7164 = vperm.xlu0 %7163, %v7079
    %v7165 = vpop.permute.xlu0 %7164
    %7166 = vset.pattern.permute.xlu0 0
    %7167 = vperm.xlu0 %7166, %v7080
    %v7168 = vpop.permute.xlu0 %7167
    %7169 = vset.pattern.permute.xlu0 0
    %7170 = vperm.xlu0 %7169, %v7081
    %v7171 = vpop.permute.xlu0 %7170
    %7172 = vset.pattern.permute.xlu0 0
    %7173 = vperm.xlu0 %7172, %v7082
    %v7174 = vpop.permute.xlu0 %7173
    %7175 = vset.pattern.permute.xlu0 0
    %7176 = vperm.xlu0 %7175, %v7083
    %v7177 = vpop.permute.xlu0 %7176
    %7178 = vset.pattern.permute.xlu0 0
    %7179 = vperm.xlu0 %7178, %v7084
    %v7180 = vpop.permute.xlu0 %7179
    %7181 = vset.pattern.permute.xlu0 0
    %7182 = vperm.xlu0 %7181, %v7085
    %v7183 = vpop.permute.xlu0 %7182
    %7184 = vset.pattern.permute.xlu0 0
    %7185 = vperm.xlu0 %7184, %v7086
    %v7186 = vpop.permute.xlu0 %7185
    %7187 = vset.pattern.permute.xlu0 0
    %7188 = vperm.xlu0 %7187, %v7087
    %v7189 = vpop.permute.xlu0 %7188
    %7190 = vset.pattern.permute.xlu0 0
    %7191 = vperm.xlu0 %7190, %v7088
    %v7192 = vpop.permute.xlu0 %7191
    %7193 = vset.pattern.permute.xlu0 0
    %7194 = vperm.xlu0 %7193, %v7089
    %v7195 = vpop.permute.xlu0 %7194
    %7196 = vset.pattern.permute.xlu0 0
    %7197 = vperm.xlu0 %7196, %v7090
    %v7198 = vpop.permute.xlu0 %7197
    %7199 = vset.pattern.permute.xlu0 0
    %7200 = vperm.xlu0 %7199, %v7091
    %v7201 = vpop.permute.xlu0 %7200
    %7202 = vset.pattern.permute.xlu0 0
    %7203 = vperm.xlu0 %7202, %v7092
    %v7204 = vpop.permute.xlu0 %7203
    %7205 = vset.pattern.permute.xlu0 0
    %7206 = vperm.xlu0 %7205, %v7093
    %v7207 = vpop.permute.xlu0 %7206
    %7208 = vset.pattern.permute.xlu0 0
    %7209 = vperm.xlu0 %7208, %v7094
    %v7210 = vpop.permute.xlu0 %7209
    %7211 = vset.pattern.permute.xlu0 0
    %7212 = vperm.xlu0 %7211, %v7095
    %v7213 = vpop.permute.xlu0 %7212
    %7214 = vset.pattern.permute.xlu0 0
    %7215 = vperm.xlu0 %7214, %v7096
    %v7216 = vpop.permute.xlu0 %7215
    %7217 = vset.pattern.permute.xlu0 0
    %7218 = vperm.xlu0 %7217, %v7097
    %v7219 = vpop.permute.xlu0 %7218
    %7220 = vset.pattern.permute.xlu0 0
    %7221 = vperm.xlu0 %7220, %v7098
    %v7222 = vpop.permute.xlu0 %7221
    %7223 = vset.pattern.permute.xlu0 0
    %7224 = vperm.xlu0 %7223, %v7099
    %v7225 = vpop.permute.xlu0 %7224
    %7226 = vset.pattern.permute.xlu0 0
    %7227 = vperm.xlu0 %7226, %v7100
    %v7228 = vpop.permute.xlu0 %7227
    %v7229 = vperm.slane %v7135, %v920
    %v7230 = vperm.slane %v7138, %v922
    %v7231 = vsel %vm924, %v7230, %v7229
    %v7232 = vperm.slane %v7141, %v920
    %v7233 = vperm.slane %v7144, %v922
    %v7234 = vsel %vm924, %v7233, %v7232
    %v7235 = vperm.slane %v7147, %v920
    %v7236 = vperm.slane %v7150, %v922
    %v7237 = vsel %vm924, %v7236, %v7235
    %v7238 = vperm.slane %v7153, %v920
    %v7239 = vperm.slane %v7156, %v922
    %v7240 = vsel %vm924, %v7239, %v7238
    %v7241 = vperm.slane %v7159, %v920
    %v7242 = vperm.slane %v7162, %v922
    %v7243 = vsel %vm924, %v7242, %v7241
    %v7244 = vperm.slane %v7165, %v920
    %v7245 = vperm.slane %v7168, %v922
    %v7246 = vsel %vm924, %v7245, %v7244
    %v7247 = vperm.slane %v7171, %v920
    %v7248 = vperm.slane %v7174, %v922
    %v7249 = vsel %vm924, %v7248, %v7247
    %v7250 = vperm.slane %v7177, %v920
    %v7251 = vperm.slane %v7180, %v922
    %v7252 = vsel %vm924, %v7251, %v7250
    %v7253 = vperm.slane %v7183, %v920
    %v7254 = vperm.slane %v7186, %v922
    %v7255 = vsel %vm924, %v7254, %v7253
    %v7256 = vperm.slane %v7189, %v920
    %v7257 = vperm.slane %v7192, %v922
    %v7258 = vsel %vm924, %v7257, %v7256
    %v7259 = vperm.slane %v7195, %v920
    %v7260 = vperm.slane %v7198, %v922
    %v7261 = vsel %vm924, %v7260, %v7259
    %v7262 = vperm.slane %v7201, %v920
    %v7263 = vperm.slane %v7204, %v922
    %v7264 = vsel %vm924, %v7263, %v7262
    %v7265 = vperm.slane %v7207, %v920
    %v7266 = vperm.slane %v7210, %v922
    %v7267 = vsel %vm924, %v7266, %v7265
    %v7268 = vperm.slane %v7213, %v920
    %v7269 = vperm.slane %v7216, %v922
    %v7270 = vsel %vm924, %v7269, %v7268
    %v7271 = vperm.slane %v7219, %v920
    %v7272 = vperm.slane %v7222, %v922
    %v7273 = vsel %vm924, %v7272, %v7271
    %v7274 = vperm.slane %v7225, %v920
    %v7275 = vperm.slane %v7228, %v922
    %v7276 = vsel %vm924, %v7275, %v7274
    %v7277 = vsel %vm971, %v7234, %v7231
    %v7278 = vsel %vm973, %v7237, %v7277
    %v7279 = vsel %vm975, %v7240, %v7278
    %v7280 = vsel %vm977, %v7243, %v7279
    %v7281 = vsel %vm979, %v7246, %v7280
    %v7282 = vsel %vm981, %v7249, %v7281
    %v7283 = vsel %vm983, %v7252, %v7282
    %v7284 = vsel %vm971, %v7258, %v7255
    %v7285 = vsel %vm973, %v7261, %v7284
    %v7286 = vsel %vm975, %v7264, %v7285
    %v7287 = vsel %vm977, %v7267, %v7286
    %v7288 = vsel %vm979, %v7270, %v7287
    %v7289 = vsel %vm981, %v7273, %v7288
    %v7290 = vsel %vm983, %v7276, %v7289
    %7293 = vrot.lane.b32.xlu0 %v5029, 120
    %v7294 = vpop.permute.xlu0 %7293
    %7295 = vrot.lane.b32.xlu0 %v5032, 120
    %v7296 = vpop.permute.xlu0 %7295
    %v7299 = vsel %vm151, %v7283, 0
    %v7301 = vsel %vm151, %v7290, 0
    %7303 = vmatpush.msra.mxu0 0.0
    %7304 = vmatpush.msra.mxu0 0.0
    %7305 = vmatpush.msra.mxu0 0.0
    %7306 = vmatpush.msra.mxu0 0.0
    %7307 = vmatpush.msra.mxu0 0.0
    %7308 = vmatpush.msra.mxu0 0.0
    %7309 = vmatpush.msra.mxu0 0.0
    %7310 = vmatpush.msra.mxu0 0.0
    %7311 = vmatpush.msra.mxu0 0.0
    %7312 = vmatpush.msra.mxu0 0.0
    %7313 = vmatpush.msra.mxu0 0.0
    %7314 = vmatpush.msra.mxu0 0.0
    %7315 = vmatpush.msra.mxu0 0.0
    %7316 = vmatpush.msra.mxu0 0.0
    %7317 = vmatpush.msra.mxu0 %v7296
    %7318 = vmatpush.msra.mxu0 %v7294
    %7319 = vmatmul.f32.gmra.mxu0 %v7299
    %v7320 = vpop.f32.mrf.mxu0
    %v7321 = vadd.f32 0.0, %v7320
    %7322 = vmatmul.f32.gmra.mxu0 %v7301
    %v7323 = vpop.f32.mrf.mxu0
    %v7324 = vadd.f32 0.0, %v7323
    %7325 = vdwg.mxu0
    %v7326 = vperm.slane %v5065, 2
    %7328 = vrot.lane.b32.xlu0 %v7326, 16
    %v7329 = vpop.permute.xlu0 %7328
    %v7331 = vmul.f32 %v5210, %v7329
    %v7332 = vmul.f32 %v5211, %v7329
    %v7333 = vmul.f32 %v5212, %v7329
    %v7334 = vmul.f32 %v5213, %v7329
    %v7335 = vmul.f32 %v5214, %v7329
    %v7336 = vmul.f32 %v5215, %v7329
    %v7337 = vmul.f32 %v5216, %v7329
    %v7338 = vmul.f32 %v5217, %v7329
    %v7339 = vmul.f32 %v5218, %v7329
    %v7340 = vmul.f32 %v5219, %v7329
    %v7341 = vmul.f32 %v5220, %v7329
    %v7342 = vmul.f32 %v5221, %v7329
    %v7343 = vmul.f32 %v5222, %v7329
    %v7344 = vmul.f32 %v5223, %v7329
    %v7345 = vmul.f32 %v5224, %v7329
    %v7346 = vmul.f32 %v5225, %v7329
    %v7347 = vmul.f32 %v5226, %v7329
    %v7348 = vmul.f32 %v5227, %v7329
    %v7349 = vmul.f32 %v5228, %v7329
    %v7350 = vmul.f32 %v5229, %v7329
    %v7351 = vmul.f32 %v5230, %v7329
    %v7352 = vmul.f32 %v5231, %v7329
    %v7353 = vmul.f32 %v5232, %v7329
    %v7354 = vmul.f32 %v5233, %v7329
    %v7355 = vmul.f32 %v5234, %v7329
    %v7356 = vmul.f32 %v5235, %v7329
    %v7357 = vmul.f32 %v5236, %v7329
    %v7358 = vmul.f32 %v5237, %v7329
    %v7359 = vmul.f32 %v5238, %v7329
    %v7360 = vmul.f32 %v5239, %v7329
    %v7361 = vmul.f32 %v5240, %v7329
    %v7362 = vmul.f32 %v5241, %v7329
    %7395 = vrot.lane.b32.xlu0 %v7331, 112
    %v7396 = vpop.permute.xlu0 %7395
    %7397 = vrot.lane.b32.xlu0 %v7332, 112
    %v7398 = vpop.permute.xlu0 %7397
    %7399 = vrot.lane.b32.xlu0 %v7333, 112
    %v7400 = vpop.permute.xlu0 %7399
    %7401 = vrot.lane.b32.xlu0 %v7334, 112
    %v7402 = vpop.permute.xlu0 %7401
    %7403 = vrot.lane.b32.xlu0 %v7335, 112
    %v7404 = vpop.permute.xlu0 %7403
    %7405 = vrot.lane.b32.xlu0 %v7336, 112
    %v7406 = vpop.permute.xlu0 %7405
    %7407 = vrot.lane.b32.xlu0 %v7337, 112
    %v7408 = vpop.permute.xlu0 %7407
    %7409 = vrot.lane.b32.xlu0 %v7338, 112
    %v7410 = vpop.permute.xlu0 %7409
    %7411 = vrot.lane.b32.xlu0 %v7339, 112
    %v7412 = vpop.permute.xlu0 %7411
    %7413 = vrot.lane.b32.xlu0 %v7340, 112
    %v7414 = vpop.permute.xlu0 %7413
    %7415 = vrot.lane.b32.xlu0 %v7341, 112
    %v7416 = vpop.permute.xlu0 %7415
    %7417 = vrot.lane.b32.xlu0 %v7342, 112
    %v7418 = vpop.permute.xlu0 %7417
    %7419 = vrot.lane.b32.xlu0 %v7343, 112
    %v7420 = vpop.permute.xlu0 %7419
    %7421 = vrot.lane.b32.xlu0 %v7344, 112
    %v7422 = vpop.permute.xlu0 %7421
    %7423 = vrot.lane.b32.xlu0 %v7345, 112
    %v7424 = vpop.permute.xlu0 %7423
    %7425 = vrot.lane.b32.xlu0 %v7346, 112
    %v7426 = vpop.permute.xlu0 %7425
    %7427 = vrot.lane.b32.xlu0 %v7347, 112
    %v7428 = vpop.permute.xlu0 %7427
    %7429 = vrot.lane.b32.xlu0 %v7348, 112
    %v7430 = vpop.permute.xlu0 %7429
    %7431 = vrot.lane.b32.xlu0 %v7349, 112
    %v7432 = vpop.permute.xlu0 %7431
    %7433 = vrot.lane.b32.xlu0 %v7350, 112
    %v7434 = vpop.permute.xlu0 %7433
    %7435 = vrot.lane.b32.xlu0 %v7351, 112
    %v7436 = vpop.permute.xlu0 %7435
    %7437 = vrot.lane.b32.xlu0 %v7352, 112
    %v7438 = vpop.permute.xlu0 %7437
    %7439 = vrot.lane.b32.xlu0 %v7353, 112
    %v7440 = vpop.permute.xlu0 %7439
    %7441 = vrot.lane.b32.xlu0 %v7354, 112
    %v7442 = vpop.permute.xlu0 %7441
    %7443 = vrot.lane.b32.xlu0 %v7355, 112
    %v7444 = vpop.permute.xlu0 %7443
    %7445 = vrot.lane.b32.xlu0 %v7356, 112
    %v7446 = vpop.permute.xlu0 %7445
    %7447 = vrot.lane.b32.xlu0 %v7357, 112
    %v7448 = vpop.permute.xlu0 %7447
    %7449 = vrot.lane.b32.xlu0 %v7358, 112
    %v7450 = vpop.permute.xlu0 %7449
    %7451 = vrot.lane.b32.xlu0 %v7359, 112
    %v7452 = vpop.permute.xlu0 %7451
    %7453 = vrot.lane.b32.xlu0 %v7360, 112
    %v7454 = vpop.permute.xlu0 %7453
    %7455 = vrot.lane.b32.xlu0 %v7361, 112
    %v7456 = vpop.permute.xlu0 %7455
    %7457 = vrot.lane.b32.xlu0 %v7362, 112
    %v7458 = vpop.permute.xlu0 %7457
    %v7491 = vsel %vm420, %v7396, 0.0
    %7492 = vadd.xlane.f32.xlu0 %v7491
    %v7493 = vpop.xlane.xlu0 %7492
    %v7494 = vsel %vm420, %v7398, 0.0
    %7495 = vadd.xlane.f32.xlu0 %v7494
    %v7496 = vpop.xlane.xlu0 %7495
    %v7497 = vsel %vm420, %v7400, 0.0
    %7498 = vadd.xlane.f32.xlu0 %v7497
    %v7499 = vpop.xlane.xlu0 %7498
    %v7500 = vsel %vm420, %v7402, 0.0
    %7501 = vadd.xlane.f32.xlu0 %v7500
    %v7502 = vpop.xlane.xlu0 %7501
    %v7503 = vsel %vm420, %v7404, 0.0
    %7504 = vadd.xlane.f32.xlu0 %v7503
    %v7505 = vpop.xlane.xlu0 %7504
    %v7506 = vsel %vm420, %v7406, 0.0
    %7507 = vadd.xlane.f32.xlu0 %v7506
    %v7508 = vpop.xlane.xlu0 %7507
    %v7509 = vsel %vm420, %v7408, 0.0
    %7510 = vadd.xlane.f32.xlu0 %v7509
    %v7511 = vpop.xlane.xlu0 %7510
    %v7512 = vsel %vm420, %v7410, 0.0
    %7513 = vadd.xlane.f32.xlu0 %v7512
    %v7514 = vpop.xlane.xlu0 %7513
    %v7515 = vsel %vm420, %v7412, 0.0
    %7516 = vadd.xlane.f32.xlu0 %v7515
    %v7517 = vpop.xlane.xlu0 %7516
    %v7518 = vsel %vm420, %v7414, 0.0
    %7519 = vadd.xlane.f32.xlu0 %v7518
    %v7520 = vpop.xlane.xlu0 %7519
    %v7521 = vsel %vm420, %v7416, 0.0
    %7522 = vadd.xlane.f32.xlu0 %v7521
    %v7523 = vpop.xlane.xlu0 %7522
    %v7524 = vsel %vm420, %v7418, 0.0
    %7525 = vadd.xlane.f32.xlu0 %v7524
    %v7526 = vpop.xlane.xlu0 %7525
    %v7527 = vsel %vm420, %v7420, 0.0
    %7528 = vadd.xlane.f32.xlu0 %v7527
    %v7529 = vpop.xlane.xlu0 %7528
    %v7530 = vsel %vm420, %v7422, 0.0
    %7531 = vadd.xlane.f32.xlu0 %v7530
    %v7532 = vpop.xlane.xlu0 %7531
    %v7533 = vsel %vm420, %v7424, 0.0
    %7534 = vadd.xlane.f32.xlu0 %v7533
    %v7535 = vpop.xlane.xlu0 %7534
    %v7536 = vsel %vm420, %v7426, 0.0
    %7537 = vadd.xlane.f32.xlu0 %v7536
    %v7538 = vpop.xlane.xlu0 %7537
    %v7539 = vsel %vm420, %v7428, 0.0
    %7540 = vadd.xlane.f32.xlu0 %v7539
    %v7541 = vpop.xlane.xlu0 %7540
    %v7542 = vsel %vm420, %v7430, 0.0
    %7543 = vadd.xlane.f32.xlu0 %v7542
    %v7544 = vpop.xlane.xlu0 %7543
    %v7545 = vsel %vm420, %v7432, 0.0
    %7546 = vadd.xlane.f32.xlu0 %v7545
    %v7547 = vpop.xlane.xlu0 %7546
    %v7548 = vsel %vm420, %v7434, 0.0
    %7549 = vadd.xlane.f32.xlu0 %v7548
    %v7550 = vpop.xlane.xlu0 %7549
    %v7551 = vsel %vm420, %v7436, 0.0
    %7552 = vadd.xlane.f32.xlu0 %v7551
    %v7553 = vpop.xlane.xlu0 %7552
    %v7554 = vsel %vm420, %v7438, 0.0
    %7555 = vadd.xlane.f32.xlu0 %v7554
    %v7556 = vpop.xlane.xlu0 %7555
    %v7557 = vsel %vm420, %v7440, 0.0
    %7558 = vadd.xlane.f32.xlu0 %v7557
    %v7559 = vpop.xlane.xlu0 %7558
    %v7560 = vsel %vm420, %v7442, 0.0
    %7561 = vadd.xlane.f32.xlu0 %v7560
    %v7562 = vpop.xlane.xlu0 %7561
    %v7563 = vsel %vm420, %v7444, 0.0
    %7564 = vadd.xlane.f32.xlu0 %v7563
    %v7565 = vpop.xlane.xlu0 %7564
    %v7566 = vsel %vm420, %v7446, 0.0
    %7567 = vadd.xlane.f32.xlu0 %v7566
    %v7568 = vpop.xlane.xlu0 %7567
    %v7569 = vsel %vm420, %v7448, 0.0
    %7570 = vadd.xlane.f32.xlu0 %v7569
    %v7571 = vpop.xlane.xlu0 %7570
    %v7572 = vsel %vm420, %v7450, 0.0
    %7573 = vadd.xlane.f32.xlu0 %v7572
    %v7574 = vpop.xlane.xlu0 %7573
    %v7575 = vsel %vm420, %v7452, 0.0
    %7576 = vadd.xlane.f32.xlu0 %v7575
    %v7577 = vpop.xlane.xlu0 %7576
    %v7578 = vsel %vm420, %v7454, 0.0
    %7579 = vadd.xlane.f32.xlu0 %v7578
    %v7580 = vpop.xlane.xlu0 %7579
    %v7581 = vsel %vm420, %v7456, 0.0
    %7582 = vadd.xlane.f32.xlu0 %v7581
    %v7583 = vpop.xlane.xlu0 %7582
    %v7584 = vsel %vm420, %v7458, 0.0
    %7585 = vadd.xlane.f32.xlu0 %v7584
    %v7586 = vpop.xlane.xlu0 %7585
    %v7587 = vadd.f32 %v7493, %v525
    %v7588 = vadd.f32 %v7496, %v531
    %v7589 = vadd.f32 %v7499, %v538
    %v7590 = vadd.f32 %v7502, %v544
    %v7591 = vadd.f32 %v7505, %v551
    %v7592 = vadd.f32 %v7508, %v557
    %v7593 = vadd.f32 %v7511, %v564
    %v7594 = vadd.f32 %v7514, %v570
    %v7595 = vadd.f32 %v7517, %v577
    %v7596 = vadd.f32 %v7520, %v583
    %v7597 = vadd.f32 %v7523, %v590
    %v7598 = vadd.f32 %v7526, %v596
    %v7599 = vadd.f32 %v7529, %v603
    %v7600 = vadd.f32 %v7532, %v609
    %v7601 = vadd.f32 %v7535, %v616
    %v7602 = vadd.f32 %v7538, %v622
    %v7603 = vadd.f32 %v7541, %v629
    %v7604 = vadd.f32 %v7544, %v635
    %v7605 = vadd.f32 %v7547, %v642
    %v7606 = vadd.f32 %v7550, %v648
    %v7607 = vadd.f32 %v7553, %v655
    %v7608 = vadd.f32 %v7556, %v661
    %v7609 = vadd.f32 %v7559, %v668
    %v7610 = vadd.f32 %v7562, %v674
    %v7611 = vadd.f32 %v7565, %v681
    %v7612 = vadd.f32 %v7568, %v687
    %v7613 = vadd.f32 %v7571, %v694
    %v7614 = vadd.f32 %v7574, %v700
    %v7615 = vadd.f32 %v7577, %v707
    %v7616 = vadd.f32 %v7580, %v713
    %v7617 = vadd.f32 %v7583, %v720
    %v7618 = vadd.f32 %v7586, %v726
    %7651 = vset.pattern.permute.xlu0 0
    %7652 = vperm.xlu0 %7651, %v7587
    %v7653 = vpop.permute.xlu0 %7652
    %7654 = vset.pattern.permute.xlu0 0
    %7655 = vperm.xlu0 %7654, %v7588
    %v7656 = vpop.permute.xlu0 %7655
    %7657 = vset.pattern.permute.xlu0 0
    %7658 = vperm.xlu0 %7657, %v7589
    %v7659 = vpop.permute.xlu0 %7658
    %7660 = vset.pattern.permute.xlu0 0
    %7661 = vperm.xlu0 %7660, %v7590
    %v7662 = vpop.permute.xlu0 %7661
    %7663 = vset.pattern.permute.xlu0 0
    %7664 = vperm.xlu0 %7663, %v7591
    %v7665 = vpop.permute.xlu0 %7664
    %7666 = vset.pattern.permute.xlu0 0
    %7667 = vperm.xlu0 %7666, %v7592
    %v7668 = vpop.permute.xlu0 %7667
    %7669 = vset.pattern.permute.xlu0 0
    %7670 = vperm.xlu0 %7669, %v7593
    %v7671 = vpop.permute.xlu0 %7670
    %7672 = vset.pattern.permute.xlu0 0
    %7673 = vperm.xlu0 %7672, %v7594
    %v7674 = vpop.permute.xlu0 %7673
    %7675 = vset.pattern.permute.xlu0 0
    %7676 = vperm.xlu0 %7675, %v7595
    %v7677 = vpop.permute.xlu0 %7676
    %7678 = vset.pattern.permute.xlu0 0
    %7679 = vperm.xlu0 %7678, %v7596
    %v7680 = vpop.permute.xlu0 %7679
    %7681 = vset.pattern.permute.xlu0 0
    %7682 = vperm.xlu0 %7681, %v7597
    %v7683 = vpop.permute.xlu0 %7682
    %7684 = vset.pattern.permute.xlu0 0
    %7685 = vperm.xlu0 %7684, %v7598
    %v7686 = vpop.permute.xlu0 %7685
    %7687 = vset.pattern.permute.xlu0 0
    %7688 = vperm.xlu0 %7687, %v7599
    %v7689 = vpop.permute.xlu0 %7688
    %7690 = vset.pattern.permute.xlu0 0
    %7691 = vperm.xlu0 %7690, %v7600
    %v7692 = vpop.permute.xlu0 %7691
    %7693 = vset.pattern.permute.xlu0 0
    %7694 = vperm.xlu0 %7693, %v7601
    %v7695 = vpop.permute.xlu0 %7694
    %7696 = vset.pattern.permute.xlu0 0
    %7697 = vperm.xlu0 %7696, %v7602
    %v7698 = vpop.permute.xlu0 %7697
    %7699 = vset.pattern.permute.xlu0 0
    %7700 = vperm.xlu0 %7699, %v7603
    %v7701 = vpop.permute.xlu0 %7700
    %7702 = vset.pattern.permute.xlu0 0
    %7703 = vperm.xlu0 %7702, %v7604
    %v7704 = vpop.permute.xlu0 %7703
    %7705 = vset.pattern.permute.xlu0 0
    %7706 = vperm.xlu0 %7705, %v7605
    %v7707 = vpop.permute.xlu0 %7706
    %7708 = vset.pattern.permute.xlu0 0
    %7709 = vperm.xlu0 %7708, %v7606
    %v7710 = vpop.permute.xlu0 %7709
    %7711 = vset.pattern.permute.xlu0 0
    %7712 = vperm.xlu0 %7711, %v7607
    %v7713 = vpop.permute.xlu0 %7712
    %7714 = vset.pattern.permute.xlu0 0
    %7715 = vperm.xlu0 %7714, %v7608
    %v7716 = vpop.permute.xlu0 %7715
    %7717 = vset.pattern.permute.xlu0 0
    %7718 = vperm.xlu0 %7717, %v7609
    %v7719 = vpop.permute.xlu0 %7718
    %7720 = vset.pattern.permute.xlu0 0
    %7721 = vperm.xlu0 %7720, %v7610
    %v7722 = vpop.permute.xlu0 %7721
    %7723 = vset.pattern.permute.xlu0 0
    %7724 = vperm.xlu0 %7723, %v7611
    %v7725 = vpop.permute.xlu0 %7724
    %7726 = vset.pattern.permute.xlu0 0
    %7727 = vperm.xlu0 %7726, %v7612
    %v7728 = vpop.permute.xlu0 %7727
    %7729 = vset.pattern.permute.xlu0 0
    %7730 = vperm.xlu0 %7729, %v7613
    %v7731 = vpop.permute.xlu0 %7730
    %7732 = vset.pattern.permute.xlu0 0
    %7733 = vperm.xlu0 %7732, %v7614
    %v7734 = vpop.permute.xlu0 %7733
    %7735 = vset.pattern.permute.xlu0 0
    %7736 = vperm.xlu0 %7735, %v7615
    %v7737 = vpop.permute.xlu0 %7736
    %7738 = vset.pattern.permute.xlu0 0
    %7739 = vperm.xlu0 %7738, %v7616
    %v7740 = vpop.permute.xlu0 %7739
    %7741 = vset.pattern.permute.xlu0 0
    %7742 = vperm.xlu0 %7741, %v7617
    %v7743 = vpop.permute.xlu0 %7742
    %7744 = vset.pattern.permute.xlu0 0
    %7745 = vperm.xlu0 %7744, %v7618
    %v7746 = vpop.permute.xlu0 %7745
    %v7747 = vperm.slane %v7653, %v920
    %v7748 = vperm.slane %v7656, %v922
    %v7749 = vsel %vm924, %v7748, %v7747
    %v7750 = vperm.slane %v7659, %v920
    %v7751 = vperm.slane %v7662, %v922
    %v7752 = vsel %vm924, %v7751, %v7750
    %v7753 = vperm.slane %v7665, %v920
    %v7754 = vperm.slane %v7668, %v922
    %v7755 = vsel %vm924, %v7754, %v7753
    %v7756 = vperm.slane %v7671, %v920
    %v7757 = vperm.slane %v7674, %v922
    %v7758 = vsel %vm924, %v7757, %v7756
    %v7759 = vperm.slane %v7677, %v920
    %v7760 = vperm.slane %v7680, %v922
    %v7761 = vsel %vm924, %v7760, %v7759
    %v7762 = vperm.slane %v7683, %v920
    %v7763 = vperm.slane %v7686, %v922
    %v7764 = vsel %vm924, %v7763, %v7762
    %v7765 = vperm.slane %v7689, %v920
    %v7766 = vperm.slane %v7692, %v922
    %v7767 = vsel %vm924, %v7766, %v7765
    %v7768 = vperm.slane %v7695, %v920
    %v7769 = vperm.slane %v7698, %v922
    %v7770 = vsel %vm924, %v7769, %v7768
    %v7771 = vperm.slane %v7701, %v920
    %v7772 = vperm.slane %v7704, %v922
    %v7773 = vsel %vm924, %v7772, %v7771
    %v7774 = vperm.slane %v7707, %v920
    %v7775 = vperm.slane %v7710, %v922
    %v7776 = vsel %vm924, %v7775, %v7774
    %v7777 = vperm.slane %v7713, %v920
    %v7778 = vperm.slane %v7716, %v922
    %v7779 = vsel %vm924, %v7778, %v7777
    %v7780 = vperm.slane %v7719, %v920
    %v7781 = vperm.slane %v7722, %v922
    %v7782 = vsel %vm924, %v7781, %v7780
    %v7783 = vperm.slane %v7725, %v920
    %v7784 = vperm.slane %v7728, %v922
    %v7785 = vsel %vm924, %v7784, %v7783
    %v7786 = vperm.slane %v7731, %v920
    %v7787 = vperm.slane %v7734, %v922
    %v7788 = vsel %vm924, %v7787, %v7786
    %v7789 = vperm.slane %v7737, %v920
    %v7790 = vperm.slane %v7740, %v922
    %v7791 = vsel %vm924, %v7790, %v7789
    %v7792 = vperm.slane %v7743, %v920
    %v7793 = vperm.slane %v7746, %v922
    %v7794 = vsel %vm924, %v7793, %v7792
    %v7795 = vsel %vm971, %v7752, %v7749
    %v7796 = vsel %vm973, %v7755, %v7795
    %v7797 = vsel %vm975, %v7758, %v7796
    %v7798 = vsel %vm977, %v7761, %v7797
    %v7799 = vsel %vm979, %v7764, %v7798
    %v7800 = vsel %vm981, %v7767, %v7799
    %v7801 = vsel %vm983, %v7770, %v7800
    %v7802 = vsel %vm971, %v7776, %v7773
    %v7803 = vsel %vm973, %v7779, %v7802
    %v7804 = vsel %vm975, %v7782, %v7803
    %v7805 = vsel %vm977, %v7785, %v7804
    %v7806 = vsel %vm979, %v7788, %v7805
    %v7807 = vsel %vm981, %v7791, %v7806
    %v7808 = vsel %vm983, %v7794, %v7807
    %v7811 = vsel %vm151, %v7801, -inf
    %7812 = vmax.xlane.f32.xlu0 %v7811
    %v7813 = vpop.xlane.xlu0 %7812
    %v7814 = vsel %vm151, %v7808, -inf
    %7815 = vmax.xlane.f32.xlu0 %v7814
    %v7816 = vpop.xlane.xlu0 %7815
    %v7819 = vperm.slane %v7813, 0
    %v7820 = vperm.slane %v7813, 1
    %v7821 = vperm.slane %v7813, 2
    %v7822 = vperm.slane %v7813, 3
    %v7823 = vperm.slane %v7813, 4
    %v7824 = vperm.slane %v7813, 5
    %v7825 = vperm.slane %v7813, 6
    %v7826 = vperm.slane %v7813, 7
    %v7827 = vperm.slane %v7816, 0
    %v7828 = vperm.slane %v7816, 1
    %v7829 = vperm.slane %v7816, 2
    %v7830 = vperm.slane %v7816, 3
    %v7831 = vperm.slane %v7816, 4
    %v7832 = vperm.slane %v7816, 5
    %v7833 = vperm.slane %v7816, 6
    %v7834 = vperm.slane %v7816, 7
    %v7851 = vsub.f32 %v7587, %v7819
    %v7852 = vsub.f32 %v7588, %v7819
    %v7853 = vsub.f32 %v7589, %v7820
    %v7854 = vsub.f32 %v7590, %v7820
    %v7855 = vsub.f32 %v7591, %v7821
    %v7856 = vsub.f32 %v7592, %v7821
    %v7857 = vsub.f32 %v7593, %v7822
    %v7858 = vsub.f32 %v7594, %v7822
    %v7859 = vsub.f32 %v7595, %v7823
    %v7860 = vsub.f32 %v7596, %v7823
    %v7861 = vsub.f32 %v7597, %v7824
    %v7862 = vsub.f32 %v7598, %v7824
    %v7863 = vsub.f32 %v7599, %v7825
    %v7864 = vsub.f32 %v7600, %v7825
    %v7865 = vsub.f32 %v7601, %v7826
    %v7866 = vsub.f32 %v7602, %v7826
    %v7867 = vsub.f32 %v7603, %v7827
    %v7868 = vsub.f32 %v7604, %v7827
    %v7869 = vsub.f32 %v7605, %v7828
    %v7870 = vsub.f32 %v7606, %v7828
    %v7871 = vsub.f32 %v7607, %v7829
    %v7872 = vsub.f32 %v7608, %v7829
    %v7873 = vsub.f32 %v7609, %v7830
    %v7874 = vsub.f32 %v7610, %v7830
    %v7875 = vsub.f32 %v7611, %v7831
    %v7876 = vsub.f32 %v7612, %v7831
    %v7877 = vsub.f32 %v7613, %v7832
    %v7878 = vsub.f32 %v7614, %v7832
    %v7879 = vsub.f32 %v7615, %v7833
    %v7880 = vsub.f32 %v7616, %v7833
    %v7881 = vsub.f32 %v7617, %v7834
    %v7882 = vsub.f32 %v7618, %v7834
    %v7883 = vmul.f32 %v7851, 1.442695
    %v7884 = vpow.pop %v7883
    %v7885 = vmul.f32 %v7852, 1.442695
    %v7886 = vpow.pop %v7885
    %v7887 = vmul.f32 %v7853, 1.442695
    %v7888 = vpow.pop %v7887
    %v7889 = vmul.f32 %v7854, 1.442695
    %v7890 = vpow.pop %v7889
    %v7891 = vmul.f32 %v7855, 1.442695
    %v7892 = vpow.pop %v7891
    %v7893 = vmul.f32 %v7856, 1.442695
    %v7894 = vpow.pop %v7893
    %v7895 = vmul.f32 %v7857, 1.442695
    %v7896 = vpow.pop %v7895
    %v7897 = vmul.f32 %v7858, 1.442695
    %v7898 = vpow.pop %v7897
    %v7899 = vmul.f32 %v7859, 1.442695
    %v7900 = vpow.pop %v7899
    %v7901 = vmul.f32 %v7860, 1.442695
    %v7902 = vpow.pop %v7901
    %v7903 = vmul.f32 %v7861, 1.442695
    %v7904 = vpow.pop %v7903
    %v7905 = vmul.f32 %v7862, 1.442695
    %v7906 = vpow.pop %v7905
    %v7907 = vmul.f32 %v7863, 1.442695
    %v7908 = vpow.pop %v7907
    %v7909 = vmul.f32 %v7864, 1.442695
    %v7910 = vpow.pop %v7909
    %v7911 = vmul.f32 %v7865, 1.442695
    %v7912 = vpow.pop %v7911
    %v7913 = vmul.f32 %v7866, 1.442695
    %v7914 = vpow.pop %v7913
    %v7915 = vmul.f32 %v7867, 1.442695
    %v7916 = vpow.pop %v7915
    %v7917 = vmul.f32 %v7868, 1.442695
    %v7918 = vpow.pop %v7917
    %v7919 = vmul.f32 %v7869, 1.442695
    %v7920 = vpow.pop %v7919
    %v7921 = vmul.f32 %v7870, 1.442695
    %v7922 = vpow.pop %v7921
    %v7923 = vmul.f32 %v7871, 1.442695
    %v7924 = vpow.pop %v7923
    %v7925 = vmul.f32 %v7872, 1.442695
    %v7926 = vpow.pop %v7925
    %v7927 = vmul.f32 %v7873, 1.442695
    %v7928 = vpow.pop %v7927
    %v7929 = vmul.f32 %v7874, 1.442695
    %v7930 = vpow.pop %v7929
    %v7931 = vmul.f32 %v7875, 1.442695
    %v7932 = vpow.pop %v7931
    %v7933 = vmul.f32 %v7876, 1.442695
    %v7934 = vpow.pop %v7933
    %v7935 = vmul.f32 %v7877, 1.442695
    %v7936 = vpow.pop %v7935
    %v7937 = vmul.f32 %v7878, 1.442695
    %v7938 = vpow.pop %v7937
    %v7939 = vmul.f32 %v7879, 1.442695
    %v7940 = vpow.pop %v7939
    %v7941 = vmul.f32 %v7880, 1.442695
    %v7942 = vpow.pop %v7941
    %v7943 = vmul.f32 %v7881, 1.442695
    %v7944 = vpow.pop %v7943
    %v7945 = vmul.f32 %v7882, 1.442695
    %v7946 = vpow.pop %v7945
    %7979 = vset.pattern.permute.xlu0 0
    %7980 = vperm.xlu0 %7979, %v7884
    %v7981 = vpop.permute.xlu0 %7980
    %7982 = vset.pattern.permute.xlu0 0
    %7983 = vperm.xlu0 %7982, %v7886
    %v7984 = vpop.permute.xlu0 %7983
    %7985 = vset.pattern.permute.xlu0 0
    %7986 = vperm.xlu0 %7985, %v7888
    %v7987 = vpop.permute.xlu0 %7986
    %7988 = vset.pattern.permute.xlu0 0
    %7989 = vperm.xlu0 %7988, %v7890
    %v7990 = vpop.permute.xlu0 %7989
    %7991 = vset.pattern.permute.xlu0 0
    %7992 = vperm.xlu0 %7991, %v7892
    %v7993 = vpop.permute.xlu0 %7992
    %7994 = vset.pattern.permute.xlu0 0
    %7995 = vperm.xlu0 %7994, %v7894
    %v7996 = vpop.permute.xlu0 %7995
    %7997 = vset.pattern.permute.xlu0 0
    %7998 = vperm.xlu0 %7997, %v7896
    %v7999 = vpop.permute.xlu0 %7998
    %8000 = vset.pattern.permute.xlu0 0
    %8001 = vperm.xlu0 %8000, %v7898
    %v8002 = vpop.permute.xlu0 %8001
    %8003 = vset.pattern.permute.xlu0 0
    %8004 = vperm.xlu0 %8003, %v7900
    %v8005 = vpop.permute.xlu0 %8004
    %8006 = vset.pattern.permute.xlu0 0
    %8007 = vperm.xlu0 %8006, %v7902
    %v8008 = vpop.permute.xlu0 %8007
    %8009 = vset.pattern.permute.xlu0 0
    %8010 = vperm.xlu0 %8009, %v7904
    %v8011 = vpop.permute.xlu0 %8010
    %8012 = vset.pattern.permute.xlu0 0
    %8013 = vperm.xlu0 %8012, %v7906
    %v8014 = vpop.permute.xlu0 %8013
    %8015 = vset.pattern.permute.xlu0 0
    %8016 = vperm.xlu0 %8015, %v7908
    %v8017 = vpop.permute.xlu0 %8016
    %8018 = vset.pattern.permute.xlu0 0
    %8019 = vperm.xlu0 %8018, %v7910
    %v8020 = vpop.permute.xlu0 %8019
    %8021 = vset.pattern.permute.xlu0 0
    %8022 = vperm.xlu0 %8021, %v7912
    %v8023 = vpop.permute.xlu0 %8022
    %8024 = vset.pattern.permute.xlu0 0
    %8025 = vperm.xlu0 %8024, %v7914
    %v8026 = vpop.permute.xlu0 %8025
    %8027 = vset.pattern.permute.xlu0 0
    %8028 = vperm.xlu0 %8027, %v7916
    %v8029 = vpop.permute.xlu0 %8028
    %8030 = vset.pattern.permute.xlu0 0
    %8031 = vperm.xlu0 %8030, %v7918
    %v8032 = vpop.permute.xlu0 %8031
    %8033 = vset.pattern.permute.xlu0 0
    %8034 = vperm.xlu0 %8033, %v7920
    %v8035 = vpop.permute.xlu0 %8034
    %8036 = vset.pattern.permute.xlu0 0
    %8037 = vperm.xlu0 %8036, %v7922
    %v8038 = vpop.permute.xlu0 %8037
    %8039 = vset.pattern.permute.xlu0 0
    %8040 = vperm.xlu0 %8039, %v7924
    %v8041 = vpop.permute.xlu0 %8040
    %8042 = vset.pattern.permute.xlu0 0
    %8043 = vperm.xlu0 %8042, %v7926
    %v8044 = vpop.permute.xlu0 %8043
    %8045 = vset.pattern.permute.xlu0 0
    %8046 = vperm.xlu0 %8045, %v7928
    %v8047 = vpop.permute.xlu0 %8046
    %8048 = vset.pattern.permute.xlu0 0
    %8049 = vperm.xlu0 %8048, %v7930
    %v8050 = vpop.permute.xlu0 %8049
    %8051 = vset.pattern.permute.xlu0 0
    %8052 = vperm.xlu0 %8051, %v7932
    %v8053 = vpop.permute.xlu0 %8052
    %8054 = vset.pattern.permute.xlu0 0
    %8055 = vperm.xlu0 %8054, %v7934
    %v8056 = vpop.permute.xlu0 %8055
    %8057 = vset.pattern.permute.xlu0 0
    %8058 = vperm.xlu0 %8057, %v7936
    %v8059 = vpop.permute.xlu0 %8058
    %8060 = vset.pattern.permute.xlu0 0
    %8061 = vperm.xlu0 %8060, %v7938
    %v8062 = vpop.permute.xlu0 %8061
    %8063 = vset.pattern.permute.xlu0 0
    %8064 = vperm.xlu0 %8063, %v7940
    %v8065 = vpop.permute.xlu0 %8064
    %8066 = vset.pattern.permute.xlu0 0
    %8067 = vperm.xlu0 %8066, %v7942
    %v8068 = vpop.permute.xlu0 %8067
    %8069 = vset.pattern.permute.xlu0 0
    %8070 = vperm.xlu0 %8069, %v7944
    %v8071 = vpop.permute.xlu0 %8070
    %8072 = vset.pattern.permute.xlu0 0
    %8073 = vperm.xlu0 %8072, %v7946
    %v8074 = vpop.permute.xlu0 %8073
    %v8075 = vperm.slane %v7981, %v920
    %v8076 = vperm.slane %v7984, %v922
    %v8077 = vsel %vm924, %v8076, %v8075
    %v8078 = vperm.slane %v7987, %v920
    %v8079 = vperm.slane %v7990, %v922
    %v8080 = vsel %vm924, %v8079, %v8078
    %v8081 = vperm.slane %v7993, %v920
    %v8082 = vperm.slane %v7996, %v922
    %v8083 = vsel %vm924, %v8082, %v8081
    %v8084 = vperm.slane %v7999, %v920
    %v8085 = vperm.slane %v8002, %v922
    %v8086 = vsel %vm924, %v8085, %v8084
    %v8087 = vperm.slane %v8005, %v920
    %v8088 = vperm.slane %v8008, %v922
    %v8089 = vsel %vm924, %v8088, %v8087
    %v8090 = vperm.slane %v8011, %v920
    %v8091 = vperm.slane %v8014, %v922
    %v8092 = vsel %vm924, %v8091, %v8090
    %v8093 = vperm.slane %v8017, %v920
    %v8094 = vperm.slane %v8020, %v922
    %v8095 = vsel %vm924, %v8094, %v8093
    %v8096 = vperm.slane %v8023, %v920
    %v8097 = vperm.slane %v8026, %v922
    %v8098 = vsel %vm924, %v8097, %v8096
    %v8099 = vperm.slane %v8029, %v920
    %v8100 = vperm.slane %v8032, %v922
    %v8101 = vsel %vm924, %v8100, %v8099
    %v8102 = vperm.slane %v8035, %v920
    %v8103 = vperm.slane %v8038, %v922
    %v8104 = vsel %vm924, %v8103, %v8102
    %v8105 = vperm.slane %v8041, %v920
    %v8106 = vperm.slane %v8044, %v922
    %v8107 = vsel %vm924, %v8106, %v8105
    %v8108 = vperm.slane %v8047, %v920
    %v8109 = vperm.slane %v8050, %v922
    %v8110 = vsel %vm924, %v8109, %v8108
    %v8111 = vperm.slane %v8053, %v920
    %v8112 = vperm.slane %v8056, %v922
    %v8113 = vsel %vm924, %v8112, %v8111
    %v8114 = vperm.slane %v8059, %v920
    %v8115 = vperm.slane %v8062, %v922
    %v8116 = vsel %vm924, %v8115, %v8114
    %v8117 = vperm.slane %v8065, %v920
    %v8118 = vperm.slane %v8068, %v922
    %v8119 = vsel %vm924, %v8118, %v8117
    %v8120 = vperm.slane %v8071, %v920
    %v8121 = vperm.slane %v8074, %v922
    %v8122 = vsel %vm924, %v8121, %v8120
    %v8123 = vsel %vm971, %v8080, %v8077
    %v8124 = vsel %vm973, %v8083, %v8123
    %v8125 = vsel %vm975, %v8086, %v8124
    %v8126 = vsel %vm977, %v8089, %v8125
    %v8127 = vsel %vm979, %v8092, %v8126
    %v8128 = vsel %vm981, %v8095, %v8127
    %v8129 = vsel %vm983, %v8098, %v8128
    %v8130 = vsel %vm971, %v8104, %v8101
    %v8131 = vsel %vm973, %v8107, %v8130
    %v8132 = vsel %vm975, %v8110, %v8131
    %v8133 = vsel %vm977, %v8113, %v8132
    %v8134 = vsel %vm979, %v8116, %v8133
    %v8135 = vsel %vm981, %v8119, %v8134
    %v8136 = vsel %vm983, %v8122, %v8135
    %v8139 = vsel %vm151, %v8129, 0.0
    %8140 = vadd.xlane.f32.xlu0 %v8139
    %v8141 = vpop.xlane.xlu0 %8140
    %v8142 = vsel %vm151, %v8136, 0.0
    %8143 = vadd.xlane.f32.xlu0 %v8142
    %v8144 = vpop.xlane.xlu0 %8143
    %v8145 = vrcp.pop %v8141
    %v8146 = vrcp.pop %v8144
    %v8149 = vperm.slane %v8145, 0
    %v8150 = vperm.slane %v8145, 1
    %v8151 = vperm.slane %v8145, 2
    %v8152 = vperm.slane %v8145, 3
    %v8153 = vperm.slane %v8145, 4
    %v8154 = vperm.slane %v8145, 5
    %v8155 = vperm.slane %v8145, 6
    %v8156 = vperm.slane %v8145, 7
    %v8157 = vperm.slane %v8146, 0
    %v8158 = vperm.slane %v8146, 1
    %v8159 = vperm.slane %v8146, 2
    %v8160 = vperm.slane %v8146, 3
    %v8161 = vperm.slane %v8146, 4
    %v8162 = vperm.slane %v8146, 5
    %v8163 = vperm.slane %v8146, 6
    %v8164 = vperm.slane %v8146, 7
    %v8181 = vmul.f32 %v7884, %v8149
    %v8182 = vmul.f32 %v7886, %v8149
    %v8183 = vmul.f32 %v7888, %v8150
    %v8184 = vmul.f32 %v7890, %v8150
    %v8185 = vmul.f32 %v7892, %v8151
    %v8186 = vmul.f32 %v7894, %v8151
    %v8187 = vmul.f32 %v7896, %v8152
    %v8188 = vmul.f32 %v7898, %v8152
    %v8189 = vmul.f32 %v7900, %v8153
    %v8190 = vmul.f32 %v7902, %v8153
    %v8191 = vmul.f32 %v7904, %v8154
    %v8192 = vmul.f32 %v7906, %v8154
    %v8193 = vmul.f32 %v7908, %v8155
    %v8194 = vmul.f32 %v7910, %v8155
    %v8195 = vmul.f32 %v7912, %v8156
    %v8196 = vmul.f32 %v7914, %v8156
    %v8197 = vmul.f32 %v7916, %v8157
    %v8198 = vmul.f32 %v7918, %v8157
    %v8199 = vmul.f32 %v7920, %v8158
    %v8200 = vmul.f32 %v7922, %v8158
    %v8201 = vmul.f32 %v7924, %v8159
    %v8202 = vmul.f32 %v7926, %v8159
    %v8203 = vmul.f32 %v7928, %v8160
    %v8204 = vmul.f32 %v7930, %v8160
    %v8205 = vmul.f32 %v7932, %v8161
    %v8206 = vmul.f32 %v7934, %v8161
    %v8207 = vmul.f32 %v7936, %v8162
    %v8208 = vmul.f32 %v7938, %v8162
    %v8209 = vmul.f32 %v7940, %v8163
    %v8210 = vmul.f32 %v7942, %v8163
    %v8211 = vmul.f32 %v7944, %v8164
    %v8212 = vmul.f32 %v7946, %v8164
    %8245 = vset.pattern.permute.xlu0 0
    %8246 = vperm.xlu0 %8245, %v8181
    %v8247 = vpop.permute.xlu0 %8246
    %8248 = vset.pattern.permute.xlu0 0
    %8249 = vperm.xlu0 %8248, %v8182
    %v8250 = vpop.permute.xlu0 %8249
    %8251 = vset.pattern.permute.xlu0 0
    %8252 = vperm.xlu0 %8251, %v8183
    %v8253 = vpop.permute.xlu0 %8252
    %8254 = vset.pattern.permute.xlu0 0
    %8255 = vperm.xlu0 %8254, %v8184
    %v8256 = vpop.permute.xlu0 %8255
    %8257 = vset.pattern.permute.xlu0 0
    %8258 = vperm.xlu0 %8257, %v8185
    %v8259 = vpop.permute.xlu0 %8258
    %8260 = vset.pattern.permute.xlu0 0
    %8261 = vperm.xlu0 %8260, %v8186
    %v8262 = vpop.permute.xlu0 %8261
    %8263 = vset.pattern.permute.xlu0 0
    %8264 = vperm.xlu0 %8263, %v8187
    %v8265 = vpop.permute.xlu0 %8264
    %8266 = vset.pattern.permute.xlu0 0
    %8267 = vperm.xlu0 %8266, %v8188
    %v8268 = vpop.permute.xlu0 %8267
    %8269 = vset.pattern.permute.xlu0 0
    %8270 = vperm.xlu0 %8269, %v8189
    %v8271 = vpop.permute.xlu0 %8270
    %8272 = vset.pattern.permute.xlu0 0
    %8273 = vperm.xlu0 %8272, %v8190
    %v8274 = vpop.permute.xlu0 %8273
    %8275 = vset.pattern.permute.xlu0 0
    %8276 = vperm.xlu0 %8275, %v8191
    %v8277 = vpop.permute.xlu0 %8276
    %8278 = vset.pattern.permute.xlu0 0
    %8279 = vperm.xlu0 %8278, %v8192
    %v8280 = vpop.permute.xlu0 %8279
    %8281 = vset.pattern.permute.xlu0 0
    %8282 = vperm.xlu0 %8281, %v8193
    %v8283 = vpop.permute.xlu0 %8282
    %8284 = vset.pattern.permute.xlu0 0
    %8285 = vperm.xlu0 %8284, %v8194
    %v8286 = vpop.permute.xlu0 %8285
    %8287 = vset.pattern.permute.xlu0 0
    %8288 = vperm.xlu0 %8287, %v8195
    %v8289 = vpop.permute.xlu0 %8288
    %8290 = vset.pattern.permute.xlu0 0
    %8291 = vperm.xlu0 %8290, %v8196
    %v8292 = vpop.permute.xlu0 %8291
    %8293 = vset.pattern.permute.xlu0 0
    %8294 = vperm.xlu0 %8293, %v8197
    %v8295 = vpop.permute.xlu0 %8294
    %8296 = vset.pattern.permute.xlu0 0
    %8297 = vperm.xlu0 %8296, %v8198
    %v8298 = vpop.permute.xlu0 %8297
    %8299 = vset.pattern.permute.xlu0 0
    %8300 = vperm.xlu0 %8299, %v8199
    %v8301 = vpop.permute.xlu0 %8300
    %8302 = vset.pattern.permute.xlu0 0
    %8303 = vperm.xlu0 %8302, %v8200
    %v8304 = vpop.permute.xlu0 %8303
    %8305 = vset.pattern.permute.xlu0 0
    %8306 = vperm.xlu0 %8305, %v8201
    %v8307 = vpop.permute.xlu0 %8306
    %8308 = vset.pattern.permute.xlu0 0
    %8309 = vperm.xlu0 %8308, %v8202
    %v8310 = vpop.permute.xlu0 %8309
    %8311 = vset.pattern.permute.xlu0 0
    %8312 = vperm.xlu0 %8311, %v8203
    %v8313 = vpop.permute.xlu0 %8312
    %8314 = vset.pattern.permute.xlu0 0
    %8315 = vperm.xlu0 %8314, %v8204
    %v8316 = vpop.permute.xlu0 %8315
    %8317 = vset.pattern.permute.xlu0 0
    %8318 = vperm.xlu0 %8317, %v8205
    %v8319 = vpop.permute.xlu0 %8318
    %8320 = vset.pattern.permute.xlu0 0
    %8321 = vperm.xlu0 %8320, %v8206
    %v8322 = vpop.permute.xlu0 %8321
    %8323 = vset.pattern.permute.xlu0 0
    %8324 = vperm.xlu0 %8323, %v8207
    %v8325 = vpop.permute.xlu0 %8324
    %8326 = vset.pattern.permute.xlu0 0
    %8327 = vperm.xlu0 %8326, %v8208
    %v8328 = vpop.permute.xlu0 %8327
    %8329 = vset.pattern.permute.xlu0 0
    %8330 = vperm.xlu0 %8329, %v8209
    %v8331 = vpop.permute.xlu0 %8330
    %8332 = vset.pattern.permute.xlu0 0
    %8333 = vperm.xlu0 %8332, %v8210
    %v8334 = vpop.permute.xlu0 %8333
    %8335 = vset.pattern.permute.xlu0 0
    %8336 = vperm.xlu0 %8335, %v8211
    %v8337 = vpop.permute.xlu0 %8336
    %8338 = vset.pattern.permute.xlu0 0
    %8339 = vperm.xlu0 %8338, %v8212
    %v8340 = vpop.permute.xlu0 %8339
    %v8341 = vperm.slane %v8247, %v920
    %v8342 = vperm.slane %v8250, %v922
    %v8343 = vsel %vm924, %v8342, %v8341
    %v8344 = vperm.slane %v8253, %v920
    %v8345 = vperm.slane %v8256, %v922
    %v8346 = vsel %vm924, %v8345, %v8344
    %v8347 = vperm.slane %v8259, %v920
    %v8348 = vperm.slane %v8262, %v922
    %v8349 = vsel %vm924, %v8348, %v8347
    %v8350 = vperm.slane %v8265, %v920
    %v8351 = vperm.slane %v8268, %v922
    %v8352 = vsel %vm924, %v8351, %v8350
    %v8353 = vperm.slane %v8271, %v920
    %v8354 = vperm.slane %v8274, %v922
    %v8355 = vsel %vm924, %v8354, %v8353
    %v8356 = vperm.slane %v8277, %v920
    %v8357 = vperm.slane %v8280, %v922
    %v8358 = vsel %vm924, %v8357, %v8356
    %v8359 = vperm.slane %v8283, %v920
    %v8360 = vperm.slane %v8286, %v922
    %v8361 = vsel %vm924, %v8360, %v8359
    %v8362 = vperm.slane %v8289, %v920
    %v8363 = vperm.slane %v8292, %v922
    %v8364 = vsel %vm924, %v8363, %v8362
    %v8365 = vperm.slane %v8295, %v920
    %v8366 = vperm.slane %v8298, %v922
    %v8367 = vsel %vm924, %v8366, %v8365
    %v8368 = vperm.slane %v8301, %v920
    %v8369 = vperm.slane %v8304, %v922
    %v8370 = vsel %vm924, %v8369, %v8368
    %v8371 = vperm.slane %v8307, %v920
    %v8372 = vperm.slane %v8310, %v922
    %v8373 = vsel %vm924, %v8372, %v8371
    %v8374 = vperm.slane %v8313, %v920
    %v8375 = vperm.slane %v8316, %v922
    %v8376 = vsel %vm924, %v8375, %v8374
    %v8377 = vperm.slane %v8319, %v920
    %v8378 = vperm.slane %v8322, %v922
    %v8379 = vsel %vm924, %v8378, %v8377
    %v8380 = vperm.slane %v8325, %v920
    %v8381 = vperm.slane %v8328, %v922
    %v8382 = vsel %vm924, %v8381, %v8380
    %v8383 = vperm.slane %v8331, %v920
    %v8384 = vperm.slane %v8334, %v922
    %v8385 = vsel %vm924, %v8384, %v8383
    %v8386 = vperm.slane %v8337, %v920
    %v8387 = vperm.slane %v8340, %v922
    %v8388 = vsel %vm924, %v8387, %v8386
    %v8389 = vsel %vm971, %v8346, %v8343
    %v8390 = vsel %vm973, %v8349, %v8389
    %v8391 = vsel %vm975, %v8352, %v8390
    %v8392 = vsel %vm977, %v8355, %v8391
    %v8393 = vsel %vm979, %v8358, %v8392
    %v8394 = vsel %vm981, %v8361, %v8393
    %v8395 = vsel %vm983, %v8364, %v8394
    %v8396 = vsel %vm971, %v8370, %v8367
    %v8397 = vsel %vm973, %v8373, %v8396
    %v8398 = vsel %vm975, %v8376, %v8397
    %v8399 = vsel %vm977, %v8379, %v8398
    %v8400 = vsel %vm979, %v8382, %v8399
    %v8401 = vsel %vm981, %v8385, %v8400
    %v8402 = vsel %vm983, %v8388, %v8401
    %8403 = vrot.lane.b32.xlu0 %v5029, 112
    %v8404 = vpop.permute.xlu0 %8403
    %8405 = vrot.lane.b32.xlu0 %v5032, 112
    %v8406 = vpop.permute.xlu0 %8405
    %v8409 = vsel %vm151, %v8395, 0
    %v8411 = vsel %vm151, %v8402, 0
    %8413 = vmatpush.msra.mxu0 0.0
    %8414 = vmatpush.msra.mxu0 0.0
    %8415 = vmatpush.msra.mxu0 0.0
    %8416 = vmatpush.msra.mxu0 0.0
    %8417 = vmatpush.msra.mxu0 0.0
    %8418 = vmatpush.msra.mxu0 0.0
    %8419 = vmatpush.msra.mxu0 0.0
    %8420 = vmatpush.msra.mxu0 0.0
    %8421 = vmatpush.msra.mxu0 0.0
    %8422 = vmatpush.msra.mxu0 0.0
    %8423 = vmatpush.msra.mxu0 0.0
    %8424 = vmatpush.msra.mxu0 0.0
    %8425 = vmatpush.msra.mxu0 0.0
    %8426 = vmatpush.msra.mxu0 0.0
    %8427 = vmatpush.msra.mxu0 %v8406
    %8428 = vmatpush.msra.mxu0 %v8404
    %8429 = vmatmul.f32.gmra.mxu0 %v8409
    %v8430 = vpop.f32.mrf.mxu0
    %v8431 = vadd.f32 0.0, %v8430
    %8432 = vmatmul.f32.gmra.mxu0 %v8411
    %v8433 = vpop.f32.mrf.mxu0
    %v8434 = vadd.f32 0.0, %v8433
    %8435 = vdwg.mxu0
    %v8436 = vperm.slane %v5065, 3
    %8438 = vrot.lane.b32.xlu0 %v8436, 24
    %v8439 = vpop.permute.xlu0 %8438
    %v8441 = vmul.f32 %v5210, %v8439
    %v8442 = vmul.f32 %v5211, %v8439
    %v8443 = vmul.f32 %v5212, %v8439
    %v8444 = vmul.f32 %v5213, %v8439
    %v8445 = vmul.f32 %v5214, %v8439
    %v8446 = vmul.f32 %v5215, %v8439
    %v8447 = vmul.f32 %v5216, %v8439
    %v8448 = vmul.f32 %v5217, %v8439
    %v8449 = vmul.f32 %v5218, %v8439
    %v8450 = vmul.f32 %v5219, %v8439
    %v8451 = vmul.f32 %v5220, %v8439
    %v8452 = vmul.f32 %v5221, %v8439
    %v8453 = vmul.f32 %v5222, %v8439
    %v8454 = vmul.f32 %v5223, %v8439
    %v8455 = vmul.f32 %v5224, %v8439
    %v8456 = vmul.f32 %v5225, %v8439
    %v8457 = vmul.f32 %v5226, %v8439
    %v8458 = vmul.f32 %v5227, %v8439
    %v8459 = vmul.f32 %v5228, %v8439
    %v8460 = vmul.f32 %v5229, %v8439
    %v8461 = vmul.f32 %v5230, %v8439
    %v8462 = vmul.f32 %v5231, %v8439
    %v8463 = vmul.f32 %v5232, %v8439
    %v8464 = vmul.f32 %v5233, %v8439
    %v8465 = vmul.f32 %v5234, %v8439
    %v8466 = vmul.f32 %v5235, %v8439
    %v8467 = vmul.f32 %v5236, %v8439
    %v8468 = vmul.f32 %v5237, %v8439
    %v8469 = vmul.f32 %v5238, %v8439
    %v8470 = vmul.f32 %v5239, %v8439
    %v8471 = vmul.f32 %v5240, %v8439
    %v8472 = vmul.f32 %v5241, %v8439
    %8505 = vrot.lane.b32.xlu0 %v8441, 104
    %v8506 = vpop.permute.xlu0 %8505
    %8507 = vrot.lane.b32.xlu0 %v8442, 104
    %v8508 = vpop.permute.xlu0 %8507
    %8509 = vrot.lane.b32.xlu0 %v8443, 104
    %v8510 = vpop.permute.xlu0 %8509
    %8511 = vrot.lane.b32.xlu0 %v8444, 104
    %v8512 = vpop.permute.xlu0 %8511
    %8513 = vrot.lane.b32.xlu0 %v8445, 104
    %v8514 = vpop.permute.xlu0 %8513
    %8515 = vrot.lane.b32.xlu0 %v8446, 104
    %v8516 = vpop.permute.xlu0 %8515
    %8517 = vrot.lane.b32.xlu0 %v8447, 104
    %v8518 = vpop.permute.xlu0 %8517
    %8519 = vrot.lane.b32.xlu0 %v8448, 104
    %v8520 = vpop.permute.xlu0 %8519
    %8521 = vrot.lane.b32.xlu0 %v8449, 104
    %v8522 = vpop.permute.xlu0 %8521
    %8523 = vrot.lane.b32.xlu0 %v8450, 104
    %v8524 = vpop.permute.xlu0 %8523
    %8525 = vrot.lane.b32.xlu0 %v8451, 104
    %v8526 = vpop.permute.xlu0 %8525
    %8527 = vrot.lane.b32.xlu0 %v8452, 104
    %v8528 = vpop.permute.xlu0 %8527
    %8529 = vrot.lane.b32.xlu0 %v8453, 104
    %v8530 = vpop.permute.xlu0 %8529
    %8531 = vrot.lane.b32.xlu0 %v8454, 104
    %v8532 = vpop.permute.xlu0 %8531
    %8533 = vrot.lane.b32.xlu0 %v8455, 104
    %v8534 = vpop.permute.xlu0 %8533
    %8535 = vrot.lane.b32.xlu0 %v8456, 104
    %v8536 = vpop.permute.xlu0 %8535
    %8537 = vrot.lane.b32.xlu0 %v8457, 104
    %v8538 = vpop.permute.xlu0 %8537
    %8539 = vrot.lane.b32.xlu0 %v8458, 104
    %v8540 = vpop.permute.xlu0 %8539
    %8541 = vrot.lane.b32.xlu0 %v8459, 104
    %v8542 = vpop.permute.xlu0 %8541
    %8543 = vrot.lane.b32.xlu0 %v8460, 104
    %v8544 = vpop.permute.xlu0 %8543
    %8545 = vrot.lane.b32.xlu0 %v8461, 104
    %v8546 = vpop.permute.xlu0 %8545
    %8547 = vrot.lane.b32.xlu0 %v8462, 104
    %v8548 = vpop.permute.xlu0 %8547
    %8549 = vrot.lane.b32.xlu0 %v8463, 104
    %v8550 = vpop.permute.xlu0 %8549
    %8551 = vrot.lane.b32.xlu0 %v8464, 104
    %v8552 = vpop.permute.xlu0 %8551
    %8553 = vrot.lane.b32.xlu0 %v8465, 104
    %v8554 = vpop.permute.xlu0 %8553
    %8555 = vrot.lane.b32.xlu0 %v8466, 104
    %v8556 = vpop.permute.xlu0 %8555
    %8557 = vrot.lane.b32.xlu0 %v8467, 104
    %v8558 = vpop.permute.xlu0 %8557
    %8559 = vrot.lane.b32.xlu0 %v8468, 104
    %v8560 = vpop.permute.xlu0 %8559
    %8561 = vrot.lane.b32.xlu0 %v8469, 104
    %v8562 = vpop.permute.xlu0 %8561
    %8563 = vrot.lane.b32.xlu0 %v8470, 104
    %v8564 = vpop.permute.xlu0 %8563
    %8565 = vrot.lane.b32.xlu0 %v8471, 104
    %v8566 = vpop.permute.xlu0 %8565
    %8567 = vrot.lane.b32.xlu0 %v8472, 104
    %v8568 = vpop.permute.xlu0 %8567
    %v8601 = vsel %vm420, %v8506, 0.0
    %8602 = vadd.xlane.f32.xlu0 %v8601
    %v8603 = vpop.xlane.xlu0 %8602
    %v8604 = vsel %vm420, %v8508, 0.0
    %8605 = vadd.xlane.f32.xlu0 %v8604
    %v8606 = vpop.xlane.xlu0 %8605
    %v8607 = vsel %vm420, %v8510, 0.0
    %8608 = vadd.xlane.f32.xlu0 %v8607
    %v8609 = vpop.xlane.xlu0 %8608
    %v8610 = vsel %vm420, %v8512, 0.0
    %8611 = vadd.xlane.f32.xlu0 %v8610
    %v8612 = vpop.xlane.xlu0 %8611
    %v8613 = vsel %vm420, %v8514, 0.0
    %8614 = vadd.xlane.f32.xlu0 %v8613
    %v8615 = vpop.xlane.xlu0 %8614
    %v8616 = vsel %vm420, %v8516, 0.0
    %8617 = vadd.xlane.f32.xlu0 %v8616
    %v8618 = vpop.xlane.xlu0 %8617
    %v8619 = vsel %vm420, %v8518, 0.0
    %8620 = vadd.xlane.f32.xlu0 %v8619
    %v8621 = vpop.xlane.xlu0 %8620
    %v8622 = vsel %vm420, %v8520, 0.0
    %8623 = vadd.xlane.f32.xlu0 %v8622
    %v8624 = vpop.xlane.xlu0 %8623
    %v8625 = vsel %vm420, %v8522, 0.0
    %8626 = vadd.xlane.f32.xlu0 %v8625
    %v8627 = vpop.xlane.xlu0 %8626
    %v8628 = vsel %vm420, %v8524, 0.0
    %8629 = vadd.xlane.f32.xlu0 %v8628
    %v8630 = vpop.xlane.xlu0 %8629
    %v8631 = vsel %vm420, %v8526, 0.0
    %8632 = vadd.xlane.f32.xlu0 %v8631
    %v8633 = vpop.xlane.xlu0 %8632
    %v8634 = vsel %vm420, %v8528, 0.0
    %8635 = vadd.xlane.f32.xlu0 %v8634
    %v8636 = vpop.xlane.xlu0 %8635
    %v8637 = vsel %vm420, %v8530, 0.0
    %8638 = vadd.xlane.f32.xlu0 %v8637
    %v8639 = vpop.xlane.xlu0 %8638
    %v8640 = vsel %vm420, %v8532, 0.0
    %8641 = vadd.xlane.f32.xlu0 %v8640
    %v8642 = vpop.xlane.xlu0 %8641
    %v8643 = vsel %vm420, %v8534, 0.0
    %8644 = vadd.xlane.f32.xlu0 %v8643
    %v8645 = vpop.xlane.xlu0 %8644
    %v8646 = vsel %vm420, %v8536, 0.0
    %8647 = vadd.xlane.f32.xlu0 %v8646
    %v8648 = vpop.xlane.xlu0 %8647
    %v8649 = vsel %vm420, %v8538, 0.0
    %8650 = vadd.xlane.f32.xlu0 %v8649
    %v8651 = vpop.xlane.xlu0 %8650
    %v8652 = vsel %vm420, %v8540, 0.0
    %8653 = vadd.xlane.f32.xlu0 %v8652
    %v8654 = vpop.xlane.xlu0 %8653
    %v8655 = vsel %vm420, %v8542, 0.0
    %8656 = vadd.xlane.f32.xlu0 %v8655
    %v8657 = vpop.xlane.xlu0 %8656
    %v8658 = vsel %vm420, %v8544, 0.0
    %8659 = vadd.xlane.f32.xlu0 %v8658
    %v8660 = vpop.xlane.xlu0 %8659
    %v8661 = vsel %vm420, %v8546, 0.0
    %8662 = vadd.xlane.f32.xlu0 %v8661
    %v8663 = vpop.xlane.xlu0 %8662
    %v8664 = vsel %vm420, %v8548, 0.0
    %8665 = vadd.xlane.f32.xlu0 %v8664
    %v8666 = vpop.xlane.xlu0 %8665
    %v8667 = vsel %vm420, %v8550, 0.0
    %8668 = vadd.xlane.f32.xlu0 %v8667
    %v8669 = vpop.xlane.xlu0 %8668
    %v8670 = vsel %vm420, %v8552, 0.0
    %8671 = vadd.xlane.f32.xlu0 %v8670
    %v8672 = vpop.xlane.xlu0 %8671
    %v8673 = vsel %vm420, %v8554, 0.0
    %8674 = vadd.xlane.f32.xlu0 %v8673
    %v8675 = vpop.xlane.xlu0 %8674
    %v8676 = vsel %vm420, %v8556, 0.0
    %8677 = vadd.xlane.f32.xlu0 %v8676
    %v8678 = vpop.xlane.xlu0 %8677
    %v8679 = vsel %vm420, %v8558, 0.0
    %8680 = vadd.xlane.f32.xlu0 %v8679
    %v8681 = vpop.xlane.xlu0 %8680
    %v8682 = vsel %vm420, %v8560, 0.0
    %8683 = vadd.xlane.f32.xlu0 %v8682
    %v8684 = vpop.xlane.xlu0 %8683
    %v8685 = vsel %vm420, %v8562, 0.0
    %8686 = vadd.xlane.f32.xlu0 %v8685
    %v8687 = vpop.xlane.xlu0 %8686
    %v8688 = vsel %vm420, %v8564, 0.0
    %8689 = vadd.xlane.f32.xlu0 %v8688
    %v8690 = vpop.xlane.xlu0 %8689
    %v8691 = vsel %vm420, %v8566, 0.0
    %8692 = vadd.xlane.f32.xlu0 %v8691
    %v8693 = vpop.xlane.xlu0 %8692
    %v8694 = vsel %vm420, %v8568, 0.0
    %8695 = vadd.xlane.f32.xlu0 %v8694
    %v8696 = vpop.xlane.xlu0 %8695
    %v8697 = vadd.f32 %v8603, %v525
    %v8698 = vadd.f32 %v8606, %v531
    %v8699 = vadd.f32 %v8609, %v538
    %v8700 = vadd.f32 %v8612, %v544
    %v8701 = vadd.f32 %v8615, %v551
    %v8702 = vadd.f32 %v8618, %v557
    %v8703 = vadd.f32 %v8621, %v564
    %v8704 = vadd.f32 %v8624, %v570
    %v8705 = vadd.f32 %v8627, %v577
    %v8706 = vadd.f32 %v8630, %v583
    %v8707 = vadd.f32 %v8633, %v590
    %v8708 = vadd.f32 %v8636, %v596
    %v8709 = vadd.f32 %v8639, %v603
    %v8710 = vadd.f32 %v8642, %v609
    %v8711 = vadd.f32 %v8645, %v616
    %v8712 = vadd.f32 %v8648, %v622
    %v8713 = vadd.f32 %v8651, %v629
    %v8714 = vadd.f32 %v8654, %v635
    %v8715 = vadd.f32 %v8657, %v642
    %v8716 = vadd.f32 %v8660, %v648
    %v8717 = vadd.f32 %v8663, %v655
    %v8718 = vadd.f32 %v8666, %v661
    %v8719 = vadd.f32 %v8669, %v668
    %v8720 = vadd.f32 %v8672, %v674
    %v8721 = vadd.f32 %v8675, %v681
    %v8722 = vadd.f32 %v8678, %v687
    %v8723 = vadd.f32 %v8681, %v694
    %v8724 = vadd.f32 %v8684, %v700
    %v8725 = vadd.f32 %v8687, %v707
    %v8726 = vadd.f32 %v8690, %v713
    %v8727 = vadd.f32 %v8693, %v720
    %v8728 = vadd.f32 %v8696, %v726
    %8761 = vset.pattern.permute.xlu0 0
    %8762 = vperm.xlu0 %8761, %v8697
    %v8763 = vpop.permute.xlu0 %8762
    %8764 = vset.pattern.permute.xlu0 0
    %8765 = vperm.xlu0 %8764, %v8698
    %v8766 = vpop.permute.xlu0 %8765
    %8767 = vset.pattern.permute.xlu0 0
    %8768 = vperm.xlu0 %8767, %v8699
    %v8769 = vpop.permute.xlu0 %8768
    %8770 = vset.pattern.permute.xlu0 0
    %8771 = vperm.xlu0 %8770, %v8700
    %v8772 = vpop.permute.xlu0 %8771
    %8773 = vset.pattern.permute.xlu0 0
    %8774 = vperm.xlu0 %8773, %v8701
    %v8775 = vpop.permute.xlu0 %8774
    %8776 = vset.pattern.permute.xlu0 0
    %8777 = vperm.xlu0 %8776, %v8702
    %v8778 = vpop.permute.xlu0 %8777
    %8779 = vset.pattern.permute.xlu0 0
    %8780 = vperm.xlu0 %8779, %v8703
    %v8781 = vpop.permute.xlu0 %8780
    %8782 = vset.pattern.permute.xlu0 0
    %8783 = vperm.xlu0 %8782, %v8704
    %v8784 = vpop.permute.xlu0 %8783
    %8785 = vset.pattern.permute.xlu0 0
    %8786 = vperm.xlu0 %8785, %v8705
    %v8787 = vpop.permute.xlu0 %8786
    %8788 = vset.pattern.permute.xlu0 0
    %8789 = vperm.xlu0 %8788, %v8706
    %v8790 = vpop.permute.xlu0 %8789
    %8791 = vset.pattern.permute.xlu0 0
    %8792 = vperm.xlu0 %8791, %v8707
    %v8793 = vpop.permute.xlu0 %8792
    %8794 = vset.pattern.permute.xlu0 0
    %8795 = vperm.xlu0 %8794, %v8708
    %v8796 = vpop.permute.xlu0 %8795
    %8797 = vset.pattern.permute.xlu0 0
    %8798 = vperm.xlu0 %8797, %v8709
    %v8799 = vpop.permute.xlu0 %8798
    %8800 = vset.pattern.permute.xlu0 0
    %8801 = vperm.xlu0 %8800, %v8710
    %v8802 = vpop.permute.xlu0 %8801
    %8803 = vset.pattern.permute.xlu0 0
    %8804 = vperm.xlu0 %8803, %v8711
    %v8805 = vpop.permute.xlu0 %8804
    %8806 = vset.pattern.permute.xlu0 0
    %8807 = vperm.xlu0 %8806, %v8712
    %v8808 = vpop.permute.xlu0 %8807
    %8809 = vset.pattern.permute.xlu0 0
    %8810 = vperm.xlu0 %8809, %v8713
    %v8811 = vpop.permute.xlu0 %8810
    %8812 = vset.pattern.permute.xlu0 0
    %8813 = vperm.xlu0 %8812, %v8714
    %v8814 = vpop.permute.xlu0 %8813
    %8815 = vset.pattern.permute.xlu0 0
    %8816 = vperm.xlu0 %8815, %v8715
    %v8817 = vpop.permute.xlu0 %8816
    %8818 = vset.pattern.permute.xlu0 0
    %8819 = vperm.xlu0 %8818, %v8716
    %v8820 = vpop.permute.xlu0 %8819
    %8821 = vset.pattern.permute.xlu0 0
    %8822 = vperm.xlu0 %8821, %v8717
    %v8823 = vpop.permute.xlu0 %8822
    %8824 = vset.pattern.permute.xlu0 0
    %8825 = vperm.xlu0 %8824, %v8718
    %v8826 = vpop.permute.xlu0 %8825
    %8827 = vset.pattern.permute.xlu0 0
    %8828 = vperm.xlu0 %8827, %v8719
    %v8829 = vpop.permute.xlu0 %8828
    %8830 = vset.pattern.permute.xlu0 0
    %8831 = vperm.xlu0 %8830, %v8720
    %v8832 = vpop.permute.xlu0 %8831
    %8833 = vset.pattern.permute.xlu0 0
    %8834 = vperm.xlu0 %8833, %v8721
    %v8835 = vpop.permute.xlu0 %8834
    %8836 = vset.pattern.permute.xlu0 0
    %8837 = vperm.xlu0 %8836, %v8722
    %v8838 = vpop.permute.xlu0 %8837
    %8839 = vset.pattern.permute.xlu0 0
    %8840 = vperm.xlu0 %8839, %v8723
    %v8841 = vpop.permute.xlu0 %8840
    %8842 = vset.pattern.permute.xlu0 0
    %8843 = vperm.xlu0 %8842, %v8724
    %v8844 = vpop.permute.xlu0 %8843
    %8845 = vset.pattern.permute.xlu0 0
    %8846 = vperm.xlu0 %8845, %v8725
    %v8847 = vpop.permute.xlu0 %8846
    %8848 = vset.pattern.permute.xlu0 0
    %8849 = vperm.xlu0 %8848, %v8726
    %v8850 = vpop.permute.xlu0 %8849
    %8851 = vset.pattern.permute.xlu0 0
    %8852 = vperm.xlu0 %8851, %v8727
    %v8853 = vpop.permute.xlu0 %8852
    %8854 = vset.pattern.permute.xlu0 0
    %8855 = vperm.xlu0 %8854, %v8728
    %v8856 = vpop.permute.xlu0 %8855
    %v8857 = vperm.slane %v8763, %v920
    %v8858 = vperm.slane %v8766, %v922
    %v8859 = vsel %vm924, %v8858, %v8857
    %v8860 = vperm.slane %v8769, %v920
    %v8861 = vperm.slane %v8772, %v922
    %v8862 = vsel %vm924, %v8861, %v8860
    %v8863 = vperm.slane %v8775, %v920
    %v8864 = vperm.slane %v8778, %v922
    %v8865 = vsel %vm924, %v8864, %v8863
    %v8866 = vperm.slane %v8781, %v920
    %v8867 = vperm.slane %v8784, %v922
    %v8868 = vsel %vm924, %v8867, %v8866
    %v8869 = vperm.slane %v8787, %v920
    %v8870 = vperm.slane %v8790, %v922
    %v8871 = vsel %vm924, %v8870, %v8869
    %v8872 = vperm.slane %v8793, %v920
    %v8873 = vperm.slane %v8796, %v922
    %v8874 = vsel %vm924, %v8873, %v8872
    %v8875 = vperm.slane %v8799, %v920
    %v8876 = vperm.slane %v8802, %v922
    %v8877 = vsel %vm924, %v8876, %v8875
    %v8878 = vperm.slane %v8805, %v920
    %v8879 = vperm.slane %v8808, %v922
    %v8880 = vsel %vm924, %v8879, %v8878
    %v8881 = vperm.slane %v8811, %v920
    %v8882 = vperm.slane %v8814, %v922
    %v8883 = vsel %vm924, %v8882, %v8881
    %v8884 = vperm.slane %v8817, %v920
    %v8885 = vperm.slane %v8820, %v922
    %v8886 = vsel %vm924, %v8885, %v8884
    %v8887 = vperm.slane %v8823, %v920
    %v8888 = vperm.slane %v8826, %v922
    %v8889 = vsel %vm924, %v8888, %v8887
    %v8890 = vperm.slane %v8829, %v920
    %v8891 = vperm.slane %v8832, %v922
    %v8892 = vsel %vm924, %v8891, %v8890
    %v8893 = vperm.slane %v8835, %v920
    %v8894 = vperm.slane %v8838, %v922
    %v8895 = vsel %vm924, %v8894, %v8893
    %v8896 = vperm.slane %v8841, %v920
    %v8897 = vperm.slane %v8844, %v922
    %v8898 = vsel %vm924, %v8897, %v8896
    %v8899 = vperm.slane %v8847, %v920
    %v8900 = vperm.slane %v8850, %v922
    %v8901 = vsel %vm924, %v8900, %v8899
    %v8902 = vperm.slane %v8853, %v920
    %v8903 = vperm.slane %v8856, %v922
    %v8904 = vsel %vm924, %v8903, %v8902
    %v8905 = vsel %vm971, %v8862, %v8859
    %v8906 = vsel %vm973, %v8865, %v8905
    %v8907 = vsel %vm975, %v8868, %v8906
    %v8908 = vsel %vm977, %v8871, %v8907
    %v8909 = vsel %vm979, %v8874, %v8908
    %v8910 = vsel %vm981, %v8877, %v8909
    %v8911 = vsel %vm983, %v8880, %v8910
    %v8912 = vsel %vm971, %v8886, %v8883
    %v8913 = vsel %vm973, %v8889, %v8912
    %v8914 = vsel %vm975, %v8892, %v8913
    %v8915 = vsel %vm977, %v8895, %v8914
    %v8916 = vsel %vm979, %v8898, %v8915
    %v8917 = vsel %vm981, %v8901, %v8916
    %v8918 = vsel %vm983, %v8904, %v8917
    %v8921 = vsel %vm151, %v8911, -inf
    %8922 = vmax.xlane.f32.xlu0 %v8921
    %v8923 = vpop.xlane.xlu0 %8922
    %v8924 = vsel %vm151, %v8918, -inf
    %8925 = vmax.xlane.f32.xlu0 %v8924
    %v8926 = vpop.xlane.xlu0 %8925
    %v8929 = vperm.slane %v8923, 0
    %v8930 = vperm.slane %v8923, 1
    %v8931 = vperm.slane %v8923, 2
    %v8932 = vperm.slane %v8923, 3
    %v8933 = vperm.slane %v8923, 4
    %v8934 = vperm.slane %v8923, 5
    %v8935 = vperm.slane %v8923, 6
    %v8936 = vperm.slane %v8923, 7
    %v8937 = vperm.slane %v8926, 0
    %v8938 = vperm.slane %v8926, 1
    %v8939 = vperm.slane %v8926, 2
    %v8940 = vperm.slane %v8926, 3
    %v8941 = vperm.slane %v8926, 4
    %v8942 = vperm.slane %v8926, 5
    %v8943 = vperm.slane %v8926, 6
    %v8944 = vperm.slane %v8926, 7
    %v8961 = vsub.f32 %v8697, %v8929
    %v8962 = vsub.f32 %v8698, %v8929
    %v8963 = vsub.f32 %v8699, %v8930
    %v8964 = vsub.f32 %v8700, %v8930
    %v8965 = vsub.f32 %v8701, %v8931
    %v8966 = vsub.f32 %v8702, %v8931
    %v8967 = vsub.f32 %v8703, %v8932
    %v8968 = vsub.f32 %v8704, %v8932
    %v8969 = vsub.f32 %v8705, %v8933
    %v8970 = vsub.f32 %v8706, %v8933
    %v8971 = vsub.f32 %v8707, %v8934
    %v8972 = vsub.f32 %v8708, %v8934
    %v8973 = vsub.f32 %v8709, %v8935
    %v8974 = vsub.f32 %v8710, %v8935
    %v8975 = vsub.f32 %v8711, %v8936
    %v8976 = vsub.f32 %v8712, %v8936
    %v8977 = vsub.f32 %v8713, %v8937
    %v8978 = vsub.f32 %v8714, %v8937
    %v8979 = vsub.f32 %v8715, %v8938
    %v8980 = vsub.f32 %v8716, %v8938
    %v8981 = vsub.f32 %v8717, %v8939
    %v8982 = vsub.f32 %v8718, %v8939
    %v8983 = vsub.f32 %v8719, %v8940
    %v8984 = vsub.f32 %v8720, %v8940
    %v8985 = vsub.f32 %v8721, %v8941
    %v8986 = vsub.f32 %v8722, %v8941
    %v8987 = vsub.f32 %v8723, %v8942
    %v8988 = vsub.f32 %v8724, %v8942
    %v8989 = vsub.f32 %v8725, %v8943
    %v8990 = vsub.f32 %v8726, %v8943
    %v8991 = vsub.f32 %v8727, %v8944
    %v8992 = vsub.f32 %v8728, %v8944
    %v8993 = vmul.f32 %v8961, 1.442695
    %v8994 = vpow.pop %v8993
    %v8995 = vmul.f32 %v8962, 1.442695
    %v8996 = vpow.pop %v8995
    %v8997 = vmul.f32 %v8963, 1.442695
    %v8998 = vpow.pop %v8997
    %v8999 = vmul.f32 %v8964, 1.442695
    %v9000 = vpow.pop %v8999
    %v9001 = vmul.f32 %v8965, 1.442695
    %v9002 = vpow.pop %v9001
    %v9003 = vmul.f32 %v8966, 1.442695
    %v9004 = vpow.pop %v9003
    %v9005 = vmul.f32 %v8967, 1.442695
    %v9006 = vpow.pop %v9005
    %v9007 = vmul.f32 %v8968, 1.442695
    %v9008 = vpow.pop %v9007
    %v9009 = vmul.f32 %v8969, 1.442695
    %v9010 = vpow.pop %v9009
    %v9011 = vmul.f32 %v8970, 1.442695
    %v9012 = vpow.pop %v9011
    %v9013 = vmul.f32 %v8971, 1.442695
    %v9014 = vpow.pop %v9013
    %v9015 = vmul.f32 %v8972, 1.442695
    %v9016 = vpow.pop %v9015
    %v9017 = vmul.f32 %v8973, 1.442695
    %v9018 = vpow.pop %v9017
    %v9019 = vmul.f32 %v8974, 1.442695
    %v9020 = vpow.pop %v9019
    %v9021 = vmul.f32 %v8975, 1.442695
    %v9022 = vpow.pop %v9021
    %v9023 = vmul.f32 %v8976, 1.442695
    %v9024 = vpow.pop %v9023
    %v9025 = vmul.f32 %v8977, 1.442695
    %v9026 = vpow.pop %v9025
    %v9027 = vmul.f32 %v8978, 1.442695
    %v9028 = vpow.pop %v9027
    %v9029 = vmul.f32 %v8979, 1.442695
    %v9030 = vpow.pop %v9029
    %v9031 = vmul.f32 %v8980, 1.442695
    %v9032 = vpow.pop %v9031
    %v9033 = vmul.f32 %v8981, 1.442695
    %v9034 = vpow.pop %v9033
    %v9035 = vmul.f32 %v8982, 1.442695
    %v9036 = vpow.pop %v9035
    %v9037 = vmul.f32 %v8983, 1.442695
    %v9038 = vpow.pop %v9037
    %v9039 = vmul.f32 %v8984, 1.442695
    %v9040 = vpow.pop %v9039
    %v9041 = vmul.f32 %v8985, 1.442695
    %v9042 = vpow.pop %v9041
    %v9043 = vmul.f32 %v8986, 1.442695
    %v9044 = vpow.pop %v9043
    %v9045 = vmul.f32 %v8987, 1.442695
    %v9046 = vpow.pop %v9045
    %v9047 = vmul.f32 %v8988, 1.442695
    %v9048 = vpow.pop %v9047
    %v9049 = vmul.f32 %v8989, 1.442695
    %v9050 = vpow.pop %v9049
    %v9051 = vmul.f32 %v8990, 1.442695
    %v9052 = vpow.pop %v9051
    %v9053 = vmul.f32 %v8991, 1.442695
    %v9054 = vpow.pop %v9053
    %v9055 = vmul.f32 %v8992, 1.442695
    %v9056 = vpow.pop %v9055
    %9089 = vset.pattern.permute.xlu0 0
    %9090 = vperm.xlu0 %9089, %v8994
    %v9091 = vpop.permute.xlu0 %9090
    %9092 = vset.pattern.permute.xlu0 0
    %9093 = vperm.xlu0 %9092, %v8996
    %v9094 = vpop.permute.xlu0 %9093
    %9095 = vset.pattern.permute.xlu0 0
    %9096 = vperm.xlu0 %9095, %v8998
    %v9097 = vpop.permute.xlu0 %9096
    %9098 = vset.pattern.permute.xlu0 0
    %9099 = vperm.xlu0 %9098, %v9000
    %v9100 = vpop.permute.xlu0 %9099
    %9101 = vset.pattern.permute.xlu0 0
    %9102 = vperm.xlu0 %9101, %v9002
    %v9103 = vpop.permute.xlu0 %9102
    %9104 = vset.pattern.permute.xlu0 0
    %9105 = vperm.xlu0 %9104, %v9004
    %v9106 = vpop.permute.xlu0 %9105
    %9107 = vset.pattern.permute.xlu0 0
    %9108 = vperm.xlu0 %9107, %v9006
    %v9109 = vpop.permute.xlu0 %9108
    %9110 = vset.pattern.permute.xlu0 0
    %9111 = vperm.xlu0 %9110, %v9008
    %v9112 = vpop.permute.xlu0 %9111
    %9113 = vset.pattern.permute.xlu0 0
    %9114 = vperm.xlu0 %9113, %v9010
    %v9115 = vpop.permute.xlu0 %9114
    %9116 = vset.pattern.permute.xlu0 0
    %9117 = vperm.xlu0 %9116, %v9012
    %v9118 = vpop.permute.xlu0 %9117
    %9119 = vset.pattern.permute.xlu0 0
    %9120 = vperm.xlu0 %9119, %v9014
    %v9121 = vpop.permute.xlu0 %9120
    %9122 = vset.pattern.permute.xlu0 0
    %9123 = vperm.xlu0 %9122, %v9016
    %v9124 = vpop.permute.xlu0 %9123
    %9125 = vset.pattern.permute.xlu0 0
    %9126 = vperm.xlu0 %9125, %v9018
    %v9127 = vpop.permute.xlu0 %9126
    %9128 = vset.pattern.permute.xlu0 0
    %9129 = vperm.xlu0 %9128, %v9020
    %v9130 = vpop.permute.xlu0 %9129
    %9131 = vset.pattern.permute.xlu0 0
    %9132 = vperm.xlu0 %9131, %v9022
    %v9133 = vpop.permute.xlu0 %9132
    %9134 = vset.pattern.permute.xlu0 0
    %9135 = vperm.xlu0 %9134, %v9024
    %v9136 = vpop.permute.xlu0 %9135
    %9137 = vset.pattern.permute.xlu0 0
    %9138 = vperm.xlu0 %9137, %v9026
    %v9139 = vpop.permute.xlu0 %9138
    %9140 = vset.pattern.permute.xlu0 0
    %9141 = vperm.xlu0 %9140, %v9028
    %v9142 = vpop.permute.xlu0 %9141
    %9143 = vset.pattern.permute.xlu0 0
    %9144 = vperm.xlu0 %9143, %v9030
    %v9145 = vpop.permute.xlu0 %9144
    %9146 = vset.pattern.permute.xlu0 0
    %9147 = vperm.xlu0 %9146, %v9032
    %v9148 = vpop.permute.xlu0 %9147
    %9149 = vset.pattern.permute.xlu0 0
    %9150 = vperm.xlu0 %9149, %v9034
    %v9151 = vpop.permute.xlu0 %9150
    %9152 = vset.pattern.permute.xlu0 0
    %9153 = vperm.xlu0 %9152, %v9036
    %v9154 = vpop.permute.xlu0 %9153
    %9155 = vset.pattern.permute.xlu0 0
    %9156 = vperm.xlu0 %9155, %v9038
    %v9157 = vpop.permute.xlu0 %9156
    %9158 = vset.pattern.permute.xlu0 0
    %9159 = vperm.xlu0 %9158, %v9040
    %v9160 = vpop.permute.xlu0 %9159
    %9161 = vset.pattern.permute.xlu0 0
    %9162 = vperm.xlu0 %9161, %v9042
    %v9163 = vpop.permute.xlu0 %9162
    %9164 = vset.pattern.permute.xlu0 0
    %9165 = vperm.xlu0 %9164, %v9044
    %v9166 = vpop.permute.xlu0 %9165
    %9167 = vset.pattern.permute.xlu0 0
    %9168 = vperm.xlu0 %9167, %v9046
    %v9169 = vpop.permute.xlu0 %9168
    %9170 = vset.pattern.permute.xlu0 0
    %9171 = vperm.xlu0 %9170, %v9048
    %v9172 = vpop.permute.xlu0 %9171
    %9173 = vset.pattern.permute.xlu0 0
    %9174 = vperm.xlu0 %9173, %v9050
    %v9175 = vpop.permute.xlu0 %9174
    %9176 = vset.pattern.permute.xlu0 0
    %9177 = vperm.xlu0 %9176, %v9052
    %v9178 = vpop.permute.xlu0 %9177
    %9179 = vset.pattern.permute.xlu0 0
    %9180 = vperm.xlu0 %9179, %v9054
    %v9181 = vpop.permute.xlu0 %9180
    %9182 = vset.pattern.permute.xlu0 0
    %9183 = vperm.xlu0 %9182, %v9056
    %v9184 = vpop.permute.xlu0 %9183
    %v9185 = vperm.slane %v9091, %v920
    %v9186 = vperm.slane %v9094, %v922
    %v9187 = vsel %vm924, %v9186, %v9185
    %v9188 = vperm.slane %v9097, %v920
    %v9189 = vperm.slane %v9100, %v922
    %v9190 = vsel %vm924, %v9189, %v9188
    %v9191 = vperm.slane %v9103, %v920
    %v9192 = vperm.slane %v9106, %v922
    %v9193 = vsel %vm924, %v9192, %v9191
    %v9194 = vperm.slane %v9109, %v920
    %v9195 = vperm.slane %v9112, %v922
    %v9196 = vsel %vm924, %v9195, %v9194
    %v9197 = vperm.slane %v9115, %v920
    %v9198 = vperm.slane %v9118, %v922
    %v9199 = vsel %vm924, %v9198, %v9197
    %v9200 = vperm.slane %v9121, %v920
    %v9201 = vperm.slane %v9124, %v922
    %v9202 = vsel %vm924, %v9201, %v9200
    %v9203 = vperm.slane %v9127, %v920
    %v9204 = vperm.slane %v9130, %v922
    %v9205 = vsel %vm924, %v9204, %v9203
    %v9206 = vperm.slane %v9133, %v920
    %v9207 = vperm.slane %v9136, %v922
    %v9208 = vsel %vm924, %v9207, %v9206
    %v9209 = vperm.slane %v9139, %v920
    %v9210 = vperm.slane %v9142, %v922
    %v9211 = vsel %vm924, %v9210, %v9209
    %v9212 = vperm.slane %v9145, %v920
    %v9213 = vperm.slane %v9148, %v922
    %v9214 = vsel %vm924, %v9213, %v9212
    %v9215 = vperm.slane %v9151, %v920
    %v9216 = vperm.slane %v9154, %v922
    %v9217 = vsel %vm924, %v9216, %v9215
    %v9218 = vperm.slane %v9157, %v920
    %v9219 = vperm.slane %v9160, %v922
    %v9220 = vsel %vm924, %v9219, %v9218
    %v9221 = vperm.slane %v9163, %v920
    %v9222 = vperm.slane %v9166, %v922
    %v9223 = vsel %vm924, %v9222, %v9221
    %v9224 = vperm.slane %v9169, %v920
    %v9225 = vperm.slane %v9172, %v922
    %v9226 = vsel %vm924, %v9225, %v9224
    %v9227 = vperm.slane %v9175, %v920
    %v9228 = vperm.slane %v9178, %v922
    %v9229 = vsel %vm924, %v9228, %v9227
    %v9230 = vperm.slane %v9181, %v920
    %v9231 = vperm.slane %v9184, %v922
    %v9232 = vsel %vm924, %v9231, %v9230
    %v9233 = vsel %vm971, %v9190, %v9187
    %v9234 = vsel %vm973, %v9193, %v9233
    %v9235 = vsel %vm975, %v9196, %v9234
    %v9236 = vsel %vm977, %v9199, %v9235
    %v9237 = vsel %vm979, %v9202, %v9236
    %v9238 = vsel %vm981, %v9205, %v9237
    %v9239 = vsel %vm983, %v9208, %v9238
    %v9240 = vsel %vm971, %v9214, %v9211
    %v9241 = vsel %vm973, %v9217, %v9240
    %v9242 = vsel %vm975, %v9220, %v9241
    %v9243 = vsel %vm977, %v9223, %v9242
    %v9244 = vsel %vm979, %v9226, %v9243
    %v9245 = vsel %vm981, %v9229, %v9244
    %v9246 = vsel %vm983, %v9232, %v9245
    %v9249 = vsel %vm151, %v9239, 0.0
    %9250 = vadd.xlane.f32.xlu0 %v9249
    %v9251 = vpop.xlane.xlu0 %9250
    %v9252 = vsel %vm151, %v9246, 0.0
    %9253 = vadd.xlane.f32.xlu0 %v9252
    %v9254 = vpop.xlane.xlu0 %9253
    %v9255 = vrcp.pop %v9251
    %v9256 = vrcp.pop %v9254
    %v9259 = vperm.slane %v9255, 0
    %v9260 = vperm.slane %v9255, 1
    %v9261 = vperm.slane %v9255, 2
    %v9262 = vperm.slane %v9255, 3
    %v9263 = vperm.slane %v9255, 4
    %v9264 = vperm.slane %v9255, 5
    %v9265 = vperm.slane %v9255, 6
    %v9266 = vperm.slane %v9255, 7
    %v9267 = vperm.slane %v9256, 0
    %v9268 = vperm.slane %v9256, 1
    %v9269 = vperm.slane %v9256, 2
    %v9270 = vperm.slane %v9256, 3
    %v9271 = vperm.slane %v9256, 4
    %v9272 = vperm.slane %v9256, 5
    %v9273 = vperm.slane %v9256, 6
    %v9274 = vperm.slane %v9256, 7
    %v9291 = vmul.f32 %v8994, %v9259
    %v9292 = vmul.f32 %v8996, %v9259
    %v9293 = vmul.f32 %v8998, %v9260
    %v9294 = vmul.f32 %v9000, %v9260
    %v9295 = vmul.f32 %v9002, %v9261
    %v9296 = vmul.f32 %v9004, %v9261
    %v9297 = vmul.f32 %v9006, %v9262
    %v9298 = vmul.f32 %v9008, %v9262
    %v9299 = vmul.f32 %v9010, %v9263
    %v9300 = vmul.f32 %v9012, %v9263
    %v9301 = vmul.f32 %v9014, %v9264
    %v9302 = vmul.f32 %v9016, %v9264
    %v9303 = vmul.f32 %v9018, %v9265
    %v9304 = vmul.f32 %v9020, %v9265
    %v9305 = vmul.f32 %v9022, %v9266
    %v9306 = vmul.f32 %v9024, %v9266
    %v9307 = vmul.f32 %v9026, %v9267
    %v9308 = vmul.f32 %v9028, %v9267
    %v9309 = vmul.f32 %v9030, %v9268
    %v9310 = vmul.f32 %v9032, %v9268
    %v9311 = vmul.f32 %v9034, %v9269
    %v9312 = vmul.f32 %v9036, %v9269
    %v9313 = vmul.f32 %v9038, %v9270
    %v9314 = vmul.f32 %v9040, %v9270
    %v9315 = vmul.f32 %v9042, %v9271
    %v9316 = vmul.f32 %v9044, %v9271
    %v9317 = vmul.f32 %v9046, %v9272
    %v9318 = vmul.f32 %v9048, %v9272
    %v9319 = vmul.f32 %v9050, %v9273
    %v9320 = vmul.f32 %v9052, %v9273
    %v9321 = vmul.f32 %v9054, %v9274
    %v9322 = vmul.f32 %v9056, %v9274
    %9355 = vset.pattern.permute.xlu0 0
    %9356 = vperm.xlu0 %9355, %v9291
    %v9357 = vpop.permute.xlu0 %9356
    %9358 = vset.pattern.permute.xlu0 0
    %9359 = vperm.xlu0 %9358, %v9292
    %v9360 = vpop.permute.xlu0 %9359
    %9361 = vset.pattern.permute.xlu0 0
    %9362 = vperm.xlu0 %9361, %v9293
    %v9363 = vpop.permute.xlu0 %9362
    %9364 = vset.pattern.permute.xlu0 0
    %9365 = vperm.xlu0 %9364, %v9294
    %v9366 = vpop.permute.xlu0 %9365
    %9367 = vset.pattern.permute.xlu0 0
    %9368 = vperm.xlu0 %9367, %v9295
    %v9369 = vpop.permute.xlu0 %9368
    %9370 = vset.pattern.permute.xlu0 0
    %9371 = vperm.xlu0 %9370, %v9296
    %v9372 = vpop.permute.xlu0 %9371
    %9373 = vset.pattern.permute.xlu0 0
    %9374 = vperm.xlu0 %9373, %v9297
    %v9375 = vpop.permute.xlu0 %9374
    %9376 = vset.pattern.permute.xlu0 0
    %9377 = vperm.xlu0 %9376, %v9298
    %v9378 = vpop.permute.xlu0 %9377
    %9379 = vset.pattern.permute.xlu0 0
    %9380 = vperm.xlu0 %9379, %v9299
    %v9381 = vpop.permute.xlu0 %9380
    %9382 = vset.pattern.permute.xlu0 0
    %9383 = vperm.xlu0 %9382, %v9300
    %v9384 = vpop.permute.xlu0 %9383
    %9385 = vset.pattern.permute.xlu0 0
    %9386 = vperm.xlu0 %9385, %v9301
    %v9387 = vpop.permute.xlu0 %9386
    %9388 = vset.pattern.permute.xlu0 0
    %9389 = vperm.xlu0 %9388, %v9302
    %v9390 = vpop.permute.xlu0 %9389
    %9391 = vset.pattern.permute.xlu0 0
    %9392 = vperm.xlu0 %9391, %v9303
    %v9393 = vpop.permute.xlu0 %9392
    %9394 = vset.pattern.permute.xlu0 0
    %9395 = vperm.xlu0 %9394, %v9304
    %v9396 = vpop.permute.xlu0 %9395
    %9397 = vset.pattern.permute.xlu0 0
    %9398 = vperm.xlu0 %9397, %v9305
    %v9399 = vpop.permute.xlu0 %9398
    %9400 = vset.pattern.permute.xlu0 0
    %9401 = vperm.xlu0 %9400, %v9306
    %v9402 = vpop.permute.xlu0 %9401
    %9403 = vset.pattern.permute.xlu0 0
    %9404 = vperm.xlu0 %9403, %v9307
    %v9405 = vpop.permute.xlu0 %9404
    %9406 = vset.pattern.permute.xlu0 0
    %9407 = vperm.xlu0 %9406, %v9308
    %v9408 = vpop.permute.xlu0 %9407
    %9409 = vset.pattern.permute.xlu0 0
    %9410 = vperm.xlu0 %9409, %v9309
    %v9411 = vpop.permute.xlu0 %9410
    %9412 = vset.pattern.permute.xlu0 0
    %9413 = vperm.xlu0 %9412, %v9310
    %v9414 = vpop.permute.xlu0 %9413
    %9415 = vset.pattern.permute.xlu0 0
    %9416 = vperm.xlu0 %9415, %v9311
    %v9417 = vpop.permute.xlu0 %9416
    %9418 = vset.pattern.permute.xlu0 0
    %9419 = vperm.xlu0 %9418, %v9312
    %v9420 = vpop.permute.xlu0 %9419
    %9421 = vset.pattern.permute.xlu0 0
    %9422 = vperm.xlu0 %9421, %v9313
    %v9423 = vpop.permute.xlu0 %9422
    %9424 = vset.pattern.permute.xlu0 0
    %9425 = vperm.xlu0 %9424, %v9314
    %v9426 = vpop.permute.xlu0 %9425
    %9427 = vset.pattern.permute.xlu0 0
    %9428 = vperm.xlu0 %9427, %v9315
    %v9429 = vpop.permute.xlu0 %9428
    %9430 = vset.pattern.permute.xlu0 0
    %9431 = vperm.xlu0 %9430, %v9316
    %v9432 = vpop.permute.xlu0 %9431
    %9433 = vset.pattern.permute.xlu0 0
    %9434 = vperm.xlu0 %9433, %v9317
    %v9435 = vpop.permute.xlu0 %9434
    %9436 = vset.pattern.permute.xlu0 0
    %9437 = vperm.xlu0 %9436, %v9318
    %v9438 = vpop.permute.xlu0 %9437
    %9439 = vset.pattern.permute.xlu0 0
    %9440 = vperm.xlu0 %9439, %v9319
    %v9441 = vpop.permute.xlu0 %9440
    %9442 = vset.pattern.permute.xlu0 0
    %9443 = vperm.xlu0 %9442, %v9320
    %v9444 = vpop.permute.xlu0 %9443
    %9445 = vset.pattern.permute.xlu0 0
    %9446 = vperm.xlu0 %9445, %v9321
    %v9447 = vpop.permute.xlu0 %9446
    %9448 = vset.pattern.permute.xlu0 0
    %9449 = vperm.xlu0 %9448, %v9322
    %v9450 = vpop.permute.xlu0 %9449
    %v9451 = vperm.slane %v9357, %v920
    %v9452 = vperm.slane %v9360, %v922
    %v9453 = vsel %vm924, %v9452, %v9451
    %v9454 = vperm.slane %v9363, %v920
    %v9455 = vperm.slane %v9366, %v922
    %v9456 = vsel %vm924, %v9455, %v9454
    %v9457 = vperm.slane %v9369, %v920
    %v9458 = vperm.slane %v9372, %v922
    %v9459 = vsel %vm924, %v9458, %v9457
    %v9460 = vperm.slane %v9375, %v920
    %v9461 = vperm.slane %v9378, %v922
    %v9462 = vsel %vm924, %v9461, %v9460
    %v9463 = vperm.slane %v9381, %v920
    %v9464 = vperm.slane %v9384, %v922
    %v9465 = vsel %vm924, %v9464, %v9463
    %v9466 = vperm.slane %v9387, %v920
    %v9467 = vperm.slane %v9390, %v922
    %v9468 = vsel %vm924, %v9467, %v9466
    %v9469 = vperm.slane %v9393, %v920
    %v9470 = vperm.slane %v9396, %v922
    %v9471 = vsel %vm924, %v9470, %v9469
    %v9472 = vperm.slane %v9399, %v920
    %v9473 = vperm.slane %v9402, %v922
    %v9474 = vsel %vm924, %v9473, %v9472
    %v9475 = vperm.slane %v9405, %v920
    %v9476 = vperm.slane %v9408, %v922
    %v9477 = vsel %vm924, %v9476, %v9475
    %v9478 = vperm.slane %v9411, %v920
    %v9479 = vperm.slane %v9414, %v922
    %v9480 = vsel %vm924, %v9479, %v9478
    %v9481 = vperm.slane %v9417, %v920
    %v9482 = vperm.slane %v9420, %v922
    %v9483 = vsel %vm924, %v9482, %v9481
    %v9484 = vperm.slane %v9423, %v920
    %v9485 = vperm.slane %v9426, %v922
    %v9486 = vsel %vm924, %v9485, %v9484
    %v9487 = vperm.slane %v9429, %v920
    %v9488 = vperm.slane %v9432, %v922
    %v9489 = vsel %vm924, %v9488, %v9487
    %v9490 = vperm.slane %v9435, %v920
    %v9491 = vperm.slane %v9438, %v922
    %v9492 = vsel %vm924, %v9491, %v9490
    %v9493 = vperm.slane %v9441, %v920
    %v9494 = vperm.slane %v9444, %v922
    %v9495 = vsel %vm924, %v9494, %v9493
    %v9496 = vperm.slane %v9447, %v920
    %v9497 = vperm.slane %v9450, %v922
    %v9498 = vsel %vm924, %v9497, %v9496
    %v9499 = vsel %vm971, %v9456, %v9453
    %v9500 = vsel %vm973, %v9459, %v9499
    %v9501 = vsel %vm975, %v9462, %v9500
    %v9502 = vsel %vm977, %v9465, %v9501
    %v9503 = vsel %vm979, %v9468, %v9502
    %v9504 = vsel %vm981, %v9471, %v9503
    %v9505 = vsel %vm983, %v9474, %v9504
    %v9506 = vsel %vm971, %v9480, %v9477
    %v9507 = vsel %vm973, %v9483, %v9506
    %v9508 = vsel %vm975, %v9486, %v9507
    %v9509 = vsel %vm977, %v9489, %v9508
    %v9510 = vsel %vm979, %v9492, %v9509
    %v9511 = vsel %vm981, %v9495, %v9510
    %v9512 = vsel %vm983, %v9498, %v9511
    %9513 = vrot.lane.b32.xlu0 %v5029, 104
    %v9514 = vpop.permute.xlu0 %9513
    %9515 = vrot.lane.b32.xlu0 %v5032, 104
    %v9516 = vpop.permute.xlu0 %9515
    %v9519 = vsel %vm151, %v9505, 0
    %v9521 = vsel %vm151, %v9512, 0
    %9523 = vmatpush.msra.mxu0 0.0
    %9524 = vmatpush.msra.mxu0 0.0
    %9525 = vmatpush.msra.mxu0 0.0
    %9526 = vmatpush.msra.mxu0 0.0
    %9527 = vmatpush.msra.mxu0 0.0
    %9528 = vmatpush.msra.mxu0 0.0
    %9529 = vmatpush.msra.mxu0 0.0
    %9530 = vmatpush.msra.mxu0 0.0
    %9531 = vmatpush.msra.mxu0 0.0
    %9532 = vmatpush.msra.mxu0 0.0
    %9533 = vmatpush.msra.mxu0 0.0
    %9534 = vmatpush.msra.mxu0 0.0
    %9535 = vmatpush.msra.mxu0 0.0
    %9536 = vmatpush.msra.mxu0 0.0
    %9537 = vmatpush.msra.mxu0 %v9516
    %9538 = vmatpush.msra.mxu0 %v9514
    %9539 = vmatmul.f32.gmra.mxu0 %v9519
    %v9540 = vpop.f32.mrf.mxu0
    %v9541 = vadd.f32 0.0, %v9540
    %9542 = vmatmul.f32.gmra.mxu0 %v9521
    %v9543 = vpop.f32.mrf.mxu0
    %v9544 = vadd.f32 0.0, %v9543
    %9545 = vdwg.mxu0
    %9548 = vrot.lane.b32.xlu0 %v7321, 8
    %v9549 = vpop.permute.xlu0 %9548
    %9550 = vrot.lane.b32.xlu0 %v7324, 8
    %v9551 = vpop.permute.xlu0 %9550
    %9556 = vrot.lane.b32.xlu0 %v8431, 16
    %v9557 = vpop.permute.xlu0 %9556
    %9558 = vrot.lane.b32.xlu0 %v8434, 16
    %v9559 = vpop.permute.xlu0 %9558
    %9564 = vrot.lane.b32.xlu0 %v9541, 24
    %v9565 = vpop.permute.xlu0 %9564
    %9566 = vrot.lane.b32.xlu0 %v9544, 24
    %v9567 = vpop.permute.xlu0 %9566
    %v9570 = vsel %vm420, %v6209, %v9549
    %v9571 = vsel %vm420, %v6212, %v9551
    %v9572 = vsel %vm151, %v9570, %v9557
    %v9573 = vsel %vm151, %v9571, %v9559
    %v9574 = vsel %vm4973, %v9572, %v9565
    %v9575 = vsel %vm4973, %v9573, %v9567
    %v9576 = vld [vmem:[%s27] sm:$0x1]
    %v9578 = vperm.slane %v9576, 0
    %v9580 = vadd.f32 %v9574, %v9578
    %v9581 = vadd.f32 %v9575, %v9578
    %vm9582 = vcmp.gt.f32.partialorder %v9580, 0.0
    %vm9583 = vcmp.gt.f32.partialorder %v9581, 0.0
    %v9584 = vmin.f32 %v9580, 0.0
    %v9585 = vmin.f32 %v9581, 0.0
    %v9586 = vmul.f32 %v9584, 1.442695
    %v9587 = vpow.pop %v9586
    %v9588 = vmul.f32 %v9585, 1.442695
    %v9589 = vpow.pop %v9588
    %v9590 = vsub.f32 %v9587, 1.0
    %v9591 = vsub.f32 %v9589, 1.0
    %v9592 = vsel %vm9582, %v9580, %v9590
    %v9593 = vsel %vm9583, %v9581, %v9591
    %9594 = vst.msk [vmem:[#allocation5] sm:$0xff] %vm4994, %v9592
    %9595 = vst.msk [vmem:[#allocation5 + $0x8] sm:$0xff] %vm4994, %v9593
    %v9596 = vld [vmem:[%s29] sm:$0xff]
    %v9597 = vld [vmem:[%s29 + $0x8] sm:$0xff]
    %v9598 = vld [vmem:[%s29 + $0x10] sm:$0xff]
    %v9599 = vld [vmem:[%s29 + $0x18] sm:$0xff]
    %v9600 = vld [vmem:[%s31] sm:$0x1]
    %v9602 = vperm.slane %v9600, 0
    %v9605 = vsel %vm4994, %v9592, 0
    %v9608 = vsel %vm4994, %v9593, 0
    %9610 = vmatpush.msra.mxu0 0.0
    %9611 = vmatpush.msra.mxu0 0.0
    %9612 = vmatpush.msra.mxu0 0.0
    %9613 = vmatpush.msra.mxu0 0.0
    %9614 = vmatpush.msra.mxu0 0.0
    %9615 = vmatpush.msra.mxu0 0.0
    %9616 = vmatpush.msra.mxu0 0.0
    %9617 = vmatpush.msra.mxu0 0.0
    %9618 = vmatpush.msra.mxu0 0.0
    %9619 = vmatpush.msra.mxu0 0.0
    %9620 = vmatpush.msra.mxu0 0.0
    %9621 = vmatpush.msra.mxu0 0.0
    %9622 = vmatpush.msra.mxu0 %v9599
    %9623 = vmatpush.msra.mxu0 %v9598
    %9624 = vmatpush.msra.mxu0 %v9597
    %9625 = vmatpush.msra.mxu0 %v9596
    %9626 = vmatmul.f32.gmra.mxu0 %v9605
    %v9627 = vpop.f32.mrf.mxu0
    %v9628 = vadd.f32 %v9602, %v9627
    %9629 = vmatmul.f32.gmra.mxu0 %v9608
    %v9630 = vpop.f32.mrf.mxu0
    %v9631 = vadd.f32 %v9602, %v9630
    %9632 = vdwg.mxu0
    %v9633 = vld [vmem:[%s33] sm:$0xff]
    %v9634 = vld [vmem:[%s33 + $0x8] sm:$0xff]
    %v9635 = vld [vmem:[%s33 + $0x10] sm:$0xff]
    %v9636 = vld [vmem:[%s33 + $0x18] sm:$0xff]
    %v9637 = vld [vmem:[%s35] sm:$0x1]
    %v9639 = vperm.slane %v9637, 0
    %9641 = vmatpush.msra.mxu0 0.0
    %9642 = vmatpush.msra.mxu0 0.0
    %9643 = vmatpush.msra.mxu0 0.0
    %9644 = vmatpush.msra.mxu0 0.0
    %9645 = vmatpush.msra.mxu0 0.0
    %9646 = vmatpush.msra.mxu0 0.0
    %9647 = vmatpush.msra.mxu0 0.0
    %9648 = vmatpush.msra.mxu0 0.0
    %9649 = vmatpush.msra.mxu0 0.0
    %9650 = vmatpush.msra.mxu0 0.0
    %9651 = vmatpush.msra.mxu0 0.0
    %9652 = vmatpush.msra.mxu0 0.0
    %9653 = vmatpush.msra.mxu0 %v9636
    %9654 = vmatpush.msra.mxu0 %v9635
    %9655 = vmatpush.msra.mxu0 %v9634
    %9656 = vmatpush.msra.mxu0 %v9633
    %9657 = vmatmul.f32.gmra.mxu0 %v9605
    %v9658 = vpop.f32.mrf.mxu0
    %v9659 = vadd.f32 %v9639, %v9658
    %9660 = vmatmul.f32.gmra.mxu0 %v9608
    %v9661 = vpop.f32.mrf.mxu0
    %v9662 = vadd.f32 %v9639, %v9661
    %9663 = vdwg.mxu0
    %v9664 = vld [vmem:[%s37] sm:$0x1]
    %v9667 = vrot.slane %v9659, 1
    %v9668 = vrot.slane %v9659, 2
    %v9669 = vrot.slane %v9659, 3
    %v9670 = vrot.slane %v9659, 4
    %v9671 = vrot.slane %v9659, 5
    %v9672 = vrot.slane %v9659, 6
    %v9673 = vrot.slane %v9659, 7
    %v9674 = vrot.slane %v9662, 1
    %v9675 = vrot.slane %v9662, 2
    %v9676 = vrot.slane %v9662, 3
    %v9677 = vrot.slane %v9662, 4
    %v9678 = vrot.slane %v9662, 5
    %v9679 = vrot.slane %v9662, 6
    %v9680 = vrot.slane %v9662, 7
    %v9681 = vperm.slane %v9659, 0
    %v9682 = vperm.slane %v9667, 0
    %v9683 = vperm.slane %v9668, 0
    %v9684 = vperm.slane %v9669, 0
    %v9685 = vperm.slane %v9670, 0
    %v9686 = vperm.slane %v9671, 0
    %v9687 = vperm.slane %v9672, 0
    %v9688 = vperm.slane %v9673, 0
    %v9689 = vperm.slane %v9662, 0
    %v9690 = vperm.slane %v9674, 0
    %v9691 = vperm.slane %v9675, 0
    %v9692 = vperm.slane %v9676, 0
    %v9693 = vperm.slane %v9677, 0
    %v9694 = vperm.slane %v9678, 0
    %v9695 = vperm.slane %v9679, 0
    %v9696 = vperm.slane %v9680, 0
    %v9713 = vadd.f32 %v9681, %v9628
    %v9714 = vadd.f32 %v9681, %v9631
    %v9715 = vadd.f32 %v9682, %v9628
    %v9716 = vadd.f32 %v9682, %v9631
    %v9717 = vadd.f32 %v9683, %v9628
    %v9718 = vadd.f32 %v9683, %v9631
    %v9719 = vadd.f32 %v9684, %v9628
    %v9720 = vadd.f32 %v9684, %v9631
    %v9721 = vadd.f32 %v9685, %v9628
    %v9722 = vadd.f32 %v9685, %v9631
    %v9723 = vadd.f32 %v9686, %v9628
    %v9724 = vadd.f32 %v9686, %v9631
    %v9725 = vadd.f32 %v9687, %v9628
    %v9726 = vadd.f32 %v9687, %v9631
    %v9727 = vadd.f32 %v9688, %v9628
    %v9728 = vadd.f32 %v9688, %v9631
    %v9729 = vadd.f32 %v9689, %v9628
    %v9730 = vadd.f32 %v9689, %v9631
    %v9731 = vadd.f32 %v9690, %v9628
    %v9732 = vadd.f32 %v9690, %v9631
    %v9733 = vadd.f32 %v9691, %v9628
    %v9734 = vadd.f32 %v9691, %v9631
    %v9735 = vadd.f32 %v9692, %v9628
    %v9736 = vadd.f32 %v9692, %v9631
    %v9737 = vadd.f32 %v9693, %v9628
    %v9738 = vadd.f32 %v9693, %v9631
    %v9739 = vadd.f32 %v9694, %v9628
    %v9740 = vadd.f32 %v9694, %v9631
    %v9741 = vadd.f32 %v9695, %v9628
    %v9742 = vadd.f32 %v9695, %v9631
    %v9743 = vadd.f32 %v9696, %v9628
    %v9744 = vadd.f32 %v9696, %v9631
    %vm9745 = vcmp.gt.f32.partialorder %v9713, 0.0
    %vm9746 = vcmp.gt.f32.partialorder %v9714, 0.0
    %vm9747 = vcmp.gt.f32.partialorder %v9715, 0.0
    %vm9748 = vcmp.gt.f32.partialorder %v9716, 0.0
    %vm9749 = vcmp.gt.f32.partialorder %v9717, 0.0
    %vm9750 = vcmp.gt.f32.partialorder %v9718, 0.0
    %vm9751 = vcmp.gt.f32.partialorder %v9719, 0.0
    %vm9752 = vcmp.gt.f32.partialorder %v9720, 0.0
    %vm9753 = vcmp.gt.f32.partialorder %v9721, 0.0
    %vm9754 = vcmp.gt.f32.partialorder %v9722, 0.0
    %vm9755 = vcmp.gt.f32.partialorder %v9723, 0.0
    %vm9756 = vcmp.gt.f32.partialorder %v9724, 0.0
    %vm9757 = vcmp.gt.f32.partialorder %v9725, 0.0
    %vm9758 = vcmp.gt.f32.partialorder %v9726, 0.0
    %vm9759 = vcmp.gt.f32.partialorder %v9727, 0.0
    %vm9760 = vcmp.gt.f32.partialorder %v9728, 0.0
    %vm9761 = vcmp.gt.f32.partialorder %v9729, 0.0
    %vm9762 = vcmp.gt.f32.partialorder %v9730, 0.0
    %vm9763 = vcmp.gt.f32.partialorder %v9731, 0.0
    %vm9764 = vcmp.gt.f32.partialorder %v9732, 0.0
    %vm9765 = vcmp.gt.f32.partialorder %v9733, 0.0
    %vm9766 = vcmp.gt.f32.partialorder %v9734, 0.0
    %vm9767 = vcmp.gt.f32.partialorder %v9735, 0.0
    %vm9768 = vcmp.gt.f32.partialorder %v9736, 0.0
    %vm9769 = vcmp.gt.f32.partialorder %v9737, 0.0
    %vm9770 = vcmp.gt.f32.partialorder %v9738, 0.0
    %vm9771 = vcmp.gt.f32.partialorder %v9739, 0.0
    %vm9772 = vcmp.gt.f32.partialorder %v9740, 0.0
    %vm9773 = vcmp.gt.f32.partialorder %v9741, 0.0
    %vm9774 = vcmp.gt.f32.partialorder %v9742, 0.0
    %vm9775 = vcmp.gt.f32.partialorder %v9743, 0.0
    %vm9776 = vcmp.gt.f32.partialorder %v9744, 0.0
    %v9777 = vmul.f32 %v9713, 0.2
    %v9778 = vmul.f32 %v9714, 0.2
    %v9779 = vmul.f32 %v9715, 0.2
    %v9780 = vmul.f32 %v9716, 0.2
    %v9781 = vmul.f32 %v9717, 0.2
    %v9782 = vmul.f32 %v9718, 0.2
    %v9783 = vmul.f32 %v9719, 0.2
    %v9784 = vmul.f32 %v9720, 0.2
    %v9785 = vmul.f32 %v9721, 0.2
    %v9786 = vmul.f32 %v9722, 0.2
    %v9787 = vmul.f32 %v9723, 0.2
    %v9788 = vmul.f32 %v9724, 0.2
    %v9789 = vmul.f32 %v9725, 0.2
    %v9790 = vmul.f32 %v9726, 0.2
    %v9791 = vmul.f32 %v9727, 0.2
    %v9792 = vmul.f32 %v9728, 0.2
    %v9793 = vmul.f32 %v9729, 0.2
    %v9794 = vmul.f32 %v9730, 0.2
    %v9795 = vmul.f32 %v9731, 0.2
    %v9796 = vmul.f32 %v9732, 0.2
    %v9797 = vmul.f32 %v9733, 0.2
    %v9798 = vmul.f32 %v9734, 0.2
    %v9799 = vmul.f32 %v9735, 0.2
    %v9800 = vmul.f32 %v9736, 0.2
    %v9801 = vmul.f32 %v9737, 0.2
    %v9802 = vmul.f32 %v9738, 0.2
    %v9803 = vmul.f32 %v9739, 0.2
    %v9804 = vmul.f32 %v9740, 0.2
    %v9805 = vmul.f32 %v9741, 0.2
    %v9806 = vmul.f32 %v9742, 0.2
    %v9807 = vmul.f32 %v9743, 0.2
    %v9808 = vmul.f32 %v9744, 0.2
    %v9809 = vsel %vm9745, %v9713, %v9777
    %v9810 = vsel %vm9746, %v9714, %v9778
    %v9811 = vsel %vm9747, %v9715, %v9779
    %v9812 = vsel %vm9748, %v9716, %v9780
    %v9813 = vsel %vm9749, %v9717, %v9781
    %v9814 = vsel %vm9750, %v9718, %v9782
    %v9815 = vsel %vm9751, %v9719, %v9783
    %v9816 = vsel %vm9752, %v9720, %v9784
    %v9817 = vsel %vm9753, %v9721, %v9785
    %v9818 = vsel %vm9754, %v9722, %v9786
    %v9819 = vsel %vm9755, %v9723, %v9787
    %v9820 = vsel %vm9756, %v9724, %v9788
    %v9821 = vsel %vm9757, %v9725, %v9789
    %v9822 = vsel %vm9758, %v9726, %v9790
    %v9823 = vsel %vm9759, %v9727, %v9791
    %v9824 = vsel %vm9760, %v9728, %v9792
    %v9825 = vsel %vm9761, %v9729, %v9793
    %v9826 = vsel %vm9762, %v9730, %v9794
    %v9827 = vsel %vm9763, %v9731, %v9795
    %v9828 = vsel %vm9764, %v9732, %v9796
    %v9829 = vsel %vm9765, %v9733, %v9797
    %v9830 = vsel %vm9766, %v9734, %v9798
    %v9831 = vsel %vm9767, %v9735, %v9799
    %v9832 = vsel %vm9768, %v9736, %v9800
    %v9833 = vsel %vm9769, %v9737, %v9801
    %v9834 = vsel %vm9770, %v9738, %v9802
    %v9835 = vsel %vm9771, %v9739, %v9803
    %v9836 = vsel %vm9772, %v9740, %v9804
    %v9837 = vsel %vm9773, %v9741, %v9805
    %v9838 = vsel %vm9774, %v9742, %v9806
    %v9839 = vsel %vm9775, %v9743, %v9807
    %v9840 = vsel %vm9776, %v9744, %v9808
    %v9842 = vperm.slane %v9664, 0
    %v9844 = vmul.f32 %v9809, %v9842
    %v9845 = vmul.f32 %v9810, %v9842
    %v9846 = vmul.f32 %v9811, %v9842
    %v9847 = vmul.f32 %v9812, %v9842
    %v9848 = vmul.f32 %v9813, %v9842
    %v9849 = vmul.f32 %v9814, %v9842
    %v9850 = vmul.f32 %v9815, %v9842
    %v9851 = vmul.f32 %v9816, %v9842
    %v9852 = vmul.f32 %v9817, %v9842
    %v9853 = vmul.f32 %v9818, %v9842
    %v9854 = vmul.f32 %v9819, %v9842
    %v9855 = vmul.f32 %v9820, %v9842
    %v9856 = vmul.f32 %v9821, %v9842
    %v9857 = vmul.f32 %v9822, %v9842
    %v9858 = vmul.f32 %v9823, %v9842
    %v9859 = vmul.f32 %v9824, %v9842
    %v9860 = vmul.f32 %v9825, %v9842
    %v9861 = vmul.f32 %v9826, %v9842
    %v9862 = vmul.f32 %v9827, %v9842
    %v9863 = vmul.f32 %v9828, %v9842
    %v9864 = vmul.f32 %v9829, %v9842
    %v9865 = vmul.f32 %v9830, %v9842
    %v9866 = vmul.f32 %v9831, %v9842
    %v9867 = vmul.f32 %v9832, %v9842
    %v9868 = vmul.f32 %v9833, %v9842
    %v9869 = vmul.f32 %v9834, %v9842
    %v9870 = vmul.f32 %v9835, %v9842
    %v9871 = vmul.f32 %v9836, %v9842
    %v9872 = vmul.f32 %v9837, %v9842
    %v9873 = vmul.f32 %v9838, %v9842
    %v9874 = vmul.f32 %v9839, %v9842
    %v9875 = vmul.f32 %v9840, %v9842
    %v9876 = vsel %vm420, %v9844, 0.0
    %9877 = vadd.xlane.f32.xlu0 %v9876
    %v9878 = vpop.xlane.xlu0 %9877
    %v9879 = vsel %vm420, %v9845, 0.0
    %9880 = vadd.xlane.f32.xlu0 %v9879
    %v9881 = vpop.xlane.xlu0 %9880
    %v9882 = vsel %vm420, %v9846, 0.0
    %9883 = vadd.xlane.f32.xlu0 %v9882
    %v9884 = vpop.xlane.xlu0 %9883
    %v9885 = vsel %vm420, %v9847, 0.0
    %9886 = vadd.xlane.f32.xlu0 %v9885
    %v9887 = vpop.xlane.xlu0 %9886
    %v9888 = vsel %vm420, %v9848, 0.0
    %9889 = vadd.xlane.f32.xlu0 %v9888
    %v9890 = vpop.xlane.xlu0 %9889
    %v9891 = vsel %vm420, %v9849, 0.0
    %9892 = vadd.xlane.f32.xlu0 %v9891
    %v9893 = vpop.xlane.xlu0 %9892
    %v9894 = vsel %vm420, %v9850, 0.0
    %9895 = vadd.xlane.f32.xlu0 %v9894
    %v9896 = vpop.xlane.xlu0 %9895
    %v9897 = vsel %vm420, %v9851, 0.0
    %9898 = vadd.xlane.f32.xlu0 %v9897
    %v9899 = vpop.xlane.xlu0 %9898
    %v9900 = vsel %vm420, %v9852, 0.0
    %9901 = vadd.xlane.f32.xlu0 %v9900
    %v9902 = vpop.xlane.xlu0 %9901
    %v9903 = vsel %vm420, %v9853, 0.0
    %9904 = vadd.xlane.f32.xlu0 %v9903
    %v9905 = vpop.xlane.xlu0 %9904
    %v9906 = vsel %vm420, %v9854, 0.0
    %9907 = vadd.xlane.f32.xlu0 %v9906
    %v9908 = vpop.xlane.xlu0 %9907
    %v9909 = vsel %vm420, %v9855, 0.0
    %9910 = vadd.xlane.f32.xlu0 %v9909
    %v9911 = vpop.xlane.xlu0 %9910
    %v9912 = vsel %vm420, %v9856, 0.0
    %9913 = vadd.xlane.f32.xlu0 %v9912
    %v9914 = vpop.xlane.xlu0 %9913
    %v9915 = vsel %vm420, %v9857, 0.0
    %9916 = vadd.xlane.f32.xlu0 %v9915
    %v9917 = vpop.xlane.xlu0 %9916
    %v9918 = vsel %vm420, %v9858, 0.0
    %9919 = vadd.xlane.f32.xlu0 %v9918
    %v9920 = vpop.xlane.xlu0 %9919
    %v9921 = vsel %vm420, %v9859, 0.0
    %9922 = vadd.xlane.f32.xlu0 %v9921
    %v9923 = vpop.xlane.xlu0 %9922
    %v9924 = vsel %vm420, %v9860, 0.0
    %9925 = vadd.xlane.f32.xlu0 %v9924
    %v9926 = vpop.xlane.xlu0 %9925
    %v9927 = vsel %vm420, %v9861, 0.0
    %9928 = vadd.xlane.f32.xlu0 %v9927
    %v9929 = vpop.xlane.xlu0 %9928
    %v9930 = vsel %vm420, %v9862, 0.0
    %9931 = vadd.xlane.f32.xlu0 %v9930
    %v9932 = vpop.xlane.xlu0 %9931
    %v9933 = vsel %vm420, %v9863, 0.0
    %9934 = vadd.xlane.f32.xlu0 %v9933
    %v9935 = vpop.xlane.xlu0 %9934
    %v9936 = vsel %vm420, %v9864, 0.0
    %9937 = vadd.xlane.f32.xlu0 %v9936
    %v9938 = vpop.xlane.xlu0 %9937
    %v9939 = vsel %vm420, %v9865, 0.0
    %9940 = vadd.xlane.f32.xlu0 %v9939
    %v9941 = vpop.xlane.xlu0 %9940
    %v9942 = vsel %vm420, %v9866, 0.0
    %9943 = vadd.xlane.f32.xlu0 %v9942
    %v9944 = vpop.xlane.xlu0 %9943
    %v9945 = vsel %vm420, %v9867, 0.0
    %9946 = vadd.xlane.f32.xlu0 %v9945
    %v9947 = vpop.xlane.xlu0 %9946
    %v9948 = vsel %vm420, %v9868, 0.0
    %9949 = vadd.xlane.f32.xlu0 %v9948
    %v9950 = vpop.xlane.xlu0 %9949
    %v9951 = vsel %vm420, %v9869, 0.0
    %9952 = vadd.xlane.f32.xlu0 %v9951
    %v9953 = vpop.xlane.xlu0 %9952
    %v9954 = vsel %vm420, %v9870, 0.0
    %9955 = vadd.xlane.f32.xlu0 %v9954
    %v9956 = vpop.xlane.xlu0 %9955
    %v9957 = vsel %vm420, %v9871, 0.0
    %9958 = vadd.xlane.f32.xlu0 %v9957
    %v9959 = vpop.xlane.xlu0 %9958
    %v9960 = vsel %vm420, %v9872, 0.0
    %9961 = vadd.xlane.f32.xlu0 %v9960
    %v9962 = vpop.xlane.xlu0 %9961
    %v9963 = vsel %vm420, %v9873, 0.0
    %9964 = vadd.xlane.f32.xlu0 %v9963
    %v9965 = vpop.xlane.xlu0 %9964
    %v9966 = vsel %vm420, %v9874, 0.0
    %9967 = vadd.xlane.f32.xlu0 %v9966
    %v9968 = vpop.xlane.xlu0 %9967
    %v9969 = vsel %vm420, %v9875, 0.0
    %9970 = vadd.xlane.f32.xlu0 %v9969
    %v9971 = vpop.xlane.xlu0 %9970
    %v9972 = vadd.f32 %v9878, %v525
    %v9973 = vadd.f32 %v9881, %v531
    %v9974 = vadd.f32 %v9884, %v538
    %v9975 = vadd.f32 %v9887, %v544
    %v9976 = vadd.f32 %v9890, %v551
    %v9977 = vadd.f32 %v9893, %v557
    %v9978 = vadd.f32 %v9896, %v564
    %v9979 = vadd.f32 %v9899, %v570
    %v9980 = vadd.f32 %v9902, %v577
    %v9981 = vadd.f32 %v9905, %v583
    %v9982 = vadd.f32 %v9908, %v590
    %v9983 = vadd.f32 %v9911, %v596
    %v9984 = vadd.f32 %v9914, %v603
    %v9985 = vadd.f32 %v9917, %v609
    %v9986 = vadd.f32 %v9920, %v616
    %v9987 = vadd.f32 %v9923, %v622
    %v9988 = vadd.f32 %v9926, %v629
    %v9989 = vadd.f32 %v9929, %v635
    %v9990 = vadd.f32 %v9932, %v642
    %v9991 = vadd.f32 %v9935, %v648
    %v9992 = vadd.f32 %v9938, %v655
    %v9993 = vadd.f32 %v9941, %v661
    %v9994 = vadd.f32 %v9944, %v668
    %v9995 = vadd.f32 %v9947, %v674
    %v9996 = vadd.f32 %v9950, %v681
    %v9997 = vadd.f32 %v9953, %v687
    %v9998 = vadd.f32 %v9956, %v694
    %v9999 = vadd.f32 %v9959, %v700
    %v10000 = vadd.f32 %v9962, %v707
    %v10001 = vadd.f32 %v9965, %v713
    %v10002 = vadd.f32 %v9968, %v720
    %v10003 = vadd.f32 %v9971, %v726
    %10036 = vset.pattern.permute.xlu0 0
    %10037 = vperm.xlu0 %10036, %v9972
    %v10038 = vpop.permute.xlu0 %10037
    %10039 = vset.pattern.permute.xlu0 0
    %10040 = vperm.xlu0 %10039, %v9973
    %v10041 = vpop.permute.xlu0 %10040
    %10042 = vset.pattern.permute.xlu0 0
    %10043 = vperm.xlu0 %10042, %v9974
    %v10044 = vpop.permute.xlu0 %10043
    %10045 = vset.pattern.permute.xlu0 0
    %10046 = vperm.xlu0 %10045, %v9975
    %v10047 = vpop.permute.xlu0 %10046
    %10048 = vset.pattern.permute.xlu0 0
    %10049 = vperm.xlu0 %10048, %v9976
    %v10050 = vpop.permute.xlu0 %10049
    %10051 = vset.pattern.permute.xlu0 0
    %10052 = vperm.xlu0 %10051, %v9977
    %v10053 = vpop.permute.xlu0 %10052
    %10054 = vset.pattern.permute.xlu0 0
    %10055 = vperm.xlu0 %10054, %v9978
    %v10056 = vpop.permute.xlu0 %10055
    %10057 = vset.pattern.permute.xlu0 0
    %10058 = vperm.xlu0 %10057, %v9979
    %v10059 = vpop.permute.xlu0 %10058
    %10060 = vset.pattern.permute.xlu0 0
    %10061 = vperm.xlu0 %10060, %v9980
    %v10062 = vpop.permute.xlu0 %10061
    %10063 = vset.pattern.permute.xlu0 0
    %10064 = vperm.xlu0 %10063, %v9981
    %v10065 = vpop.permute.xlu0 %10064
    %10066 = vset.pattern.permute.xlu0 0
    %10067 = vperm.xlu0 %10066, %v9982
    %v10068 = vpop.permute.xlu0 %10067
    %10069 = vset.pattern.permute.xlu0 0
    %10070 = vperm.xlu0 %10069, %v9983
    %v10071 = vpop.permute.xlu0 %10070
    %10072 = vset.pattern.permute.xlu0 0
    %10073 = vperm.xlu0 %10072, %v9984
    %v10074 = vpop.permute.xlu0 %10073
    %10075 = vset.pattern.permute.xlu0 0
    %10076 = vperm.xlu0 %10075, %v9985
    %v10077 = vpop.permute.xlu0 %10076
    %10078 = vset.pattern.permute.xlu0 0
    %10079 = vperm.xlu0 %10078, %v9986
    %v10080 = vpop.permute.xlu0 %10079
    %10081 = vset.pattern.permute.xlu0 0
    %10082 = vperm.xlu0 %10081, %v9987
    %v10083 = vpop.permute.xlu0 %10082
    %10084 = vset.pattern.permute.xlu0 0
    %10085 = vperm.xlu0 %10084, %v9988
    %v10086 = vpop.permute.xlu0 %10085
    %10087 = vset.pattern.permute.xlu0 0
    %10088 = vperm.xlu0 %10087, %v9989
    %v10089 = vpop.permute.xlu0 %10088
    %10090 = vset.pattern.permute.xlu0 0
    %10091 = vperm.xlu0 %10090, %v9990
    %v10092 = vpop.permute.xlu0 %10091
    %10093 = vset.pattern.permute.xlu0 0
    %10094 = vperm.xlu0 %10093, %v9991
    %v10095 = vpop.permute.xlu0 %10094
    %10096 = vset.pattern.permute.xlu0 0
    %10097 = vperm.xlu0 %10096, %v9992
    %v10098 = vpop.permute.xlu0 %10097
    %10099 = vset.pattern.permute.xlu0 0
    %10100 = vperm.xlu0 %10099, %v9993
    %v10101 = vpop.permute.xlu0 %10100
    %10102 = vset.pattern.permute.xlu0 0
    %10103 = vperm.xlu0 %10102, %v9994
    %v10104 = vpop.permute.xlu0 %10103
    %10105 = vset.pattern.permute.xlu0 0
    %10106 = vperm.xlu0 %10105, %v9995
    %v10107 = vpop.permute.xlu0 %10106
    %10108 = vset.pattern.permute.xlu0 0
    %10109 = vperm.xlu0 %10108, %v9996
    %v10110 = vpop.permute.xlu0 %10109
    %10111 = vset.pattern.permute.xlu0 0
    %10112 = vperm.xlu0 %10111, %v9997
    %v10113 = vpop.permute.xlu0 %10112
    %10114 = vset.pattern.permute.xlu0 0
    %10115 = vperm.xlu0 %10114, %v9998
    %v10116 = vpop.permute.xlu0 %10115
    %10117 = vset.pattern.permute.xlu0 0
    %10118 = vperm.xlu0 %10117, %v9999
    %v10119 = vpop.permute.xlu0 %10118
    %10120 = vset.pattern.permute.xlu0 0
    %10121 = vperm.xlu0 %10120, %v10000
    %v10122 = vpop.permute.xlu0 %10121
    %10123 = vset.pattern.permute.xlu0 0
    %10124 = vperm.xlu0 %10123, %v10001
    %v10125 = vpop.permute.xlu0 %10124
    %10126 = vset.pattern.permute.xlu0 0
    %10127 = vperm.xlu0 %10126, %v10002
    %v10128 = vpop.permute.xlu0 %10127
    %10129 = vset.pattern.permute.xlu0 0
    %10130 = vperm.xlu0 %10129, %v10003
    %v10131 = vpop.permute.xlu0 %10130
    %v10132 = vperm.slane %v10038, %v920
    %v10133 = vperm.slane %v10041, %v922
    %v10134 = vsel %vm924, %v10133, %v10132
    %v10135 = vperm.slane %v10044, %v920
    %v10136 = vperm.slane %v10047, %v922
    %v10137 = vsel %vm924, %v10136, %v10135
    %v10138 = vperm.slane %v10050, %v920
    %v10139 = vperm.slane %v10053, %v922
    %v10140 = vsel %vm924, %v10139, %v10138
    %v10141 = vperm.slane %v10056, %v920
    %v10142 = vperm.slane %v10059, %v922
    %v10143 = vsel %vm924, %v10142, %v10141
    %v10144 = vperm.slane %v10062, %v920
    %v10145 = vperm.slane %v10065, %v922
    %v10146 = vsel %vm924, %v10145, %v10144
    %v10147 = vperm.slane %v10068, %v920
    %v10148 = vperm.slane %v10071, %v922
    %v10149 = vsel %vm924, %v10148, %v10147
    %v10150 = vperm.slane %v10074, %v920
    %v10151 = vperm.slane %v10077, %v922
    %v10152 = vsel %vm924, %v10151, %v10150
    %v10153 = vperm.slane %v10080, %v920
    %v10154 = vperm.slane %v10083, %v922
    %v10155 = vsel %vm924, %v10154, %v10153
    %v10156 = vperm.slane %v10086, %v920
    %v10157 = vperm.slane %v10089, %v922
    %v10158 = vsel %vm924, %v10157, %v10156
    %v10159 = vperm.slane %v10092, %v920
    %v10160 = vperm.slane %v10095, %v922
    %v10161 = vsel %vm924, %v10160, %v10159
    %v10162 = vperm.slane %v10098, %v920
    %v10163 = vperm.slane %v10101, %v922
    %v10164 = vsel %vm924, %v10163, %v10162
    %v10165 = vperm.slane %v10104, %v920
    %v10166 = vperm.slane %v10107, %v922
    %v10167 = vsel %vm924, %v10166, %v10165
    %v10168 = vperm.slane %v10110, %v920
    %v10169 = vperm.slane %v10113, %v922
    %v10170 = vsel %vm924, %v10169, %v10168
    %v10171 = vperm.slane %v10116, %v920
    %v10172 = vperm.slane %v10119, %v922
    %v10173 = vsel %vm924, %v10172, %v10171
    %v10174 = vperm.slane %v10122, %v920
    %v10175 = vperm.slane %v10125, %v922
    %v10176 = vsel %vm924, %v10175, %v10174
    %v10177 = vperm.slane %v10128, %v920
    %v10178 = vperm.slane %v10131, %v922
    %v10179 = vsel %vm924, %v10178, %v10177
    %v10180 = vsel %vm971, %v10137, %v10134
    %v10181 = vsel %vm973, %v10140, %v10180
    %v10182 = vsel %vm975, %v10143, %v10181
    %v10183 = vsel %vm977, %v10146, %v10182
    %v10184 = vsel %vm979, %v10149, %v10183
    %v10185 = vsel %vm981, %v10152, %v10184
    %v10186 = vsel %vm983, %v10155, %v10185
    %v10187 = vsel %vm971, %v10161, %v10158
    %v10188 = vsel %vm973, %v10164, %v10187
    %v10189 = vsel %vm975, %v10167, %v10188
    %v10190 = vsel %vm977, %v10170, %v10189
    %v10191 = vsel %vm979, %v10173, %v10190
    %v10192 = vsel %vm981, %v10176, %v10191
    %v10193 = vsel %vm983, %v10179, %v10192
    %v10196 = vsel %vm151, %v10186, -inf
    %10197 = vmax.xlane.f32.xlu0 %v10196
    %v10198 = vpop.xlane.xlu0 %10197
    %v10199 = vsel %vm151, %v10193, -inf
    %10200 = vmax.xlane.f32.xlu0 %v10199
    %v10201 = vpop.xlane.xlu0 %10200
    %v10204 = vperm.slane %v10198, 0
    %v10205 = vperm.slane %v10198, 1
    %v10206 = vperm.slane %v10198, 2
    %v10207 = vperm.slane %v10198, 3
    %v10208 = vperm.slane %v10198, 4
    %v10209 = vperm.slane %v10198, 5
    %v10210 = vperm.slane %v10198, 6
    %v10211 = vperm.slane %v10198, 7
    %v10212 = vperm.slane %v10201, 0
    %v10213 = vperm.slane %v10201, 1
    %v10214 = vperm.slane %v10201, 2
    %v10215 = vperm.slane %v10201, 3
    %v10216 = vperm.slane %v10201, 4
    %v10217 = vperm.slane %v10201, 5
    %v10218 = vperm.slane %v10201, 6
    %v10219 = vperm.slane %v10201, 7
    %v10236 = vsub.f32 %v9972, %v10204
    %v10237 = vsub.f32 %v9973, %v10204
    %v10238 = vsub.f32 %v9974, %v10205
    %v10239 = vsub.f32 %v9975, %v10205
    %v10240 = vsub.f32 %v9976, %v10206
    %v10241 = vsub.f32 %v9977, %v10206
    %v10242 = vsub.f32 %v9978, %v10207
    %v10243 = vsub.f32 %v9979, %v10207
    %v10244 = vsub.f32 %v9980, %v10208
    %v10245 = vsub.f32 %v9981, %v10208
    %v10246 = vsub.f32 %v9982, %v10209
    %v10247 = vsub.f32 %v9983, %v10209
    %v10248 = vsub.f32 %v9984, %v10210
    %v10249 = vsub.f32 %v9985, %v10210
    %v10250 = vsub.f32 %v9986, %v10211
    %v10251 = vsub.f32 %v9987, %v10211
    %v10252 = vsub.f32 %v9988, %v10212
    %v10253 = vsub.f32 %v9989, %v10212
    %v10254 = vsub.f32 %v9990, %v10213
    %v10255 = vsub.f32 %v9991, %v10213
    %v10256 = vsub.f32 %v9992, %v10214
    %v10257 = vsub.f32 %v9993, %v10214
    %v10258 = vsub.f32 %v9994, %v10215
    %v10259 = vsub.f32 %v9995, %v10215
    %v10260 = vsub.f32 %v9996, %v10216
    %v10261 = vsub.f32 %v9997, %v10216
    %v10262 = vsub.f32 %v9998, %v10217
    %v10263 = vsub.f32 %v9999, %v10217
    %v10264 = vsub.f32 %v10000, %v10218
    %v10265 = vsub.f32 %v10001, %v10218
    %v10266 = vsub.f32 %v10002, %v10219
    %v10267 = vsub.f32 %v10003, %v10219
    %v10268 = vmul.f32 %v10236, 1.442695
    %v10269 = vpow.pop %v10268
    %v10270 = vmul.f32 %v10237, 1.442695
    %v10271 = vpow.pop %v10270
    %v10272 = vmul.f32 %v10238, 1.442695
    %v10273 = vpow.pop %v10272
    %v10274 = vmul.f32 %v10239, 1.442695
    %v10275 = vpow.pop %v10274
    %v10276 = vmul.f32 %v10240, 1.442695
    %v10277 = vpow.pop %v10276
    %v10278 = vmul.f32 %v10241, 1.442695
    %v10279 = vpow.pop %v10278
    %v10280 = vmul.f32 %v10242, 1.442695
    %v10281 = vpow.pop %v10280
    %v10282 = vmul.f32 %v10243, 1.442695
    %v10283 = vpow.pop %v10282
    %v10284 = vmul.f32 %v10244, 1.442695
    %v10285 = vpow.pop %v10284
    %v10286 = vmul.f32 %v10245, 1.442695
    %v10287 = vpow.pop %v10286
    %v10288 = vmul.f32 %v10246, 1.442695
    %v10289 = vpow.pop %v10288
    %v10290 = vmul.f32 %v10247, 1.442695
    %v10291 = vpow.pop %v10290
    %v10292 = vmul.f32 %v10248, 1.442695
    %v10293 = vpow.pop %v10292
    %v10294 = vmul.f32 %v10249, 1.442695
    %v10295 = vpow.pop %v10294
    %v10296 = vmul.f32 %v10250, 1.442695
    %v10297 = vpow.pop %v10296
    %v10298 = vmul.f32 %v10251, 1.442695
    %v10299 = vpow.pop %v10298
    %v10300 = vmul.f32 %v10252, 1.442695
    %v10301 = vpow.pop %v10300
    %v10302 = vmul.f32 %v10253, 1.442695
    %v10303 = vpow.pop %v10302
    %v10304 = vmul.f32 %v10254, 1.442695
    %v10305 = vpow.pop %v10304
    %v10306 = vmul.f32 %v10255, 1.442695
    %v10307 = vpow.pop %v10306
    %v10308 = vmul.f32 %v10256, 1.442695
    %v10309 = vpow.pop %v10308
    %v10310 = vmul.f32 %v10257, 1.442695
    %v10311 = vpow.pop %v10310
    %v10312 = vmul.f32 %v10258, 1.442695
    %v10313 = vpow.pop %v10312
    %v10314 = vmul.f32 %v10259, 1.442695
    %v10315 = vpow.pop %v10314
    %v10316 = vmul.f32 %v10260, 1.442695
    %v10317 = vpow.pop %v10316
    %v10318 = vmul.f32 %v10261, 1.442695
    %v10319 = vpow.pop %v10318
    %v10320 = vmul.f32 %v10262, 1.442695
    %v10321 = vpow.pop %v10320
    %v10322 = vmul.f32 %v10263, 1.442695
    %v10323 = vpow.pop %v10322
    %v10324 = vmul.f32 %v10264, 1.442695
    %v10325 = vpow.pop %v10324
    %v10326 = vmul.f32 %v10265, 1.442695
    %v10327 = vpow.pop %v10326
    %v10328 = vmul.f32 %v10266, 1.442695
    %v10329 = vpow.pop %v10328
    %v10330 = vmul.f32 %v10267, 1.442695
    %v10331 = vpow.pop %v10330
    %10364 = vset.pattern.permute.xlu0 0
    %10365 = vperm.xlu0 %10364, %v10269
    %v10366 = vpop.permute.xlu0 %10365
    %10367 = vset.pattern.permute.xlu0 0
    %10368 = vperm.xlu0 %10367, %v10271
    %v10369 = vpop.permute.xlu0 %10368
    %10370 = vset.pattern.permute.xlu0 0
    %10371 = vperm.xlu0 %10370, %v10273
    %v10372 = vpop.permute.xlu0 %10371
    %10373 = vset.pattern.permute.xlu0 0
    %10374 = vperm.xlu0 %10373, %v10275
    %v10375 = vpop.permute.xlu0 %10374
    %10376 = vset.pattern.permute.xlu0 0
    %10377 = vperm.xlu0 %10376, %v10277
    %v10378 = vpop.permute.xlu0 %10377
    %10379 = vset.pattern.permute.xlu0 0
    %10380 = vperm.xlu0 %10379, %v10279
    %v10381 = vpop.permute.xlu0 %10380
    %10382 = vset.pattern.permute.xlu0 0
    %10383 = vperm.xlu0 %10382, %v10281
    %v10384 = vpop.permute.xlu0 %10383
    %10385 = vset.pattern.permute.xlu0 0
    %10386 = vperm.xlu0 %10385, %v10283
    %v10387 = vpop.permute.xlu0 %10386
    %10388 = vset.pattern.permute.xlu0 0
    %10389 = vperm.xlu0 %10388, %v10285
    %v10390 = vpop.permute.xlu0 %10389
    %10391 = vset.pattern.permute.xlu0 0
    %10392 = vperm.xlu0 %10391, %v10287
    %v10393 = vpop.permute.xlu0 %10392
    %10394 = vset.pattern.permute.xlu0 0
    %10395 = vperm.xlu0 %10394, %v10289
    %v10396 = vpop.permute.xlu0 %10395
    %10397 = vset.pattern.permute.xlu0 0
    %10398 = vperm.xlu0 %10397, %v10291
    %v10399 = vpop.permute.xlu0 %10398
    %10400 = vset.pattern.permute.xlu0 0
    %10401 = vperm.xlu0 %10400, %v10293
    %v10402 = vpop.permute.xlu0 %10401
    %10403 = vset.pattern.permute.xlu0 0
    %10404 = vperm.xlu0 %10403, %v10295
    %v10405 = vpop.permute.xlu0 %10404
    %10406 = vset.pattern.permute.xlu0 0
    %10407 = vperm.xlu0 %10406, %v10297
    %v10408 = vpop.permute.xlu0 %10407
    %10409 = vset.pattern.permute.xlu0 0
    %10410 = vperm.xlu0 %10409, %v10299
    %v10411 = vpop.permute.xlu0 %10410
    %10412 = vset.pattern.permute.xlu0 0
    %10413 = vperm.xlu0 %10412, %v10301
    %v10414 = vpop.permute.xlu0 %10413
    %10415 = vset.pattern.permute.xlu0 0
    %10416 = vperm.xlu0 %10415, %v10303
    %v10417 = vpop.permute.xlu0 %10416
    %10418 = vset.pattern.permute.xlu0 0
    %10419 = vperm.xlu0 %10418, %v10305
    %v10420 = vpop.permute.xlu0 %10419
    %10421 = vset.pattern.permute.xlu0 0
    %10422 = vperm.xlu0 %10421, %v10307
    %v10423 = vpop.permute.xlu0 %10422
    %10424 = vset.pattern.permute.xlu0 0
    %10425 = vperm.xlu0 %10424, %v10309
    %v10426 = vpop.permute.xlu0 %10425
    %10427 = vset.pattern.permute.xlu0 0
    %10428 = vperm.xlu0 %10427, %v10311
    %v10429 = vpop.permute.xlu0 %10428
    %10430 = vset.pattern.permute.xlu0 0
    %10431 = vperm.xlu0 %10430, %v10313
    %v10432 = vpop.permute.xlu0 %10431
    %10433 = vset.pattern.permute.xlu0 0
    %10434 = vperm.xlu0 %10433, %v10315
    %v10435 = vpop.permute.xlu0 %10434
    %10436 = vset.pattern.permute.xlu0 0
    %10437 = vperm.xlu0 %10436, %v10317
    %v10438 = vpop.permute.xlu0 %10437
    %10439 = vset.pattern.permute.xlu0 0
    %10440 = vperm.xlu0 %10439, %v10319
    %v10441 = vpop.permute.xlu0 %10440
    %10442 = vset.pattern.permute.xlu0 0
    %10443 = vperm.xlu0 %10442, %v10321
    %v10444 = vpop.permute.xlu0 %10443
    %10445 = vset.pattern.permute.xlu0 0
    %10446 = vperm.xlu0 %10445, %v10323
    %v10447 = vpop.permute.xlu0 %10446
    %10448 = vset.pattern.permute.xlu0 0
    %10449 = vperm.xlu0 %10448, %v10325
    %v10450 = vpop.permute.xlu0 %10449
    %10451 = vset.pattern.permute.xlu0 0
    %10452 = vperm.xlu0 %10451, %v10327
    %v10453 = vpop.permute.xlu0 %10452
    %10454 = vset.pattern.permute.xlu0 0
    %10455 = vperm.xlu0 %10454, %v10329
    %v10456 = vpop.permute.xlu0 %10455
    %10457 = vset.pattern.permute.xlu0 0
    %10458 = vperm.xlu0 %10457, %v10331
    %v10459 = vpop.permute.xlu0 %10458
    %v10460 = vperm.slane %v10366, %v920
    %v10461 = vperm.slane %v10369, %v922
    %v10462 = vsel %vm924, %v10461, %v10460
    %v10463 = vperm.slane %v10372, %v920
    %v10464 = vperm.slane %v10375, %v922
    %v10465 = vsel %vm924, %v10464, %v10463
    %v10466 = vperm.slane %v10378, %v920
    %v10467 = vperm.slane %v10381, %v922
    %v10468 = vsel %vm924, %v10467, %v10466
    %v10469 = vperm.slane %v10384, %v920
    %v10470 = vperm.slane %v10387, %v922
    %v10471 = vsel %vm924, %v10470, %v10469
    %v10472 = vperm.slane %v10390, %v920
    %v10473 = vperm.slane %v10393, %v922
    %v10474 = vsel %vm924, %v10473, %v10472
    %v10475 = vperm.slane %v10396, %v920
    %v10476 = vperm.slane %v10399, %v922
    %v10477 = vsel %vm924, %v10476, %v10475
    %v10478 = vperm.slane %v10402, %v920
    %v10479 = vperm.slane %v10405, %v922
    %v10480 = vsel %vm924, %v10479, %v10478
    %v10481 = vperm.slane %v10408, %v920
    %v10482 = vperm.slane %v10411, %v922
    %v10483 = vsel %vm924, %v10482, %v10481
    %v10484 = vperm.slane %v10414, %v920
    %v10485 = vperm.slane %v10417, %v922
    %v10486 = vsel %vm924, %v10485, %v10484
    %v10487 = vperm.slane %v10420, %v920
    %v10488 = vperm.slane %v10423, %v922
    %v10489 = vsel %vm924, %v10488, %v10487
    %v10490 = vperm.slane %v10426, %v920
    %v10491 = vperm.slane %v10429, %v922
    %v10492 = vsel %vm924, %v10491, %v10490
    %v10493 = vperm.slane %v10432, %v920
    %v10494 = vperm.slane %v10435, %v922
    %v10495 = vsel %vm924, %v10494, %v10493
    %v10496 = vperm.slane %v10438, %v920
    %v10497 = vperm.slane %v10441, %v922
    %v10498 = vsel %vm924, %v10497, %v10496
    %v10499 = vperm.slane %v10444, %v920
    %v10500 = vperm.slane %v10447, %v922
    %v10501 = vsel %vm924, %v10500, %v10499
    %v10502 = vperm.slane %v10450, %v920
    %v10503 = vperm.slane %v10453, %v922
    %v10504 = vsel %vm924, %v10503, %v10502
    %v10505 = vperm.slane %v10456, %v920
    %v10506 = vperm.slane %v10459, %v922
    %v10507 = vsel %vm924, %v10506, %v10505
    %v10508 = vsel %vm971, %v10465, %v10462
    %v10509 = vsel %vm973, %v10468, %v10508
    %v10510 = vsel %vm975, %v10471, %v10509
    %v10511 = vsel %vm977, %v10474, %v10510
    %v10512 = vsel %vm979, %v10477, %v10511
    %v10513 = vsel %vm981, %v10480, %v10512
    %v10514 = vsel %vm983, %v10483, %v10513
    %v10515 = vsel %vm971, %v10489, %v10486
    %v10516 = vsel %vm973, %v10492, %v10515
    %v10517 = vsel %vm975, %v10495, %v10516
    %v10518 = vsel %vm977, %v10498, %v10517
    %v10519 = vsel %vm979, %v10501, %v10518
    %v10520 = vsel %vm981, %v10504, %v10519
    %v10521 = vsel %vm983, %v10507, %v10520
    %v10524 = vsel %vm151, %v10514, 0.0
    %10525 = vadd.xlane.f32.xlu0 %v10524
    %v10526 = vpop.xlane.xlu0 %10525
    %v10527 = vsel %vm151, %v10521, 0.0
    %10528 = vadd.xlane.f32.xlu0 %v10527
    %v10529 = vpop.xlane.xlu0 %10528
    %v10530 = vrcp.pop %v10526
    %v10531 = vrcp.pop %v10529
    %v10534 = vperm.slane %v10530, 0
    %v10535 = vperm.slane %v10530, 1
    %v10536 = vperm.slane %v10530, 2
    %v10537 = vperm.slane %v10530, 3
    %v10538 = vperm.slane %v10530, 4
    %v10539 = vperm.slane %v10530, 5
    %v10540 = vperm.slane %v10530, 6
    %v10541 = vperm.slane %v10530, 7
    %v10542 = vperm.slane %v10531, 0
    %v10543 = vperm.slane %v10531, 1
    %v10544 = vperm.slane %v10531, 2
    %v10545 = vperm.slane %v10531, 3
    %v10546 = vperm.slane %v10531, 4
    %v10547 = vperm.slane %v10531, 5
    %v10548 = vperm.slane %v10531, 6
    %v10549 = vperm.slane %v10531, 7
    %v10566 = vmul.f32 %v10269, %v10534
    %v10567 = vmul.f32 %v10271, %v10534
    %v10568 = vmul.f32 %v10273, %v10535
    %v10569 = vmul.f32 %v10275, %v10535
    %v10570 = vmul.f32 %v10277, %v10536
    %v10571 = vmul.f32 %v10279, %v10536
    %v10572 = vmul.f32 %v10281, %v10537
    %v10573 = vmul.f32 %v10283, %v10537
    %v10574 = vmul.f32 %v10285, %v10538
    %v10575 = vmul.f32 %v10287, %v10538
    %v10576 = vmul.f32 %v10289, %v10539
    %v10577 = vmul.f32 %v10291, %v10539
    %v10578 = vmul.f32 %v10293, %v10540
    %v10579 = vmul.f32 %v10295, %v10540
    %v10580 = vmul.f32 %v10297, %v10541
    %v10581 = vmul.f32 %v10299, %v10541
    %v10582 = vmul.f32 %v10301, %v10542
    %v10583 = vmul.f32 %v10303, %v10542
    %v10584 = vmul.f32 %v10305, %v10543
    %v10585 = vmul.f32 %v10307, %v10543
    %v10586 = vmul.f32 %v10309, %v10544
    %v10587 = vmul.f32 %v10311, %v10544
    %v10588 = vmul.f32 %v10313, %v10545
    %v10589 = vmul.f32 %v10315, %v10545
    %v10590 = vmul.f32 %v10317, %v10546
    %v10591 = vmul.f32 %v10319, %v10546
    %v10592 = vmul.f32 %v10321, %v10547
    %v10593 = vmul.f32 %v10323, %v10547
    %v10594 = vmul.f32 %v10325, %v10548
    %v10595 = vmul.f32 %v10327, %v10548
    %v10596 = vmul.f32 %v10329, %v10549
    %v10597 = vmul.f32 %v10331, %v10549
    %v10598 = vld [vmem:[%s39] sm:$0x1]
    %v10600 = vperm.slane %v10598, 0
    %10634 = vset.pattern.permute.xlu0 0
    %10635 = vperm.xlu0 %10634, %v10566
    %v10636 = vpop.permute.xlu0 %10635
    %10637 = vset.pattern.permute.xlu0 0
    %10638 = vperm.xlu0 %10637, %v10567
    %v10639 = vpop.permute.xlu0 %10638
    %10640 = vset.pattern.permute.xlu0 0
    %10641 = vperm.xlu0 %10640, %v10568
    %v10642 = vpop.permute.xlu0 %10641
    %10643 = vset.pattern.permute.xlu0 0
    %10644 = vperm.xlu0 %10643, %v10569
    %v10645 = vpop.permute.xlu0 %10644
    %10646 = vset.pattern.permute.xlu0 0
    %10647 = vperm.xlu0 %10646, %v10570
    %v10648 = vpop.permute.xlu0 %10647
    %10649 = vset.pattern.permute.xlu0 0
    %10650 = vperm.xlu0 %10649, %v10571
    %v10651 = vpop.permute.xlu0 %10650
    %10652 = vset.pattern.permute.xlu0 0
    %10653 = vperm.xlu0 %10652, %v10572
    %v10654 = vpop.permute.xlu0 %10653
    %10655 = vset.pattern.permute.xlu0 0
    %10656 = vperm.xlu0 %10655, %v10573
    %v10657 = vpop.permute.xlu0 %10656
    %10658 = vset.pattern.permute.xlu0 0
    %10659 = vperm.xlu0 %10658, %v10574
    %v10660 = vpop.permute.xlu0 %10659
    %10661 = vset.pattern.permute.xlu0 0
    %10662 = vperm.xlu0 %10661, %v10575
    %v10663 = vpop.permute.xlu0 %10662
    %10664 = vset.pattern.permute.xlu0 0
    %10665 = vperm.xlu0 %10664, %v10576
    %v10666 = vpop.permute.xlu0 %10665
    %10667 = vset.pattern.permute.xlu0 0
    %10668 = vperm.xlu0 %10667, %v10577
    %v10669 = vpop.permute.xlu0 %10668
    %10670 = vset.pattern.permute.xlu0 0
    %10671 = vperm.xlu0 %10670, %v10578
    %v10672 = vpop.permute.xlu0 %10671
    %10673 = vset.pattern.permute.xlu0 0
    %10674 = vperm.xlu0 %10673, %v10579
    %v10675 = vpop.permute.xlu0 %10674
    %10676 = vset.pattern.permute.xlu0 0
    %10677 = vperm.xlu0 %10676, %v10580
    %v10678 = vpop.permute.xlu0 %10677
    %10679 = vset.pattern.permute.xlu0 0
    %10680 = vperm.xlu0 %10679, %v10581
    %v10681 = vpop.permute.xlu0 %10680
    %10682 = vset.pattern.permute.xlu0 0
    %10683 = vperm.xlu0 %10682, %v10582
    %v10684 = vpop.permute.xlu0 %10683
    %10685 = vset.pattern.permute.xlu0 0
    %10686 = vperm.xlu0 %10685, %v10583
    %v10687 = vpop.permute.xlu0 %10686
    %10688 = vset.pattern.permute.xlu0 0
    %10689 = vperm.xlu0 %10688, %v10584
    %v10690 = vpop.permute.xlu0 %10689
    %10691 = vset.pattern.permute.xlu0 0
    %10692 = vperm.xlu0 %10691, %v10585
    %v10693 = vpop.permute.xlu0 %10692
    %10694 = vset.pattern.permute.xlu0 0
    %10695 = vperm.xlu0 %10694, %v10586
    %v10696 = vpop.permute.xlu0 %10695
    %10697 = vset.pattern.permute.xlu0 0
    %10698 = vperm.xlu0 %10697, %v10587
    %v10699 = vpop.permute.xlu0 %10698
    %10700 = vset.pattern.permute.xlu0 0
    %10701 = vperm.xlu0 %10700, %v10588
    %v10702 = vpop.permute.xlu0 %10701
    %10703 = vset.pattern.permute.xlu0 0
    %10704 = vperm.xlu0 %10703, %v10589
    %v10705 = vpop.permute.xlu0 %10704
    %10706 = vset.pattern.permute.xlu0 0
    %10707 = vperm.xlu0 %10706, %v10590
    %v10708 = vpop.permute.xlu0 %10707
    %10709 = vset.pattern.permute.xlu0 0
    %10710 = vperm.xlu0 %10709, %v10591
    %v10711 = vpop.permute.xlu0 %10710
    %10712 = vset.pattern.permute.xlu0 0
    %10713 = vperm.xlu0 %10712, %v10592
    %v10714 = vpop.permute.xlu0 %10713
    %10715 = vset.pattern.permute.xlu0 0
    %10716 = vperm.xlu0 %10715, %v10593
    %v10717 = vpop.permute.xlu0 %10716
    %10718 = vset.pattern.permute.xlu0 0
    %10719 = vperm.xlu0 %10718, %v10594
    %v10720 = vpop.permute.xlu0 %10719
    %10721 = vset.pattern.permute.xlu0 0
    %10722 = vperm.xlu0 %10721, %v10595
    %v10723 = vpop.permute.xlu0 %10722
    %10724 = vset.pattern.permute.xlu0 0
    %10725 = vperm.xlu0 %10724, %v10596
    %v10726 = vpop.permute.xlu0 %10725
    %10727 = vset.pattern.permute.xlu0 0
    %10728 = vperm.xlu0 %10727, %v10597
    %v10729 = vpop.permute.xlu0 %10728
    %v10730 = vperm.slane %v10636, %v920
    %v10731 = vperm.slane %v10639, %v922
    %v10732 = vsel %vm924, %v10731, %v10730
    %v10733 = vperm.slane %v10642, %v920
    %v10734 = vperm.slane %v10645, %v922
    %v10735 = vsel %vm924, %v10734, %v10733
    %v10736 = vperm.slane %v10648, %v920
    %v10737 = vperm.slane %v10651, %v922
    %v10738 = vsel %vm924, %v10737, %v10736
    %v10739 = vperm.slane %v10654, %v920
    %v10740 = vperm.slane %v10657, %v922
    %v10741 = vsel %vm924, %v10740, %v10739
    %v10742 = vperm.slane %v10660, %v920
    %v10743 = vperm.slane %v10663, %v922
    %v10744 = vsel %vm924, %v10743, %v10742
    %v10745 = vperm.slane %v10666, %v920
    %v10746 = vperm.slane %v10669, %v922
    %v10747 = vsel %vm924, %v10746, %v10745
    %v10748 = vperm.slane %v10672, %v920
    %v10749 = vperm.slane %v10675, %v922
    %v10750 = vsel %vm924, %v10749, %v10748
    %v10751 = vperm.slane %v10678, %v920
    %v10752 = vperm.slane %v10681, %v922
    %v10753 = vsel %vm924, %v10752, %v10751
    %v10754 = vperm.slane %v10684, %v920
    %v10755 = vperm.slane %v10687, %v922
    %v10756 = vsel %vm924, %v10755, %v10754
    %v10757 = vperm.slane %v10690, %v920
    %v10758 = vperm.slane %v10693, %v922
    %v10759 = vsel %vm924, %v10758, %v10757
    %v10760 = vperm.slane %v10696, %v920
    %v10761 = vperm.slane %v10699, %v922
    %v10762 = vsel %vm924, %v10761, %v10760
    %v10763 = vperm.slane %v10702, %v920
    %v10764 = vperm.slane %v10705, %v922
    %v10765 = vsel %vm924, %v10764, %v10763
    %v10766 = vperm.slane %v10708, %v920
    %v10767 = vperm.slane %v10711, %v922
    %v10768 = vsel %vm924, %v10767, %v10766
    %v10769 = vperm.slane %v10714, %v920
    %v10770 = vperm.slane %v10717, %v922
    %v10771 = vsel %vm924, %v10770, %v10769
    %v10772 = vperm.slane %v10720, %v920
    %v10773 = vperm.slane %v10723, %v922
    %v10774 = vsel %vm924, %v10773, %v10772
    %v10775 = vperm.slane %v10726, %v920
    %v10776 = vperm.slane %v10729, %v922
    %v10777 = vsel %vm924, %v10776, %v10775
    %v10778 = vsel %vm971, %v10735, %v10732
    %v10779 = vsel %vm973, %v10738, %v10778
    %v10780 = vsel %vm975, %v10741, %v10779
    %v10781 = vsel %vm977, %v10744, %v10780
    %v10782 = vsel %vm979, %v10747, %v10781
    %v10783 = vsel %vm981, %v10750, %v10782
    %v10784 = vsel %vm983, %v10753, %v10783
    %v10785 = vsel %vm971, %v10759, %v10756
    %v10786 = vsel %vm973, %v10762, %v10785
    %v10787 = vsel %vm975, %v10765, %v10786
    %v10788 = vsel %vm977, %v10768, %v10787
    %v10789 = vsel %vm979, %v10771, %v10788
    %v10790 = vsel %vm981, %v10774, %v10789
    %v10791 = vsel %vm983, %v10777, %v10790
    %v10792 = vsel %vm151, %v10784, 0
    %v10794 = vsel %vm151, %v10791, 0
    %10796 = vmatpush.msra.mxu0 0.0
    %10797 = vmatpush.msra.mxu0 0.0
    %10798 = vmatpush.msra.mxu0 0.0
    %10799 = vmatpush.msra.mxu0 0.0
    %10800 = vmatpush.msra.mxu0 0.0
    %10801 = vmatpush.msra.mxu0 0.0
    %10802 = vmatpush.msra.mxu0 0.0
    %10803 = vmatpush.msra.mxu0 0.0
    %10804 = vmatpush.msra.mxu0 0.0
    %10805 = vmatpush.msra.mxu0 0.0
    %10806 = vmatpush.msra.mxu0 0.0
    %10807 = vmatpush.msra.mxu0 0.0
    %10808 = vmatpush.msra.mxu0 0.0
    %10809 = vmatpush.msra.mxu0 0.0
    %10810 = vmatpush.msra.mxu0 %v9631
    %10811 = vmatpush.msra.mxu0 %v9628
    %10812 = vmatmul.f32.gmra.mxu0 %v10792
    %v10813 = vpop.f32.mrf.mxu0
    %v10814 = vadd.f32 %v10600, %v10813
    %10815 = vmatmul.f32.gmra.mxu0 %v10794
    %v10816 = vpop.f32.mrf.mxu0
    %v10817 = vadd.f32 %v10600, %v10816
    %10818 = vdwg.mxu0
    %10819 = vst.msk [vmem:[%s65] sm:$0xff] %vm420, %v10814
    %10820 = vst.msk [vmem:[%s65 + $0x8] sm:$0xff] %vm420, %v10817
    %v10821 = vld [vmem:[%s41] sm:$0xff]
    %v10822 = vld [vmem:[%s43] sm:$0x1]
    %v10824 = vperm.slane %v10822, 0
    %v10827 = vsel %vm420, %v10814, 0
    %v10830 = vsel %vm420, %v10817, 0
    %10832 = vmatpush.msra.mxu0 0.0
    %10833 = vmatpush.msra.mxu0 0.0
    %10834 = vmatpush.msra.mxu0 0.0
    %10835 = vmatpush.msra.mxu0 0.0
    %10836 = vmatpush.msra.mxu0 0.0
    %10837 = vmatpush.msra.mxu0 0.0
    %10838 = vmatpush.msra.mxu0 0.0
    %10839 = vmatpush.msra.mxu0 0.0
    %10840 = vmatpush.msra.mxu0 0.0
    %10841 = vmatpush.msra.mxu0 0.0
    %10842 = vmatpush.msra.mxu0 0.0
    %10843 = vmatpush.msra.mxu0 0.0
    %10844 = vmatpush.msra.mxu0 0.0
    %10845 = vmatpush.msra.mxu0 0.0
    %10846 = vmatpush.msra.mxu0 0.0
    %10847 = vmatpush.msra.mxu0 %v10821
    %10848 = vmatmul.f32.gmra.mxu0 %v10827
    %v10849 = vpop.f32.mrf.mxu0
    %v10850 = vadd.f32 %v10824, %v10849
    %10851 = vmatmul.f32.gmra.mxu0 %v10830
    %v10852 = vpop.f32.mrf.mxu0
    %v10853 = vadd.f32 %v10824, %v10852
    %10854 = vdwg.mxu0
    %v10855 = vadd.f32 %v10850, %v10853
    %v10856 = vrot.slane %v10855, 4
    %v10857 = vadd.f32 %v10855, %v10856
    %v10858 = vrot.slane %v10857, 2
    %v10859 = vadd.f32 %v10857, %v10858
    %v10860 = vrot.slane %v10859, 1
    %v10861 = vadd.f32 %v10859, %v10860
    %v10862 = vrcp.pop 16.0
    %v10863 = vmul.f32 16.0, %v10862
    %v10864 = vsub.f32 1.0, %v10863
    %v10865 = vmul.f32 %v10862, %v10864
    %v10866 = vadd.f32 %v10862, %v10865
    %vm10867 = vweird.f32 %v10862
    %v10868 = vsel %vm10867, %v10862, %v10866
    %v10869 = vmul.f32 %v10861, %v10868
    %v10870 = vsub.f32 %v10850, %v10869
    %v10871 = vsub.f32 %v10853, %v10869
    %v10872 = vmul.f32 %v10870, %v10870
    %v10873 = vmul.f32 %v10871, %v10871
    %v10874 = vadd.f32 %v10872, %v10873
    %v10875 = vrot.slane %v10874, 4
    %v10876 = vadd.f32 %v10874, %v10875
    %v10877 = vrot.slane %v10876, 2
    %v10878 = vadd.f32 %v10876, %v10877
    %v10879 = vrot.slane %v10878, 1
    %v10880 = vadd.f32 %v10878, %v10879
    %v10881 = vmul.f32 %v10880, %v10868
    %v10882 = vadd.f32 %v10881, 1e-05
    %v10883 = vrsqrt.pop %v10882
    %v10884 = vmul.f32 %v10883, %v10882
    %v10885 = vmul.f32 %v10884, %v10883
    %v10886 = vmul.f32 0.5, %v10885
    %v10887 = vsub.f32 1.5, %v10886
    %v10888 = vmul.f32 %v10883, %v10887
    %vm10889 = vweird.f32 %v10882
    %vm10890 = vweird.f32 %v10883
    %vm10891 = vmor %vm10889, %vm10890
    %v10892 = vsel %vm10891, %v10883, %v10888
    %v10893 = vmul.f32 %v10870, %v10892
    %v10894 = vmul.f32 %v10871, %v10892
    %v10895 = vld [vmem:[%s45] sm:$0x1]
    %v10897 = vperm.slane %v10895, 0
    %v10899 = vmul.f32 %v10893, %v10897
    %v10900 = vmul.f32 %v10894, %v10897
    %v10901 = vld [vmem:[%s47] sm:$0x1]
    %v10903 = vperm.slane %v10901, 0
    %v10905 = vadd.f32 %v10899, %v10903
    %v10906 = vadd.f32 %v10900, %v10903
    %v10907 = vmax.f32 %v10905, 0.0
    %v10908 = vmax.f32 %v10906, 0.0
    %v10909 = vld [vmem:[%s49] sm:$0xff]
    %v10910 = vld [vmem:[%s49 + $0x8] sm:$0xff]
    %v10911 = vld [vmem:[%s49 + $0x10] sm:$0xff]
    %v10912 = vld [vmem:[%s49 + $0x18] sm:$0xff]
    %v10913 = vld [vmem:[%s49 + $0x20] sm:$0xff]
    %v10914 = vld [vmem:[%s49 + $0x28] sm:$0xff]
    %v10915 = vld [vmem:[%s49 + $0x30] sm:$0xff]
    %v10916 = vld [vmem:[%s49 + $0x38] sm:$0xff]
    %v10917 = vld [vmem:[%s49 + $0x40] sm:$0xff]
    %v10918 = vld [vmem:[%s49 + $0x48] sm:$0xff]
    %v10919 = vld [vmem:[%s49 + $0x50] sm:$0xff]
    %v10920 = vld [vmem:[%s49 + $0x58] sm:$0xff]
    %v10921 = vld [vmem:[%s49 + $0x60] sm:$0xff]
    %v10922 = vld [vmem:[%s49 + $0x68] sm:$0xff]
    %v10923 = vld [vmem:[%s49 + $0x70] sm:$0xff]
    %v10924 = vld [vmem:[%s49 + $0x78] sm:$0xff]
    %v10925 = vld [vmem:[%s51] sm:$0x1]
    %v10927 = vperm.slane %v10925, 0
    %10929 = vmatpush.msra.mxu0 %v10924
    %10930 = vmatpush.msra.mxu0 %v10923
    %10931 = vmatpush.msra.mxu0 %v10922
    %10932 = vmatpush.msra.mxu0 %v10921
    %10933 = vmatpush.msra.mxu0 %v10920
    %10934 = vmatpush.msra.mxu0 %v10919
    %10935 = vmatpush.msra.mxu0 %v10918
    %10936 = vmatpush.msra.mxu0 %v10917
    %10937 = vmatpush.msra.mxu0 %v10916
    %10938 = vmatpush.msra.mxu0 %v10915
    %10939 = vmatpush.msra.mxu0 %v10914
    %10940 = vmatpush.msra.mxu0 %v10913
    %10941 = vmatpush.msra.mxu0 %v10912
    %10942 = vmatpush.msra.mxu0 %v10911
    %10943 = vmatpush.msra.mxu0 %v10910
    %10944 = vmatpush.msra.mxu0 %v10909
    %10945 = vmatmul.f32.gmra.mxu0 %v10907
    %v10946 = vpop.f32.mrf.mxu0
    %v10947 = vadd.f32 %v10927, %v10946
    %10948 = vmatmul.f32.gmra.mxu0 %v10908
    %v10949 = vpop.f32.mrf.mxu0
    %v10950 = vadd.f32 %v10927, %v10949
    %10951 = vdwg.mxu0
    %vm10952 = vcmask 523264
    %v10953 = vsel %vm10952, %v10947, 0.0
    %v10954 = vsel %vm10952, %v10950, 0.0
    %v10955 = vadd.f32 %v10953, %v10954
    %v10956 = vrot.slane %v10955, 4
    %v10957 = vadd.f32 %v10955, %v10956
    %v10958 = vrot.slane %v10957, 2
    %v10959 = vadd.f32 %v10957, %v10958
    %v10960 = vrot.slane %v10959, 1
    %v10961 = vadd.f32 %v10959, %v10960
    %v10962 = vmul.f32 %v10961, %v10868
    %v10963 = vsub.f32 %v10947, %v10962
    %v10964 = vsub.f32 %v10950, %v10962
    %v10965 = vmul.f32 %v10963, %v10963
    %v10966 = vmul.f32 %v10964, %v10964
    %v10967 = vsel %vm10952, %v10965, 0.0
    %v10968 = vsel %vm10952, %v10966, 0.0
    %v10969 = vadd.f32 %v10967, %v10968
    %v10970 = vrot.slane %v10969, 4
    %v10971 = vadd.f32 %v10969, %v10970
    %v10972 = vrot.slane %v10971, 2
    %v10973 = vadd.f32 %v10971, %v10972
    %v10974 = vrot.slane %v10973, 1
    %v10975 = vadd.f32 %v10973, %v10974
    %v10976 = vmul.f32 %v10975, %v10868
    %v10977 = vadd.f32 %v10976, 1e-05
    %v10978 = vrsqrt.pop %v10977
    %v10979 = vmul.f32 %v10978, %v10977
    %v10980 = vmul.f32 %v10979, %v10978
    %v10981 = vmul.f32 0.5, %v10980
    %v10982 = vsub.f32 1.5, %v10981
    %v10983 = vmul.f32 %v10978, %v10982
    %vm10984 = vweird.f32 %v10977
    %vm10985 = vweird.f32 %v10978
    %vm10986 = vmor %vm10984, %vm10985
    %v10987 = vsel %vm10986, %v10978, %v10983
    %v10988 = vmul.f32 %v10963, %v10987
    %v10989 = vmul.f32 %v10964, %v10987
    %v10990 = vld [vmem:[%s53] sm:$0x1]
    %v10992 = vperm.slane %v10990, 0
    %v10994 = vmul.f32 %v10988, %v10992
    %v10995 = vmul.f32 %v10989, %v10992
    %v10996 = vld [vmem:[%s55] sm:$0x1]
    %v10998 = vperm.slane %v10996, 0
    %v11000 = vadd.f32 %v10994, %v10998
    %v11001 = vadd.f32 %v10995, %v10998
    %v11002 = vmax.f32 %v11000, 0.0
    %v11003 = vmax.f32 %v11001, 0.0
    %v11004 = vld [vmem:[%s57] sm:$0xff]
    %v11005 = vld [vmem:[%s57 + $0x8] sm:$0xff]
    %v11006 = vld [vmem:[%s57 + $0x10] sm:$0xff]
    %v11007 = vld [vmem:[%s57 + $0x18] sm:$0xff]
    %v11008 = vld [vmem:[%s57 + $0x20] sm:$0xff]
    %v11009 = vld [vmem:[%s57 + $0x28] sm:$0xff]
    %v11010 = vld [vmem:[%s57 + $0x30] sm:$0xff]
    %v11011 = vld [vmem:[%s57 + $0x38] sm:$0xff]
    %v11012 = vld [vmem:[#allocation2] sm:$0x1]
    %v11014 = vperm.slane %v11012, 0
    %v11017 = vsel %vm10952, %v11002, 0
    %v11020 = vsel %vm10952, %v11003, 0
    %11022 = vmatpush.msra.mxu0 0.0
    %11023 = vmatpush.msra.mxu0 0.0
    %11024 = vmatpush.msra.mxu0 0.0
    %11025 = vmatpush.msra.mxu0 0.0
    %11026 = vmatpush.msra.mxu0 0.0
    %11027 = vmatpush.msra.mxu0 0.0
    %11028 = vmatpush.msra.mxu0 0.0
    %11029 = vmatpush.msra.mxu0 0.0
    %11030 = vmatpush.msra.mxu0 %v11011
    %11031 = vmatpush.msra.mxu0 %v11010
    %11032 = vmatpush.msra.mxu0 %v11009
    %11033 = vmatpush.msra.mxu0 %v11008
    %11034 = vmatpush.msra.mxu0 %v11007
    %11035 = vmatpush.msra.mxu0 %v11006
    %11036 = vmatpush.msra.mxu0 %v11005
    %11037 = vmatpush.msra.mxu0 %v11004
    %11038 = vmatmul.f32.gmra.mxu0 %v11017
    %v11039 = vpop.f32.mrf.mxu0
    %v11040 = vadd.f32 %v11014, %v11039
    %11041 = vmatmul.f32.gmra.mxu0 %v11020
    %v11042 = vpop.f32.mrf.mxu0
    %v11043 = vadd.f32 %v11014, %v11042
    %11044 = vdwg.mxu0
    %vm11045 = vcmask 7168
    %11046 = vst.msk [vmem:[%s67] sm:$0xff] %vm11045, %v11040
    %11047 = vst.msk [vmem:[%s67 + $0x8] sm:$0xff] %vm11045, %v11043
    // Predicated region
    $region122: #{tpu_custom_call.1} parent=1 // pred_check
      _
    $region123: #{tpu_custom_call.1} parent=1 // pred_check_branch
      %11049 = sbr.rel (0) target = $region125
    $region124: #{tpu_custom_call.1} parent=1 // pred_region
      %11051 = vsyncadd [#allocation4], 0
      %s11052 = sshll.u32 [#allocation3], 4
      %s11053 = int_to_ptr.vmem [resolvable:$true] %s11052
      %s11054 = sshll.u32 %s61, 4
      %s11055 = int_to_ptr.hbm [resolvable:$true] %s11054
      %11060 = dma.vmem_to_hbm [thread:$0]  %s11053, 256, %s11055, [#allocation4], 128, 128, 8
    $region125: #{tpu_custom_call.1} parent=1 // pred_fallthru
      _
    // Predicated region
    $region126: #{tpu_custom_call.1} parent=1 // pred_check
      _
    $region127: #{tpu_custom_call.1} parent=1 // pred_check_branch
      %11062 = sbr.rel (0) target = $region129
    $region128: #{tpu_custom_call.1} parent=1 // pred_region
      %11064 = vsyncadd [#allocation6], 0
      %s11065 = sshll.u32 [#allocation5], 4
      %s11066 = int_to_ptr.vmem [resolvable:$true] %s11065
      %s11067 = sshll.u32 %s63, 4
      %s11068 = int_to_ptr.hbm [resolvable:$true] %s11067
      %11073 = dma.vmem_to_hbm [thread:$0]  %s11066, 256, %s11068, [#allocation6], 128, 128, 8
    $region129: #{tpu_custom_call.1} parent=1 // pred_fallthru
      _
    // Predicated region
    $region130: #{tpu_custom_call.1} parent=1 // pred_check
      _
    $region131: #{tpu_custom_call.1} parent=1 // pred_check_branch
      %11075 = sbr.rel (0) target = $region133
    $region132: #{tpu_custom_call.1} parent=1 // pred_region
      _
    $region133: #{tpu_custom_call.1} parent=1 // pred_fallthru
      _
    // Predicated region
    $region134: #{tpu_custom_call.1} parent=1 // pred_check
      _
    $region135: #{tpu_custom_call.1} parent=1 // pred_check_branch
      %11077 = sbr.rel (0) target = $region137
    $region136: #{tpu_custom_call.1} parent=1 // pred_region
      _
    $region137: #{tpu_custom_call.1} parent=1 // pred_fallthru
      _
    // Predicated region
    $region138: #{tpu_custom_call.1} parent=1 // pred_check
      _
    $region139: #{tpu_custom_call.1} parent=1 // pred_check_branch
      %11079 = sbr.rel (0) target = $region141
    $region140: #{tpu_custom_call.1} parent=1 // pred_region
      %11081 = dma.done [#allocation4], 256
    $region141: #{tpu_custom_call.1} parent=1 // pred_fallthru
      _
    // Predicated region
    $region142: #{tpu_custom_call.1} parent=1 // pred_check
      _
    $region143: #{tpu_custom_call.1} parent=1 // pred_check_branch
      %11083 = sbr.rel (0) target = $region145
    $region144: #{tpu_custom_call.1} parent=1 // pred_region
      %11085 = dma.done [#allocation6], 256
    $region145: #{tpu_custom_call.1} parent=1 // pred_fallthru
      _
    // Predicated region
    $region146: #{tpu_custom_call.1} parent=1 // pred_check
      _
    $region147: #{tpu_custom_call.1} parent=1 // pred_check_branch
      %11087 = sbr.rel (0) target = $region149
    $region148: #{tpu_custom_call.1} parent=1 // pred_region
      _
    $region149: #{tpu_custom_call.1} parent=1 // pred_fallthru
      _
    // Predicated region
    $region150: #{tpu_custom_call.1} parent=1 // pred_check
      _
    $region151: #{tpu_custom_call.1} parent=1 // pred_check_branch
      %11089 = sbr.rel (0) target = $region153
    $region152: #{tpu_custom_call.1} parent=1 // pred_region
      _
    $region153: #{tpu_custom_call.1} parent=1 // pred_fallthru
      _
    %11090 = vsyncpa [#allocation4], 1
    %11091 = vsyncpa [#allocation6], 1

</llo_original>
